<compile_context>
chip_gen: v7x
topology: tpu7x:2x2x1
jax: 0.10.0
libtpu: 0.0.40
codegen_flags: <defaults>
</compile_context>

<pallas_src>
import functools

import jax
import jax.numpy as jnp
from jax.experimental import pallas as pl
from jax.experimental.pallas import tpu as pltpu


# ---------------------------------------------------------------------------
# Fused conv + BN + (residual) + (ReLU) kernel
# ---------------------------------------------------------------------------

def _conv_bn_kernel(x_ref, w_ref, scale_ref, shift_ref, *rest,
                    stride, ksize, Ho, Wo, apply_relu, has_res):
    """Grid = (batch, Cout-tiles, Cin-tiles).  K (Cin tiles) is the reduction.

    x_ref     : (S, 1, Hs, Ws, tk)  parity slabs of the padded input (bf16)
    w_ref     : (k, k, tk, tn)      conv weights (bf16)
    scale_ref : (1, tn)             folded BN scale (f32)
    shift_ref : (1, tn)             folded BN shift (f32)
    res_ref   : (1, M, tn)          optional residual (added pre-ReLU)
    o_ref     : (1, M, tn)          output, M = Ho*Wo
    acc_ref   : (M, tn) f32         VMEM accumulator scratch
    """
    if has_res:
        res_ref, o_ref, acc_ref = rest
    else:
        o_ref, acc_ref = rest
        res_ref = None

    kk = pl.program_id(2)

    @pl.when(kk == 0)
    def _init():
        acc_ref[...] = jnp.zeros_like(acc_ref)

    sp = min(ksize, stride)          # parities per spatial dim in the slabs
    M = Ho * Wo

    # Fold the k*k conv taps into this K step: 9 (or 1) small MXU matmuls
    # accumulated in registers, then one add into the f32 scratch.
    acc_tap = jnp.zeros(acc_ref.shape, jnp.float32)
    for di in range(ksize):
        for dj in range(ksize):
            slab = (di % stride) * sp + (dj % stride)
            oi, oj = di // stride, dj // stride
            xt = x_ref[slab, 0, oi:oi + Ho, oj:oj + Wo, :]      # (Ho, Wo, tk)
            xt = xt.reshape(M, xt.shape[-1])
            acc_tap = acc_tap + jnp.dot(xt, w_ref[di, dj],
                                        preferred_element_type=jnp.float32)
    acc_ref[...] += acc_tap

    @pl.when(kk == pl.num_programs(2) - 1)
    def _finalize():
        y = acc_ref[...] * scale_ref[...] + shift_ref[...]
        if has_res:
            y = y + res_ref[0].astype(jnp.float32)
        if apply_relu:
            y = jnp.maximum(y, 0.0)
        o_ref[0] = y.astype(o_ref.dtype)


# ---------------------------------------------------------------------------
# Plain-JAX glue: parity-split padded input (NOT im2col; ~1x bytes)
# ---------------------------------------------------------------------------

def _parity_slabs(x, stride, pad, ksize, Ho, Wo):
    """Split the padded NHWC input by spatial parity so that every conv tap is
    a non-strided shift inside the kernel.  Returns (S, N, Hs, Ws, Cin) with
    S = min(ksize, stride)**2 (1 for stride-1 and 1x1 convs, 4 for 3x3/s2)."""
    xp = jnp.pad(x, ((0, 0), (pad, pad), (pad, pad), (0, 0)))
    sp = min(ksize, stride)
    Hs = Ho + (ksize - 1) // stride
    Ws = Wo + (ksize - 1) // stride
    slabs = []
    for pi in range(sp):
        for pj in range(sp):
            sl = xp[:, pi::stride, pj::stride, :][:, :Hs, :Ws, :]
            ph, pw = Hs - sl.shape[1], Ws - sl.shape[2]
            if ph or pw:
                sl = jnp.pad(sl, ((0, 0), (0, ph), (0, pw), (0, 0)))
            slabs.append(sl)
    return jnp.stack(slabs, axis=0)


def _pick_tile(dim, cap):
    """Largest 128-multiple divisor of `dim` that is <= cap, else full dim."""
    if dim <= cap:
        return dim
    t = (cap // 128) * 128
    while t >= 128:
        if dim % t == 0:
            return t
        t -= 128
    return dim


# ---------------------------------------------------------------------------
# pallas_call wrapper
# ---------------------------------------------------------------------------

def conv_bn_act(x, w, scale, shift, *, stride, padding, relu,
                residual=None, out_dtype=jnp.bfloat16):
    """Fused conv(kxk, stride, pad, bias=False) + BN affine [+res] [+ReLU].

    x: (N,H,W,Cin) NHWC.  w: (k,k,Cin,Cout).  Returns (N,Ho,Wo,Cout)."""
    kh, kw, cin, cout = w.shape
    assert kh == kw
    N, H, W, _ = x.shape
    Ho = (H + 2 * padding - kh) // stride + 1
    Wo = (W + 2 * padding - kw) // stride + 1
    M = Ho * Wo

    xb = x.astype(jnp.bfloat16)
    wb = w.astype(jnp.bfloat16)
    slabs = _parity_slabs(xb, stride, padding, kh, Ho, Wo)
    S, _, Hs, Ws, _ = slabs.shape

    tk = _pick_tile(cin, 512)        # Cin reduction tile (K axis of the grid)
    tn = _pick_tile(cout, 256)       # lane-dense Cout tile
    kt, jt = cin // tk, cout // tn

    scale2 = scale.reshape(1, cout).astype(jnp.float32)
    shift2 = shift.reshape(1, cout).astype(jnp.float32)

    has_res = residual is not None
    args = [slabs, wb, scale2, shift2]
    in_specs = [
        pl.BlockSpec((S, 1, Hs, Ws, tk), lambda b, j, k: (0, b, 0, 0, k)),
        pl.BlockSpec((kh, kw, tk, tn), lambda b, j, k: (0, 0, k, j)),
        pl.BlockSpec((1, tn), lambda b, j, k: (0, j)),
        pl.BlockSpec((1, tn), lambda b, j, k: (0, j)),
    ]
    if has_res:
        args.append(residual.reshape(N, M, cout))
        in_specs.append(pl.BlockSpec((1, M, tn), lambda b, j, k: (b, 0, j)))

    kernel = functools.partial(
        _conv_bn_kernel, stride=stride, ksize=kh, Ho=Ho, Wo=Wo,
        apply_relu=relu, has_res=has_res)

    out = pl.pallas_call(
        kernel,
        grid=(N, jt, kt),
        in_specs=in_specs,
        out_specs=pl.BlockSpec((1, M, tn), lambda b, j, k: (b, 0, j)),
        out_shape=jax.ShapeDtypeStruct((N, M, cout), out_dtype),
        scratch_shapes=[pltpu.VMEM((M, tn), jnp.float32)],
        compiler_params=pltpu.CompilerParams(
            dimension_semantics=("parallel", "parallel", "arbitrary")),
    )(*args)
    return out.reshape(N, Ho, Wo, cout)


# ---------------------------------------------------------------------------
# ResidualBlock forward (mirrors the PyTorch module, eval mode)
# ---------------------------------------------------------------------------

def residual_block_forward(x_nchw, p):
    """x_nchw: (N, Cin, H, W) like PyTorch.  Returns (N, Cout, Ho, Wo) f32."""
    x = jnp.transpose(x_nchw, (0, 2, 3, 1)).astype(jnp.bfloat16)   # NHWC
    stride = p['stride']

    if 'wd' in p:    # downsample = 1x1 conv (stride) + BN, no ReLU
        identity = conv_bn_act(x, p['wd'], p['sd'], p['bd'], stride=stride,
                               padding=0, relu=False, out_dtype=jnp.bfloat16)
    else:
        identity = x

    h = conv_bn_act(x, p['w1'], p['s1'], p['b1'], stride=stride, padding=1,
                    relu=True, out_dtype=jnp.bfloat16)
    # conv2 + bn2 + residual add + final ReLU fused into a single kernel
    out = conv_bn_act(h, p['w2'], p['s2'], p['b2'], stride=1, padding=1,
                      relu=True, residual=identity, out_dtype=jnp.float32)
    return jnp.transpose(out, (0, 3, 1, 2))                         # NCHW


# ---------------------------------------------------------------------------
# Parameter init (Kaiming fan_out / relu, eval-mode BN folded to scale/shift)
# ---------------------------------------------------------------------------

def init_residual_block_params(key, in_ch, out_ch, stride):
    k1, k2, kd = jax.random.split(key, 3)

    def conv_w(k, kh, kw, cin, cout):
        std = (2.0 / (cout * kh * kw)) ** 0.5
        return jax.random.normal(k, (kh, kw, cin, cout), jnp.float32) * std

    def bn(c):
        gamma = jnp.ones((c,), jnp.float32)
        beta = jnp.zeros((c,), jnp.float32)
        mean = jnp.zeros((c,), jnp.float32)
        var = jnp.ones((c,), jnp.float32)
        eps = 1e-5
        scale = gamma / jnp.sqrt(var + eps)
        shift = beta - mean * scale
        return scale, shift

    p = {'stride': stride, 'w1': conv_w(k1, 3, 3, in_ch, out_ch)}
    p['s1'], p['b1'] = bn(out_ch)
    p['w2'] = conv_w(k2, 3, 3, out_ch, out_ch)
    p['s2'], p['b2'] = bn(out_ch)
    if stride != 1 or in_ch != out_ch:
        p['wd'] = conv_w(kd, 1, 1, in_ch, out_ch)
        p['sd'], p['bd'] = bn(out_ch)
    return p


# ---------------------------------------------------------------------------

if __name__ == "__main__":
    key = jax.random.PRNGKey(0)
    kp1, kp2, kx = jax.random.split(key, 3)

    # ResidualBlock(64 -> 128, stride=2): exercises the 1x1-conv downsample path.
    p_down = init_residual_block_params(kp1, 64, 128, stride=2)
    # ResidualBlock(128 -> 128, stride=1): exercises the identity skip path.
    p_ident = init_residual_block_params(kp2, 128, 128, stride=1)

    # Small NCHW input (PyTorch convention).
    x = jax.random.normal(kx, (2, 64, 16, 16), jnp.float32)

    fwd = jax.jit(lambda inp: residual_block_forward(
        residual_block_forward(inp, p_down), p_ident))

    out = jax.block_until_ready(fwd(x))
    assert out.shape == (2, 128, 8, 8), out.shape
    assert bool(jnp.all(jnp.isfinite(out)))
    print("KERNEL_OK")
</pallas_src>

<mosaic_0001>
module attributes {stable_mosaic.version = 11 : i64} {
  func.func @_conv_bn_kernel(%arg0: i32, %arg1: i32, %arg2: i32, %arg3: memref<1x1x8x8x64xbf16, #tpu.memory_space<vmem>>, %arg4: memref<1x1x64x128xbf16, #tpu.memory_space<vmem>>, %arg5: memref<1x128xf32, #tpu.memory_space<vmem>>, %arg6: memref<1x128xf32, #tpu.memory_space<vmem>>, %arg7: memref<1x64x128xbf16, #tpu.memory_space<vmem>>, %arg8: memref<64x128xf32, #tpu.memory_space<vmem>>) attributes {dimension_semantics = [#tpu.dimension_semantics<parallel>, #tpu.dimension_semantics<parallel>, #tpu.dimension_semantics<arbitrary>], iteration_bounds = array<i64: 2, 1, 1>, scalar_prefetch = 0 : i64, scratch_operands = 1 : i64, tpu.core_type = #tpu.core_type<tc>, window_params = [{transform_indices = @transform_0, window_bounds = array<i64: 1, 1, 8, 8, 64>}, {transform_indices = @transform_1, window_bounds = array<i64: 1, 1, 64, 128>}, {transform_indices = @transform_2, window_bounds = array<i64: 1, 128>}, {transform_indices = @transform_3, window_bounds = array<i64: 1, 128>}, {transform_indices = @transform_4, window_bounds = array<i64: 1, 64, 128>}]} {
    %c0_i32 = arith.constant 0 : i32
    %0 = arith.cmpi eq, %arg2, %c0_i32 : i32
    %1 = arith.extui %0 : i1 to i32
    %c0_i32_0 = arith.constant 0 : i32
    %2 = arith.cmpi ne, %1, %c0_i32_0 : i32
    scf.if %2 {
      %cst_16 = arith.constant 0.000000e+00 : f32
      %17 = vector.broadcast %cst_16 : f32 to vector<64x128xf32>
      %c0_17 = arith.constant 0 : index
      %c0_18 = arith.constant 0 : index
      %18 = vector.load %arg8[%c0_17, %c0_18] : memref<64x128xf32, #tpu.memory_space<vmem>>, vector<64x128xf32>
      tpu.vector_store %arg8[%c0_17, %c0_18], %17 {strides = array<i32>} : memref<64x128xf32, #tpu.memory_space<vmem>>, vector<64x128xf32>,
    } else {
    }
    %cst = arith.constant 0.000000e+00 : f32
    %3 = vector.broadcast %cst : f32 to vector<64x128xf32>
    %c0 = arith.constant 0 : index
    %c0_1 = arith.constant 0 : index
    %c0_2 = arith.constant 0 : index
    %c0_3 = arith.constant 0 : index
    %c0_4 = arith.constant 0 : index
    %4 = vector.load %arg3[%c0, %c0_1, %c0_2, %c0_3, %c0_4] : memref<1x1x8x8x64xbf16, #tpu.memory_space<vmem>>, vector<1x1x8x8x64xbf16>
    %5 = vector.shape_cast %4 : vector<1x1x8x8x64xbf16> to vector<8x8x64xbf16>
    %6 = vector.shape_cast %5 : vector<8x8x64xbf16> to vector<64x64xbf16>
    %c0_5 = arith.constant 0 : index
    %c0_6 = arith.constant 0 : index
    %c0_7 = arith.constant 0 : index
    %c0_8 = arith.constant 0 : index
    %7 = vector.load %arg4[%c0_5, %c0_6, %c0_7, %c0_8] : memref<1x1x64x128xbf16, #tpu.memory_space<vmem>>, vector<1x1x64x128xbf16>
    %8 = vector.shape_cast %7 : vector<1x1x64x128xbf16> to vector<64x128xbf16>
    %cst_9 = arith.constant dense<0.000000e+00> : vector<64x128xf32>
    %9 = tpu.matmul %6, %8, %cst_9 {dimension_numbers = #tpu.dot_dimension_numbers<[1], [0], [0], [1], [0, 0, 1, 1], [], []>} : vector<64x64xbf16>, vector<64x128xbf16>, vector<64x128xf32> -> vector<64x128xf32>
    %10 = arith.addf %3, %9 : vector<64x128xf32>
    %c0_10 = arith.constant 0 : index
    %c0_11 = arith.constant 0 : index
    %11 = vector.load %arg8[%c0_10, %c0_11] : memref<64x128xf32, #tpu.memory_space<vmem>>, vector<64x128xf32>
    %12 = arith.addf %11, %10 : vector<64x128xf32>
    %c0_12 = arith.constant 0 : index
    %c0_13 = arith.constant 0 : index
    %13 = vector.load %arg8[%c0_12, %c0_13] : memref<64x128xf32, #tpu.memory_space<vmem>>, vector<64x128xf32>
    tpu.vector_store %arg8[%c0_12, %c0_13], %12 {strides = array<i32>} : memref<64x128xf32, #tpu.memory_space<vmem>>, vector<64x128xf32>,
    %c0_i32_14 = arith.constant 0 : i32
    %14 = arith.cmpi eq, %arg2, %c0_i32_14 : i32
    %15 = arith.extui %14 : i1 to i32
    %c0_i32_15 = arith.constant 0 : i32
    %16 = arith.cmpi ne, %15, %c0_i32_15 : i32
    scf.if %16 {
      %c0_16 = arith.constant 0 : index
      %c0_17 = arith.constant 0 : index
      %17 = vector.load %arg8[%c0_16, %c0_17] : memref<64x128xf32, #tpu.memory_space<vmem>>, vector<64x128xf32>
      %c0_18 = arith.constant 0 : index
      %c0_19 = arith.constant 0 : index
      %18 = vector.load %arg5[%c0_18, %c0_19] : memref<1x128xf32, #tpu.memory_space<vmem>>, vector<1x128xf32>
      %19 = vector.broadcast %18 : vector<1x128xf32> to vector<64x128xf32>
      %20 = arith.mulf %17, %19 : vector<64x128xf32>
      %c0_20 = arith.constant 0 : index
      %c0_21 = arith.constant 0 : index
      %21 = vector.load %arg6[%c0_20, %c0_21] : memref<1x128xf32, #tpu.memory_space<vmem>>, vector<1x128xf32>
      %22 = vector.broadcast %21 : vector<1x128xf32> to vector<64x128xf32>
      %23 = arith.addf %20, %22 : vector<64x128xf32>
      %24 = arith.truncf %23 : vector<64x128xf32> to vector<64x128xbf16>
      %c0_22 = arith.constant 0 : index
      %c0_23 = arith.constant 0 : index
      %c0_24 = arith.constant 0 : index
      %25 = vector.load %arg7[%c0_22, %c0_23, %c0_24] : memref<1x64x128xbf16, #tpu.memory_space<vmem>>, vector<1x64x128xbf16>
      %26 = vector.shape_cast %25 : vector<1x64x128xbf16> to vector<64x128xbf16>
      %27 = vector.shape_cast %24 : vector<64x128xbf16> to vector<1x64x128xbf16>
      tpu.vector_store %arg7[%c0_22, %c0_23, %c0_24], %27 {strides = array<i32>} : memref<1x64x128xbf16, #tpu.memory_space<vmem>>, vector<1x64x128xbf16>,
    } else {
    }
    return
  }
  func.func @transform_0(%arg0: i32, %arg1: i32, %arg2: i32) -> (i32, i32, i32, i32, i32) {
    %c0_i32 = arith.constant 0 : i32
    %c0_i32_0 = arith.constant 0 : i32
    %c0_i32_1 = arith.constant 0 : i32
    %c0_i32_2 = arith.constant 0 : i32
    return %c0_i32, %arg0, %c0_i32_0, %c0_i32_1, %arg2 : i32, i32, i32, i32, i32
  }
  func.func @transform_1(%arg0: i32, %arg1: i32, %arg2: i32) -> (i32, i32, i32, i32) {
    %c0_i32 = arith.constant 0 : i32
    %c0_i32_0 = arith.constant 0 : i32
    %c0_i32_1 = arith.constant 0 : i32
    return %c0_i32, %c0_i32_0, %arg2, %arg1 : i32, i32, i32, i32
  }
  func.func @transform_2(%arg0: i32, %arg1: i32, %arg2: i32) -> (i32, i32) {
    %c0_i32 = arith.constant 0 : i32
    %c0_i32_0 = arith.constant 0 : i32
    return %c0_i32, %arg1 : i32, i32
  }
  func.func @transform_3(%arg0: i32, %arg1: i32, %arg2: i32) -> (i32, i32) {
    %c0_i32 = arith.constant 0 : i32
    %c0_i32_0 = arith.constant 0 : i32
    return %c0_i32, %arg1 : i32, i32
  }
  func.func @transform_4(%arg0: i32, %arg1: i32, %arg2: i32) -> (i32, i32, i32) {
    %c0_i32 = arith.constant 0 : i32
    %c0_i32_0 = arith.constant 0 : i32
    return %arg0, %c0_i32, %arg1 : i32, i32, i32
  }
}

module attributes {stable_mosaic.version = 11 : i64} {
  func.func @_conv_bn_kernel(%arg0: i32, %arg1: i32, %arg2: i32, %arg3: memref<4x1x9x9x64xbf16, #tpu.memory_space<vmem>>, %arg4: memref<3x3x64x128xbf16, #tpu.memory_space<vmem>>, %arg5: memref<1x128xf32, #tpu.memory_space<vmem>>, %arg6: memref<1x128xf32, #tpu.memory_space<vmem>>, %arg7: memref<1x64x128xbf16, #tpu.memory_space<vmem>>, %arg8: memref<64x128xf32, #tpu.memory_space<vmem>>) attributes {dimension_semantics = [#tpu.dimension_semantics<parallel>, #tpu.dimension_semantics<parallel>, #tpu.dimension_semantics<arbitrary>], iteration_bounds = array<i64: 2, 1, 1>, scalar_prefetch = 0 : i64, scratch_operands = 1 : i64, tpu.core_type = #tpu.core_type<tc>, window_params = [{transform_indices = @transform_0, window_bounds = array<i64: 4, 1, 9, 9, 64>}, {transform_indices = @transform_1, window_bounds = array<i64: 3, 3, 64, 128>}, {transform_indices = @transform_2, window_bounds = array<i64: 1, 128>}, {transform_indices = @transform_3, window_bounds = array<i64: 1, 128>}, {transform_indices = @transform_4, window_bounds = array<i64: 1, 64, 128>}]} {
    %c0_i32 = arith.constant 0 : i32
    %0 = arith.cmpi eq, %arg2, %c0_i32 : i32
    %1 = arith.extui %0 : i1 to i32
    %c0_i32_0 = arith.constant 0 : i32
    %2 = arith.cmpi ne, %1, %c0_i32_0 : i32
    scf.if %2 {
      %cst_93 = arith.constant 0.000000e+00 : f32
      %73 = vector.broadcast %cst_93 : f32 to vector<64x128xf32>
      %c0_94 = arith.constant 0 : index
      %c0_95 = arith.constant 0 : index
      %74 = vector.load %arg8[%c0_94, %c0_95] : memref<64x128xf32, #tpu.memory_space<vmem>>, vector<64x128xf32>
      tpu.vector_store %arg8[%c0_94, %c0_95], %73 {strides = array<i32>} : memref<64x128xf32, #tpu.memory_space<vmem>>, vector<64x128xf32>,
    } else {
    }
    %cst = arith.constant 0.000000e+00 : f32
    %3 = vector.broadcast %cst : f32 to vector<64x128xf32>
    %c0 = arith.constant 0 : index
    %c0_1 = arith.constant 0 : index
    %c0_2 = arith.constant 0 : index
    %c0_3 = arith.constant 0 : index
    %c0_4 = arith.constant 0 : index
    %4 = vector.load %arg3[%c0, %c0_1, %c0_2, %c0_3, %c0_4] : memref<4x1x9x9x64xbf16, #tpu.memory_space<vmem>>, vector<1x1x8x8x64xbf16>
    %5 = vector.shape_cast %4 : vector<1x1x8x8x64xbf16> to vector<8x8x64xbf16>
    %6 = vector.shape_cast %5 : vector<8x8x64xbf16> to vector<64x64xbf16>
    %c0_5 = arith.constant 0 : index
    %c0_6 = arith.constant 0 : index
    %c0_7 = arith.constant 0 : index
    %c0_8 = arith.constant 0 : index
    %7 = vector.load %arg4[%c0_5, %c0_6, %c0_7, %c0_8] : memref<3x3x64x128xbf16, #tpu.memory_space<vmem>>, vector<1x1x64x128xbf16>
    %8 = vector.shape_cast %7 : vector<1x1x64x128xbf16> to vector<64x128xbf16>
    %cst_9 = arith.constant dense<0.000000e+00> : vector<64x128xf32>
    %9 = tpu.matmul %6, %8, %cst_9 {dimension_numbers = #tpu.dot_dimension_numbers<[1], [0], [0], [1], [0, 0, 1, 1], [], []>} : vector<64x64xbf16>, vector<64x128xbf16>, vector<64x128xf32> -> vector<64x128xf32>
    %10 = arith.addf %3, %9 : vector<64x128xf32>
    %c1 = arith.constant 1 : index
    %c0_10 = arith.constant 0 : index
    %c0_11 = arith.constant 0 : index
    %c0_12 = arith.constant 0 : index
    %c0_13 = arith.constant 0 : index
    %11 = vector.load %arg3[%c1, %c0_10, %c0_11, %c0_12, %c0_13] : memref<4x1x9x9x64xbf16, #tpu.memory_space<vmem>>, vector<1x1x8x8x64xbf16>
    %12 = vector.shape_cast %11 : vector<1x1x8x8x64xbf16> to vector<8x8x64xbf16>
    %13 = vector.shape_cast %12 : vector<8x8x64xbf16> to vector<64x64xbf16>
    %c0_14 = arith.constant 0 : index
    %c1_15 = arith.constant 1 : index
    %c0_16 = arith.constant 0 : index
    %c0_17 = arith.constant 0 : index
    %14 = vector.load %arg4[%c0_14, %c1_15, %c0_16, %c0_17] : memref<3x3x64x128xbf16, #tpu.memory_space<vmem>>, vector<1x1x64x128xbf16>
    %15 = vector.shape_cast %14 : vector<1x1x64x128xbf16> to vector<64x128xbf16>
    %cst_18 = arith.constant dense<0.000000e+00> : vector<64x128xf32>
    %16 = tpu.matmul %13, %15, %cst_18 {dimension_numbers = #tpu.dot_dimension_numbers<[1], [0], [0], [1], [0, 0, 1, 1], [], []>} : vector<64x64xbf16>, vector<64x128xbf16>, vector<64x128xf32> -> vector<64x128xf32>
    %17 = arith.addf %10, %16 : vector<64x128xf32>
    %c0_19 = arith.constant 0 : index
    %c0_20 = arith.constant 0 : index
    %c0_21 = arith.constant 0 : index
    %c1_22 = arith.constant 1 : index
    %c0_23 = arith.constant 0 : index
    %18 = vector.load %arg3[%c0_19, %c0_20, %c0_21, %c1_22, %c0_23] : memref<4x1x9x9x64xbf16, #tpu.memory_space<vmem>>, vector<1x1x8x8x64xbf16>
    %19 = vector.shape_cast %18 : vector<1x1x8x8x64xbf16> to vector<8x8x64xbf16>
    %20 = vector.shape_cast %19 : vector<8x8x64xbf16> to vector<64x64xbf16>
    %c0_24 = arith.constant 0 : index
    %c2 = arith.constant 2 : index
    %c0_25 = arith.constant 0 : index
    %c0_26 = arith.constant 0 : index
    %21 = vector.load %arg4[%c0_24, %c2, %c0_25, %c0_26] : memref<3x3x64x128xbf16, #tpu.memory_space<vmem>>, vector<1x1x64x128xbf16>
    %22 = vector.shape_cast %21 : vector<1x1x64x128xbf16> to vector<64x128xbf16>
    %cst_27 = arith.constant dense<0.000000e+00> : vector<64x128xf32>
    %23 = tpu.matmul %20, %22, %cst_27 {dimension_numbers = #tpu.dot_dimension_numbers<[1], [0], [0], [1], [0, 0, 1, 1], [], []>} : vector<64x64xbf16>, vector<64x128xbf16>, vector<64x128xf32> -> vector<64x128xf32>
    %24 = arith.addf %17, %23 : vector<64x128xf32>
    %c2_28 = arith.constant 2 : index
    %c0_29 = arith.constant 0 : index
    %c0_30 = arith.constant 0 : index
    %c0_31 = arith.constant 0 : index
    %c0_32 = arith.constant 0 : index
    %25 = vector.load %arg3[%c2_28, %c0_29, %c0_30, %c0_31, %c0_32] : memref<4x1x9x9x64xbf16, #tpu.memory_space<vmem>>, vector<1x1x8x8x64xbf16>
    %26 = vector.shape_cast %25 : vector<1x1x8x8x64xbf16> to vector<8x8x64xbf16>
    %27 = vector.shape_cast %26 : vector<8x8x64xbf16> to vector<64x64xbf16>
    %c1_33 = arith.constant 1 : index
    %c0_34 = arith.constant 0 : index
    %c0_35 = arith.constant 0 : index
    %c0_36 = arith.constant 0 : index
    %28 = vector.load %arg4[%c1_33, %c0_34, %c0_35, %c0_36] : memref<3x3x64x128xbf16, #tpu.memory_space<vmem>>, vector<1x1x64x128xbf16>
    %29 = vector.shape_cast %28 : vector<1x1x64x128xbf16> to vector<64x128xbf16>
    %cst_37 = arith.constant dense<0.000000e+00> : vector<64x128xf32>
    %30 = tpu.matmul %27, %29, %cst_37 {dimension_numbers = #tpu.dot_dimension_numbers<[1], [0], [0], [1], [0, 0, 1, 1], [], []>} : vector<64x64xbf16>, vector<64x128xbf16>, vector<64x128xf32> -> vector<64x128xf32>
    %31 = arith.addf %24, %30 : vector<64x128xf32>
    %c3 = arith.constant 3 : index
    %c0_38 = arith.constant 0 : index
    %c0_39 = arith.constant 0 : index
    %c0_40 = arith.constant 0 : index
    %c0_41 = arith.constant 0 : index
    %32 = vector.load %arg3[%c3, %c0_38, %c0_39, %c0_40, %c0_41] : memref<4x1x9x9x64xbf16, #tpu.memory_space<vmem>>, vector<1x1x8x8x64xbf16>
    %33 = vector.shape_cast %32 : vector<1x1x8x8x64xbf16> to vector<8x8x64xbf16>
    %34 = vector.shape_cast %33 : vector<8x8x64xbf16> to vector<64x64xbf16>
    %c1_42 = arith.constant 1 : index
    %c1_43 = arith.constant 1 : index
    %c0_44 = arith.constant 0 : index
    %c0_45 = arith.constant 0 : index
    %35 = vector.load %arg4[%c1_42, %c1_43, %c0_44, %c0_45] : memref<3x3x64x128xbf16, #tpu.memory_space<vmem>>, vector<1x1x64x128xbf16>
    %36 = vector.shape_cast %35 : vector<1x1x64x128xbf16> to vector<64x128xbf16>
    %cst_46 = arith.constant dense<0.000000e+00> : vector<64x128xf32>
    %37 = tpu.matmul %34, %36, %cst_46 {dimension_numbers = #tpu.dot_dimension_numbers<[1], [0], [0], [1], [0, 0, 1, 1], [], []>} : vector<64x64xbf16>, vector<64x128xbf16>, vector<64x128xf32> -> vector<64x128xf32>
    %38 = arith.addf %31, %37 : vector<64x128xf32>
    %c2_47 = arith.constant 2 : index
    %c0_48 = arith.constant 0 : index
    %c0_49 = arith.constant 0 : index
    %c1_50 = arith.constant 1 : index
    %c0_51 = arith.constant 0 : index
    %39 = vector.load %arg3[%c2_47, %c0_48, %c0_49, %c1_50, %c0_51] : memref<4x1x9x9x64xbf16, #tpu.memory_space<vmem>>, vector<1x1x8x8x64xbf16>
    %40 = vector.shape_cast %39 : vector<1x1x8x8x64xbf16> to vector<8x8x64xbf16>
    %41 = vector.shape_cast %40 : vector<8x8x64xbf16> to vector<64x64xbf16>
    %c1_52 = arith.constant 1 : index
    %c2_53 = arith.constant 2 : index
    %c0_54 = arith.constant 0 : index
    %c0_55 = arith.constant 0 : index
    %42 = vector.load %arg4[%c1_52, %c2_53, %c0_54, %c0_55] : memref<3x3x64x128xbf16, #tpu.memory_space<vmem>>, vector<1x1x64x128xbf16>
    %43 = vector.shape_cast %42 : vector<1x1x64x128xbf16> to vector<64x128xbf16>
    %cst_56 = arith.constant dense<0.000000e+00> : vector<64x128xf32>
    %44 = tpu.matmul %41, %43, %cst_56 {dimension_numbers = #tpu.dot_dimension_numbers<[1], [0], [0], [1], [0, 0, 1, 1], [], []>} : vector<64x64xbf16>, vector<64x128xbf16>, vector<64x128xf32> -> vector<64x128xf32>
    %45 = arith.addf %38, %44 : vector<64x128xf32>
    %c0_57 = arith.constant 0 : index
    %c0_58 = arith.constant 0 : index
    %c1_59 = arith.constant 1 : index
    %c0_60 = arith.constant 0 : index
    %c0_61 = arith.constant 0 : index
    %46 = vector.load %arg3[%c0_57, %c0_58, %c1_59, %c0_60, %c0_61] : memref<4x1x9x9x64xbf16, #tpu.memory_space<vmem>>, vector<1x1x8x8x64xbf16>
    %47 = vector.shape_cast %46 : vector<1x1x8x8x64xbf16> to vector<8x8x64xbf16>
    %48 = vector.shape_cast %47 : vector<8x8x64xbf16> to vector<64x64xbf16>
    %c2_62 = arith.constant 2 : index
    %c0_63 = arith.constant 0 : index
    %c0_64 = arith.constant 0 : index
    %c0_65 = arith.constant 0 : index
    %49 = vector.load %arg4[%c2_62, %c0_63, %c0_64, %c0_65] : memref<3x3x64x128xbf16, #tpu.memory_space<vmem>>, vector<1x1x64x128xbf16>
    %50 = vector.shape_cast %49 : vector<1x1x64x128xbf16> to vector<64x128xbf16>
    %cst_66 = arith.constant dense<0.000000e+00> : vector<64x128xf32>
    %51 = tpu.matmul %48, %50, %cst_66 {dimension_numbers = #tpu.dot_dimension_numbers<[1], [0], [0], [1], [0, 0, 1, 1], [], []>} : vector<64x64xbf16>, vector<64x128xbf16>, vector<64x128xf32> -> vector<64x128xf32>
    %52 = arith.addf %45, %51 : vector<64x128xf32>
    %c1_67 = arith.constant 1 : index
    %c0_68 = arith.constant 0 : index
    %c1_69 = arith.constant 1 : index
    %c0_70 = arith.constant 0 : index
    %c0_71 = arith.constant 0 : index
    %53 = vector.load %arg3[%c1_67, %c0_68, %c1_69, %c0_70, %c0_71] : memref<4x1x9x9x64xbf16, #tpu.memory_space<vmem>>, vector<1x1x8x8x64xbf16>
    %54 = vector.shape_cast %53 : vector<1x1x8x8x64xbf16> to vector<8x8x64xbf16>
    %55 = vector.shape_cast %54 : vector<8x8x64xbf16> to vector<64x64xbf16>
    %c2_72 = arith.constant 2 : index
    %c1_73 = arith.constant 1 : index
    %c0_74 = arith.constant 0 : index
    %c0_75 = arith.constant 0 : index
    %56 = vector.load %arg4[%c2_72, %c1_73, %c0_74, %c0_75] : memref<3x3x64x128xbf16, #tpu.memory_space<vmem>>, vector<1x1x64x128xbf16>
    %57 = vector.shape_cast %56 : vector<1x1x64x128xbf16> to vector<64x128xbf16>
    %cst_76 = arith.constant dense<0.000000e+00> : vector<64x128xf32>
    %58 = tpu.matmul %55, %57, %cst_76 {dimension_numbers = #tpu.dot_dimension_numbers<[1], [0], [0], [1], [0, 0, 1, 1], [], []>} : vector<64x64xbf16>, vector<64x128xbf16>, vector<64x128xf32> -> vector<64x128xf32>
    %59 = arith.addf %52, %58 : vector<64x128xf32>
    %c0_77 = arith.constant 0 : index
    %c0_78 = arith.constant 0 : index
    %c1_79 = arith.constant 1 : index
    %c1_80 = arith.constant 1 : index
    %c0_81 = arith.constant 0 : index
    %60 = vector.load %arg3[%c0_77, %c0_78, %c1_79, %c1_80, %c0_81] : memref<4x1x9x9x64xbf16, #tpu.memory_space<vmem>>, vector<1x1x8x8x64xbf16>
    %61 = vector.shape_cast %60 : vector<1x1x8x8x64xbf16> to vector<8x8x64xbf16>
    %62 = vector.shape_cast %61 : vector<8x8x64xbf16> to vector<64x64xbf16>
    %c2_82 = arith.constant 2 : index
    %c2_83 = arith.constant 2 : index
    %c0_84 = arith.constant 0 : index
    %c0_85 = arith.constant 0 : index
    %63 = vector.load %arg4[%c2_82, %c2_83, %c0_84, %c0_85] : memref<3x3x64x128xbf16, #tpu.memory_space<vmem>>, vector<1x1x64x128xbf16>
    %64 = vector.shape_cast %63 : vector<1x1x64x128xbf16> to vector<64x128xbf16>
    %cst_86 = arith.constant dense<0.000000e+00> : vector<64x128xf32>
    %65 = tpu.matmul %62, %64, %cst_86 {dimension_numbers = #tpu.dot_dimension_numbers<[1], [0], [0], [1], [0, 0, 1, 1], [], []>} : vector<64x64xbf16>, vector<64x128xbf16>, vector<64x128xf32> -> vector<64x128xf32>
    %66 = arith.addf %59, %65 : vector<64x128xf32>
    %c0_87 = arith.constant 0 : index
    %c0_88 = arith.constant 0 : index
    %67 = vector.load %arg8[%c0_87, %c0_88] : memref<64x128xf32, #tpu.memory_space<vmem>>, vector<64x128xf32>
    %68 = arith.addf %67, %66 : vector<64x128xf32>
    %c0_89 = arith.constant 0 : index
    %c0_90 = arith.constant 0 : index
    %69 = vector.load %arg8[%c0_89, %c0_90] : memref<64x128xf32, #tpu.memory_space<vmem>>, vector<64x128xf32>
    tpu.vector_store %arg8[%c0_89, %c0_90], %68 {strides = array<i32>} : memref<64x128xf32, #tpu.memory_space<vmem>>, vector<64x128xf32>,
    %c0_i32_91 = arith.constant 0 : i32
    %70 = arith.cmpi eq, %arg2, %c0_i32_91 : i32
    %71 = arith.extui %70 : i1 to i32
    %c0_i32_92 = arith.constant 0 : i32
    %72 = arith.cmpi ne, %71, %c0_i32_92 : i32
    scf.if %72 {
      %c0_93 = arith.constant 0 : index
      %c0_94 = arith.constant 0 : index
      %73 = vector.load %arg8[%c0_93, %c0_94] : memref<64x128xf32, #tpu.memory_space<vmem>>, vector<64x128xf32>
      %c0_95 = arith.constant 0 : index
      %c0_96 = arith.constant 0 : index
      %74 = vector.load %arg5[%c0_95, %c0_96] : memref<1x128xf32, #tpu.memory_space<vmem>>, vector<1x128xf32>
      %75 = vector.broadcast %74 : vector<1x128xf32> to vector<64x128xf32>
      %76 = arith.mulf %73, %75 : vector<64x128xf32>
      %c0_97 = arith.constant 0 : index
      %c0_98 = arith.constant 0 : index
      %77 = vector.load %arg6[%c0_97, %c0_98] : memref<1x128xf32, #tpu.memory_space<vmem>>, vector<1x128xf32>
      %78 = vector.broadcast %77 : vector<1x128xf32> to vector<64x128xf32>
      %79 = arith.addf %76, %78 : vector<64x128xf32>
      %cst_99 = arith.constant 0.000000e+00 : f32
      %80 = vector.broadcast %cst_99 : f32 to vector<64x128xf32>
      %81 = arith.maximumf %79, %80 : vector<64x128xf32>
      %82 = arith.truncf %81 : vector<64x128xf32> to vector<64x128xbf16>
      %c0_100 = arith.constant 0 : index
      %c0_101 = arith.constant 0 : index
      %c0_102 = arith.constant 0 : index
      %83 = vector.load %arg7[%c0_100, %c0_101, %c0_102] : memref<1x64x128xbf16, #tpu.memory_space<vmem>>, vector<1x64x128xbf16>
      %84 = vector.shape_cast %83 : vector<1x64x128xbf16> to vector<64x128xbf16>
      %85 = vector.shape_cast %82 : vector<64x128xbf16> to vector<1x64x128xbf16>
      tpu.vector_store %arg7[%c0_100, %c0_101, %c0_102], %85 {strides = array<i32>} : memref<1x64x128xbf16, #tpu.memory_space<vmem>>, vector<1x64x128xbf16>,
    } else {
    }
    return
  }
  func.func @transform_0(%arg0: i32, %arg1: i32, %arg2: i32) -> (i32, i32, i32, i32, i32) {
    %c0_i32 = arith.constant 0 : i32
    %c0_i32_0 = arith.constant 0 : i32
    %c0_i32_1 = arith.constant 0 : i32
    %c0_i32_2 = arith.constant 0 : i32
    return %c0_i32, %arg0, %c0_i32_0, %c0_i32_1, %arg2 : i32, i32, i32, i32, i32
  }
  func.func @transform_1(%arg0: i32, %arg1: i32, %arg2: i32) -> (i32, i32, i32, i32) {
    %c0_i32 = arith.constant 0 : i32
    %c0_i32_0 = arith.constant 0 : i32
    %c0_i32_1 = arith.constant 0 : i32
    return %c0_i32, %c0_i32_0, %arg2, %arg1 : i32, i32, i32, i32
  }
  func.func @transform_2(%arg0: i32, %arg1: i32, %arg2: i32) -> (i32, i32) {
    %c0_i32 = arith.constant 0 : i32
    %c0_i32_0 = arith.constant 0 : i32
    return %c0_i32, %arg1 : i32, i32
  }
  func.func @transform_3(%arg0: i32, %arg1: i32, %arg2: i32) -> (i32, i32) {
    %c0_i32 = arith.constant 0 : i32
    %c0_i32_0 = arith.constant 0 : i32
    return %c0_i32, %arg1 : i32, i32
  }
  func.func @transform_4(%arg0: i32, %arg1: i32, %arg2: i32) -> (i32, i32, i32) {
    %c0_i32 = arith.constant 0 : i32
    %c0_i32_0 = arith.constant 0 : i32
    return %arg0, %c0_i32, %arg1 : i32, i32, i32
  }
}

module attributes {stable_mosaic.version = 11 : i64} {
  func.func @_conv_bn_kernel(%arg0: i32, %arg1: i32, %arg2: i32, %arg3: memref<1x1x10x10x128xbf16, #tpu.memory_space<vmem>>, %arg4: memref<3x3x128x128xbf16, #tpu.memory_space<vmem>>, %arg5: memref<1x128xf32, #tpu.memory_space<vmem>>, %arg6: memref<1x128xf32, #tpu.memory_space<vmem>>, %arg7: memref<1x64x128xbf16, #tpu.memory_space<vmem>>, %arg8: memref<1x64x128xf32, #tpu.memory_space<vmem>>, %arg9: memref<64x128xf32, #tpu.memory_space<vmem>>) attributes {dimension_semantics = [#tpu.dimension_semantics<parallel>, #tpu.dimension_semantics<parallel>, #tpu.dimension_semantics<arbitrary>], iteration_bounds = array<i64: 2, 1, 1>, scalar_prefetch = 0 : i64, scratch_operands = 1 : i64, tpu.core_type = #tpu.core_type<tc>, window_params = [{transform_indices = @transform_0, window_bounds = array<i64: 1, 1, 10, 10, 128>}, {transform_indices = @transform_1, window_bounds = array<i64: 3, 3, 128, 128>}, {transform_indices = @transform_2, window_bounds = array<i64: 1, 128>}, {transform_indices = @transform_3, window_bounds = array<i64: 1, 128>}, {transform_indices = @transform_4, window_bounds = array<i64: 1, 64, 128>}, {transform_indices = @transform_5, window_bounds = array<i64: 1, 64, 128>}]} {
    %c0_i32 = arith.constant 0 : i32
    %0 = arith.cmpi eq, %arg2, %c0_i32 : i32
    %1 = arith.extui %0 : i1 to i32
    %c0_i32_0 = arith.constant 0 : i32
    %2 = arith.cmpi ne, %1, %c0_i32_0 : i32
    scf.if %2 {
      %cst_94 = arith.constant 0.000000e+00 : f32
      %73 = vector.broadcast %cst_94 : f32 to vector<64x128xf32>
      %c0_95 = arith.constant 0 : index
      %c0_96 = arith.constant 0 : index
      %74 = vector.load %arg9[%c0_95, %c0_96] : memref<64x128xf32, #tpu.memory_space<vmem>>, vector<64x128xf32>
      tpu.vector_store %arg9[%c0_95, %c0_96], %73 {strides = array<i32>} : memref<64x128xf32, #tpu.memory_space<vmem>>, vector<64x128xf32>,
    } else {
    }
    %cst = arith.constant 0.000000e+00 : f32
    %3 = vector.broadcast %cst : f32 to vector<64x128xf32>
    %c0 = arith.constant 0 : index
    %c0_1 = arith.constant 0 : index
    %c0_2 = arith.constant 0 : index
    %c0_3 = arith.constant 0 : index
    %c0_4 = arith.constant 0 : index
    %4 = vector.load %arg3[%c0, %c0_1, %c0_2, %c0_3, %c0_4] : memref<1x1x10x10x128xbf16, #tpu.memory_space<vmem>>, vector<1x1x8x8x128xbf16>
    %5 = vector.shape_cast %4 : vector<1x1x8x8x128xbf16> to vector<8x8x128xbf16>
    %6 = vector.shape_cast %5 : vector<8x8x128xbf16> to vector<64x128xbf16>
    %c0_5 = arith.constant 0 : index
    %c0_6 = arith.constant 0 : index
    %c0_7 = arith.constant 0 : index
    %c0_8 = arith.constant 0 : index
    %7 = vector.load %arg4[%c0_5, %c0_6, %c0_7, %c0_8] : memref<3x3x128x128xbf16, #tpu.memory_space<vmem>>, vector<1x1x128x128xbf16>
    %8 = vector.shape_cast %7 : vector<1x1x128x128xbf16> to vector<128x128xbf16>
    %cst_9 = arith.constant dense<0.000000e+00> : vector<64x128xf32>
    %9 = tpu.matmul %6, %8, %cst_9 {dimension_numbers = #tpu.dot_dimension_numbers<[1], [0], [0], [1], [0, 0, 1, 1], [], []>} : vector<64x128xbf16>, vector<128x128xbf16>, vector<64x128xf32> -> vector<64x128xf32>
    %10 = arith.addf %3, %9 : vector<64x128xf32>
    %c0_10 = arith.constant 0 : index
    %c0_11 = arith.constant 0 : index
    %c0_12 = arith.constant 0 : index
    %c1 = arith.constant 1 : index
    %c0_13 = arith.constant 0 : index
    %11 = vector.load %arg3[%c0_10, %c0_11, %c0_12, %c1, %c0_13] : memref<1x1x10x10x128xbf16, #tpu.memory_space<vmem>>, vector<1x1x8x8x128xbf16>
    %12 = vector.shape_cast %11 : vector<1x1x8x8x128xbf16> to vector<8x8x128xbf16>
    %13 = vector.shape_cast %12 : vector<8x8x128xbf16> to vector<64x128xbf16>
    %c0_14 = arith.constant 0 : index
    %c1_15 = arith.constant 1 : index
    %c0_16 = arith.constant 0 : index
    %c0_17 = arith.constant 0 : index
    %14 = vector.load %arg4[%c0_14, %c1_15, %c0_16, %c0_17] : memref<3x3x128x128xbf16, #tpu.memory_space<vmem>>, vector<1x1x128x128xbf16>
    %15 = vector.shape_cast %14 : vector<1x1x128x128xbf16> to vector<128x128xbf16>
    %cst_18 = arith.constant dense<0.000000e+00> : vector<64x128xf32>
    %16 = tpu.matmul %13, %15, %cst_18 {dimension_numbers = #tpu.dot_dimension_numbers<[1], [0], [0], [1], [0, 0, 1, 1], [], []>} : vector<64x128xbf16>, vector<128x128xbf16>, vector<64x128xf32> -> vector<64x128xf32>
    %17 = arith.addf %10, %16 : vector<64x128xf32>
    %c0_19 = arith.constant 0 : index
    %c0_20 = arith.constant 0 : index
    %c0_21 = arith.constant 0 : index
    %c2 = arith.constant 2 : index
    %c0_22 = arith.constant 0 : index
    %18 = vector.load %arg3[%c0_19, %c0_20, %c0_21, %c2, %c0_22] : memref<1x1x10x10x128xbf16, #tpu.memory_space<vmem>>, vector<1x1x8x8x128xbf16>
    %19 = vector.shape_cast %18 : vector<1x1x8x8x128xbf16> to vector<8x8x128xbf16>
    %20 = vector.shape_cast %19 : vector<8x8x128xbf16> to vector<64x128xbf16>
    %c0_23 = arith.constant 0 : index
    %c2_24 = arith.constant 2 : index
    %c0_25 = arith.constant 0 : index
    %c0_26 = arith.constant 0 : index
    %21 = vector.load %arg4[%c0_23, %c2_24, %c0_25, %c0_26] : memref<3x3x128x128xbf16, #tpu.memory_space<vmem>>, vector<1x1x128x128xbf16>
    %22 = vector.shape_cast %21 : vector<1x1x128x128xbf16> to vector<128x128xbf16>
    %cst_27 = arith.constant dense<0.000000e+00> : vector<64x128xf32>
    %23 = tpu.matmul %20, %22, %cst_27 {dimension_numbers = #tpu.dot_dimension_numbers<[1], [0], [0], [1], [0, 0, 1, 1], [], []>} : vector<64x128xbf16>, vector<128x128xbf16>, vector<64x128xf32> -> vector<64x128xf32>
    %24 = arith.addf %17, %23 : vector<64x128xf32>
    %c0_28 = arith.constant 0 : index
    %c0_29 = arith.constant 0 : index
    %c1_30 = arith.constant 1 : index
    %c0_31 = arith.constant 0 : index
    %c0_32 = arith.constant 0 : index
    %25 = vector.load %arg3[%c0_28, %c0_29, %c1_30, %c0_31, %c0_32] : memref<1x1x10x10x128xbf16, #tpu.memory_space<vmem>>, vector<1x1x8x8x128xbf16>
    %26 = vector.shape_cast %25 : vector<1x1x8x8x128xbf16> to vector<8x8x128xbf16>
    %27 = vector.shape_cast %26 : vector<8x8x128xbf16> to vector<64x128xbf16>
    %c1_33 = arith.constant 1 : index
    %c0_34 = arith.constant 0 : index
    %c0_35 = arith.constant 0 : index
    %c0_36 = arith.constant 0 : index
    %28 = vector.load %arg4[%c1_33, %c0_34, %c0_35, %c0_36] : memref<3x3x128x128xbf16, #tpu.memory_space<vmem>>, vector<1x1x128x128xbf16>
    %29 = vector.shape_cast %28 : vector<1x1x128x128xbf16> to vector<128x128xbf16>
    %cst_37 = arith.constant dense<0.000000e+00> : vector<64x128xf32>
    %30 = tpu.matmul %27, %29, %cst_37 {dimension_numbers = #tpu.dot_dimension_numbers<[1], [0], [0], [1], [0, 0, 1, 1], [], []>} : vector<64x128xbf16>, vector<128x128xbf16>, vector<64x128xf32> -> vector<64x128xf32>
    %31 = arith.addf %24, %30 : vector<64x128xf32>
    %c0_38 = arith.constant 0 : index
    %c0_39 = arith.constant 0 : index
    %c1_40 = arith.constant 1 : index
    %c1_41 = arith.constant 1 : index
    %c0_42 = arith.constant 0 : index
    %32 = vector.load %arg3[%c0_38, %c0_39, %c1_40, %c1_41, %c0_42] : memref<1x1x10x10x128xbf16, #tpu.memory_space<vmem>>, vector<1x1x8x8x128xbf16>
    %33 = vector.shape_cast %32 : vector<1x1x8x8x128xbf16> to vector<8x8x128xbf16>
    %34 = vector.shape_cast %33 : vector<8x8x128xbf16> to vector<64x128xbf16>
    %c1_43 = arith.constant 1 : index
    %c1_44 = arith.constant 1 : index
    %c0_45 = arith.constant 0 : index
    %c0_46 = arith.constant 0 : index
    %35 = vector.load %arg4[%c1_43, %c1_44, %c0_45, %c0_46] : memref<3x3x128x128xbf16, #tpu.memory_space<vmem>>, vector<1x1x128x128xbf16>
    %36 = vector.shape_cast %35 : vector<1x1x128x128xbf16> to vector<128x128xbf16>
    %cst_47 = arith.constant dense<0.000000e+00> : vector<64x128xf32>
    %37 = tpu.matmul %34, %36, %cst_47 {dimension_numbers = #tpu.dot_dimension_numbers<[1], [0], [0], [1], [0, 0, 1, 1], [], []>} : vector<64x128xbf16>, vector<128x128xbf16>, vector<64x128xf32> -> vector<64x128xf32>
    %38 = arith.addf %31, %37 : vector<64x128xf32>
    %c0_48 = arith.constant 0 : index
    %c0_49 = arith.constant 0 : index
    %c1_50 = arith.constant 1 : index
    %c2_51 = arith.constant 2 : index
    %c0_52 = arith.constant 0 : index
    %39 = vector.load %arg3[%c0_48, %c0_49, %c1_50, %c2_51, %c0_52] : memref<1x1x10x10x128xbf16, #tpu.memory_space<vmem>>, vector<1x1x8x8x128xbf16>
    %40 = vector.shape_cast %39 : vector<1x1x8x8x128xbf16> to vector<8x8x128xbf16>
    %41 = vector.shape_cast %40 : vector<8x8x128xbf16> to vector<64x128xbf16>
    %c1_53 = arith.constant 1 : index
    %c2_54 = arith.constant 2 : index
    %c0_55 = arith.constant 0 : index
    %c0_56 = arith.constant 0 : index
    %42 = vector.load %arg4[%c1_53, %c2_54, %c0_55, %c0_56] : memref<3x3x128x128xbf16, #tpu.memory_space<vmem>>, vector<1x1x128x128xbf16>
    %43 = vector.shape_cast %42 : vector<1x1x128x128xbf16> to vector<128x128xbf16>
    %cst_57 = arith.constant dense<0.000000e+00> : vector<64x128xf32>
    %44 = tpu.matmul %41, %43, %cst_57 {dimension_numbers = #tpu.dot_dimension_numbers<[1], [0], [0], [1], [0, 0, 1, 1], [], []>} : vector<64x128xbf16>, vector<128x128xbf16>, vector<64x128xf32> -> vector<64x128xf32>
    %45 = arith.addf %38, %44 : vector<64x128xf32>
    %c0_58 = arith.constant 0 : index
    %c0_59 = arith.constant 0 : index
    %c2_60 = arith.constant 2 : index
    %c0_61 = arith.constant 0 : index
    %c0_62 = arith.constant 0 : index
    %46 = vector.load %arg3[%c0_58, %c0_59, %c2_60, %c0_61, %c0_62] : memref<1x1x10x10x128xbf16, #tpu.memory_space<vmem>>, vector<1x1x8x8x128xbf16>
    %47 = vector.shape_cast %46 : vector<1x1x8x8x128xbf16> to vector<8x8x128xbf16>
    %48 = vector.shape_cast %47 : vector<8x8x128xbf16> to vector<64x128xbf16>
    %c2_63 = arith.constant 2 : index
    %c0_64 = arith.constant 0 : index
    %c0_65 = arith.constant 0 : index
    %c0_66 = arith.constant 0 : index
    %49 = vector.load %arg4[%c2_63, %c0_64, %c0_65, %c0_66] : memref<3x3x128x128xbf16, #tpu.memory_space<vmem>>, vector<1x1x128x128xbf16>
    %50 = vector.shape_cast %49 : vector<1x1x128x128xbf16> to vector<128x128xbf16>
    %cst_67 = arith.constant dense<0.000000e+00> : vector<64x128xf32>
    %51 = tpu.matmul %48, %50, %cst_67 {dimension_numbers = #tpu.dot_dimension_numbers<[1], [0], [0], [1], [0, 0, 1, 1], [], []>} : vector<64x128xbf16>, vector<128x128xbf16>, vector<64x128xf32> -> vector<64x128xf32>
    %52 = arith.addf %45, %51 : vector<64x128xf32>
    %c0_68 = arith.constant 0 : index
    %c0_69 = arith.constant 0 : index
    %c2_70 = arith.constant 2 : index
    %c1_71 = arith.constant 1 : index
    %c0_72 = arith.constant 0 : index
    %53 = vector.load %arg3[%c0_68, %c0_69, %c2_70, %c1_71, %c0_72] : memref<1x1x10x10x128xbf16, #tpu.memory_space<vmem>>, vector<1x1x8x8x128xbf16>
    %54 = vector.shape_cast %53 : vector<1x1x8x8x128xbf16> to vector<8x8x128xbf16>
    %55 = vector.shape_cast %54 : vector<8x8x128xbf16> to vector<64x128xbf16>
    %c2_73 = arith.constant 2 : index
    %c1_74 = arith.constant 1 : index
    %c0_75 = arith.constant 0 : index
    %c0_76 = arith.constant 0 : index
    %56 = vector.load %arg4[%c2_73, %c1_74, %c0_75, %c0_76] : memref<3x3x128x128xbf16, #tpu.memory_space<vmem>>, vector<1x1x128x128xbf16>
    %57 = vector.shape_cast %56 : vector<1x1x128x128xbf16> to vector<128x128xbf16>
    %cst_77 = arith.constant dense<0.000000e+00> : vector<64x128xf32>
    %58 = tpu.matmul %55, %57, %cst_77 {dimension_numbers = #tpu.dot_dimension_numbers<[1], [0], [0], [1], [0, 0, 1, 1], [], []>} : vector<64x128xbf16>, vector<128x128xbf16>, vector<64x128xf32> -> vector<64x128xf32>
    %59 = arith.addf %52, %58 : vector<64x128xf32>
    %c0_78 = arith.constant 0 : index
    %c0_79 = arith.constant 0 : index
    %c2_80 = arith.constant 2 : index
    %c2_81 = arith.constant 2 : index
    %c0_82 = arith.constant 0 : index
    %60 = vector.load %arg3[%c0_78, %c0_79, %c2_80, %c2_81, %c0_82] : memref<1x1x10x10x128xbf16, #tpu.memory_space<vmem>>, vector<1x1x8x8x128xbf16>
    %61 = vector.shape_cast %60 : vector<1x1x8x8x128xbf16> to vector<8x8x128xbf16>
    %62 = vector.shape_cast %61 : vector<8x8x128xbf16> to vector<64x128xbf16>
    %c2_83 = arith.constant 2 : index
    %c2_84 = arith.constant 2 : index
    %c0_85 = arith.constant 0 : index
    %c0_86 = arith.constant 0 : index
    %63 = vector.load %arg4[%c2_83, %c2_84, %c0_85, %c0_86] : memref<3x3x128x128xbf16, #tpu.memory_space<vmem>>, vector<1x1x128x128xbf16>
    %64 = vector.shape_cast %63 : vector<1x1x128x128xbf16> to vector<128x128xbf16>
    %cst_87 = arith.constant dense<0.000000e+00> : vector<64x128xf32>
    %65 = tpu.matmul %62, %64, %cst_87 {dimension_numbers = #tpu.dot_dimension_numbers<[1], [0], [0], [1], [0, 0, 1, 1], [], []>} : vector<64x128xbf16>, vector<128x128xbf16>, vector<64x128xf32> -> vector<64x128xf32>
    %66 = arith.addf %59, %65 : vector<64x128xf32>
    %c0_88 = arith.constant 0 : index
    %c0_89 = arith.constant 0 : index
    %67 = vector.load %arg9[%c0_88, %c0_89] : memref<64x128xf32, #tpu.memory_space<vmem>>, vector<64x128xf32>
    %68 = arith.addf %67, %66 : vector<64x128xf32>
    %c0_90 = arith.constant 0 : index
    %c0_91 = arith.constant 0 : index
    %69 = vector.load %arg9[%c0_90, %c0_91] : memref<64x128xf32, #tpu.memory_space<vmem>>, vector<64x128xf32>
    tpu.vector_store %arg9[%c0_90, %c0_91], %68 {strides = array<i32>} : memref<64x128xf32, #tpu.memory_space<vmem>>, vector<64x128xf32>,
    %c0_i32_92 = arith.constant 0 : i32
    %70 = arith.cmpi eq, %arg2, %c0_i32_92 : i32
    %71 = arith.extui %70 : i1 to i32
    %c0_i32_93 = arith.constant 0 : i32
    %72 = arith.cmpi ne, %71, %c0_i32_93 : i32
    scf.if %72 {
      %c0_94 = arith.constant 0 : index
      %c0_95 = arith.constant 0 : index
      %73 = vector.load %arg9[%c0_94, %c0_95] : memref<64x128xf32, #tpu.memory_space<vmem>>, vector<64x128xf32>
      %c0_96 = arith.constant 0 : index
      %c0_97 = arith.constant 0 : index
      %74 = vector.load %arg5[%c0_96, %c0_97] : memref<1x128xf32, #tpu.memory_space<vmem>>, vector<1x128xf32>
      %75 = vector.broadcast %74 : vector<1x128xf32> to vector<64x128xf32>
      %76 = arith.mulf %73, %75 : vector<64x128xf32>
      %c0_98 = arith.constant 0 : index
      %c0_99 = arith.constant 0 : index
      %77 = vector.load %arg6[%c0_98, %c0_99] : memref<1x128xf32, #tpu.memory_space<vmem>>, vector<1x128xf32>
      %78 = vector.broadcast %77 : vector<1x128xf32> to vector<64x128xf32>
      %79 = arith.addf %76, %78 : vector<64x128xf32>
      %c0_100 = arith.constant 0 : index
      %c0_101 = arith.constant 0 : index
      %c0_102 = arith.constant 0 : index
      %80 = vector.load %arg7[%c0_100, %c0_101, %c0_102] : memref<1x64x128xbf16, #tpu.memory_space<vmem>>, vector<1x64x128xbf16>
      %81 = vector.shape_cast %80 : vector<1x64x128xbf16> to vector<64x128xbf16>
      %82 = arith.extf %81 : vector<64x128xbf16> to vector<64x128xf32>
      %83 = arith.addf %79, %82 : vector<64x128xf32>
      %cst_103 = arith.constant 0.000000e+00 : f32
      %84 = vector.broadcast %cst_103 : f32 to vector<64x128xf32>
      %85 = arith.maximumf %83, %84 : vector<64x128xf32>
      %c0_104 = arith.constant 0 : index
      %c0_105 = arith.constant 0 : index
      %c0_106 = arith.constant 0 : index
      %86 = vector.load %arg8[%c0_104, %c0_105, %c0_106] : memref<1x64x128xf32, #tpu.memory_space<vmem>>, vector<1x64x128xf32>
      %87 = vector.shape_cast %86 : vector<1x64x128xf32> to vector<64x128xf32>
      %88 = vector.shape_cast %85 : vector<64x128xf32> to vector<1x64x128xf32>
      tpu.vector_store %arg8[%c0_104, %c0_105, %c0_106], %88 {strides = array<i32>} : memref<1x64x128xf32, #tpu.memory_space<vmem>>, vector<1x64x128xf32>,
    } else {
    }
    return
  }
  func.func @transform_0(%arg0: i32, %arg1: i32, %arg2: i32) -> (i32, i32, i32, i32, i32) {
    %c0_i32 = arith.constant 0 : i32
    %c0_i32_0 = arith.constant 0 : i32
    %c0_i32_1 = arith.constant 0 : i32
    %c0_i32_2 = arith.constant 0 : i32
    return %c0_i32, %arg0, %c0_i32_0, %c0_i32_1, %arg2 : i32, i32, i32, i32, i32
  }
  func.func @transform_1(%arg0: i32, %arg1: i32, %arg2: i32) -> (i32, i32, i32, i32) {
    %c0_i32 = arith.constant 0 : i32
    %c0_i32_0 = arith.constant 0 : i32
    %c0_i32_1 = arith.constant 0 : i32
    return %c0_i32, %c0_i32_0, %arg2, %arg1 : i32, i32, i32, i32
  }
  func.func @transform_2(%arg0: i32, %arg1: i32, %arg2: i32) -> (i32, i32) {
    %c0_i32 = arith.constant 0 : i32
    %c0_i32_0 = arith.constant 0 : i32
    return %c0_i32, %arg1 : i32, i32
  }
  func.func @transform_3(%arg0: i32, %arg1: i32, %arg2: i32) -> (i32, i32) {
    %c0_i32 = arith.constant 0 : i32
    %c0_i32_0 = arith.constant 0 : i32
    return %c0_i32, %arg1 : i32, i32
  }
  func.func @transform_4(%arg0: i32, %arg1: i32, %arg2: i32) -> (i32, i32, i32) {
    %c0_i32 = arith.constant 0 : i32
    %c0_i32_0 = arith.constant 0 : i32
    return %arg0, %c0_i32, %arg1 : i32, i32, i32
  }
  func.func @transform_5(%arg0: i32, %arg1: i32, %arg2: i32) -> (i32, i32, i32) {
    %c0_i32 = arith.constant 0 : i32
    %c0_i32_0 = arith.constant 0 : i32
    return %arg0, %c0_i32, %arg1 : i32, i32, i32
  }
}

module attributes {stable_mosaic.version = 11 : i64} {
  func.func @_conv_bn_kernel(%arg0: i32, %arg1: i32, %arg2: i32, %arg3: memref<1x1x10x10x128xbf16, #tpu.memory_space<vmem>>, %arg4: memref<3x3x128x128xbf16, #tpu.memory_space<vmem>>, %arg5: memref<1x128xf32, #tpu.memory_space<vmem>>, %arg6: memref<1x128xf32, #tpu.memory_space<vmem>>, %arg7: memref<1x64x128xbf16, #tpu.memory_space<vmem>>, %arg8: memref<64x128xf32, #tpu.memory_space<vmem>>) attributes {dimension_semantics = [#tpu.dimension_semantics<parallel>, #tpu.dimension_semantics<parallel>, #tpu.dimension_semantics<arbitrary>], iteration_bounds = array<i64: 2, 1, 1>, scalar_prefetch = 0 : i64, scratch_operands = 1 : i64, tpu.core_type = #tpu.core_type<tc>, window_params = [{transform_indices = @transform_0, window_bounds = array<i64: 1, 1, 10, 10, 128>}, {transform_indices = @transform_1, window_bounds = array<i64: 3, 3, 128, 128>}, {transform_indices = @transform_2, window_bounds = array<i64: 1, 128>}, {transform_indices = @transform_3, window_bounds = array<i64: 1, 128>}, {transform_indices = @transform_4, window_bounds = array<i64: 1, 64, 128>}]} {
    %c0_i32 = arith.constant 0 : i32
    %0 = arith.cmpi eq, %arg2, %c0_i32 : i32
    %1 = arith.extui %0 : i1 to i32
    %c0_i32_0 = arith.constant 0 : i32
    %2 = arith.cmpi ne, %1, %c0_i32_0 : i32
    scf.if %2 {
      %cst_94 = arith.constant 0.000000e+00 : f32
      %73 = vector.broadcast %cst_94 : f32 to vector<64x128xf32>
      %c0_95 = arith.constant 0 : index
      %c0_96 = arith.constant 0 : index
      %74 = vector.load %arg8[%c0_95, %c0_96] : memref<64x128xf32, #tpu.memory_space<vmem>>, vector<64x128xf32>
      tpu.vector_store %arg8[%c0_95, %c0_96], %73 {strides = array<i32>} : memref<64x128xf32, #tpu.memory_space<vmem>>, vector<64x128xf32>,
    } else {
    }
    %cst = arith.constant 0.000000e+00 : f32
    %3 = vector.broadcast %cst : f32 to vector<64x128xf32>
    %c0 = arith.constant 0 : index
    %c0_1 = arith.constant 0 : index
    %c0_2 = arith.constant 0 : index
    %c0_3 = arith.constant 0 : index
    %c0_4 = arith.constant 0 : index
    %4 = vector.load %arg3[%c0, %c0_1, %c0_2, %c0_3, %c0_4] : memref<1x1x10x10x128xbf16, #tpu.memory_space<vmem>>, vector<1x1x8x8x128xbf16>
    %5 = vector.shape_cast %4 : vector<1x1x8x8x128xbf16> to vector<8x8x128xbf16>
    %6 = vector.shape_cast %5 : vector<8x8x128xbf16> to vector<64x128xbf16>
    %c0_5 = arith.constant 0 : index
    %c0_6 = arith.constant 0 : index
    %c0_7 = arith.constant 0 : index
    %c0_8 = arith.constant 0 : index
    %7 = vector.load %arg4[%c0_5, %c0_6, %c0_7, %c0_8] : memref<3x3x128x128xbf16, #tpu.memory_space<vmem>>, vector<1x1x128x128xbf16>
    %8 = vector.shape_cast %7 : vector<1x1x128x128xbf16> to vector<128x128xbf16>
    %cst_9 = arith.constant dense<0.000000e+00> : vector<64x128xf32>
    %9 = tpu.matmul %6, %8, %cst_9 {dimension_numbers = #tpu.dot_dimension_numbers<[1], [0], [0], [1], [0, 0, 1, 1], [], []>} : vector<64x128xbf16>, vector<128x128xbf16>, vector<64x128xf32> -> vector<64x128xf32>
    %10 = arith.addf %3, %9 : vector<64x128xf32>
    %c0_10 = arith.constant 0 : index
    %c0_11 = arith.constant 0 : index
    %c0_12 = arith.constant 0 : index
    %c1 = arith.constant 1 : index
    %c0_13 = arith.constant 0 : index
    %11 = vector.load %arg3[%c0_10, %c0_11, %c0_12, %c1, %c0_13] : memref<1x1x10x10x128xbf16, #tpu.memory_space<vmem>>, vector<1x1x8x8x128xbf16>
    %12 = vector.shape_cast %11 : vector<1x1x8x8x128xbf16> to vector<8x8x128xbf16>
    %13 = vector.shape_cast %12 : vector<8x8x128xbf16> to vector<64x128xbf16>
    %c0_14 = arith.constant 0 : index
    %c1_15 = arith.constant 1 : index
    %c0_16 = arith.constant 0 : index
    %c0_17 = arith.constant 0 : index
    %14 = vector.load %arg4[%c0_14, %c1_15, %c0_16, %c0_17] : memref<3x3x128x128xbf16, #tpu.memory_space<vmem>>, vector<1x1x128x128xbf16>
    %15 = vector.shape_cast %14 : vector<1x1x128x128xbf16> to vector<128x128xbf16>
    %cst_18 = arith.constant dense<0.000000e+00> : vector<64x128xf32>
    %16 = tpu.matmul %13, %15, %cst_18 {dimension_numbers = #tpu.dot_dimension_numbers<[1], [0], [0], [1], [0, 0, 1, 1], [], []>} : vector<64x128xbf16>, vector<128x128xbf16>, vector<64x128xf32> -> vector<64x128xf32>
    %17 = arith.addf %10, %16 : vector<64x128xf32>
    %c0_19 = arith.constant 0 : index
    %c0_20 = arith.constant 0 : index
    %c0_21 = arith.constant 0 : index
    %c2 = arith.constant 2 : index
    %c0_22 = arith.constant 0 : index
    %18 = vector.load %arg3[%c0_19, %c0_20, %c0_21, %c2, %c0_22] : memref<1x1x10x10x128xbf16, #tpu.memory_space<vmem>>, vector<1x1x8x8x128xbf16>
    %19 = vector.shape_cast %18 : vector<1x1x8x8x128xbf16> to vector<8x8x128xbf16>
    %20 = vector.shape_cast %19 : vector<8x8x128xbf16> to vector<64x128xbf16>
    %c0_23 = arith.constant 0 : index
    %c2_24 = arith.constant 2 : index
    %c0_25 = arith.constant 0 : index
    %c0_26 = arith.constant 0 : index
    %21 = vector.load %arg4[%c0_23, %c2_24, %c0_25, %c0_26] : memref<3x3x128x128xbf16, #tpu.memory_space<vmem>>, vector<1x1x128x128xbf16>
    %22 = vector.shape_cast %21 : vector<1x1x128x128xbf16> to vector<128x128xbf16>
    %cst_27 = arith.constant dense<0.000000e+00> : vector<64x128xf32>
    %23 = tpu.matmul %20, %22, %cst_27 {dimension_numbers = #tpu.dot_dimension_numbers<[1], [0], [0], [1], [0, 0, 1, 1], [], []>} : vector<64x128xbf16>, vector<128x128xbf16>, vector<64x128xf32> -> vector<64x128xf32>
    %24 = arith.addf %17, %23 : vector<64x128xf32>
    %c0_28 = arith.constant 0 : index
    %c0_29 = arith.constant 0 : index
    %c1_30 = arith.constant 1 : index
    %c0_31 = arith.constant 0 : index
    %c0_32 = arith.constant 0 : index
    %25 = vector.load %arg3[%c0_28, %c0_29, %c1_30, %c0_31, %c0_32] : memref<1x1x10x10x128xbf16, #tpu.memory_space<vmem>>, vector<1x1x8x8x128xbf16>
    %26 = vector.shape_cast %25 : vector<1x1x8x8x128xbf16> to vector<8x8x128xbf16>
    %27 = vector.shape_cast %26 : vector<8x8x128xbf16> to vector<64x128xbf16>
    %c1_33 = arith.constant 1 : index
    %c0_34 = arith.constant 0 : index
    %c0_35 = arith.constant 0 : index
    %c0_36 = arith.constant 0 : index
    %28 = vector.load %arg4[%c1_33, %c0_34, %c0_35, %c0_36] : memref<3x3x128x128xbf16, #tpu.memory_space<vmem>>, vector<1x1x128x128xbf16>
    %29 = vector.shape_cast %28 : vector<1x1x128x128xbf16> to vector<128x128xbf16>
    %cst_37 = arith.constant dense<0.000000e+00> : vector<64x128xf32>
    %30 = tpu.matmul %27, %29, %cst_37 {dimension_numbers = #tpu.dot_dimension_numbers<[1], [0], [0], [1], [0, 0, 1, 1], [], []>} : vector<64x128xbf16>, vector<128x128xbf16>, vector<64x128xf32> -> vector<64x128xf32>
    %31 = arith.addf %24, %30 : vector<64x128xf32>
    %c0_38 = arith.constant 0 : index
    %c0_39 = arith.constant 0 : index
    %c1_40 = arith.constant 1 : index
    %c1_41 = arith.constant 1 : index
    %c0_42 = arith.constant 0 : index
    %32 = vector.load %arg3[%c0_38, %c0_39, %c1_40, %c1_41, %c0_42] : memref<1x1x10x10x128xbf16, #tpu.memory_space<vmem>>, vector<1x1x8x8x128xbf16>
    %33 = vector.shape_cast %32 : vector<1x1x8x8x128xbf16> to vector<8x8x128xbf16>
    %34 = vector.shape_cast %33 : vector<8x8x128xbf16> to vector<64x128xbf16>
    %c1_43 = arith.constant 1 : index
    %c1_44 = arith.constant 1 : index
    %c0_45 = arith.constant 0 : index
    %c0_46 = arith.constant 0 : index
    %35 = vector.load %arg4[%c1_43, %c1_44, %c0_45, %c0_46] : memref<3x3x128x128xbf16, #tpu.memory_space<vmem>>, vector<1x1x128x128xbf16>
    %36 = vector.shape_cast %35 : vector<1x1x128x128xbf16> to vector<128x128xbf16>
    %cst_47 = arith.constant dense<0.000000e+00> : vector<64x128xf32>
    %37 = tpu.matmul %34, %36, %cst_47 {dimension_numbers = #tpu.dot_dimension_numbers<[1], [0], [0], [1], [0, 0, 1, 1], [], []>} : vector<64x128xbf16>, vector<128x128xbf16>, vector<64x128xf32> -> vector<64x128xf32>
    %38 = arith.addf %31, %37 : vector<64x128xf32>
    %c0_48 = arith.constant 0 : index
    %c0_49 = arith.constant 0 : index
    %c1_50 = arith.constant 1 : index
    %c2_51 = arith.constant 2 : index
    %c0_52 = arith.constant 0 : index
    %39 = vector.load %arg3[%c0_48, %c0_49, %c1_50, %c2_51, %c0_52] : memref<1x1x10x10x128xbf16, #tpu.memory_space<vmem>>, vector<1x1x8x8x128xbf16>
    %40 = vector.shape_cast %39 : vector<1x1x8x8x128xbf16> to vector<8x8x128xbf16>
    %41 = vector.shape_cast %40 : vector<8x8x128xbf16> to vector<64x128xbf16>
    %c1_53 = arith.constant 1 : index
    %c2_54 = arith.constant 2 : index
    %c0_55 = arith.constant 0 : index
    %c0_56 = arith.constant 0 : index
    %42 = vector.load %arg4[%c1_53, %c2_54, %c0_55, %c0_56] : memref<3x3x128x128xbf16, #tpu.memory_space<vmem>>, vector<1x1x128x128xbf16>
    %43 = vector.shape_cast %42 : vector<1x1x128x128xbf16> to vector<128x128xbf16>
    %cst_57 = arith.constant dense<0.000000e+00> : vector<64x128xf32>
    %44 = tpu.matmul %41, %43, %cst_57 {dimension_numbers = #tpu.dot_dimension_numbers<[1], [0], [0], [1], [0, 0, 1, 1], [], []>} : vector<64x128xbf16>, vector<128x128xbf16>, vector<64x128xf32> -> vector<64x128xf32>
    %45 = arith.addf %38, %44 : vector<64x128xf32>
    %c0_58 = arith.constant 0 : index
    %c0_59 = arith.constant 0 : index
    %c2_60 = arith.constant 2 : index
    %c0_61 = arith.constant 0 : index
    %c0_62 = arith.constant 0 : index
    %46 = vector.load %arg3[%c0_58, %c0_59, %c2_60, %c0_61, %c0_62] : memref<1x1x10x10x128xbf16, #tpu.memory_space<vmem>>, vector<1x1x8x8x128xbf16>
    %47 = vector.shape_cast %46 : vector<1x1x8x8x128xbf16> to vector<8x8x128xbf16>
    %48 = vector.shape_cast %47 : vector<8x8x128xbf16> to vector<64x128xbf16>
    %c2_63 = arith.constant 2 : index
    %c0_64 = arith.constant 0 : index
    %c0_65 = arith.constant 0 : index
    %c0_66 = arith.constant 0 : index
    %49 = vector.load %arg4[%c2_63, %c0_64, %c0_65, %c0_66] : memref<3x3x128x128xbf16, #tpu.memory_space<vmem>>, vector<1x1x128x128xbf16>
    %50 = vector.shape_cast %49 : vector<1x1x128x128xbf16> to vector<128x128xbf16>
    %cst_67 = arith.constant dense<0.000000e+00> : vector<64x128xf32>
    %51 = tpu.matmul %48, %50, %cst_67 {dimension_numbers = #tpu.dot_dimension_numbers<[1], [0], [0], [1], [0, 0, 1, 1], [], []>} : vector<64x128xbf16>, vector<128x128xbf16>, vector<64x128xf32> -> vector<64x128xf32>
    %52 = arith.addf %45, %51 : vector<64x128xf32>
    %c0_68 = arith.constant 0 : index
    %c0_69 = arith.constant 0 : index
    %c2_70 = arith.constant 2 : index
    %c1_71 = arith.constant 1 : index
    %c0_72 = arith.constant 0 : index
    %53 = vector.load %arg3[%c0_68, %c0_69, %c2_70, %c1_71, %c0_72] : memref<1x1x10x10x128xbf16, #tpu.memory_space<vmem>>, vector<1x1x8x8x128xbf16>
    %54 = vector.shape_cast %53 : vector<1x1x8x8x128xbf16> to vector<8x8x128xbf16>
    %55 = vector.shape_cast %54 : vector<8x8x128xbf16> to vector<64x128xbf16>
    %c2_73 = arith.constant 2 : index
    %c1_74 = arith.constant 1 : index
    %c0_75 = arith.constant 0 : index
    %c0_76 = arith.constant 0 : index
    %56 = vector.load %arg4[%c2_73, %c1_74, %c0_75, %c0_76] : memref<3x3x128x128xbf16, #tpu.memory_space<vmem>>, vector<1x1x128x128xbf16>
    %57 = vector.shape_cast %56 : vector<1x1x128x128xbf16> to vector<128x128xbf16>
    %cst_77 = arith.constant dense<0.000000e+00> : vector<64x128xf32>
    %58 = tpu.matmul %55, %57, %cst_77 {dimension_numbers = #tpu.dot_dimension_numbers<[1], [0], [0], [1], [0, 0, 1, 1], [], []>} : vector<64x128xbf16>, vector<128x128xbf16>, vector<64x128xf32> -> vector<64x128xf32>
    %59 = arith.addf %52, %58 : vector<64x128xf32>
    %c0_78 = arith.constant 0 : index
    %c0_79 = arith.constant 0 : index
    %c2_80 = arith.constant 2 : index
    %c2_81 = arith.constant 2 : index
    %c0_82 = arith.constant 0 : index
    %60 = vector.load %arg3[%c0_78, %c0_79, %c2_80, %c2_81, %c0_82] : memref<1x1x10x10x128xbf16, #tpu.memory_space<vmem>>, vector<1x1x8x8x128xbf16>
    %61 = vector.shape_cast %60 : vector<1x1x8x8x128xbf16> to vector<8x8x128xbf16>
    %62 = vector.shape_cast %61 : vector<8x8x128xbf16> to vector<64x128xbf16>
    %c2_83 = arith.constant 2 : index
    %c2_84 = arith.constant 2 : index
    %c0_85 = arith.constant 0 : index
    %c0_86 = arith.constant 0 : index
    %63 = vector.load %arg4[%c2_83, %c2_84, %c0_85, %c0_86] : memref<3x3x128x128xbf16, #tpu.memory_space<vmem>>, vector<1x1x128x128xbf16>
    %64 = vector.shape_cast %63 : vector<1x1x128x128xbf16> to vector<128x128xbf16>
    %cst_87 = arith.constant dense<0.000000e+00> : vector<64x128xf32>
    %65 = tpu.matmul %62, %64, %cst_87 {dimension_numbers = #tpu.dot_dimension_numbers<[1], [0], [0], [1], [0, 0, 1, 1], [], []>} : vector<64x128xbf16>, vector<128x128xbf16>, vector<64x128xf32> -> vector<64x128xf32>
    %66 = arith.addf %59, %65 : vector<64x128xf32>
    %c0_88 = arith.constant 0 : index
    %c0_89 = arith.constant 0 : index
    %67 = vector.load %arg8[%c0_88, %c0_89] : memref<64x128xf32, #tpu.memory_space<vmem>>, vector<64x128xf32>
    %68 = arith.addf %67, %66 : vector<64x128xf32>
    %c0_90 = arith.constant 0 : index
    %c0_91 = arith.constant 0 : index
    %69 = vector.load %arg8[%c0_90, %c0_91] : memref<64x128xf32, #tpu.memory_space<vmem>>, vector<64x128xf32>
    tpu.vector_store %arg8[%c0_90, %c0_91], %68 {strides = array<i32>} : memref<64x128xf32, #tpu.memory_space<vmem>>, vector<64x128xf32>,
    %c0_i32_92 = arith.constant 0 : i32
    %70 = arith.cmpi eq, %arg2, %c0_i32_92 : i32
    %71 = arith.extui %70 : i1 to i32
    %c0_i32_93 = arith.constant 0 : i32
    %72 = arith.cmpi ne, %71, %c0_i32_93 : i32
    scf.if %72 {
      %c0_94 = arith.constant 0 : index
      %c0_95 = arith.constant 0 : index
      %73 = vector.load %arg8[%c0_94, %c0_95] : memref<64x128xf32, #tpu.memory_space<vmem>>, vector<64x128xf32>
      %c0_96 = arith.constant 0 : index
      %c0_97 = arith.constant 0 : index
      %74 = vector.load %arg5[%c0_96, %c0_97] : memref<1x128xf32, #tpu.memory_space<vmem>>, vector<1x128xf32>
      %75 = vector.broadcast %74 : vector<1x128xf32> to vector<64x128xf32>
      %76 = arith.mulf %73, %75 : vector<64x128xf32>
      %c0_98 = arith.constant 0 : index
      %c0_99 = arith.constant 0 : index
      %77 = vector.load %arg6[%c0_98, %c0_99] : memref<1x128xf32, #tpu.memory_space<vmem>>, vector<1x128xf32>
      %78 = vector.broadcast %77 : vector<1x128xf32> to vector<64x128xf32>
      %79 = arith.addf %76, %78 : vector<64x128xf32>
      %cst_100 = arith.constant 0.000000e+00 : f32
      %80 = vector.broadcast %cst_100 : f32 to vector<64x128xf32>
      %81 = arith.maximumf %79, %80 : vector<64x128xf32>
      %82 = arith.truncf %81 : vector<64x128xf32> to vector<64x128xbf16>
      %c0_101 = arith.constant 0 : index
      %c0_102 = arith.constant 0 : index
      %c0_103 = arith.constant 0 : index
      %83 = vector.load %arg7[%c0_101, %c0_102, %c0_103] : memref<1x64x128xbf16, #tpu.memory_space<vmem>>, vector<1x64x128xbf16>
      %84 = vector.shape_cast %83 : vector<1x64x128xbf16> to vector<64x128xbf16>
      %85 = vector.shape_cast %82 : vector<64x128xbf16> to vector<1x64x128xbf16>
      tpu.vector_store %arg7[%c0_101, %c0_102, %c0_103], %85 {strides = array<i32>} : memref<1x64x128xbf16, #tpu.memory_space<vmem>>, vector<1x64x128xbf16>,
    } else {
    }
    return
  }
  func.func @transform_0(%arg0: i32, %arg1: i32, %arg2: i32) -> (i32, i32, i32, i32, i32) {
    %c0_i32 = arith.constant 0 : i32
    %c0_i32_0 = arith.constant 0 : i32
    %c0_i32_1 = arith.constant 0 : i32
    %c0_i32_2 = arith.constant 0 : i32
    return %c0_i32, %arg0, %c0_i32_0, %c0_i32_1, %arg2 : i32, i32, i32, i32, i32
  }
  func.func @transform_1(%arg0: i32, %arg1: i32, %arg2: i32) -> (i32, i32, i32, i32) {
    %c0_i32 = arith.constant 0 : i32
    %c0_i32_0 = arith.constant 0 : i32
    %c0_i32_1 = arith.constant 0 : i32
    return %c0_i32, %c0_i32_0, %arg2, %arg1 : i32, i32, i32, i32
  }
  func.func @transform_2(%arg0: i32, %arg1: i32, %arg2: i32) -> (i32, i32) {
    %c0_i32 = arith.constant 0 : i32
    %c0_i32_0 = arith.constant 0 : i32
    return %c0_i32, %arg1 : i32, i32
  }
  func.func @transform_3(%arg0: i32, %arg1: i32, %arg2: i32) -> (i32, i32) {
    %c0_i32 = arith.constant 0 : i32
    %c0_i32_0 = arith.constant 0 : i32
    return %c0_i32, %arg1 : i32, i32
  }
  func.func @transform_4(%arg0: i32, %arg1: i32, %arg2: i32) -> (i32, i32, i32) {
    %c0_i32 = arith.constant 0 : i32
    %c0_i32_0 = arith.constant 0 : i32
    return %arg0, %c0_i32, %arg1 : i32, i32, i32
  }
}

module attributes {stable_mosaic.version = 11 : i64} {
  func.func @_conv_bn_kernel(%arg0: i32, %arg1: i32, %arg2: i32, %arg3: memref<1x1x10x10x128xbf16, #tpu.memory_space<vmem>>, %arg4: memref<3x3x128x128xbf16, #tpu.memory_space<vmem>>, %arg5: memref<1x128xf32, #tpu.memory_space<vmem>>, %arg6: memref<1x128xf32, #tpu.memory_space<vmem>>, %arg7: memref<1x64x128xbf16, #tpu.memory_space<vmem>>, %arg8: memref<1x64x128xf32, #tpu.memory_space<vmem>>, %arg9: memref<64x128xf32, #tpu.memory_space<vmem>>) attributes {dimension_semantics = [#tpu.dimension_semantics<parallel>, #tpu.dimension_semantics<parallel>, #tpu.dimension_semantics<arbitrary>], iteration_bounds = array<i64: 2, 1, 1>, scalar_prefetch = 0 : i64, scratch_operands = 1 : i64, tpu.core_type = #tpu.core_type<tc>, window_params = [{transform_indices = @transform_0, window_bounds = array<i64: 1, 1, 10, 10, 128>}, {transform_indices = @transform_1, window_bounds = array<i64: 3, 3, 128, 128>}, {transform_indices = @transform_2, window_bounds = array<i64: 1, 128>}, {transform_indices = @transform_3, window_bounds = array<i64: 1, 128>}, {transform_indices = @transform_4, window_bounds = array<i64: 1, 64, 128>}, {transform_indices = @transform_5, window_bounds = array<i64: 1, 64, 128>}]} {
    %c0_i32 = arith.constant 0 : i32
    %0 = arith.cmpi eq, %arg2, %c0_i32 : i32
    %1 = arith.extui %0 : i1 to i32
    %c0_i32_0 = arith.constant 0 : i32
    %2 = arith.cmpi ne, %1, %c0_i32_0 : i32
    scf.if %2 {
      %cst_94 = arith.constant 0.000000e+00 : f32
      %73 = vector.broadcast %cst_94 : f32 to vector<64x128xf32>
      %c0_95 = arith.constant 0 : index
      %c0_96 = arith.constant 0 : index
      %74 = vector.load %arg9[%c0_95, %c0_96] : memref<64x128xf32, #tpu.memory_space<vmem>>, vector<64x128xf32>
      tpu.vector_store %arg9[%c0_95, %c0_96], %73 {strides = array<i32>} : memref<64x128xf32, #tpu.memory_space<vmem>>, vector<64x128xf32>,
    } else {
    }
    %cst = arith.constant 0.000000e+00 : f32
    %3 = vector.broadcast %cst : f32 to vector<64x128xf32>
    %c0 = arith.constant 0 : index
    %c0_1 = arith.constant 0 : index
    %c0_2 = arith.constant 0 : index
    %c0_3 = arith.constant 0 : index
    %c0_4 = arith.constant 0 : index
    %4 = vector.load %arg3[%c0, %c0_1, %c0_2, %c0_3, %c0_4] : memref<1x1x10x10x128xbf16, #tpu.memory_space<vmem>>, vector<1x1x8x8x128xbf16>
    %5 = vector.shape_cast %4 : vector<1x1x8x8x128xbf16> to vector<8x8x128xbf16>
    %6 = vector.shape_cast %5 : vector<8x8x128xbf16> to vector<64x128xbf16>
    %c0_5 = arith.constant 0 : index
    %c0_6 = arith.constant 0 : index
    %c0_7 = arith.constant 0 : index
    %c0_8 = arith.constant 0 : index
    %7 = vector.load %arg4[%c0_5, %c0_6, %c0_7, %c0_8] : memref<3x3x128x128xbf16, #tpu.memory_space<vmem>>, vector<1x1x128x128xbf16>
    %8 = vector.shape_cast %7 : vector<1x1x128x128xbf16> to vector<128x128xbf16>
    %cst_9 = arith.constant dense<0.000000e+00> : vector<64x128xf32>
    %9 = tpu.matmul %6, %8, %cst_9 {dimension_numbers = #tpu.dot_dimension_numbers<[1], [0], [0], [1], [0, 0, 1, 1], [], []>} : vector<64x128xbf16>, vector<128x128xbf16>, vector<64x128xf32> -> vector<64x128xf32>
    %10 = arith.addf %3, %9 : vector<64x128xf32>
    %c0_10 = arith.constant 0 : index
    %c0_11 = arith.constant 0 : index
    %c0_12 = arith.constant 0 : index
    %c1 = arith.constant 1 : index
    %c0_13 = arith.constant 0 : index
    %11 = vector.load %arg3[%c0_10, %c0_11, %c0_12, %c1, %c0_13] : memref<1x1x10x10x128xbf16, #tpu.memory_space<vmem>>, vector<1x1x8x8x128xbf16>
    %12 = vector.shape_cast %11 : vector<1x1x8x8x128xbf16> to vector<8x8x128xbf16>
    %13 = vector.shape_cast %12 : vector<8x8x128xbf16> to vector<64x128xbf16>
    %c0_14 = arith.constant 0 : index
    %c1_15 = arith.constant 1 : index
    %c0_16 = arith.constant 0 : index
    %c0_17 = arith.constant 0 : index
    %14 = vector.load %arg4[%c0_14, %c1_15, %c0_16, %c0_17] : memref<3x3x128x128xbf16, #tpu.memory_space<vmem>>, vector<1x1x128x128xbf16>
    %15 = vector.shape_cast %14 : vector<1x1x128x128xbf16> to vector<128x128xbf16>
    %cst_18 = arith.constant dense<0.000000e+00> : vector<64x128xf32>
    %16 = tpu.matmul %13, %15, %cst_18 {dimension_numbers = #tpu.dot_dimension_numbers<[1], [0], [0], [1], [0, 0, 1, 1], [], []>} : vector<64x128xbf16>, vector<128x128xbf16>, vector<64x128xf32> -> vector<64x128xf32>
    %17 = arith.addf %10, %16 : vector<64x128xf32>
    %c0_19 = arith.constant 0 : index
    %c0_20 = arith.constant 0 : index
    %c0_21 = arith.constant 0 : index
    %c2 = arith.constant 2 : index
    %c0_22 = arith.constant 0 : index
    %18 = vector.load %arg3[%c0_19, %c0_20, %c0_21, %c2, %c0_22] : memref<1x1x10x10x128xbf16, #tpu.memory_space<vmem>>, vector<1x1x8x8x128xbf16>
    %19 = vector.shape_cast %18 : vector<1x1x8x8x128xbf16> to vector<8x8x128xbf16>
    %20 = vector.shape_cast %19 : vector<8x8x128xbf16> to vector<64x128xbf16>
    %c0_23 = arith.constant 0 : index
    %c2_24 = arith.constant 2 : index
    %c0_25 = arith.constant 0 : index
    %c0_26 = arith.constant 0 : index
    %21 = vector.load %arg4[%c0_23, %c2_24, %c0_25, %c0_26] : memref<3x3x128x128xbf16, #tpu.memory_space<vmem>>, vector<1x1x128x128xbf16>
    %22 = vector.shape_cast %21 : vector<1x1x128x128xbf16> to vector<128x128xbf16>
    %cst_27 = arith.constant dense<0.000000e+00> : vector<64x128xf32>
    %23 = tpu.matmul %20, %22, %cst_27 {dimension_numbers = #tpu.dot_dimension_numbers<[1], [0], [0], [1], [0, 0, 1, 1], [], []>} : vector<64x128xbf16>, vector<128x128xbf16>, vector<64x128xf32> -> vector<64x128xf32>
    %24 = arith.addf %17, %23 : vector<64x128xf32>
    %c0_28 = arith.constant 0 : index
    %c0_29 = arith.constant 0 : index
    %c1_30 = arith.constant 1 : index
    %c0_31 = arith.constant 0 : index
    %c0_32 = arith.constant 0 : index
    %25 = vector.load %arg3[%c0_28, %c0_29, %c1_30, %c0_31, %c0_32] : memref<1x1x10x10x128xbf16, #tpu.memory_space<vmem>>, vector<1x1x8x8x128xbf16>
    %26 = vector.shape_cast %25 : vector<1x1x8x8x128xbf16> to vector<8x8x128xbf16>
    %27 = vector.shape_cast %26 : vector<8x8x128xbf16> to vector<64x128xbf16>
    %c1_33 = arith.constant 1 : index
    %c0_34 = arith.constant 0 : index
    %c0_35 = arith.constant 0 : index
    %c0_36 = arith.constant 0 : index
    %28 = vector.load %arg4[%c1_33, %c0_34, %c0_35, %c0_36] : memref<3x3x128x128xbf16, #tpu.memory_space<vmem>>, vector<1x1x128x128xbf16>
    %29 = vector.shape_cast %28 : vector<1x1x128x128xbf16> to vector<128x128xbf16>
    %cst_37 = arith.constant dense<0.000000e+00> : vector<64x128xf32>
    %30 = tpu.matmul %27, %29, %cst_37 {dimension_numbers = #tpu.dot_dimension_numbers<[1], [0], [0], [1], [0, 0, 1, 1], [], []>} : vector<64x128xbf16>, vector<128x128xbf16>, vector<64x128xf32> -> vector<64x128xf32>
    %31 = arith.addf %24, %30 : vector<64x128xf32>
    %c0_38 = arith.constant 0 : index
    %c0_39 = arith.constant 0 : index
    %c1_40 = arith.constant 1 : index
    %c1_41 = arith.constant 1 : index
    %c0_42 = arith.constant 0 : index
    %32 = vector.load %arg3[%c0_38, %c0_39, %c1_40, %c1_41, %c0_42] : memref<1x1x10x10x128xbf16, #tpu.memory_space<vmem>>, vector<1x1x8x8x128xbf16>
    %33 = vector.shape_cast %32 : vector<1x1x8x8x128xbf16> to vector<8x8x128xbf16>
    %34 = vector.shape_cast %33 : vector<8x8x128xbf16> to vector<64x128xbf16>
    %c1_43 = arith.constant 1 : index
    %c1_44 = arith.constant 1 : index
    %c0_45 = arith.constant 0 : index
    %c0_46 = arith.constant 0 : index
    %35 = vector.load %arg4[%c1_43, %c1_44, %c0_45, %c0_46] : memref<3x3x128x128xbf16, #tpu.memory_space<vmem>>, vector<1x1x128x128xbf16>
    %36 = vector.shape_cast %35 : vector<1x1x128x128xbf16> to vector<128x128xbf16>
    %cst_47 = arith.constant dense<0.000000e+00> : vector<64x128xf32>
    %37 = tpu.matmul %34, %36, %cst_47 {dimension_numbers = #tpu.dot_dimension_numbers<[1], [0], [0], [1], [0, 0, 1, 1], [], []>} : vector<64x128xbf16>, vector<128x128xbf16>, vector<64x128xf32> -> vector<64x128xf32>
    %38 = arith.addf %31, %37 : vector<64x128xf32>
    %c0_48 = arith.constant 0 : index
    %c0_49 = arith.constant 0 : index
    %c1_50 = arith.constant 1 : index
    %c2_51 = arith.constant 2 : index
    %c0_52 = arith.constant 0 : index
    %39 = vector.load %arg3[%c0_48, %c0_49, %c1_50, %c2_51, %c0_52] : memref<1x1x10x10x128xbf16, #tpu.memory_space<vmem>>, vector<1x1x8x8x128xbf16>
    %40 = vector.shape_cast %39 : vector<1x1x8x8x128xbf16> to vector<8x8x128xbf16>
    %41 = vector.shape_cast %40 : vector<8x8x128xbf16> to vector<64x128xbf16>
    %c1_53 = arith.constant 1 : index
    %c2_54 = arith.constant 2 : index
    %c0_55 = arith.constant 0 : index
    %c0_56 = arith.constant 0 : index
    %42 = vector.load %arg4[%c1_53, %c2_54, %c0_55, %c0_56] : memref<3x3x128x128xbf16, #tpu.memory_space<vmem>>, vector<1x1x128x128xbf16>
    %43 = vector.shape_cast %42 : vector<1x1x128x128xbf16> to vector<128x128xbf16>
    %cst_57 = arith.constant dense<0.000000e+00> : vector<64x128xf32>
    %44 = tpu.matmul %41, %43, %cst_57 {dimension_numbers = #tpu.dot_dimension_numbers<[1], [0], [0], [1], [0, 0, 1, 1], [], []>} : vector<64x128xbf16>, vector<128x128xbf16>, vector<64x128xf32> -> vector<64x128xf32>
    %45 = arith.addf %38, %44 : vector<64x128xf32>
    %c0_58 = arith.constant 0 : index
    %c0_59 = arith.constant 0 : index
    %c2_60 = arith.constant 2 : index
    %c0_61 = arith.constant 0 : index
    %c0_62 = arith.constant 0 : index
    %46 = vector.load %arg3[%c0_58, %c0_59, %c2_60, %c0_61, %c0_62] : memref<1x1x10x10x128xbf16, #tpu.memory_space<vmem>>, vector<1x1x8x8x128xbf16>
    %47 = vector.shape_cast %46 : vector<1x1x8x8x128xbf16> to vector<8x8x128xbf16>
    %48 = vector.shape_cast %47 : vector<8x8x128xbf16> to vector<64x128xbf16>
    %c2_63 = arith.constant 2 : index
    %c0_64 = arith.constant 0 : index
    %c0_65 = arith.constant 0 : index
    %c0_66 = arith.constant 0 : index
    %49 = vector.load %arg4[%c2_63, %c0_64, %c0_65, %c0_66] : memref<3x3x128x128xbf16, #tpu.memory_space<vmem>>, vector<1x1x128x128xbf16>
    %50 = vector.shape_cast %49 : vector<1x1x128x128xbf16> to vector<128x128xbf16>
    %cst_67 = arith.constant dense<0.000000e+00> : vector<64x128xf32>
    %51 = tpu.matmul %48, %50, %cst_67 {dimension_numbers = #tpu.dot_dimension_numbers<[1], [0], [0], [1], [0, 0, 1, 1], [], []>} : vector<64x128xbf16>, vector<128x128xbf16>, vector<64x128xf32> -> vector<64x128xf32>
    %52 = arith.addf %45, %51 : vector<64x128xf32>
    %c0_68 = arith.constant 0 : index
    %c0_69 = arith.constant 0 : index
    %c2_70 = arith.constant 2 : index
    %c1_71 = arith.constant 1 : index
    %c0_72 = arith.constant 0 : index
    %53 = vector.load %arg3[%c0_68, %c0_69, %c2_70, %c1_71, %c0_72] : memref<1x1x10x10x128xbf16, #tpu.memory_space<vmem>>, vector<1x1x8x8x128xbf16>
    %54 = vector.shape_cast %53 : vector<1x1x8x8x128xbf16> to vector<8x8x128xbf16>
    %55 = vector.shape_cast %54 : vector<8x8x128xbf16> to vector<64x128xbf16>
    %c2_73 = arith.constant 2 : index
    %c1_74 = arith.constant 1 : index
    %c0_75 = arith.constant 0 : index
    %c0_76 = arith.constant 0 : index
    %56 = vector.load %arg4[%c2_73, %c1_74, %c0_75, %c0_76] : memref<3x3x128x128xbf16, #tpu.memory_space<vmem>>, vector<1x1x128x128xbf16>
    %57 = vector.shape_cast %56 : vector<1x1x128x128xbf16> to vector<128x128xbf16>
    %cst_77 = arith.constant dense<0.000000e+00> : vector<64x128xf32>
    %58 = tpu.matmul %55, %57, %cst_77 {dimension_numbers = #tpu.dot_dimension_numbers<[1], [0], [0], [1], [0, 0, 1, 1], [], []>} : vector<64x128xbf16>, vector<128x128xbf16>, vector<64x128xf32> -> vector<64x128xf32>
    %59 = arith.addf %52, %58 : vector<64x128xf32>
    %c0_78 = arith.constant 0 : index
    %c0_79 = arith.constant 0 : index
    %c2_80 = arith.constant 2 : index
    %c2_81 = arith.constant 2 : index
    %c0_82 = arith.constant 0 : index
    %60 = vector.load %arg3[%c0_78, %c0_79, %c2_80, %c2_81, %c0_82] : memref<1x1x10x10x128xbf16, #tpu.memory_space<vmem>>, vector<1x1x8x8x128xbf16>
    %61 = vector.shape_cast %60 : vector<1x1x8x8x128xbf16> to vector<8x8x128xbf16>
    %62 = vector.shape_cast %61 : vector<8x8x128xbf16> to vector<64x128xbf16>
    %c2_83 = arith.constant 2 : index
    %c2_84 = arith.constant 2 : index
    %c0_85 = arith.constant 0 : index
    %c0_86 = arith.constant 0 : index
    %63 = vector.load %arg4[%c2_83, %c2_84, %c0_85, %c0_86] : memref<3x3x128x128xbf16, #tpu.memory_space<vmem>>, vector<1x1x128x128xbf16>
    %64 = vector.shape_cast %63 : vector<1x1x128x128xbf16> to vector<128x128xbf16>
    %cst_87 = arith.constant dense<0.000000e+00> : vector<64x128xf32>
    %65 = tpu.matmul %62, %64, %cst_87 {dimension_numbers = #tpu.dot_dimension_numbers<[1], [0], [0], [1], [0, 0, 1, 1], [], []>} : vector<64x128xbf16>, vector<128x128xbf16>, vector<64x128xf32> -> vector<64x128xf32>
    %66 = arith.addf %59, %65 : vector<64x128xf32>
    %c0_88 = arith.constant 0 : index
    %c0_89 = arith.constant 0 : index
    %67 = vector.load %arg9[%c0_88, %c0_89] : memref<64x128xf32, #tpu.memory_space<vmem>>, vector<64x128xf32>
    %68 = arith.addf %67, %66 : vector<64x128xf32>
    %c0_90 = arith.constant 0 : index
    %c0_91 = arith.constant 0 : index
    %69 = vector.load %arg9[%c0_90, %c0_91] : memref<64x128xf32, #tpu.memory_space<vmem>>, vector<64x128xf32>
    tpu.vector_store %arg9[%c0_90, %c0_91], %68 {strides = array<i32>} : memref<64x128xf32, #tpu.memory_space<vmem>>, vector<64x128xf32>,
    %c0_i32_92 = arith.constant 0 : i32
    %70 = arith.cmpi eq, %arg2, %c0_i32_92 : i32
    %71 = arith.extui %70 : i1 to i32
    %c0_i32_93 = arith.constant 0 : i32
    %72 = arith.cmpi ne, %71, %c0_i32_93 : i32
    scf.if %72 {
      %c0_94 = arith.constant 0 : index
      %c0_95 = arith.constant 0 : index
      %73 = vector.load %arg9[%c0_94, %c0_95] : memref<64x128xf32, #tpu.memory_space<vmem>>, vector<64x128xf32>
      %c0_96 = arith.constant 0 : index
      %c0_97 = arith.constant 0 : index
      %74 = vector.load %arg5[%c0_96, %c0_97] : memref<1x128xf32, #tpu.memory_space<vmem>>, vector<1x128xf32>
      %75 = vector.broadcast %74 : vector<1x128xf32> to vector<64x128xf32>
      %76 = arith.mulf %73, %75 : vector<64x128xf32>
      %c0_98 = arith.constant 0 : index
      %c0_99 = arith.constant 0 : index
      %77 = vector.load %arg6[%c0_98, %c0_99] : memref<1x128xf32, #tpu.memory_space<vmem>>, vector<1x128xf32>
      %78 = vector.broadcast %77 : vector<1x128xf32> to vector<64x128xf32>
      %79 = arith.addf %76, %78 : vector<64x128xf32>
      %c0_100 = arith.constant 0 : index
      %c0_101 = arith.constant 0 : index
      %c0_102 = arith.constant 0 : index
      %80 = vector.load %arg7[%c0_100, %c0_101, %c0_102] : memref<1x64x128xbf16, #tpu.memory_space<vmem>>, vector<1x64x128xbf16>
      %81 = vector.shape_cast %80 : vector<1x64x128xbf16> to vector<64x128xbf16>
      %82 = arith.extf %81 : vector<64x128xbf16> to vector<64x128xf32>
      %83 = arith.addf %79, %82 : vector<64x128xf32>
      %cst_103 = arith.constant 0.000000e+00 : f32
      %84 = vector.broadcast %cst_103 : f32 to vector<64x128xf32>
      %85 = arith.maximumf %83, %84 : vector<64x128xf32>
      %c0_104 = arith.constant 0 : index
      %c0_105 = arith.constant 0 : index
      %c0_106 = arith.constant 0 : index
      %86 = vector.load %arg8[%c0_104, %c0_105, %c0_106] : memref<1x64x128xf32, #tpu.memory_space<vmem>>, vector<1x64x128xf32>
      %87 = vector.shape_cast %86 : vector<1x64x128xf32> to vector<64x128xf32>
      %88 = vector.shape_cast %85 : vector<64x128xf32> to vector<1x64x128xf32>
      tpu.vector_store %arg8[%c0_104, %c0_105, %c0_106], %88 {strides = array<i32>} : memref<1x64x128xf32, #tpu.memory_space<vmem>>, vector<1x64x128xf32>,
    } else {
    }
    return
  }
  func.func @transform_0(%arg0: i32, %arg1: i32, %arg2: i32) -> (i32, i32, i32, i32, i32) {
    %c0_i32 = arith.constant 0 : i32
    %c0_i32_0 = arith.constant 0 : i32
    %c0_i32_1 = arith.constant 0 : i32
    %c0_i32_2 = arith.constant 0 : i32
    return %c0_i32, %arg0, %c0_i32_0, %c0_i32_1, %arg2 : i32, i32, i32, i32, i32
  }
  func.func @transform_1(%arg0: i32, %arg1: i32, %arg2: i32) -> (i32, i32, i32, i32) {
    %c0_i32 = arith.constant 0 : i32
    %c0_i32_0 = arith.constant 0 : i32
    %c0_i32_1 = arith.constant 0 : i32
    return %c0_i32, %c0_i32_0, %arg2, %arg1 : i32, i32, i32, i32
  }
  func.func @transform_2(%arg0: i32, %arg1: i32, %arg2: i32) -> (i32, i32) {
    %c0_i32 = arith.constant 0 : i32
    %c0_i32_0 = arith.constant 0 : i32
    return %c0_i32, %arg1 : i32, i32
  }
  func.func @transform_3(%arg0: i32, %arg1: i32, %arg2: i32) -> (i32, i32) {
    %c0_i32 = arith.constant 0 : i32
    %c0_i32_0 = arith.constant 0 : i32
    return %c0_i32, %arg1 : i32, i32
  }
  func.func @transform_4(%arg0: i32, %arg1: i32, %arg2: i32) -> (i32, i32, i32) {
    %c0_i32 = arith.constant 0 : i32
    %c0_i32_0 = arith.constant 0 : i32
    return %arg0, %c0_i32, %arg1 : i32, i32, i32
  }
  func.func @transform_5(%arg0: i32, %arg1: i32, %arg2: i32) -> (i32, i32, i32) {
    %c0_i32 = arith.constant 0 : i32
    %c0_i32_0 = arith.constant 0 : i32
    return %arg0, %c0_i32, %arg1 : i32, i32, i32
  }
}

</mosaic_0001>

<llo_original>
// kernel: _lambda_.5
$region0: #{_lambda_.5}
  #allocation0 [shape = 'u32[]', space=smem, size = 0x4, offset = 0x4, fixed_abs, tag = 'smem constant byte address 0x4 - core index']
  #allocation1 [shape = 'u32[144,128]{1,0:T(1,128)}', space=vmem, size = 0x12000, scoped, tag = 'internal scratch']
  #allocation2 [shape = 'f32[64,128]{1,0:T(8,128)}', space=vmem, size = 0x8000, scoped, tag = 'scratch operand']
  %s0 = inlined_call_operand.vmem [shape: bf16[1,2,8,8,64], index: 0, kind: input, shape index: {}]
  %s1 = inlined_call_operand.vmem [shape: bf16[1,1,64,128], index: 1, kind: input, shape index: {}]
  %s2 = inlined_call_operand.vmem [shape: f32[1,128], index: 2, kind: input, shape index: {}]
  %s3 = inlined_call_operand.vmem [shape: f32[1,128], index: 3, kind: input, shape index: {}]
  %s4 = inlined_call_operand.vmem [shape: bf16[2,64,128], index: 4, kind: output, shape index: {}]
  %s5 = sld [smem:[#allocation0]]
  $region57: #{_lambda_.5} parent=0
    _
  %s7 = ssub.s32 1, %s5
  %s8 = scalar_select 0, %s7, %s5
  loop: start=0, step=1, limit=4
  $region2: #{_lambda_.5} parent=0 // loop_pre_header
    _
  $region3: #{_lambda_.5} parent=0 // loop_header
    %s10 = sphi 0, %s14
    %p11 = scmp.ge.s32.totalorder %s10, 4
    %s17 = sphi 0, %s36
    %s18 = sphi 0, %s32
    %s19 = sphi 0, %s28
    %s20 = sphi 0, %s17
    %s21 = sphi 0, %s18
    %s22 = sphi 0, %s19
    %s23 = sphi 0, %s20
    %s24 = sphi 0, %s21
    %s25 = sphi 0, %s22
    %s41 = sphi 0, %s43
    %s44 = sphi 0, %s41
    %s45 = sphi 0, %s44
    %s61 = sphi 0, %s45
    %s69 = sphi 0, %s71
    %s72 = sphi 0, %s69
    %s73 = sphi 0, %s72
    %s89 = sphi 0, %s73
    %s95 = sphi 0, %s97
    %s98 = sphi 0, %s95
    %s99 = sphi 0, %s98
    %s115 = sphi 0, %s99
    %s121 = sphi 0, %s123
    %s124 = sphi 0, %s121
    %s125 = sphi 0, %s124
    %s141 = sphi 0, %s125
    %s149 = sphi 0, %s151
    %s152 = sphi 0, %s149
    %s153 = sphi 0, %s152
    %s169 = sphi 0, %s153
  $region4: #{_lambda_.5} parent=0 // loop_header_branch
    %13 = sbr.rel (%p11) target = $region8
  $region5: #{_lambda_.5} parent=0 // loop_body
    %s15 = ssub.s32 %s10, 1
    %s16 = ssub.s32 %s10, 2
    %s26 = sadd.s32 1, %s19
    %p27 = scmp.ge.s32.totalorder %s26, 1
    %s28 = scalar_select %p27, 0, %s26
    %s29 = sadd.s32 1, %s18
    %s30 = scalar_select %p27, %s29, %s18
    %p31 = scmp.ge.s32.totalorder %s30, 1
    %s32 = scalar_select %p31, 0, %s30
    %s33 = sadd.s32 1, %s17
    %s34 = scalar_select %p31, %s33, %s17
    %p35 = scmp.ge.s32.totalorder %s34, 2
    %s36 = scalar_select %p35, 0, %s34
    %s37 = ssub.s32 %s17, %s36
    %s38 = ssub.s32 %s19, %s28
    %s39 = sor.u32 %s37, %s38
    %p40 = scmp.eq.s32.totalorder %s39, 0
    %s42 = sadd.s32 %s41, 1
    %s43 = scalar_select %p40, %s41, %s42
    %p46 = pneg %p40
    %p47 = scmp.eq.s32.totalorder %s10, 1
    %p48 = por %p46, %p47
    %p49 = scmp.ne.s32.totalorder %s41, %s44
    %p50 = scmp.eq.s32.totalorder %s10, 0
    %p51 = por %p49, %p50
    %p52 = scmp.ne.s32.totalorder %s41, %s44
    %p53 = scmp.eq.s32.totalorder %s15, 1
    %p54 = por %p52, %p53
    %p55 = scmp.ne.s32.totalorder %s44, %s45
    %p56 = scmp.eq.s32.totalorder %s15, 0
    %p57 = por %p55, %p56
    %p58 = scmp.ne.s32.totalorder %s44, %s45
    %p59 = scmp.eq.s32.totalorder %s16, 1
    %p60 = por %p58, %p59
    %p62 = scmp.ne.s32.totalorder %s45, %s61
    %p63 = scmp.eq.s32.totalorder %s16, 0
    %p64 = por %p62, %p63
    %s65 = ssub.s32 %s19, %s28
    %s66 = ssub.s32 %s18, %s32
    %s67 = sor.u32 %s65, %s66
    %p68 = scmp.eq.s32.totalorder %s67, 0
    %s70 = sadd.s32 %s69, 1
    %s71 = scalar_select %p68, %s69, %s70
    %p74 = pneg %p68
    %p75 = scmp.eq.s32.totalorder %s10, 1
    %p76 = por %p74, %p75
    %p77 = scmp.ne.s32.totalorder %s69, %s72
    %p78 = scmp.eq.s32.totalorder %s10, 0
    %p79 = por %p77, %p78
    %p80 = scmp.ne.s32.totalorder %s69, %s72
    %p81 = scmp.eq.s32.totalorder %s15, 1
    %p82 = por %p80, %p81
    %p83 = scmp.ne.s32.totalorder %s72, %s73
    %p84 = scmp.eq.s32.totalorder %s15, 0
    %p85 = por %p83, %p84
    %p86 = scmp.ne.s32.totalorder %s72, %s73
    %p87 = scmp.eq.s32.totalorder %s16, 1
    %p88 = por %p86, %p87
    %p90 = scmp.ne.s32.totalorder %s73, %s89
    %p91 = scmp.eq.s32.totalorder %s16, 0
    %p92 = por %p90, %p91
    %s93 = ssub.s32 %s18, %s32
    %p94 = scmp.eq.s32.totalorder %s93, 0
    %s96 = sadd.s32 %s95, 1
    %s97 = scalar_select %p94, %s95, %s96
    %p100 = pneg %p94
    %p101 = scmp.eq.s32.totalorder %s10, 1
    %p102 = por %p100, %p101
    %p103 = scmp.ne.s32.totalorder %s95, %s98
    %p104 = scmp.eq.s32.totalorder %s10, 0
    %p105 = por %p103, %p104
    %p106 = scmp.ne.s32.totalorder %s95, %s98
    %p107 = scmp.eq.s32.totalorder %s15, 1
    %p108 = por %p106, %p107
    %p109 = scmp.ne.s32.totalorder %s98, %s99
    %p110 = scmp.eq.s32.totalorder %s15, 0
    %p111 = por %p109, %p110
    %p112 = scmp.ne.s32.totalorder %s98, %s99
    %p113 = scmp.eq.s32.totalorder %s16, 1
    %p114 = por %p112, %p113
    %p116 = scmp.ne.s32.totalorder %s99, %s115
    %p117 = scmp.eq.s32.totalorder %s16, 0
    %p118 = por %p116, %p117
    %s119 = ssub.s32 %s18, %s32
    %p120 = scmp.eq.s32.totalorder %s119, 0
    %s122 = sadd.s32 %s121, 1
    %s123 = scalar_select %p120, %s121, %s122
    %p126 = pneg %p120
    %p127 = scmp.eq.s32.totalorder %s10, 1
    %p128 = por %p126, %p127
    %p129 = scmp.ne.s32.totalorder %s121, %s124
    %p130 = scmp.eq.s32.totalorder %s10, 0
    %p131 = por %p129, %p130
    %p132 = scmp.ne.s32.totalorder %s121, %s124
    %p133 = scmp.eq.s32.totalorder %s15, 1
    %p134 = por %p132, %p133
    %p135 = scmp.ne.s32.totalorder %s124, %s125
    %p136 = scmp.eq.s32.totalorder %s15, 0
    %p137 = por %p135, %p136
    %p138 = scmp.ne.s32.totalorder %s124, %s125
    %p139 = scmp.eq.s32.totalorder %s16, 1
    %p140 = por %p138, %p139
    %p142 = scmp.ne.s32.totalorder %s125, %s141
    %p143 = scmp.eq.s32.totalorder %s16, 0
    %p144 = por %p142, %p143
    %s145 = ssub.s32 %s17, %s36
    %s146 = ssub.s32 %s18, %s32
    %s147 = sor.u32 %s145, %s146
    %p148 = scmp.eq.s32.totalorder %s147, 0
    %s150 = sadd.s32 %s149, 1
    %s151 = scalar_select %p148, %s149, %s150
    %p154 = pneg %p148
    %p155 = scmp.eq.s32.totalorder %s10, 1
    %p156 = por %p154, %p155
    %p157 = scmp.ne.s32.totalorder %s149, %s152
    %p158 = scmp.eq.s32.totalorder %s10, 0
    %p159 = por %p157, %p158
    %p160 = scmp.ne.s32.totalorder %s149, %s152
    %p161 = scmp.eq.s32.totalorder %s15, 1
    %p162 = por %p160, %p161
    %p163 = scmp.ne.s32.totalorder %s152, %s153
    %p164 = scmp.eq.s32.totalorder %s15, 0
    %p165 = por %p163, %p164
    %p166 = scmp.ne.s32.totalorder %s152, %s153
    %p167 = scmp.eq.s32.totalorder %s16, 1
    %p168 = por %p166, %p167
    %p170 = scmp.ne.s32.totalorder %s153, %s169
    %p171 = scmp.eq.s32.totalorder %s16, 0
    %p172 = por %p170, %p171
    %p173 = scmp.le.s32.totalorder 1, %s10
    %p174 = scmp.lt.s32.totalorder %s10, 3
    %p175 = pnand %p173, %p174
    %p176 = pneg %p175
    // Predicated region
    $region9: #{_lambda_.5} parent=5 // pred_check
      _
    $region10: #{_lambda_.5} parent=5 // pred_check_branch
      %178 = sbr.rel (%p175) target = $region12
    $region11: #{_lambda_.5} parent=5 // pred_region
      %s179 = ssub.s32 %s10, 1
      // Predicated region
      $region13: #{_lambda_.5} parent=11 // pred_check
        %p180 = pneg %p85
      $region14: #{_lambda_.5} parent=11 // pred_check_branch
        %182 = sbr.rel (%p180) target = $region16
      $region15: #{_lambda_.5} parent=11 // pred_region
        %s183 = smul.u32 8, %s22
        %p184 = scmp.lt.s32.totalorder %s183, 7
        %s185 = scalar_select %p184, %s183, 7
        %p186 = scmp.lt.s32.totalorder %s21, 0
        %s187 = scalar_select %p186, %s21, 0
        %s188 = sadd.s32 %s187, %s185
        %s189 = smul.addr %s188, 4
        %s190 = scalar_lea.vmem %s1, %s189
        %s191 = smul.u32 8, %s22
      $region16: #{_lambda_.5} parent=11 // pred_fallthru
        _
      // Predicated region
      $region17: #{_lambda_.5} parent=11 // pred_check
        %p192 = pneg %p111
      $region18: #{_lambda_.5} parent=11 // pred_check_branch
        %194 = sbr.rel (%p192) target = $region20
      $region19: #{_lambda_.5} parent=11 // pred_region
        %p195 = scmp.lt.s32.totalorder %s21, 0
        %s196 = scalar_select %p195, %s21, 0
        %s197 = scalar_lea.vmem %s2, %s196
      $region20: #{_lambda_.5} parent=11 // pred_fallthru
        _
      // Predicated region
      $region21: #{_lambda_.5} parent=11 // pred_check
        %p198 = pneg %p137
      $region22: #{_lambda_.5} parent=11 // pred_check_branch
        %200 = sbr.rel (%p198) target = $region24
      $region23: #{_lambda_.5} parent=11 // pred_region
        %p201 = scmp.lt.s32.totalorder %s21, 0
        %s202 = scalar_select %p201, %s21, 0
        %s203 = scalar_lea.vmem %s3, %s202
      $region24: #{_lambda_.5} parent=11 // pred_fallthru
        _
    $region12: #{_lambda_.5} parent=5 // pred_fallthru
      _
    %p204 = scmp.lt.s32.totalorder %s10, 2
    // Predicated region
    $region25: #{_lambda_.5} parent=5 // pred_check
      %p205 = pneg %p204
    $region26: #{_lambda_.5} parent=5 // pred_check_branch
      %207 = sbr.rel (%p205) target = $region28
    $region27: #{_lambda_.5} parent=5 // pred_region
      // Predicated region
      $region29: #{_lambda_.5} parent=27 // pred_check
        %p208 = pneg %p51
      $region30: #{_lambda_.5} parent=27 // pred_check_branch
        %210 = sbr.rel (%p208) target = $region32
      $region31: #{_lambda_.5} parent=27 // pred_region
        %p211 = scmp.lt.s32.totalorder %s17, 1
        %s212 = scalar_select %p211, %s17, 1
        %p213 = scmp.lt.s32.totalorder %s19, 0
        %s214 = scalar_select %p213, %s19, 0
        %s215 = smul.addr %s212, 8
        %s216 = sadd.s32 %s214, %s215
        %s217 = smul.addr %s216, 4
        %s218 = scalar_lea.vmem %s0, %s217
      $region32: #{_lambda_.5} parent=27 // pred_fallthru
        _
    $region28: #{_lambda_.5} parent=5 // pred_fallthru
      _
    %p219 = scmp.le.s32.totalorder 1, %s10
    %p220 = scmp.lt.s32.totalorder %s10, 3
    %p221 = pnand %p219, %p220
    %p222 = pneg %p221
    // Predicated region
    $region33: #{_lambda_.5} parent=5 // pred_check
      _
    $region34: #{_lambda_.5} parent=5 // pred_check_branch
      %224 = sbr.rel (%p221) target = $region36
    $region35: #{_lambda_.5} parent=5 // pred_region
      %s225 = ssub.s32 %s10, 1
      %p226 = scmp.lt.s32.totalorder %s20, 1
      %s227 = scalar_select %p226, %s20, 1
      %p228 = scmp.lt.s32.totalorder %s22, 0
      %s229 = scalar_select %p228, %s22, 0
      %s230 = smul.addr %s227, 8
      %s231 = sadd.s32 %s229, %s230
      %s232 = smul.addr %s231, 4
      %s233 = scalar_lea.vmem %s0, %s232
      %p234 = pneg %p57
      %p235 = pneg %p54
      %s236 = smul.u32 8, %s22
      %p237 = scmp.lt.s32.totalorder %s236, 7
      %s238 = scalar_select %p237, %s236, 7
      %p239 = scmp.lt.s32.totalorder %s21, 0
      %s240 = scalar_select %p239, %s21, 0
      %s241 = sadd.s32 %s240, %s238
      %s242 = smul.addr %s241, 4
      %s243 = scalar_lea.vmem %s1, %s242
      %p244 = pneg %p85
      %p245 = pneg %p82
      %p246 = scmp.lt.s32.totalorder %s21, 0
      %s247 = scalar_select %p246, %s21, 0
      %s248 = scalar_lea.vmem %s2, %s247
      %p249 = pneg %p111
      %p250 = pneg %p108
      %p251 = scmp.lt.s32.totalorder %s21, 0
      %s252 = scalar_select %p251, %s21, 0
      %s253 = scalar_lea.vmem %s3, %s252
      %p254 = pneg %p137
      %p255 = pneg %p134
      %p256 = pneg %p165
      %p257 = pneg %p162
      %p258 = scmp.lt.s32.totalorder %s20, 1
      %s259 = scalar_select %p258, %s20, 1
      %p260 = scmp.lt.s32.totalorder %s21, 0
      %s261 = scalar_select %p260, %s21, 0
      %s262 = smul.addr %s259, 8
      %s263 = sadd.s32 %s261, %s262
      %s264 = smul.addr %s263, 4
      %s265 = scalar_lea.vmem %s4, %s264
      %p266 = scmp.lt.s32.totalorder %s20, 1
      %s267 = scalar_select %p266, %s20, 1
      %p268 = scmp.lt.s32.totalorder %s22, 0
      %s269 = scalar_select %p268, %s22, 0
      %s270 = smul.addr %s267, 8
      %s271 = sadd.s32 %s269, %s270
      %s272 = smul.addr %s271, 4
      %s273 = scalar_lea.vmem %s0, %s272
      %s274 = smul.u32 8, %s22
      %p275 = scmp.lt.s32.totalorder %s274, 7
      %s276 = scalar_select %p275, %s274, 7
      %p277 = scmp.lt.s32.totalorder %s21, 0
      %s278 = scalar_select %p277, %s21, 0
      %s279 = sadd.s32 %s278, %s276
      %s280 = smul.addr %s279, 4
      %s281 = scalar_lea.vmem %s1, %s280
      %s282 = smul.u32 8, %s22
      %p283 = scmp.lt.s32.totalorder %s21, 0
      %s284 = scalar_select %p283, %s21, 0
      %s285 = scalar_lea.vmem %s2, %s284
      %p286 = scmp.lt.s32.totalorder %s21, 0
      %s287 = scalar_select %p286, %s21, 0
      %s288 = scalar_lea.vmem %s3, %s287
      %p289 = scmp.lt.s32.totalorder %s20, 1
      %s290 = scalar_select %p289, %s20, 1
      %p291 = scmp.lt.s32.totalorder %s21, 0
      %s292 = scalar_select %p291, %s21, 0
      %s293 = smul.addr %s290, 8
      %s294 = sadd.s32 %s292, %s293
      %s295 = smul.addr %s294, 4
      %s296 = scalar_lea.vmem %s4, %s295
      %p298 = scmp.eq.s32.totalorder %s22, 0
      // Predicated region
      $region37: #{_lambda_.5} parent=35 // pred_check
        %p299 = pneg %p298
      $region38: #{_lambda_.5} parent=35 // pred_check_branch
        %301 = sbr.rel (%p299) target = $region40
      $region39: #{_lambda_.5} parent=35 // pred_region
        %302 = vst [vmem:[#allocation2] sm:$0xff] 0.0
        %303 = vst [vmem:[#allocation2 + $0x8] sm:$0xff] 0.0
        %304 = vst [vmem:[#allocation2 + $0x10] sm:$0xff] 0.0
        %305 = vst [vmem:[#allocation2 + $0x18] sm:$0xff] 0.0
        %306 = vst [vmem:[#allocation2 + $0x20] sm:$0xff] 0.0
        %307 = vst [vmem:[#allocation2 + $0x28] sm:$0xff] 0.0
        %308 = vst [vmem:[#allocation2 + $0x30] sm:$0xff] 0.0
        %309 = vst [vmem:[#allocation2 + $0x38] sm:$0xff] 0.0
      $region40: #{_lambda_.5} parent=35 // pred_fallthru
        _
      %v310 = vld [vmem:[%s273] sm:$0xf]
      %v311 = vld [vmem:[%s273 + $0x4] sm:$0xf]
      %v312 = vld [vmem:[%s273 + $0x8] sm:$0xf]
      %v313 = vld [vmem:[%s273 + $0xc] sm:$0xf]
      %v314 = vld [vmem:[%s273 + $0x10] sm:$0xf]
      %v315 = vld [vmem:[%s273 + $0x14] sm:$0xf]
      %v316 = vld [vmem:[%s273 + $0x18] sm:$0xf]
      %v317 = vld [vmem:[%s273 + $0x1c] sm:$0xf]
      %v318 = vld [vmem:[%s281] sm:$0xf]
      %v319 = vld [vmem:[%s281 + $0x4] sm:$0xf]
      %v320 = vld [vmem:[%s281 + $0x8] sm:$0xf]
      %v321 = vld [vmem:[%s281 + $0xc] sm:$0xf]
      %v322 = vld [vmem:[%s281 + $0x10] sm:$0xf]
      %v323 = vld [vmem:[%s281 + $0x14] sm:$0xf]
      %v324 = vld [vmem:[%s281 + $0x18] sm:$0xf]
      %v325 = vld [vmem:[%s281 + $0x1c] sm:$0xf]
      %v334 = vunpack.c.l.b16 %v310
      %v335 = vunpack.c.l.b16 %v311
      %v336 = vunpack.c.l.b16 %v312
      %v337 = vunpack.c.l.b16 %v313
      %v338 = vunpack.c.l.b16 %v314
      %v339 = vunpack.c.l.b16 %v315
      %v340 = vunpack.c.l.b16 %v316
      %v341 = vunpack.c.l.b16 %v317
      %v342 = vpack.c.b16 %v335, %v334
      %v343 = vpack.c.b16 %v337, %v336
      %v344 = vpack.c.b16 %v339, %v338
      %v345 = vpack.c.b16 %v341, %v340
      %v354 = vunpack.c.l.b16 %v318
      %v355 = vunpack.c.l.b16 %v319
      %v356 = vunpack.c.l.b16 %v320
      %v357 = vunpack.c.l.b16 %v321
      %v358 = vunpack.c.l.b16 %v322
      %v359 = vunpack.c.l.b16 %v323
      %v360 = vunpack.c.l.b16 %v324
      %v361 = vunpack.c.l.b16 %v325
      %v362 = vpack.c.b16 %v355, %v354
      %v363 = vpack.c.b16 %v357, %v356
      %v364 = vpack.c.b16 %v359, %v358
      %v365 = vpack.c.b16 %v361, %v360
      %vm370 = vcmask 523264
      %v372 = vsel %vm370, %v342, 0
      %v375 = vsel %vm370, %v343, 0
      %v378 = vsel %vm370, %v344, 0
      %v381 = vsel %vm370, %v345, 0
      %383 = vmatprep.subr.bf16.mxu0 0
      %384 = vmatpush1.bf16.msra.mxu0 %v362
      %385 = vmatprep.subr.bf16.mxu0 0
      %386 = vmatpush1.bf16.msra.mxu0 %v363
      %387 = vmatprep.subr.bf16.mxu0 0
      %388 = vmatpush1.bf16.msra.mxu0 %v364
      %389 = vmatprep.subr.bf16.mxu0 0
      %390 = vmatpush1.bf16.msra.mxu0 %v365
      %391 = vmatprep.subr.bf16.mxu0 0
      %392 = vmatpush1.bf16.msra.mxu0 0
      %393 = vmatprep.subr.bf16.mxu0 0
      %394 = vmatpush1.bf16.msra.mxu0 0
      %395 = vmatprep.subr.bf16.mxu0 0
      %396 = vmatpush1.bf16.msra.mxu0 0
      %397 = vmatprep.subr.bf16.mxu0 0
      %398 = vmatpush1.bf16.msra.mxu0 0
      %399 = vmatprep.subr.bf16.mxu0 0
      %400 = vmatpush1.bf16.msra.mxu0 0
      %401 = vmatprep.subr.bf16.mxu0 0
      %402 = vmatpush1.bf16.msra.mxu0 0
      %403 = vmatprep.subr.bf16.mxu0 0
      %404 = vmatpush1.bf16.msra.mxu0 0
      %405 = vmatprep.subr.bf16.mxu0 0
      %406 = vmatpush1.bf16.msra.mxu0 0
      %407 = vmatprep.subr.bf16.mxu0 0
      %408 = vmatpush1.bf16.msra.mxu0 0
      %409 = vmatprep.subr.bf16.mxu0 0
      %410 = vmatpush1.bf16.msra.mxu0 0
      %411 = vmatprep.subr.bf16.mxu0 0
      %412 = vmatpush1.bf16.msra.mxu0 0
      %413 = vmatprep.subr.bf16.mxu0 0
      %414 = vmatpush1.bf16.msra.mxu0 0
      %415 = vmatprep.mubr.bf16.mxu0 0
      %416 = vmatmul.mubr.bf16.gmra.mrb[0].mxu0 %v372
      %v417 = vpop.f32.mrb[0].mxu0
      %v418 = vadd.f32 0.0, %v417
      %v419 = vpop.f32.mrb[0].mxu0
      %v420 = vpop.f32.mrb[0].mxu0
      %v421 = vadd.f32 0.0, %v420
      %v422 = vpop.f32.mrb[0].mxu0
      %423 = vmatprep.mubr.bf16.mxu0 0
      %424 = vmatmul.mubr.bf16.gmra.mrb[0].mxu0 %v375
      %v425 = vpop.f32.mrb[0].mxu0
      %v426 = vadd.f32 0.0, %v425
      %v427 = vpop.f32.mrb[0].mxu0
      %v428 = vpop.f32.mrb[0].mxu0
      %v429 = vadd.f32 0.0, %v428
      %v430 = vpop.f32.mrb[0].mxu0
      %431 = vmatprep.mubr.bf16.mxu0 0
      %432 = vmatmul.mubr.bf16.gmra.mrb[0].mxu0 %v378
      %v433 = vpop.f32.mrb[0].mxu0
      %v434 = vadd.f32 0.0, %v433
      %v435 = vpop.f32.mrb[0].mxu0
      %v436 = vpop.f32.mrb[0].mxu0
      %v437 = vadd.f32 0.0, %v436
      %v438 = vpop.f32.mrb[0].mxu0
      %439 = vmatprep.mubr.bf16.mxu0 0
      %440 = vmatmul.mubr.bf16.gmra.mrb[0].mxu0 %v381
      %v441 = vpop.f32.mrb[0].mxu0
      %v442 = vadd.f32 0.0, %v441
      %v443 = vpop.f32.mrb[0].mxu0
      %v444 = vpop.f32.mrb[0].mxu0
      %v445 = vadd.f32 0.0, %v444
      %v446 = vpop.f32.mrb[0].mxu0
      %447 = vdwg.mxu0
      %v448 = vld [vmem:[#allocation2] sm:$0xff]
      %v449 = vld [vmem:[#allocation2 + $0x8] sm:$0xff]
      %v450 = vld [vmem:[#allocation2 + $0x10] sm:$0xff]
      %v451 = vld [vmem:[#allocation2 + $0x18] sm:$0xff]
      %v452 = vld [vmem:[#allocation2 + $0x20] sm:$0xff]
      %v453 = vld [vmem:[#allocation2 + $0x28] sm:$0xff]
      %v454 = vld [vmem:[#allocation2 + $0x30] sm:$0xff]
      %v455 = vld [vmem:[#allocation2 + $0x38] sm:$0xff]
      %v456 = vadd.f32 %v448, %v418
      %v457 = vadd.f32 %v449, %v421
      %v458 = vadd.f32 %v450, %v426
      %v459 = vadd.f32 %v451, %v429
      %v460 = vadd.f32 %v452, %v434
      %v461 = vadd.f32 %v453, %v437
      %v462 = vadd.f32 %v454, %v442
      %v463 = vadd.f32 %v455, %v445
      %464 = vst [vmem:[#allocation2] sm:$0xff] %v456
      %465 = vst [vmem:[#allocation2 + $0x8] sm:$0xff] %v457
      %466 = vst [vmem:[#allocation2 + $0x10] sm:$0xff] %v458
      %467 = vst [vmem:[#allocation2 + $0x18] sm:$0xff] %v459
      %468 = vst [vmem:[#allocation2 + $0x20] sm:$0xff] %v460
      %469 = vst [vmem:[#allocation2 + $0x28] sm:$0xff] %v461
      %470 = vst [vmem:[#allocation2 + $0x30] sm:$0xff] %v462
      %471 = vst [vmem:[#allocation2 + $0x38] sm:$0xff] %v463
      // Predicated region
      $region41: #{_lambda_.5} parent=35 // pred_check
        %p472 = pneg %p298
      $region42: #{_lambda_.5} parent=35 // pred_check_branch
        %474 = sbr.rel (%p472) target = $region44
      $region43: #{_lambda_.5} parent=35 // pred_region
        %v475 = vld [vmem:[#allocation2] sm:$0xff]
        %v476 = vld [vmem:[#allocation2 + $0x8] sm:$0xff]
        %v477 = vld [vmem:[#allocation2 + $0x10] sm:$0xff]
        %v478 = vld [vmem:[#allocation2 + $0x18] sm:$0xff]
        %v479 = vld [vmem:[#allocation2 + $0x20] sm:$0xff]
        %v480 = vld [vmem:[#allocation2 + $0x28] sm:$0xff]
        %v481 = vld [vmem:[#allocation2 + $0x30] sm:$0xff]
        %v482 = vld [vmem:[#allocation2 + $0x38] sm:$0xff]
        %v483 = vld [vmem:[%s285] sm:$0x1]
        %v485 = vlaneseq
        %v486 = vshrl.u32 %v485, 7
        %v487 = vsub.s32 0, %v486
        %v488 = vrot.slane %v483, %v487
        %v490 = vmul.f32 %v475, %v488
        %v491 = vmul.f32 %v476, %v488
        %v492 = vmul.f32 %v477, %v488
        %v493 = vmul.f32 %v478, %v488
        %v494 = vmul.f32 %v479, %v488
        %v495 = vmul.f32 %v480, %v488
        %v496 = vmul.f32 %v481, %v488
        %v497 = vmul.f32 %v482, %v488
        %v498 = vld [vmem:[%s288] sm:$0x1]
        %v500 = vlaneseq
        %v501 = vshrl.u32 %v500, 7
        %v502 = vsub.s32 0, %v501
        %v503 = vrot.slane %v498, %v502
        %v505 = vadd.f32 %v490, %v503
        %v506 = vadd.f32 %v491, %v503
        %v507 = vadd.f32 %v492, %v503
        %v508 = vadd.f32 %v493, %v503
        %v509 = vadd.f32 %v494, %v503
        %v510 = vadd.f32 %v495, %v503
        %v511 = vadd.f32 %v496, %v503
        %v512 = vadd.f32 %v497, %v503
        %v513 = vpack.c.bf16 %v506, %v505
        %v514 = vpack.c.bf16 %v508, %v507
        %v515 = vpack.c.bf16 %v510, %v509
        %v516 = vpack.c.bf16 %v512, %v511
        %v521 = vunpack.c.l.b16 %v513
        %v522 = vunpack.c.h.b16 %v513
        %v523 = vunpack.c.l.b16 %v514
        %v524 = vunpack.c.h.b16 %v514
        %v525 = vunpack.c.l.b16 %v515
        %v526 = vunpack.c.h.b16 %v515
        %v527 = vunpack.c.l.b16 %v516
        %v528 = vunpack.c.h.b16 %v516
        %v529 = vpack.c.b16 %v521, %v521
        %v530 = vpack.c.b16 %v522, %v522
        %v531 = vpack.c.b16 %v523, %v523
        %v532 = vpack.c.b16 %v524, %v524
        %v533 = vpack.c.b16 %v525, %v525
        %v534 = vpack.c.b16 %v526, %v526
        %v535 = vpack.c.b16 %v527, %v527
        %v536 = vpack.c.b16 %v528, %v528
        %545 = vst [vmem:[%s296] sm:$0xf] %v529
        %546 = vst [vmem:[%s296 + $0x4] sm:$0xf] %v530
        %547 = vst [vmem:[%s296 + $0x8] sm:$0xf] %v531
        %548 = vst [vmem:[%s296 + $0xc] sm:$0xf] %v532
        %549 = vst [vmem:[%s296 + $0x10] sm:$0xf] %v533
        %550 = vst [vmem:[%s296 + $0x14] sm:$0xf] %v534
        %551 = vst [vmem:[%s296 + $0x18] sm:$0xf] %v535
        %552 = vst [vmem:[%s296 + $0x1c] sm:$0xf] %v536
      $region44: #{_lambda_.5} parent=35 // pred_fallthru
        _
      %p553 = scmp.lt.s32.totalorder %s20, 1
      %s554 = scalar_select %p553, %s20, 1
      %p555 = scmp.lt.s32.totalorder %s21, 0
      %s556 = scalar_select %p555, %s21, 0
      %s557 = smul.addr %s554, 8
      %s558 = sadd.s32 %s556, %s557
      %s559 = smul.addr %s558, 4
      %s560 = scalar_lea.vmem %s4, %s559
      // Predicated region
      $region45: #{_lambda_.5} parent=35 // pred_check
        %p561 = pneg %p162
      $region46: #{_lambda_.5} parent=35 // pred_check_branch
        %563 = sbr.rel (%p561) target = $region48
      $region47: #{_lambda_.5} parent=35 // pred_region
        _
      $region48: #{_lambda_.5} parent=35 // pred_fallthru
        _
    $region36: #{_lambda_.5} parent=5 // pred_fallthru
      _
    %p564 = scmp.le.s32.totalorder 2, %s10
    // Predicated region
    $region49: #{_lambda_.5} parent=5 // pred_check
      %p565 = pneg %p564
    $region50: #{_lambda_.5} parent=5 // pred_check_branch
      %567 = sbr.rel (%p565) target = $region52
    $region51: #{_lambda_.5} parent=5 // pred_region
      %s568 = ssub.s32 %s10, 2
      // Predicated region
      $region53: #{_lambda_.5} parent=51 // pred_check
        %p569 = pneg %p168
      $region54: #{_lambda_.5} parent=51 // pred_check_branch
        %571 = sbr.rel (%p569) target = $region56
      $region55: #{_lambda_.5} parent=51 // pred_region
        %p572 = scmp.lt.s32.totalorder %s23, 1
        %s573 = scalar_select %p572, %s23, 1
        %p574 = scmp.lt.s32.totalorder %s24, 0
        %s575 = scalar_select %p574, %s24, 0
        %s576 = smul.addr %s573, 8
        %s577 = sadd.s32 %s575, %s576
        %s578 = smul.addr %s577, 4
        %s579 = scalar_lea.vmem %s4, %s578
      $region56: #{_lambda_.5} parent=51 // pred_fallthru
        _
    $region52: #{_lambda_.5} parent=5 // pred_fallthru
      _
  $region6: #{_lambda_.5} parent=0 // loop_footer
    %s14 = sadd.s32 1, %s10
  $region7: #{_lambda_.5} parent=0 // loop_footer_branch
    %9 = sbr.rel target = $region3
  $region8: #{_lambda_.5} parent=0 // loop_exit
    _

// kernel: _lambda_.6
$region0: #{_lambda_.6}
  #allocation0 [shape = 'u32[]', space=smem, size = 0x4, offset = 0x4, fixed_abs, tag = 'smem constant byte address 0x4 - core index']
  #allocation1 [shape = 'u32[144,128]{1,0:T(1,128)}', space=vmem, size = 0x12000, scoped, tag = 'internal scratch']
  #allocation2 [shape = 'f32[64,128]{1,0:T(8,128)}', space=vmem, size = 0x8000, scoped, tag = 'scratch operand']
  %s0 = inlined_call_operand.vmem [shape: bf16[4,2,9,9,64], index: 0, kind: input, shape index: {}]
  %s1 = inlined_call_operand.vmem [shape: bf16[3,3,64,128], index: 1, kind: input, shape index: {}]
  %s2 = inlined_call_operand.vmem [shape: f32[1,128], index: 2, kind: input, shape index: {}]
  %s3 = inlined_call_operand.vmem [shape: f32[1,128], index: 3, kind: input, shape index: {}]
  %s4 = inlined_call_operand.vmem [shape: bf16[2,64,128], index: 4, kind: output, shape index: {}]
  %s5 = sld [smem:[#allocation0]]
  $region98: #{_lambda_.6} parent=0
    _
  %s7 = ssub.s32 1, %s5
  %s8 = scalar_select 0, %s7, %s5
  $region1: #{_lambda_.6} parent=0
    #allocation3 [shape = 'u8[294912]{0}', space=vmem, size = 0x48000, scoped, tag = 'input window, operand 0']
    loop: start=0, step=1, limit=4
    $region2: #{_lambda_.6} parent=1 // loop_pre_header
      _
    $region3: #{_lambda_.6} parent=1 // loop_header
      %s10 = sphi 0, %s14
      %p11 = scmp.ge.s32.totalorder %s10, 4
      %s17 = sphi 0, %s36
      %s18 = sphi 0, %s32
      %s19 = sphi 0, %s28
      %s20 = sphi 0, %s17
      %s21 = sphi 0, %s18
      %s22 = sphi 0, %s19
      %s23 = sphi 0, %s20
      %s24 = sphi 0, %s21
      %s25 = sphi 0, %s22
      %s41 = sphi 0, %s43
      %s44 = sphi 0, %s41
      %s45 = sphi 0, %s44
      %s61 = sphi 0, %s45
      %s69 = sphi 0, %s71
      %s72 = sphi 0, %s69
      %s73 = sphi 0, %s72
      %s89 = sphi 0, %s73
      %s95 = sphi 0, %s97
      %s98 = sphi 0, %s95
      %s99 = sphi 0, %s98
      %s115 = sphi 0, %s99
      %s121 = sphi 0, %s123
      %s124 = sphi 0, %s121
      %s125 = sphi 0, %s124
      %s141 = sphi 0, %s125
      %s149 = sphi 0, %s151
      %s152 = sphi 0, %s149
      %s153 = sphi 0, %s152
      %s169 = sphi 0, %s153
    $region4: #{_lambda_.6} parent=1 // loop_header_branch
      %13 = sbr.rel (%p11) target = $region8
    $region5: #{_lambda_.6} parent=1 // loop_body
      %s15 = ssub.s32 %s10, 1
      %s16 = ssub.s32 %s10, 2
      %s26 = sadd.s32 1, %s19
      %p27 = scmp.ge.s32.totalorder %s26, 1
      %s28 = scalar_select %p27, 0, %s26
      %s29 = sadd.s32 1, %s18
      %s30 = scalar_select %p27, %s29, %s18
      %p31 = scmp.ge.s32.totalorder %s30, 1
      %s32 = scalar_select %p31, 0, %s30
      %s33 = sadd.s32 1, %s17
      %s34 = scalar_select %p31, %s33, %s17
      %p35 = scmp.ge.s32.totalorder %s34, 2
      %s36 = scalar_select %p35, 0, %s34
      %s37 = ssub.s32 %s17, %s36
      %s38 = ssub.s32 %s19, %s28
      %s39 = sor.u32 %s37, %s38
      %p40 = scmp.eq.s32.totalorder %s39, 0
      %s42 = sadd.s32 %s41, 1
      %s43 = scalar_select %p40, %s41, %s42
      %p46 = pneg %p40
      %p47 = scmp.eq.s32.totalorder %s10, 1
      %p48 = por %p46, %p47
      %p49 = scmp.ne.s32.totalorder %s41, %s44
      %p50 = scmp.eq.s32.totalorder %s10, 0
      %p51 = por %p49, %p50
      %p52 = scmp.ne.s32.totalorder %s41, %s44
      %p53 = scmp.eq.s32.totalorder %s15, 1
      %p54 = por %p52, %p53
      %p55 = scmp.ne.s32.totalorder %s44, %s45
      %p56 = scmp.eq.s32.totalorder %s15, 0
      %p57 = por %p55, %p56
      %p58 = scmp.ne.s32.totalorder %s44, %s45
      %p59 = scmp.eq.s32.totalorder %s16, 1
      %p60 = por %p58, %p59
      %p62 = scmp.ne.s32.totalorder %s45, %s61
      %p63 = scmp.eq.s32.totalorder %s16, 0
      %p64 = por %p62, %p63
      %s65 = ssub.s32 %s19, %s28
      %s66 = ssub.s32 %s18, %s32
      %s67 = sor.u32 %s65, %s66
      %p68 = scmp.eq.s32.totalorder %s67, 0
      %s70 = sadd.s32 %s69, 1
      %s71 = scalar_select %p68, %s69, %s70
      %p74 = pneg %p68
      %p75 = scmp.eq.s32.totalorder %s10, 1
      %p76 = por %p74, %p75
      %p77 = scmp.ne.s32.totalorder %s69, %s72
      %p78 = scmp.eq.s32.totalorder %s10, 0
      %p79 = por %p77, %p78
      %p80 = scmp.ne.s32.totalorder %s69, %s72
      %p81 = scmp.eq.s32.totalorder %s15, 1
      %p82 = por %p80, %p81
      %p83 = scmp.ne.s32.totalorder %s72, %s73
      %p84 = scmp.eq.s32.totalorder %s15, 0
      %p85 = por %p83, %p84
      %p86 = scmp.ne.s32.totalorder %s72, %s73
      %p87 = scmp.eq.s32.totalorder %s16, 1
      %p88 = por %p86, %p87
      %p90 = scmp.ne.s32.totalorder %s73, %s89
      %p91 = scmp.eq.s32.totalorder %s16, 0
      %p92 = por %p90, %p91
      %s93 = ssub.s32 %s18, %s32
      %p94 = scmp.eq.s32.totalorder %s93, 0
      %s96 = sadd.s32 %s95, 1
      %s97 = scalar_select %p94, %s95, %s96
      %p100 = pneg %p94
      %p101 = scmp.eq.s32.totalorder %s10, 1
      %p102 = por %p100, %p101
      %p103 = scmp.ne.s32.totalorder %s95, %s98
      %p104 = scmp.eq.s32.totalorder %s10, 0
      %p105 = por %p103, %p104
      %p106 = scmp.ne.s32.totalorder %s95, %s98
      %p107 = scmp.eq.s32.totalorder %s15, 1
      %p108 = por %p106, %p107
      %p109 = scmp.ne.s32.totalorder %s98, %s99
      %p110 = scmp.eq.s32.totalorder %s15, 0
      %p111 = por %p109, %p110
      %p112 = scmp.ne.s32.totalorder %s98, %s99
      %p113 = scmp.eq.s32.totalorder %s16, 1
      %p114 = por %p112, %p113
      %p116 = scmp.ne.s32.totalorder %s99, %s115
      %p117 = scmp.eq.s32.totalorder %s16, 0
      %p118 = por %p116, %p117
      %s119 = ssub.s32 %s18, %s32
      %p120 = scmp.eq.s32.totalorder %s119, 0
      %s122 = sadd.s32 %s121, 1
      %s123 = scalar_select %p120, %s121, %s122
      %p126 = pneg %p120
      %p127 = scmp.eq.s32.totalorder %s10, 1
      %p128 = por %p126, %p127
      %p129 = scmp.ne.s32.totalorder %s121, %s124
      %p130 = scmp.eq.s32.totalorder %s10, 0
      %p131 = por %p129, %p130
      %p132 = scmp.ne.s32.totalorder %s121, %s124
      %p133 = scmp.eq.s32.totalorder %s15, 1
      %p134 = por %p132, %p133
      %p135 = scmp.ne.s32.totalorder %s124, %s125
      %p136 = scmp.eq.s32.totalorder %s15, 0
      %p137 = por %p135, %p136
      %p138 = scmp.ne.s32.totalorder %s124, %s125
      %p139 = scmp.eq.s32.totalorder %s16, 1
      %p140 = por %p138, %p139
      %p142 = scmp.ne.s32.totalorder %s125, %s141
      %p143 = scmp.eq.s32.totalorder %s16, 0
      %p144 = por %p142, %p143
      %s145 = ssub.s32 %s17, %s36
      %s146 = ssub.s32 %s18, %s32
      %s147 = sor.u32 %s145, %s146
      %p148 = scmp.eq.s32.totalorder %s147, 0
      %s150 = sadd.s32 %s149, 1
      %s151 = scalar_select %p148, %s149, %s150
      %p154 = pneg %p148
      %p155 = scmp.eq.s32.totalorder %s10, 1
      %p156 = por %p154, %p155
      %p157 = scmp.ne.s32.totalorder %s149, %s152
      %p158 = scmp.eq.s32.totalorder %s10, 0
      %p159 = por %p157, %p158
      %p160 = scmp.ne.s32.totalorder %s149, %s152
      %p161 = scmp.eq.s32.totalorder %s15, 1
      %p162 = por %p160, %p161
      %p163 = scmp.ne.s32.totalorder %s152, %s153
      %p164 = scmp.eq.s32.totalorder %s15, 0
      %p165 = por %p163, %p164
      %p166 = scmp.ne.s32.totalorder %s152, %s153
      %p167 = scmp.eq.s32.totalorder %s16, 1
      %p168 = por %p166, %p167
      %p170 = scmp.ne.s32.totalorder %s153, %s169
      %p171 = scmp.eq.s32.totalorder %s16, 0
      %p172 = por %p170, %p171
      %p173 = scmp.le.s32.totalorder 1, %s10
      %p174 = scmp.lt.s32.totalorder %s10, 3
      %p175 = pnand %p173, %p174
      %p176 = pneg %p175
      // Predicated region
      $region9: #{_lambda_.6} parent=5 // pred_check
        _
      $region10: #{_lambda_.6} parent=5 // pred_check_branch
        %178 = sbr.rel (%p175) target = $region12
      $region11: #{_lambda_.6} parent=5 // pred_region
        %s179 = ssub.s32 %s10, 1
        // Predicated region
        $region13: #{_lambda_.6} parent=11 // pred_check
          %p180 = pneg %p85
        $region14: #{_lambda_.6} parent=11 // pred_check_branch
          %182 = sbr.rel (%p180) target = $region16
        $region15: #{_lambda_.6} parent=11 // pred_region
          %s183 = smul.u32 8, %s22
          %p184 = scmp.lt.s32.totalorder %s183, 7
          %s185 = scalar_select %p184, %s183, 7
          %p186 = scmp.lt.s32.totalorder %s21, 0
          %s187 = scalar_select %p186, %s21, 0
          %s188 = sadd.s32 %s187, %s185
          %s189 = smul.addr %s188, 4
          %s190 = scalar_lea.vmem %s1, %s189
          %s191 = smul.u32 8, %s22
        $region16: #{_lambda_.6} parent=11 // pred_fallthru
          _
        // Predicated region
        $region17: #{_lambda_.6} parent=11 // pred_check
          %p192 = pneg %p111
        $region18: #{_lambda_.6} parent=11 // pred_check_branch
          %194 = sbr.rel (%p192) target = $region20
        $region19: #{_lambda_.6} parent=11 // pred_region
          %p195 = scmp.lt.s32.totalorder %s21, 0
          %s196 = scalar_select %p195, %s21, 0
          %s197 = scalar_lea.vmem %s2, %s196
        $region20: #{_lambda_.6} parent=11 // pred_fallthru
          _
        // Predicated region
        $region21: #{_lambda_.6} parent=11 // pred_check
          %p198 = pneg %p137
        $region22: #{_lambda_.6} parent=11 // pred_check_branch
          %200 = sbr.rel (%p198) target = $region24
        $region23: #{_lambda_.6} parent=11 // pred_region
          %p201 = scmp.lt.s32.totalorder %s21, 0
          %s202 = scalar_select %p201, %s21, 0
          %s203 = scalar_lea.vmem %s3, %s202
        $region24: #{_lambda_.6} parent=11 // pred_fallthru
          _
      $region12: #{_lambda_.6} parent=5 // pred_fallthru
        _
      %p204 = scmp.lt.s32.totalorder %s10, 2
      // Predicated region
      $region25: #{_lambda_.6} parent=5 // pred_check
        %p205 = pneg %p204
      $region26: #{_lambda_.6} parent=5 // pred_check_branch
        %207 = sbr.rel (%p205) target = $region28
      $region27: #{_lambda_.6} parent=5 // pred_region
        // Predicated region
        $region29: #{_lambda_.6} parent=27 // pred_check
          %p208 = pneg %p51
        $region30: #{_lambda_.6} parent=27 // pred_check_branch
          %210 = sbr.rel (%p208) target = $region32
        $region31: #{_lambda_.6} parent=27 // pred_region
          %s211 = sand.u32 %s41, 1
          %s212 = sand.u32 %s41, 1
          %s213 = smul.addr %s212, 288
          %s214 = scalar_lea.vmem [#allocation3], %s213
          %s215 = smul.addr %s17, 18
          %s216 = sadd.s32 %s19, %s215
          %s217 = smul.addr %s216, 4
          %s218 = scalar_lea.vmem %s0, %s217
          // Predicated region
          $region33: #{_lambda_.6} parent=31 // pred_check
            _
          $region34: #{_lambda_.6} parent=31 // pred_check_branch
            %220 = sbr.rel (0) target = $region36
          $region35: #{_lambda_.6} parent=31 // pred_region
            // Predicated region
            $region37: #{_lambda_.6} parent=35 // pred_check
              _
            $region38: #{_lambda_.6} parent=35 // pred_check_branch
              %222 = sbr.rel target = $region40
            $region39: #{_lambda_.6} parent=35 // pred_region
              // Predicated region
              $region52: #{_lambda_.6} parent=39 // pred_check
                _
              $region53: #{_lambda_.6} parent=39 // pred_check_branch
                %379 = sbr.rel (0) target = $region55
              $region54: #{_lambda_.6} parent=39 // pred_region
                loop: start=0, step=1, limit=1
                $region56: #{_lambda_.6} parent=54 // loop_pre_header
                  _
                $region57: #{_lambda_.6} parent=54 // loop_header
                  %s381 = sphi 0, %s385
                  %p382 = scmp.ge.s32.totalorder %s381, 1
                  %s386 = sphi %s218, %s218
                  %s387 = sphi %s214, %s214
                $region58: #{_lambda_.6} parent=54 // loop_header_branch
                  %384 = sbr.rel (%p382) target = $region62
                $region59: #{_lambda_.6} parent=54 // loop_body
                  _
                $region60: #{_lambda_.6} parent=54 // loop_footer
                  %s385 = sadd.s32 1, %s381
                $region61: #{_lambda_.6} parent=54 // loop_footer_branch
                  %380 = sbr.rel target = $region57
                $region62: #{_lambda_.6} parent=54 // loop_exit
                  _
                loop: start=0, step=1, limit=1
                $region63: #{_lambda_.6} parent=54 // loop_pre_header
                  _
                $region64: #{_lambda_.6} parent=54 // loop_header
                  %s390 = sphi 0, %s394
                  %p391 = scmp.ge.s32.totalorder %s390, 1
                  %s395 = sphi %s218, %s218
                  %s396 = sphi %s214, %s214
                $region65: #{_lambda_.6} parent=54 // loop_header_branch
                  %393 = sbr.rel (%p391) target = $region69
                $region66: #{_lambda_.6} parent=54 // loop_body
                  %v397 = vld [vmem:[%s395] sm:$0xf]
                  %398 = vst [vmem:[%s396] sm:$0xf] %v397
                  %v399 = vld [vmem:[%s395 + $0x4] sm:$0xf]
                  %400 = vst [vmem:[%s396 + $0x4] sm:$0xf] %v399
                  %v401 = vld [vmem:[%s395 + $0x8] sm:$0xf]
                  %402 = vst [vmem:[%s396 + $0x8] sm:$0xf] %v401
                  %v403 = vld [vmem:[%s395 + $0xc] sm:$0xf]
                  %404 = vst [vmem:[%s396 + $0xc] sm:$0xf] %v403
                  %v405 = vld [vmem:[%s395 + $0x10] sm:$0xf]
                  %406 = vst [vmem:[%s396 + $0x10] sm:$0xf] %v405
                  %v407 = vld [vmem:[%s395 + $0x14] sm:$0xf]
                  %408 = vst [vmem:[%s396 + $0x14] sm:$0xf] %v407
                  %v409 = vld [vmem:[%s395 + $0x18] sm:$0xf]
                  %410 = vst [vmem:[%s396 + $0x18] sm:$0xf] %v409
                  %v411 = vld [vmem:[%s395 + $0x1c] sm:$0xf]
                  %412 = vst [vmem:[%s396 + $0x1c] sm:$0xf] %v411
                  %v413 = vld [vmem:[%s395 + $0x20] sm:$0xf]
                  %414 = vst [vmem:[%s396 + $0x20] sm:$0xf] %v413
                  %v415 = vld [vmem:[%s395 + $0x24] sm:$0xf]
                  %416 = vst [vmem:[%s396 + $0x24] sm:$0xf] %v415
                  %v417 = vld [vmem:[%s395 + $0x28] sm:$0xf]
                  %418 = vst [vmem:[%s396 + $0x28] sm:$0xf] %v417
                  %v419 = vld [vmem:[%s395 + $0x2c] sm:$0xf]
                  %420 = vst [vmem:[%s396 + $0x2c] sm:$0xf] %v419
                  %v421 = vld [vmem:[%s395 + $0x30] sm:$0xf]
                  %422 = vst [vmem:[%s396 + $0x30] sm:$0xf] %v421
                  %v423 = vld [vmem:[%s395 + $0x34] sm:$0xf]
                  %424 = vst [vmem:[%s396 + $0x34] sm:$0xf] %v423
                  %v425 = vld [vmem:[%s395 + $0x38] sm:$0xf]
                  %426 = vst [vmem:[%s396 + $0x38] sm:$0xf] %v425
                  %v427 = vld [vmem:[%s395 + $0x3c] sm:$0xf]
                  %428 = vst [vmem:[%s396 + $0x3c] sm:$0xf] %v427
                  %v429 = vld [vmem:[%s395 + $0x40] sm:$0xf]
                  %430 = vst [vmem:[%s396 + $0x40] sm:$0xf] %v429
                  %v431 = vld [vmem:[%s395 + $0x44] sm:$0xf]
                  %432 = vst [vmem:[%s396 + $0x44] sm:$0xf] %v431
                  %v433 = vld [vmem:[%s395 + $0x90] sm:$0xf]
                  %434 = vst [vmem:[%s396 + $0x48] sm:$0xf] %v433
                  %v435 = vld [vmem:[%s395 + $0x94] sm:$0xf]
                  %436 = vst [vmem:[%s396 + $0x4c] sm:$0xf] %v435
                  %v437 = vld [vmem:[%s395 + $0x98] sm:$0xf]
                  %438 = vst [vmem:[%s396 + $0x50] sm:$0xf] %v437
                  %v439 = vld [vmem:[%s395 + $0x9c] sm:$0xf]
                  %440 = vst [vmem:[%s396 + $0x54] sm:$0xf] %v439
                  %v441 = vld [vmem:[%s395 + $0xa0] sm:$0xf]
                  %442 = vst [vmem:[%s396 + $0x58] sm:$0xf] %v441
                  %v443 = vld [vmem:[%s395 + $0xa4] sm:$0xf]
                  %444 = vst [vmem:[%s396 + $0x5c] sm:$0xf] %v443
                  %v445 = vld [vmem:[%s395 + $0xa8] sm:$0xf]
                  %446 = vst [vmem:[%s396 + $0x60] sm:$0xf] %v445
                  %v447 = vld [vmem:[%s395 + $0xac] sm:$0xf]
                  %448 = vst [vmem:[%s396 + $0x64] sm:$0xf] %v447
                  %v449 = vld [vmem:[%s395 + $0xb0] sm:$0xf]
                  %450 = vst [vmem:[%s396 + $0x68] sm:$0xf] %v449
                  %v451 = vld [vmem:[%s395 + $0xb4] sm:$0xf]
                  %452 = vst [vmem:[%s396 + $0x6c] sm:$0xf] %v451
                  %v453 = vld [vmem:[%s395 + $0xb8] sm:$0xf]
                  %454 = vst [vmem:[%s396 + $0x70] sm:$0xf] %v453
                  %v455 = vld [vmem:[%s395 + $0xbc] sm:$0xf]
                  %456 = vst [vmem:[%s396 + $0x74] sm:$0xf] %v455
                  %v457 = vld [vmem:[%s395 + $0xc0] sm:$0xf]
                  %458 = vst [vmem:[%s396 + $0x78] sm:$0xf] %v457
                  %v459 = vld [vmem:[%s395 + $0xc4] sm:$0xf]
                  %460 = vst [vmem:[%s396 + $0x7c] sm:$0xf] %v459
                  %v461 = vld [vmem:[%s395 + $0xc8] sm:$0xf]
                  %462 = vst [vmem:[%s396 + $0x80] sm:$0xf] %v461
                  %v463 = vld [vmem:[%s395 + $0xcc] sm:$0xf]
                  %464 = vst [vmem:[%s396 + $0x84] sm:$0xf] %v463
                  %v465 = vld [vmem:[%s395 + $0xd0] sm:$0xf]
                  %466 = vst [vmem:[%s396 + $0x88] sm:$0xf] %v465
                  %v467 = vld [vmem:[%s395 + $0xd4] sm:$0xf]
                  %468 = vst [vmem:[%s396 + $0x8c] sm:$0xf] %v467
                  %v469 = vld [vmem:[%s395 + $0x120] sm:$0xf]
                  %470 = vst [vmem:[%s396 + $0x90] sm:$0xf] %v469
                  %v471 = vld [vmem:[%s395 + $0x124] sm:$0xf]
                  %472 = vst [vmem:[%s396 + $0x94] sm:$0xf] %v471
                  %v473 = vld [vmem:[%s395 + $0x128] sm:$0xf]
                  %474 = vst [vmem:[%s396 + $0x98] sm:$0xf] %v473
                  %v475 = vld [vmem:[%s395 + $0x12c] sm:$0xf]
                  %476 = vst [vmem:[%s396 + $0x9c] sm:$0xf] %v475
                  %v477 = vld [vmem:[%s395 + $0x130] sm:$0xf]
                  %478 = vst [vmem:[%s396 + $0xa0] sm:$0xf] %v477
                  %v479 = vld [vmem:[%s395 + $0x134] sm:$0xf]
                  %480 = vst [vmem:[%s396 + $0xa4] sm:$0xf] %v479
                  %v481 = vld [vmem:[%s395 + $0x138] sm:$0xf]
                  %482 = vst [vmem:[%s396 + $0xa8] sm:$0xf] %v481
                  %v483 = vld [vmem:[%s395 + $0x13c] sm:$0xf]
                  %484 = vst [vmem:[%s396 + $0xac] sm:$0xf] %v483
                  %v485 = vld [vmem:[%s395 + $0x140] sm:$0xf]
                  %486 = vst [vmem:[%s396 + $0xb0] sm:$0xf] %v485
                  %v487 = vld [vmem:[%s395 + $0x144] sm:$0xf]
                  %488 = vst [vmem:[%s396 + $0xb4] sm:$0xf] %v487
                  %v489 = vld [vmem:[%s395 + $0x148] sm:$0xf]
                  %490 = vst [vmem:[%s396 + $0xb8] sm:$0xf] %v489
                  %v491 = vld [vmem:[%s395 + $0x14c] sm:$0xf]
                  %492 = vst [vmem:[%s396 + $0xbc] sm:$0xf] %v491
                  %v493 = vld [vmem:[%s395 + $0x150] sm:$0xf]
                  %494 = vst [vmem:[%s396 + $0xc0] sm:$0xf] %v493
                  %v495 = vld [vmem:[%s395 + $0x154] sm:$0xf]
                  %496 = vst [vmem:[%s396 + $0xc4] sm:$0xf] %v495
                  %v497 = vld [vmem:[%s395 + $0x158] sm:$0xf]
                  %498 = vst [vmem:[%s396 + $0xc8] sm:$0xf] %v497
                  %v499 = vld [vmem:[%s395 + $0x15c] sm:$0xf]
                  %500 = vst [vmem:[%s396 + $0xcc] sm:$0xf] %v499
                  %v501 = vld [vmem:[%s395 + $0x160] sm:$0xf]
                  %502 = vst [vmem:[%s396 + $0xd0] sm:$0xf] %v501
                  %v503 = vld [vmem:[%s395 + $0x164] sm:$0xf]
                  %504 = vst [vmem:[%s396 + $0xd4] sm:$0xf] %v503
                  %v505 = vld [vmem:[%s395 + $0x1b0] sm:$0xf]
                  %506 = vst [vmem:[%s396 + $0xd8] sm:$0xf] %v505
                  %v507 = vld [vmem:[%s395 + $0x1b4] sm:$0xf]
                  %508 = vst [vmem:[%s396 + $0xdc] sm:$0xf] %v507
                  %v509 = vld [vmem:[%s395 + $0x1b8] sm:$0xf]
                  %510 = vst [vmem:[%s396 + $0xe0] sm:$0xf] %v509
                  %v511 = vld [vmem:[%s395 + $0x1bc] sm:$0xf]
                  %512 = vst [vmem:[%s396 + $0xe4] sm:$0xf] %v511
                  %v513 = vld [vmem:[%s395 + $0x1c0] sm:$0xf]
                  %514 = vst [vmem:[%s396 + $0xe8] sm:$0xf] %v513
                  %v515 = vld [vmem:[%s395 + $0x1c4] sm:$0xf]
                  %516 = vst [vmem:[%s396 + $0xec] sm:$0xf] %v515
                  %v517 = vld [vmem:[%s395 + $0x1c8] sm:$0xf]
                  %518 = vst [vmem:[%s396 + $0xf0] sm:$0xf] %v517
                  %v519 = vld [vmem:[%s395 + $0x1cc] sm:$0xf]
                  %520 = vst [vmem:[%s396 + $0xf4] sm:$0xf] %v519
                  %v521 = vld [vmem:[%s395 + $0x1d0] sm:$0xf]
                  %522 = vst [vmem:[%s396 + $0xf8] sm:$0xf] %v521
                  %v523 = vld [vmem:[%s395 + $0x1d4] sm:$0xf]
                  %524 = vst [vmem:[%s396 + $0xfc] sm:$0xf] %v523
                  %v525 = vld [vmem:[%s395 + $0x1d8] sm:$0xf]
                  %526 = vst [vmem:[%s396 + $0x100] sm:$0xf] %v525
                  %v527 = vld [vmem:[%s395 + $0x1dc] sm:$0xf]
                  %528 = vst [vmem:[%s396 + $0x104] sm:$0xf] %v527
                  %v529 = vld [vmem:[%s395 + $0x1e0] sm:$0xf]
                  %530 = vst [vmem:[%s396 + $0x108] sm:$0xf] %v529
                  %v531 = vld [vmem:[%s395 + $0x1e4] sm:$0xf]
                  %532 = vst [vmem:[%s396 + $0x10c] sm:$0xf] %v531
                  %v533 = vld [vmem:[%s395 + $0x1e8] sm:$0xf]
                  %534 = vst [vmem:[%s396 + $0x110] sm:$0xf] %v533
                  %v535 = vld [vmem:[%s395 + $0x1ec] sm:$0xf]
                  %536 = vst [vmem:[%s396 + $0x114] sm:$0xf] %v535
                  %v537 = vld [vmem:[%s395 + $0x1f0] sm:$0xf]
                  %538 = vst [vmem:[%s396 + $0x118] sm:$0xf] %v537
                  %v539 = vld [vmem:[%s395 + $0x1f4] sm:$0xf]
                  %540 = vst [vmem:[%s396 + $0x11c] sm:$0xf] %v539
                $region67: #{_lambda_.6} parent=54 // loop_footer
                  %s394 = sadd.s32 1, %s390
                $region68: #{_lambda_.6} parent=54 // loop_footer_branch
                  %389 = sbr.rel target = $region64
                $region69: #{_lambda_.6} parent=54 // loop_exit
                  _
              $region55: #{_lambda_.6} parent=39 // pred_fallthru
                _
            $region40: #{_lambda_.6} parent=35 // pred_fallthru
              _
            // Predicated region
            $region41: #{_lambda_.6} parent=35 // pred_check
              _
            $region42: #{_lambda_.6} parent=35 // pred_check_branch
              %224 = sbr.rel (0) target = $region44
            $region43: #{_lambda_.6} parent=35 // pred_region
              loop: start=0, step=1, limit=1
              $region45: #{_lambda_.6} parent=43 // loop_pre_header
                _
              $region46: #{_lambda_.6} parent=43 // loop_header
                %s227 = sphi 0, %s231
                %p228 = scmp.ge.s32.totalorder %s227, 1
                %s232 = sphi %s218, %s218
                %s233 = sphi %s214, %s214
              $region47: #{_lambda_.6} parent=43 // loop_header_branch
                %230 = sbr.rel (%p228) target = $region51
              $region48: #{_lambda_.6} parent=43 // loop_body
                %v234 = vld [vmem:[%s232] sm:$0xf]
                %235 = vst [vmem:[%s233] sm:$0xf] %v234
                %v236 = vld [vmem:[%s232 + $0x4] sm:$0xf]
                %237 = vst [vmem:[%s233 + $0x4] sm:$0xf] %v236
                %v238 = vld [vmem:[%s232 + $0x8] sm:$0xf]
                %239 = vst [vmem:[%s233 + $0x8] sm:$0xf] %v238
                %v240 = vld [vmem:[%s232 + $0xc] sm:$0xf]
                %241 = vst [vmem:[%s233 + $0xc] sm:$0xf] %v240
                %v242 = vld [vmem:[%s232 + $0x10] sm:$0xf]
                %243 = vst [vmem:[%s233 + $0x10] sm:$0xf] %v242
                %v244 = vld [vmem:[%s232 + $0x14] sm:$0xf]
                %245 = vst [vmem:[%s233 + $0x14] sm:$0xf] %v244
                %v246 = vld [vmem:[%s232 + $0x18] sm:$0xf]
                %247 = vst [vmem:[%s233 + $0x18] sm:$0xf] %v246
                %v248 = vld [vmem:[%s232 + $0x1c] sm:$0xf]
                %249 = vst [vmem:[%s233 + $0x1c] sm:$0xf] %v248
                %v250 = vld [vmem:[%s232 + $0x20] sm:$0xf]
                %251 = vst [vmem:[%s233 + $0x20] sm:$0xf] %v250
                %v252 = vld [vmem:[%s232 + $0x24] sm:$0xf]
                %253 = vst [vmem:[%s233 + $0x24] sm:$0xf] %v252
                %v254 = vld [vmem:[%s232 + $0x28] sm:$0xf]
                %255 = vst [vmem:[%s233 + $0x28] sm:$0xf] %v254
                %v256 = vld [vmem:[%s232 + $0x2c] sm:$0xf]
                %257 = vst [vmem:[%s233 + $0x2c] sm:$0xf] %v256
                %v258 = vld [vmem:[%s232 + $0x30] sm:$0xf]
                %259 = vst [vmem:[%s233 + $0x30] sm:$0xf] %v258
                %v260 = vld [vmem:[%s232 + $0x34] sm:$0xf]
                %261 = vst [vmem:[%s233 + $0x34] sm:$0xf] %v260
                %v262 = vld [vmem:[%s232 + $0x38] sm:$0xf]
                %263 = vst [vmem:[%s233 + $0x38] sm:$0xf] %v262
                %v264 = vld [vmem:[%s232 + $0x3c] sm:$0xf]
                %265 = vst [vmem:[%s233 + $0x3c] sm:$0xf] %v264
                %v266 = vld [vmem:[%s232 + $0x40] sm:$0xf]
                %267 = vst [vmem:[%s233 + $0x40] sm:$0xf] %v266
                %v268 = vld [vmem:[%s232 + $0x44] sm:$0xf]
                %269 = vst [vmem:[%s233 + $0x44] sm:$0xf] %v268
                %v270 = vld [vmem:[%s232 + $0x90] sm:$0xf]
                %271 = vst [vmem:[%s233 + $0x48] sm:$0xf] %v270
                %v272 = vld [vmem:[%s232 + $0x94] sm:$0xf]
                %273 = vst [vmem:[%s233 + $0x4c] sm:$0xf] %v272
                %v274 = vld [vmem:[%s232 + $0x98] sm:$0xf]
                %275 = vst [vmem:[%s233 + $0x50] sm:$0xf] %v274
                %v276 = vld [vmem:[%s232 + $0x9c] sm:$0xf]
                %277 = vst [vmem:[%s233 + $0x54] sm:$0xf] %v276
                %v278 = vld [vmem:[%s232 + $0xa0] sm:$0xf]
                %279 = vst [vmem:[%s233 + $0x58] sm:$0xf] %v278
                %v280 = vld [vmem:[%s232 + $0xa4] sm:$0xf]
                %281 = vst [vmem:[%s233 + $0x5c] sm:$0xf] %v280
                %v282 = vld [vmem:[%s232 + $0xa8] sm:$0xf]
                %283 = vst [vmem:[%s233 + $0x60] sm:$0xf] %v282
                %v284 = vld [vmem:[%s232 + $0xac] sm:$0xf]
                %285 = vst [vmem:[%s233 + $0x64] sm:$0xf] %v284
                %v286 = vld [vmem:[%s232 + $0xb0] sm:$0xf]
                %287 = vst [vmem:[%s233 + $0x68] sm:$0xf] %v286
                %v288 = vld [vmem:[%s232 + $0xb4] sm:$0xf]
                %289 = vst [vmem:[%s233 + $0x6c] sm:$0xf] %v288
                %v290 = vld [vmem:[%s232 + $0xb8] sm:$0xf]
                %291 = vst [vmem:[%s233 + $0x70] sm:$0xf] %v290
                %v292 = vld [vmem:[%s232 + $0xbc] sm:$0xf]
                %293 = vst [vmem:[%s233 + $0x74] sm:$0xf] %v292
                %v294 = vld [vmem:[%s232 + $0xc0] sm:$0xf]
                %295 = vst [vmem:[%s233 + $0x78] sm:$0xf] %v294
                %v296 = vld [vmem:[%s232 + $0xc4] sm:$0xf]
                %297 = vst [vmem:[%s233 + $0x7c] sm:$0xf] %v296
                %v298 = vld [vmem:[%s232 + $0xc8] sm:$0xf]
                %299 = vst [vmem:[%s233 + $0x80] sm:$0xf] %v298
                %v300 = vld [vmem:[%s232 + $0xcc] sm:$0xf]
                %301 = vst [vmem:[%s233 + $0x84] sm:$0xf] %v300
                %v302 = vld [vmem:[%s232 + $0xd0] sm:$0xf]
                %303 = vst [vmem:[%s233 + $0x88] sm:$0xf] %v302
                %v304 = vld [vmem:[%s232 + $0xd4] sm:$0xf]
                %305 = vst [vmem:[%s233 + $0x8c] sm:$0xf] %v304
                %v306 = vld [vmem:[%s232 + $0x120] sm:$0xf]
                %307 = vst [vmem:[%s233 + $0x90] sm:$0xf] %v306
                %v308 = vld [vmem:[%s232 + $0x124] sm:$0xf]
                %309 = vst [vmem:[%s233 + $0x94] sm:$0xf] %v308
                %v310 = vld [vmem:[%s232 + $0x128] sm:$0xf]
                %311 = vst [vmem:[%s233 + $0x98] sm:$0xf] %v310
                %v312 = vld [vmem:[%s232 + $0x12c] sm:$0xf]
                %313 = vst [vmem:[%s233 + $0x9c] sm:$0xf] %v312
                %v314 = vld [vmem:[%s232 + $0x130] sm:$0xf]
                %315 = vst [vmem:[%s233 + $0xa0] sm:$0xf] %v314
                %v316 = vld [vmem:[%s232 + $0x134] sm:$0xf]
                %317 = vst [vmem:[%s233 + $0xa4] sm:$0xf] %v316
                %v318 = vld [vmem:[%s232 + $0x138] sm:$0xf]
                %319 = vst [vmem:[%s233 + $0xa8] sm:$0xf] %v318
                %v320 = vld [vmem:[%s232 + $0x13c] sm:$0xf]
                %321 = vst [vmem:[%s233 + $0xac] sm:$0xf] %v320
                %v322 = vld [vmem:[%s232 + $0x140] sm:$0xf]
                %323 = vst [vmem:[%s233 + $0xb0] sm:$0xf] %v322
                %v324 = vld [vmem:[%s232 + $0x144] sm:$0xf]
                %325 = vst [vmem:[%s233 + $0xb4] sm:$0xf] %v324
                %v326 = vld [vmem:[%s232 + $0x148] sm:$0xf]
                %327 = vst [vmem:[%s233 + $0xb8] sm:$0xf] %v326
                %v328 = vld [vmem:[%s232 + $0x14c] sm:$0xf]
                %329 = vst [vmem:[%s233 + $0xbc] sm:$0xf] %v328
                %v330 = vld [vmem:[%s232 + $0x150] sm:$0xf]
                %331 = vst [vmem:[%s233 + $0xc0] sm:$0xf] %v330
                %v332 = vld [vmem:[%s232 + $0x154] sm:$0xf]
                %333 = vst [vmem:[%s233 + $0xc4] sm:$0xf] %v332
                %v334 = vld [vmem:[%s232 + $0x158] sm:$0xf]
                %335 = vst [vmem:[%s233 + $0xc8] sm:$0xf] %v334
                %v336 = vld [vmem:[%s232 + $0x15c] sm:$0xf]
                %337 = vst [vmem:[%s233 + $0xcc] sm:$0xf] %v336
                %v338 = vld [vmem:[%s232 + $0x160] sm:$0xf]
                %339 = vst [vmem:[%s233 + $0xd0] sm:$0xf] %v338
                %v340 = vld [vmem:[%s232 + $0x164] sm:$0xf]
                %341 = vst [vmem:[%s233 + $0xd4] sm:$0xf] %v340
                %v342 = vld [vmem:[%s232 + $0x1b0] sm:$0xf]
                %343 = vst [vmem:[%s233 + $0xd8] sm:$0xf] %v342
                %v344 = vld [vmem:[%s232 + $0x1b4] sm:$0xf]
                %345 = vst [vmem:[%s233 + $0xdc] sm:$0xf] %v344
                %v346 = vld [vmem:[%s232 + $0x1b8] sm:$0xf]
                %347 = vst [vmem:[%s233 + $0xe0] sm:$0xf] %v346
                %v348 = vld [vmem:[%s232 + $0x1bc] sm:$0xf]
                %349 = vst [vmem:[%s233 + $0xe4] sm:$0xf] %v348
                %v350 = vld [vmem:[%s232 + $0x1c0] sm:$0xf]
                %351 = vst [vmem:[%s233 + $0xe8] sm:$0xf] %v350
                %v352 = vld [vmem:[%s232 + $0x1c4] sm:$0xf]
                %353 = vst [vmem:[%s233 + $0xec] sm:$0xf] %v352
                %v354 = vld [vmem:[%s232 + $0x1c8] sm:$0xf]
                %355 = vst [vmem:[%s233 + $0xf0] sm:$0xf] %v354
                %v356 = vld [vmem:[%s232 + $0x1cc] sm:$0xf]
                %357 = vst [vmem:[%s233 + $0xf4] sm:$0xf] %v356
                %v358 = vld [vmem:[%s232 + $0x1d0] sm:$0xf]
                %359 = vst [vmem:[%s233 + $0xf8] sm:$0xf] %v358
                %v360 = vld [vmem:[%s232 + $0x1d4] sm:$0xf]
                %361 = vst [vmem:[%s233 + $0xfc] sm:$0xf] %v360
                %v362 = vld [vmem:[%s232 + $0x1d8] sm:$0xf]
                %363 = vst [vmem:[%s233 + $0x100] sm:$0xf] %v362
                %v364 = vld [vmem:[%s232 + $0x1dc] sm:$0xf]
                %365 = vst [vmem:[%s233 + $0x104] sm:$0xf] %v364
                %v366 = vld [vmem:[%s232 + $0x1e0] sm:$0xf]
                %367 = vst [vmem:[%s233 + $0x108] sm:$0xf] %v366
                %v368 = vld [vmem:[%s232 + $0x1e4] sm:$0xf]
                %369 = vst [vmem:[%s233 + $0x10c] sm:$0xf] %v368
                %v370 = vld [vmem:[%s232 + $0x1e8] sm:$0xf]
                %371 = vst [vmem:[%s233 + $0x110] sm:$0xf] %v370
                %v372 = vld [vmem:[%s232 + $0x1ec] sm:$0xf]
                %373 = vst [vmem:[%s233 + $0x114] sm:$0xf] %v372
                %v374 = vld [vmem:[%s232 + $0x1f0] sm:$0xf]
                %375 = vst [vmem:[%s233 + $0x118] sm:$0xf] %v374
                %v376 = vld [vmem:[%s232 + $0x1f4] sm:$0xf]
                %377 = vst [vmem:[%s233 + $0x11c] sm:$0xf] %v376
              $region49: #{_lambda_.6} parent=43 // loop_footer
                %s231 = sadd.s32 1, %s227
              $region50: #{_lambda_.6} parent=43 // loop_footer_branch
                %226 = sbr.rel target = $region46
              $region51: #{_lambda_.6} parent=43 // loop_exit
                _
            $region44: #{_lambda_.6} parent=35 // pred_fallthru
              _
          $region36: #{_lambda_.6} parent=31 // pred_fallthru
            _
          %541 = vnop
        $region32: #{_lambda_.6} parent=27 // pred_fallthru
          _
      $region28: #{_lambda_.6} parent=5 // pred_fallthru
        _
      %p542 = scmp.le.s32.totalorder 1, %s10
      %p543 = scmp.lt.s32.totalorder %s10, 3
      %p544 = pnand %p542, %p543
      %p545 = pneg %p544
      // Predicated region
      $region70: #{_lambda_.6} parent=5 // pred_check
        _
      $region71: #{_lambda_.6} parent=5 // pred_check_branch
        %547 = sbr.rel (%p544) target = $region73
      $region72: #{_lambda_.6} parent=5 // pred_region
        %s548 = ssub.s32 %s10, 1
        %s549 = sand.u32 %s44, 1
        %s550 = sand.u32 %s44, 1
        %s551 = smul.addr %s550, 288
        %s552 = scalar_lea.vmem [#allocation3], %s551
        // Predicated region
        $region74: #{_lambda_.6} parent=72 // pred_check
          %p553 = pneg %p57
        $region75: #{_lambda_.6} parent=72 // pred_check_branch
          %555 = sbr.rel (%p553) target = $region77
        $region76: #{_lambda_.6} parent=72 // pred_region
          _
        $region77: #{_lambda_.6} parent=72 // pred_fallthru
          _
        %s556 = sand.u32 %s44, 1
        %s557 = sand.u32 %s44, 1
        %s558 = smul.addr %s557, 288
        %s559 = scalar_lea.vmem [#allocation3], %s558
        %p560 = pneg %p57
        %p561 = pneg %p54
        %s562 = smul.u32 8, %s22
        %p563 = scmp.lt.s32.totalorder %s562, 7
        %s564 = scalar_select %p563, %s562, 7
        %p565 = scmp.lt.s32.totalorder %s21, 0
        %s566 = scalar_select %p565, %s21, 0
        %s567 = sadd.s32 %s566, %s564
        %s568 = smul.addr %s567, 4
        %s569 = scalar_lea.vmem %s1, %s568
        %p570 = pneg %p85
        %p571 = pneg %p82
        %p572 = scmp.lt.s32.totalorder %s21, 0
        %s573 = scalar_select %p572, %s21, 0
        %s574 = scalar_lea.vmem %s2, %s573
        %p575 = pneg %p111
        %p576 = pneg %p108
        %p577 = scmp.lt.s32.totalorder %s21, 0
        %s578 = scalar_select %p577, %s21, 0
        %s579 = scalar_lea.vmem %s3, %s578
        %p580 = pneg %p137
        %p581 = pneg %p134
        %p582 = pneg %p165
        %p583 = pneg %p162
        %p584 = scmp.lt.s32.totalorder %s20, 1
        %s585 = scalar_select %p584, %s20, 1
        %p586 = scmp.lt.s32.totalorder %s21, 0
        %s587 = scalar_select %p586, %s21, 0
        %s588 = smul.addr %s585, 8
        %s589 = sadd.s32 %s587, %s588
        %s590 = smul.addr %s589, 4
        %s591 = scalar_lea.vmem %s4, %s590
        %s592 = smul.u32 8, %s22
        %p593 = scmp.lt.s32.totalorder %s592, 7
        %s594 = scalar_select %p593, %s592, 7
        %p595 = scmp.lt.s32.totalorder %s21, 0
        %s596 = scalar_select %p595, %s21, 0
        %s597 = sadd.s32 %s596, %s594
        %s598 = smul.addr %s597, 4
        %s599 = scalar_lea.vmem %s1, %s598
        %s600 = smul.u32 8, %s22
        %p601 = scmp.lt.s32.totalorder %s21, 0
        %s602 = scalar_select %p601, %s21, 0
        %s603 = scalar_lea.vmem %s2, %s602
        %p604 = scmp.lt.s32.totalorder %s21, 0
        %s605 = scalar_select %p604, %s21, 0
        %s606 = scalar_lea.vmem %s3, %s605
        %p607 = scmp.lt.s32.totalorder %s20, 1
        %s608 = scalar_select %p607, %s20, 1
        %p609 = scmp.lt.s32.totalorder %s21, 0
        %s610 = scalar_select %p609, %s21, 0
        %s611 = smul.addr %s608, 8
        %s612 = sadd.s32 %s610, %s611
        %s613 = smul.addr %s612, 4
        %s614 = scalar_lea.vmem %s4, %s613
        %p616 = scmp.eq.s32.totalorder %s22, 0
        // Predicated region
        $region78: #{_lambda_.6} parent=72 // pred_check
          %p617 = pneg %p616
        $region79: #{_lambda_.6} parent=72 // pred_check_branch
          %619 = sbr.rel (%p617) target = $region81
        $region80: #{_lambda_.6} parent=72 // pred_region
          %620 = vst [vmem:[#allocation2] sm:$0xff] 0.0
          %621 = vst [vmem:[#allocation2 + $0x8] sm:$0xff] 0.0
          %622 = vst [vmem:[#allocation2 + $0x10] sm:$0xff] 0.0
          %623 = vst [vmem:[#allocation2 + $0x18] sm:$0xff] 0.0
          %624 = vst [vmem:[#allocation2 + $0x20] sm:$0xff] 0.0
          %625 = vst [vmem:[#allocation2 + $0x28] sm:$0xff] 0.0
          %626 = vst [vmem:[#allocation2 + $0x30] sm:$0xff] 0.0
          %627 = vst [vmem:[#allocation2 + $0x38] sm:$0xff] 0.0
        $region81: #{_lambda_.6} parent=72 // pred_fallthru
          _
        %v628 = vld [vmem:[%s552] sm:$0xf]
        %v629 = vld [vmem:[%s552 + $0x8] sm:$0xf]
        %v630 = vld [vmem:[%s552 + $0x10] sm:$0xf]
        %v631 = vld [vmem:[%s552 + $0x18] sm:$0xf]
        %v632 = vld [vmem:[%s552 + $0x20] sm:$0xf]
        %v633 = vld [vmem:[%s552 + $0x28] sm:$0xf]
        %v634 = vld [vmem:[%s552 + $0x30] sm:$0xf]
        %v635 = vld [vmem:[%s552 + $0x38] sm:$0xf]
        %v636 = vld [vmem:[%s599] sm:$0xf]
        %v637 = vld [vmem:[%s599 + $0x4] sm:$0xf]
        %v638 = vld [vmem:[%s599 + $0x8] sm:$0xf]
        %v639 = vld [vmem:[%s599 + $0xc] sm:$0xf]
        %v640 = vld [vmem:[%s599 + $0x10] sm:$0xf]
        %v641 = vld [vmem:[%s599 + $0x14] sm:$0xf]
        %v642 = vld [vmem:[%s599 + $0x18] sm:$0xf]
        %v643 = vld [vmem:[%s599 + $0x1c] sm:$0xf]
        %s644 = scalar_lea.vmem %s552, 72 [#allocation3]
        %v645 = vld [vmem:[%s644] sm:$0xf]
        %v646 = vld [vmem:[%s644 + $0x8] sm:$0xf]
        %v647 = vld [vmem:[%s644 + $0x10] sm:$0xf]
        %v648 = vld [vmem:[%s644 + $0x18] sm:$0xf]
        %v649 = vld [vmem:[%s644 + $0x20] sm:$0xf]
        %v650 = vld [vmem:[%s644 + $0x28] sm:$0xf]
        %v651 = vld [vmem:[%s644 + $0x30] sm:$0xf]
        %v652 = vld [vmem:[%s644 + $0x38] sm:$0xf]
        %s653 = scalar_lea.vmem %s599, 32
        %v654 = vld [vmem:[%s653] sm:$0xf]
        %v655 = vld [vmem:[%s653 + $0x4] sm:$0xf]
        %v656 = vld [vmem:[%s653 + $0x8] sm:$0xf]
        %v657 = vld [vmem:[%s653 + $0xc] sm:$0xf]
        %v658 = vld [vmem:[%s653 + $0x10] sm:$0xf]
        %v659 = vld [vmem:[%s653 + $0x14] sm:$0xf]
        %v660 = vld [vmem:[%s653 + $0x18] sm:$0xf]
        %v661 = vld [vmem:[%s653 + $0x1c] sm:$0xf]
        %v670 = vunpack.c.l.b16 %v645
        %v671 = vunpack.c.l.b16 %v646
        %v672 = vunpack.c.l.b16 %v647
        %v673 = vunpack.c.l.b16 %v648
        %v674 = vunpack.c.l.b16 %v649
        %v675 = vunpack.c.l.b16 %v650
        %v676 = vunpack.c.l.b16 %v651
        %v677 = vunpack.c.l.b16 %v652
        %v678 = vpack.c.b16 %v671, %v670
        %v679 = vpack.c.b16 %v673, %v672
        %v680 = vpack.c.b16 %v675, %v674
        %v681 = vpack.c.b16 %v677, %v676
        %v690 = vunpack.c.l.b16 %v654
        %v691 = vunpack.c.l.b16 %v655
        %v692 = vunpack.c.l.b16 %v656
        %v693 = vunpack.c.l.b16 %v657
        %v694 = vunpack.c.l.b16 %v658
        %v695 = vunpack.c.l.b16 %v659
        %v696 = vunpack.c.l.b16 %v660
        %v697 = vunpack.c.l.b16 %v661
        %v698 = vpack.c.b16 %v691, %v690
        %v699 = vpack.c.b16 %v693, %v692
        %v700 = vpack.c.b16 %v695, %v694
        %v701 = vpack.c.b16 %v697, %v696
        %vm706 = vcmask 523264
        %v708 = vsel %vm706, %v678, 0
        %v711 = vsel %vm706, %v679, 0
        %v714 = vsel %vm706, %v680, 0
        %v717 = vsel %vm706, %v681, 0
        %719 = vmatprep.subr.bf16.mxu0 0
        %720 = vmatpush1.bf16.msra.mxu0 %v698
        %721 = vmatprep.subr.bf16.mxu0 0
        %722 = vmatpush1.bf16.msra.mxu0 %v699
        %723 = vmatprep.subr.bf16.mxu0 0
        %724 = vmatpush1.bf16.msra.mxu0 %v700
        %725 = vmatprep.subr.bf16.mxu0 0
        %726 = vmatpush1.bf16.msra.mxu0 %v701
        %727 = vmatprep.subr.bf16.mxu0 0
        %728 = vmatpush1.bf16.msra.mxu0 0
        %729 = vmatprep.subr.bf16.mxu0 0
        %730 = vmatpush1.bf16.msra.mxu0 0
        %731 = vmatprep.subr.bf16.mxu0 0
        %732 = vmatpush1.bf16.msra.mxu0 0
        %733 = vmatprep.subr.bf16.mxu0 0
        %734 = vmatpush1.bf16.msra.mxu0 0
        %735 = vmatprep.subr.bf16.mxu0 0
        %736 = vmatpush1.bf16.msra.mxu0 0
        %737 = vmatprep.subr.bf16.mxu0 0
        %738 = vmatpush1.bf16.msra.mxu0 0
        %739 = vmatprep.subr.bf16.mxu0 0
        %740 = vmatpush1.bf16.msra.mxu0 0
        %741 = vmatprep.subr.bf16.mxu0 0
        %742 = vmatpush1.bf16.msra.mxu0 0
        %743 = vmatprep.subr.bf16.mxu0 0
        %744 = vmatpush1.bf16.msra.mxu0 0
        %745 = vmatprep.subr.bf16.mxu0 0
        %746 = vmatpush1.bf16.msra.mxu0 0
        %747 = vmatprep.subr.bf16.mxu0 0
        %748 = vmatpush1.bf16.msra.mxu0 0
        %749 = vmatprep.subr.bf16.mxu0 0
        %750 = vmatpush1.bf16.msra.mxu0 0
        %751 = vmatprep.mubr.bf16.mxu0 0
        %752 = vmatmul.mubr.bf16.gmra.mrb[0].mxu0 %v708
        %v753 = vpop.f32.mrb[0].mxu0
        %v754 = vadd.f32 0.0, %v753
        %v755 = vpop.f32.mrb[0].mxu0
        %v756 = vpop.f32.mrb[0].mxu0
        %v757 = vadd.f32 0.0, %v756
        %v758 = vpop.f32.mrb[0].mxu0
        %759 = vmatprep.mubr.bf16.mxu0 0
        %760 = vmatmul.mubr.bf16.gmra.mrb[0].mxu0 %v711
        %v761 = vpop.f32.mrb[0].mxu0
        %v762 = vadd.f32 0.0, %v761
        %v763 = vpop.f32.mrb[0].mxu0
        %v764 = vpop.f32.mrb[0].mxu0
        %v765 = vadd.f32 0.0, %v764
        %v766 = vpop.f32.mrb[0].mxu0
        %767 = vmatprep.mubr.bf16.mxu0 0
        %768 = vmatmul.mubr.bf16.gmra.mrb[0].mxu0 %v714
        %v769 = vpop.f32.mrb[0].mxu0
        %v770 = vadd.f32 0.0, %v769
        %v771 = vpop.f32.mrb[0].mxu0
        %v772 = vpop.f32.mrb[0].mxu0
        %v773 = vadd.f32 0.0, %v772
        %v774 = vpop.f32.mrb[0].mxu0
        %775 = vmatprep.mubr.bf16.mxu0 0
        %776 = vmatmul.mubr.bf16.gmra.mrb[0].mxu0 %v717
        %v777 = vpop.f32.mrb[0].mxu0
        %v778 = vadd.f32 0.0, %v777
        %v779 = vpop.f32.mrb[0].mxu0
        %v780 = vpop.f32.mrb[0].mxu0
        %v781 = vadd.f32 0.0, %v780
        %v782 = vpop.f32.mrb[0].mxu0
        %783 = vdwg.mxu0
        %v792 = vunpack.c.l.b16 %v628
        %v793 = vunpack.c.l.b16 %v629
        %v794 = vunpack.c.l.b16 %v630
        %v795 = vunpack.c.l.b16 %v631
        %v796 = vunpack.c.l.b16 %v632
        %v797 = vunpack.c.l.b16 %v633
        %v798 = vunpack.c.l.b16 %v634
        %v799 = vunpack.c.l.b16 %v635
        %v800 = vpack.c.b16 %v793, %v792
        %v801 = vpack.c.b16 %v795, %v794
        %v802 = vpack.c.b16 %v797, %v796
        %v803 = vpack.c.b16 %v799, %v798
        %v812 = vunpack.c.l.b16 %v636
        %v813 = vunpack.c.l.b16 %v637
        %v814 = vunpack.c.l.b16 %v638
        %v815 = vunpack.c.l.b16 %v639
        %v816 = vunpack.c.l.b16 %v640
        %v817 = vunpack.c.l.b16 %v641
        %v818 = vunpack.c.l.b16 %v642
        %v819 = vunpack.c.l.b16 %v643
        %v820 = vpack.c.b16 %v813, %v812
        %v821 = vpack.c.b16 %v815, %v814
        %v822 = vpack.c.b16 %v817, %v816
        %v823 = vpack.c.b16 %v819, %v818
        %v829 = vsel %vm706, %v800, 0
        %v832 = vsel %vm706, %v801, 0
        %v835 = vsel %vm706, %v802, 0
        %v838 = vsel %vm706, %v803, 0
        %840 = vmatprep.subr.bf16.mxu0 0
        %841 = vmatpush1.bf16.msra.mxu0 %v820
        %842 = vmatprep.subr.bf16.mxu0 0
        %843 = vmatpush1.bf16.msra.mxu0 %v821
        %844 = vmatprep.subr.bf16.mxu0 0
        %845 = vmatpush1.bf16.msra.mxu0 %v822
        %846 = vmatprep.subr.bf16.mxu0 0
        %847 = vmatpush1.bf16.msra.mxu0 %v823
        %848 = vmatprep.subr.bf16.mxu0 0
        %849 = vmatpush1.bf16.msra.mxu0 0
        %850 = vmatprep.subr.bf16.mxu0 0
        %851 = vmatpush1.bf16.msra.mxu0 0
        %852 = vmatprep.subr.bf16.mxu0 0
        %853 = vmatpush1.bf16.msra.mxu0 0
        %854 = vmatprep.subr.bf16.mxu0 0
        %855 = vmatpush1.bf16.msra.mxu0 0
        %856 = vmatprep.subr.bf16.mxu0 0
        %857 = vmatpush1.bf16.msra.mxu0 0
        %858 = vmatprep.subr.bf16.mxu0 0
        %859 = vmatpush1.bf16.msra.mxu0 0
        %860 = vmatprep.subr.bf16.mxu0 0
        %861 = vmatpush1.bf16.msra.mxu0 0
        %862 = vmatprep.subr.bf16.mxu0 0
        %863 = vmatpush1.bf16.msra.mxu0 0
        %864 = vmatprep.subr.bf16.mxu0 0
        %865 = vmatpush1.bf16.msra.mxu0 0
        %866 = vmatprep.subr.bf16.mxu0 0
        %867 = vmatpush1.bf16.msra.mxu0 0
        %868 = vmatprep.subr.bf16.mxu0 0
        %869 = vmatpush1.bf16.msra.mxu0 0
        %870 = vmatprep.subr.bf16.mxu0 0
        %871 = vmatpush1.bf16.msra.mxu0 0
        %872 = vmatprep.mubr.bf16.mxu0 0
        %873 = vmatmul.mubr.bf16.gmra.mrb[0].mxu0 %v829
        %v874 = vpop.f32.mrb[0].mxu0
        %v875 = vadd.f32 %v754, %v874
        %v876 = vpop.f32.mrb[0].mxu0
        %v877 = vpop.f32.mrb[0].mxu0
        %v878 = vadd.f32 %v757, %v877
        %v879 = vpop.f32.mrb[0].mxu0
        %880 = vmatprep.mubr.bf16.mxu0 0
        %881 = vmatmul.mubr.bf16.gmra.mrb[0].mxu0 %v832
        %v882 = vpop.f32.mrb[0].mxu0
        %v883 = vadd.f32 %v762, %v882
        %v884 = vpop.f32.mrb[0].mxu0
        %v885 = vpop.f32.mrb[0].mxu0
        %v886 = vadd.f32 %v765, %v885
        %v887 = vpop.f32.mrb[0].mxu0
        %888 = vmatprep.mubr.bf16.mxu0 0
        %889 = vmatmul.mubr.bf16.gmra.mrb[0].mxu0 %v835
        %v890 = vpop.f32.mrb[0].mxu0
        %v891 = vadd.f32 %v770, %v890
        %v892 = vpop.f32.mrb[0].mxu0
        %v893 = vpop.f32.mrb[0].mxu0
        %v894 = vadd.f32 %v773, %v893
        %v895 = vpop.f32.mrb[0].mxu0
        %896 = vmatprep.mubr.bf16.mxu0 0
        %897 = vmatmul.mubr.bf16.gmra.mrb[0].mxu0 %v838
        %v898 = vpop.f32.mrb[0].mxu0
        %v899 = vadd.f32 %v778, %v898
        %v900 = vpop.f32.mrb[0].mxu0
        %v901 = vpop.f32.mrb[0].mxu0
        %v902 = vadd.f32 %v781, %v901
        %v903 = vpop.f32.mrb[0].mxu0
        %904 = vdwg.mxu0
        %v905 = vld [vmem:[%s552] sm:$0xf]
        %v906 = vld [vmem:[%s552 + $0x4] sm:$0x1]
        %v907 = vld [vmem:[%s552 + $0x8] sm:$0xf]
        %v908 = vld [vmem:[%s552 + $0xc] sm:$0x1]
        %v909 = vld [vmem:[%s552 + $0x10] sm:$0xf]
        %v910 = vld [vmem:[%s552 + $0x14] sm:$0x1]
        %v911 = vld [vmem:[%s552 + $0x18] sm:$0xf]
        %v912 = vld [vmem:[%s552 + $0x1c] sm:$0x1]
        %v913 = vld [vmem:[%s552 + $0x20] sm:$0xf]
        %v914 = vld [vmem:[%s552 + $0x24] sm:$0x1]
        %v915 = vld [vmem:[%s552 + $0x28] sm:$0xf]
        %v916 = vld [vmem:[%s552 + $0x2c] sm:$0x1]
        %v917 = vld [vmem:[%s552 + $0x30] sm:$0xf]
        %v918 = vld [vmem:[%s552 + $0x34] sm:$0x1]
        %v919 = vld [vmem:[%s552 + $0x38] sm:$0xf]
        %v920 = vld [vmem:[%s552 + $0x3c] sm:$0x1]
        %vm921 = vsmask.f32 3328
        %vm922 = vsmask.f32 7440
        %vm923 = vmor %vm921, %vm922
        %v925 = vshrl.u32 %v905, 16
        %v927 = vrot.slane %v925, 4
        %v928 = vshll.u32 %v905, 16
        %v930 = vrot.slane %v928, 5
        %v931 = vor.u32 %v927, %v930
        %v932 = vrot.slane %v931, 4
        %v934 = vshll.u32 %v906, 16
        %v936 = vrot.slane %v934, 5
        %v937 = vsel %vm923, %v932, %v936
        %v939 = vshrl.u32 %v907, 16
        %v941 = vrot.slane %v939, 4
        %v942 = vshll.u32 %v907, 16
        %v944 = vrot.slane %v942, 5
        %v945 = vor.u32 %v941, %v944
        %v946 = vrot.slane %v945, 4
        %v948 = vshll.u32 %v908, 16
        %v950 = vrot.slane %v948, 5
        %v951 = vsel %vm923, %v946, %v950
        %v953 = vshrl.u32 %v909, 16
        %v955 = vrot.slane %v953, 4
        %v956 = vshll.u32 %v909, 16
        %v958 = vrot.slane %v956, 5
        %v959 = vor.u32 %v955, %v958
        %v960 = vrot.slane %v959, 4
        %v962 = vshll.u32 %v910, 16
        %v964 = vrot.slane %v962, 5
        %v965 = vsel %vm923, %v960, %v964
        %v967 = vshrl.u32 %v911, 16
        %v969 = vrot.slane %v967, 4
        %v970 = vshll.u32 %v911, 16
        %v972 = vrot.slane %v970, 5
        %v973 = vor.u32 %v969, %v972
        %v974 = vrot.slane %v973, 4
        %v976 = vshll.u32 %v912, 16
        %v978 = vrot.slane %v976, 5
        %v979 = vsel %vm923, %v974, %v978
        %v981 = vshrl.u32 %v913, 16
        %v983 = vrot.slane %v981, 4
        %v984 = vshll.u32 %v913, 16
        %v986 = vrot.slane %v984, 5
        %v987 = vor.u32 %v983, %v986
        %v988 = vrot.slane %v987, 4
        %v990 = vshll.u32 %v914, 16
        %v992 = vrot.slane %v990, 5
        %v993 = vsel %vm923, %v988, %v992
        %v995 = vshrl.u32 %v915, 16
        %v997 = vrot.slane %v995, 4
        %v998 = vshll.u32 %v915, 16
        %v1000 = vrot.slane %v998, 5
        %v1001 = vor.u32 %v997, %v1000
        %v1002 = vrot.slane %v1001, 4
        %v1004 = vshll.u32 %v916, 16
        %v1006 = vrot.slane %v1004, 5
        %v1007 = vsel %vm923, %v1002, %v1006
        %v1009 = vshrl.u32 %v917, 16
        %v1011 = vrot.slane %v1009, 4
        %v1012 = vshll.u32 %v917, 16
        %v1014 = vrot.slane %v1012, 5
        %v1015 = vor.u32 %v1011, %v1014
        %v1016 = vrot.slane %v1015, 4
        %v1018 = vshll.u32 %v918, 16
        %v1020 = vrot.slane %v1018, 5
        %v1021 = vsel %vm923, %v1016, %v1020
        %v1023 = vshrl.u32 %v919, 16
        %v1025 = vrot.slane %v1023, 4
        %v1026 = vshll.u32 %v919, 16
        %v1028 = vrot.slane %v1026, 5
        %v1029 = vor.u32 %v1025, %v1028
        %v1030 = vrot.slane %v1029, 4
        %v1032 = vshll.u32 %v920, 16
        %v1034 = vrot.slane %v1032, 5
        %v1035 = vsel %vm923, %v1030, %v1034
        %s1036 = scalar_lea.vmem %s599, 64
        %v1037 = vld [vmem:[%s1036] sm:$0xf]
        %v1038 = vld [vmem:[%s1036 + $0x4] sm:$0xf]
        %v1039 = vld [vmem:[%s1036 + $0x8] sm:$0xf]
        %v1040 = vld [vmem:[%s1036 + $0xc] sm:$0xf]
        %v1041 = vld [vmem:[%s1036 + $0x10] sm:$0xf]
        %v1042 = vld [vmem:[%s1036 + $0x14] sm:$0xf]
        %v1043 = vld [vmem:[%s1036 + $0x18] sm:$0xf]
        %v1044 = vld [vmem:[%s1036 + $0x1c] sm:$0xf]
        %v1045 = vunpack.c.l.b16 %v937
        %v1046 = vunpack.c.l.b16 %v951
        %v1047 = vunpack.c.l.b16 %v965
        %v1048 = vunpack.c.l.b16 %v979
        %v1049 = vunpack.c.l.b16 %v993
        %v1050 = vunpack.c.l.b16 %v1007
        %v1051 = vunpack.c.l.b16 %v1021
        %v1052 = vunpack.c.l.b16 %v1035
        %v1053 = vpack.c.b16 %v1046, %v1045
        %v1054 = vpack.c.b16 %v1048, %v1047
        %v1055 = vpack.c.b16 %v1050, %v1049
        %v1056 = vpack.c.b16 %v1052, %v1051
        %v1065 = vunpack.c.l.b16 %v1037
        %v1066 = vunpack.c.l.b16 %v1038
        %v1067 = vunpack.c.l.b16 %v1039
        %v1068 = vunpack.c.l.b16 %v1040
        %v1069 = vunpack.c.l.b16 %v1041
        %v1070 = vunpack.c.l.b16 %v1042
        %v1071 = vunpack.c.l.b16 %v1043
        %v1072 = vunpack.c.l.b16 %v1044
        %v1073 = vpack.c.b16 %v1066, %v1065
        %v1074 = vpack.c.b16 %v1068, %v1067
        %v1075 = vpack.c.b16 %v1070, %v1069
        %v1076 = vpack.c.b16 %v1072, %v1071
        %v1082 = vsel %vm706, %v1053, 0
        %v1085 = vsel %vm706, %v1054, 0
        %v1088 = vsel %vm706, %v1055, 0
        %v1091 = vsel %vm706, %v1056, 0
        %1093 = vmatprep.subr.bf16.mxu0 0
        %1094 = vmatpush1.bf16.msra.mxu0 %v1073
        %1095 = vmatprep.subr.bf16.mxu0 0
        %1096 = vmatpush1.bf16.msra.mxu0 %v1074
        %1097 = vmatprep.subr.bf16.mxu0 0
        %1098 = vmatpush1.bf16.msra.mxu0 %v1075
        %1099 = vmatprep.subr.bf16.mxu0 0
        %1100 = vmatpush1.bf16.msra.mxu0 %v1076
        %1101 = vmatprep.subr.bf16.mxu0 0
        %1102 = vmatpush1.bf16.msra.mxu0 0
        %1103 = vmatprep.subr.bf16.mxu0 0
        %1104 = vmatpush1.bf16.msra.mxu0 0
        %1105 = vmatprep.subr.bf16.mxu0 0
        %1106 = vmatpush1.bf16.msra.mxu0 0
        %1107 = vmatprep.subr.bf16.mxu0 0
        %1108 = vmatpush1.bf16.msra.mxu0 0
        %1109 = vmatprep.subr.bf16.mxu0 0
        %1110 = vmatpush1.bf16.msra.mxu0 0
        %1111 = vmatprep.subr.bf16.mxu0 0
        %1112 = vmatpush1.bf16.msra.mxu0 0
        %1113 = vmatprep.subr.bf16.mxu0 0
        %1114 = vmatpush1.bf16.msra.mxu0 0
        %1115 = vmatprep.subr.bf16.mxu0 0
        %1116 = vmatpush1.bf16.msra.mxu0 0
        %1117 = vmatprep.subr.bf16.mxu0 0
        %1118 = vmatpush1.bf16.msra.mxu0 0
        %1119 = vmatprep.subr.bf16.mxu0 0
        %1120 = vmatpush1.bf16.msra.mxu0 0
        %1121 = vmatprep.subr.bf16.mxu0 0
        %1122 = vmatpush1.bf16.msra.mxu0 0
        %1123 = vmatprep.subr.bf16.mxu0 0
        %1124 = vmatpush1.bf16.msra.mxu0 0
        %1125 = vmatprep.mubr.bf16.mxu0 0
        %1126 = vmatmul.mubr.bf16.gmra.mrb[0].mxu0 %v1082
        %v1127 = vpop.f32.mrb[0].mxu0
        %v1128 = vadd.f32 0.0, %v1127
        %v1129 = vpop.f32.mrb[0].mxu0
        %v1130 = vpop.f32.mrb[0].mxu0
        %v1131 = vadd.f32 0.0, %v1130
        %v1132 = vpop.f32.mrb[0].mxu0
        %1133 = vmatprep.mubr.bf16.mxu0 0
        %1134 = vmatmul.mubr.bf16.gmra.mrb[0].mxu0 %v1085
        %v1135 = vpop.f32.mrb[0].mxu0
        %v1136 = vadd.f32 0.0, %v1135
        %v1137 = vpop.f32.mrb[0].mxu0
        %v1138 = vpop.f32.mrb[0].mxu0
        %v1139 = vadd.f32 0.0, %v1138
        %v1140 = vpop.f32.mrb[0].mxu0
        %1141 = vmatprep.mubr.bf16.mxu0 0
        %1142 = vmatmul.mubr.bf16.gmra.mrb[0].mxu0 %v1088
        %v1143 = vpop.f32.mrb[0].mxu0
        %v1144 = vadd.f32 0.0, %v1143
        %v1145 = vpop.f32.mrb[0].mxu0
        %v1146 = vpop.f32.mrb[0].mxu0
        %v1147 = vadd.f32 0.0, %v1146
        %v1148 = vpop.f32.mrb[0].mxu0
        %1149 = vmatprep.mubr.bf16.mxu0 0
        %1150 = vmatmul.mubr.bf16.gmra.mrb[0].mxu0 %v1091
        %v1151 = vpop.f32.mrb[0].mxu0
        %v1152 = vadd.f32 0.0, %v1151
        %v1153 = vpop.f32.mrb[0].mxu0
        %v1154 = vpop.f32.mrb[0].mxu0
        %v1155 = vadd.f32 0.0, %v1154
        %v1156 = vpop.f32.mrb[0].mxu0
        %1157 = vdwg.mxu0
        %v1158 = vadd.f32 %v875, %v1128
        %v1159 = vadd.f32 %v878, %v1131
        %v1160 = vadd.f32 %v883, %v1136
        %v1161 = vadd.f32 %v886, %v1139
        %v1162 = vadd.f32 %v891, %v1144
        %v1163 = vadd.f32 %v894, %v1147
        %v1164 = vadd.f32 %v899, %v1152
        %v1165 = vadd.f32 %v902, %v1155
        %s1166 = scalar_lea.vmem %s552, 144 [#allocation3]
        %v1167 = vld [vmem:[%s1166] sm:$0xf]
        %v1168 = vld [vmem:[%s1166 + $0x8] sm:$0xf]
        %v1169 = vld [vmem:[%s1166 + $0x10] sm:$0xf]
        %v1170 = vld [vmem:[%s1166 + $0x18] sm:$0xf]
        %v1171 = vld [vmem:[%s1166 + $0x20] sm:$0xf]
        %v1172 = vld [vmem:[%s1166 + $0x28] sm:$0xf]
        %v1173 = vld [vmem:[%s1166 + $0x30] sm:$0xf]
        %v1174 = vld [vmem:[%s1166 + $0x38] sm:$0xf]
        %s1175 = scalar_lea.vmem %s599, 96
        %v1176 = vld [vmem:[%s1175] sm:$0xf]
        %v1177 = vld [vmem:[%s1175 + $0x4] sm:$0xf]
        %v1178 = vld [vmem:[%s1175 + $0x8] sm:$0xf]
        %v1179 = vld [vmem:[%s1175 + $0xc] sm:$0xf]
        %v1180 = vld [vmem:[%s1175 + $0x10] sm:$0xf]
        %v1181 = vld [vmem:[%s1175 + $0x14] sm:$0xf]
        %v1182 = vld [vmem:[%s1175 + $0x18] sm:$0xf]
        %v1183 = vld [vmem:[%s1175 + $0x1c] sm:$0xf]
        %v1192 = vunpack.c.l.b16 %v1167
        %v1193 = vunpack.c.l.b16 %v1168
        %v1194 = vunpack.c.l.b16 %v1169
        %v1195 = vunpack.c.l.b16 %v1170
        %v1196 = vunpack.c.l.b16 %v1171
        %v1197 = vunpack.c.l.b16 %v1172
        %v1198 = vunpack.c.l.b16 %v1173
        %v1199 = vunpack.c.l.b16 %v1174
        %v1200 = vpack.c.b16 %v1193, %v1192
        %v1201 = vpack.c.b16 %v1195, %v1194
        %v1202 = vpack.c.b16 %v1197, %v1196
        %v1203 = vpack.c.b16 %v1199, %v1198
        %v1212 = vunpack.c.l.b16 %v1176
        %v1213 = vunpack.c.l.b16 %v1177
        %v1214 = vunpack.c.l.b16 %v1178
        %v1215 = vunpack.c.l.b16 %v1179
        %v1216 = vunpack.c.l.b16 %v1180
        %v1217 = vunpack.c.l.b16 %v1181
        %v1218 = vunpack.c.l.b16 %v1182
        %v1219 = vunpack.c.l.b16 %v1183
        %v1220 = vpack.c.b16 %v1213, %v1212
        %v1221 = vpack.c.b16 %v1215, %v1214
        %v1222 = vpack.c.b16 %v1217, %v1216
        %v1223 = vpack.c.b16 %v1219, %v1218
        %v1229 = vsel %vm706, %v1200, 0
        %v1232 = vsel %vm706, %v1201, 0
        %v1235 = vsel %vm706, %v1202, 0
        %v1238 = vsel %vm706, %v1203, 0
        %1240 = vmatprep.subr.bf16.mxu0 0
        %1241 = vmatpush1.bf16.msra.mxu0 %v1220
        %1242 = vmatprep.subr.bf16.mxu0 0
        %1243 = vmatpush1.bf16.msra.mxu0 %v1221
        %1244 = vmatprep.subr.bf16.mxu0 0
        %1245 = vmatpush1.bf16.msra.mxu0 %v1222
        %1246 = vmatprep.subr.bf16.mxu0 0
        %1247 = vmatpush1.bf16.msra.mxu0 %v1223
        %1248 = vmatprep.subr.bf16.mxu0 0
        %1249 = vmatpush1.bf16.msra.mxu0 0
        %1250 = vmatprep.subr.bf16.mxu0 0
        %1251 = vmatpush1.bf16.msra.mxu0 0
        %1252 = vmatprep.subr.bf16.mxu0 0
        %1253 = vmatpush1.bf16.msra.mxu0 0
        %1254 = vmatprep.subr.bf16.mxu0 0
        %1255 = vmatpush1.bf16.msra.mxu0 0
        %1256 = vmatprep.subr.bf16.mxu0 0
        %1257 = vmatpush1.bf16.msra.mxu0 0
        %1258 = vmatprep.subr.bf16.mxu0 0
        %1259 = vmatpush1.bf16.msra.mxu0 0
        %1260 = vmatprep.subr.bf16.mxu0 0
        %1261 = vmatpush1.bf16.msra.mxu0 0
        %1262 = vmatprep.subr.bf16.mxu0 0
        %1263 = vmatpush1.bf16.msra.mxu0 0
        %1264 = vmatprep.subr.bf16.mxu0 0
        %1265 = vmatpush1.bf16.msra.mxu0 0
        %1266 = vmatprep.subr.bf16.mxu0 0
        %1267 = vmatpush1.bf16.msra.mxu0 0
        %1268 = vmatprep.subr.bf16.mxu0 0
        %1269 = vmatpush1.bf16.msra.mxu0 0
        %1270 = vmatprep.subr.bf16.mxu0 0
        %1271 = vmatpush1.bf16.msra.mxu0 0
        %1272 = vmatprep.mubr.bf16.mxu0 0
        %1273 = vmatmul.mubr.bf16.gmra.mrb[0].mxu0 %v1229
        %v1274 = vpop.f32.mrb[0].mxu0
        %v1275 = vadd.f32 0.0, %v1274
        %v1276 = vpop.f32.mrb[0].mxu0
        %v1277 = vpop.f32.mrb[0].mxu0
        %v1278 = vadd.f32 0.0, %v1277
        %v1279 = vpop.f32.mrb[0].mxu0
        %1280 = vmatprep.mubr.bf16.mxu0 0
        %1281 = vmatmul.mubr.bf16.gmra.mrb[0].mxu0 %v1232
        %v1282 = vpop.f32.mrb[0].mxu0
        %v1283 = vadd.f32 0.0, %v1282
        %v1284 = vpop.f32.mrb[0].mxu0
        %v1285 = vpop.f32.mrb[0].mxu0
        %v1286 = vadd.f32 0.0, %v1285
        %v1287 = vpop.f32.mrb[0].mxu0
        %1288 = vmatprep.mubr.bf16.mxu0 0
        %1289 = vmatmul.mubr.bf16.gmra.mrb[0].mxu0 %v1235
        %v1290 = vpop.f32.mrb[0].mxu0
        %v1291 = vadd.f32 0.0, %v1290
        %v1292 = vpop.f32.mrb[0].mxu0
        %v1293 = vpop.f32.mrb[0].mxu0
        %v1294 = vadd.f32 0.0, %v1293
        %v1295 = vpop.f32.mrb[0].mxu0
        %1296 = vmatprep.mubr.bf16.mxu0 0
        %1297 = vmatmul.mubr.bf16.gmra.mrb[0].mxu0 %v1238
        %v1298 = vpop.f32.mrb[0].mxu0
        %v1299 = vadd.f32 0.0, %v1298
        %v1300 = vpop.f32.mrb[0].mxu0
        %v1301 = vpop.f32.mrb[0].mxu0
        %v1302 = vadd.f32 0.0, %v1301
        %v1303 = vpop.f32.mrb[0].mxu0
        %1304 = vdwg.mxu0
        %v1305 = vadd.f32 %v1158, %v1275
        %v1306 = vadd.f32 %v1159, %v1278
        %v1307 = vadd.f32 %v1160, %v1283
        %v1308 = vadd.f32 %v1161, %v1286
        %v1309 = vadd.f32 %v1162, %v1291
        %v1310 = vadd.f32 %v1163, %v1294
        %v1311 = vadd.f32 %v1164, %v1299
        %v1312 = vadd.f32 %v1165, %v1302
        %s1313 = scalar_lea.vmem %s552, 216 [#allocation3]
        %v1314 = vld [vmem:[%s1313] sm:$0xf]
        %v1315 = vld [vmem:[%s1313 + $0x8] sm:$0xf]
        %v1316 = vld [vmem:[%s1313 + $0x10] sm:$0xf]
        %v1317 = vld [vmem:[%s1313 + $0x18] sm:$0xf]
        %v1318 = vld [vmem:[%s1313 + $0x20] sm:$0xf]
        %v1319 = vld [vmem:[%s1313 + $0x28] sm:$0xf]
        %v1320 = vld [vmem:[%s1313 + $0x30] sm:$0xf]
        %v1321 = vld [vmem:[%s1313 + $0x38] sm:$0xf]
        %s1322 = scalar_lea.vmem %s599, 128
        %v1323 = vld [vmem:[%s1322] sm:$0xf]
        %v1324 = vld [vmem:[%s1322 + $0x4] sm:$0xf]
        %v1325 = vld [vmem:[%s1322 + $0x8] sm:$0xf]
        %v1326 = vld [vmem:[%s1322 + $0xc] sm:$0xf]
        %v1327 = vld [vmem:[%s1322 + $0x10] sm:$0xf]
        %v1328 = vld [vmem:[%s1322 + $0x14] sm:$0xf]
        %v1329 = vld [vmem:[%s1322 + $0x18] sm:$0xf]
        %v1330 = vld [vmem:[%s1322 + $0x1c] sm:$0xf]
        %v1339 = vunpack.c.l.b16 %v1314
        %v1340 = vunpack.c.l.b16 %v1315
        %v1341 = vunpack.c.l.b16 %v1316
        %v1342 = vunpack.c.l.b16 %v1317
        %v1343 = vunpack.c.l.b16 %v1318
        %v1344 = vunpack.c.l.b16 %v1319
        %v1345 = vunpack.c.l.b16 %v1320
        %v1346 = vunpack.c.l.b16 %v1321
        %v1347 = vpack.c.b16 %v1340, %v1339
        %v1348 = vpack.c.b16 %v1342, %v1341
        %v1349 = vpack.c.b16 %v1344, %v1343
        %v1350 = vpack.c.b16 %v1346, %v1345
        %v1359 = vunpack.c.l.b16 %v1323
        %v1360 = vunpack.c.l.b16 %v1324
        %v1361 = vunpack.c.l.b16 %v1325
        %v1362 = vunpack.c.l.b16 %v1326
        %v1363 = vunpack.c.l.b16 %v1327
        %v1364 = vunpack.c.l.b16 %v1328
        %v1365 = vunpack.c.l.b16 %v1329
        %v1366 = vunpack.c.l.b16 %v1330
        %v1367 = vpack.c.b16 %v1360, %v1359
        %v1368 = vpack.c.b16 %v1362, %v1361
        %v1369 = vpack.c.b16 %v1364, %v1363
        %v1370 = vpack.c.b16 %v1366, %v1365
        %v1376 = vsel %vm706, %v1347, 0
        %v1379 = vsel %vm706, %v1348, 0
        %v1382 = vsel %vm706, %v1349, 0
        %v1385 = vsel %vm706, %v1350, 0
        %1387 = vmatprep.subr.bf16.mxu0 0
        %1388 = vmatpush1.bf16.msra.mxu0 %v1367
        %1389 = vmatprep.subr.bf16.mxu0 0
        %1390 = vmatpush1.bf16.msra.mxu0 %v1368
        %1391 = vmatprep.subr.bf16.mxu0 0
        %1392 = vmatpush1.bf16.msra.mxu0 %v1369
        %1393 = vmatprep.subr.bf16.mxu0 0
        %1394 = vmatpush1.bf16.msra.mxu0 %v1370
        %1395 = vmatprep.subr.bf16.mxu0 0
        %1396 = vmatpush1.bf16.msra.mxu0 0
        %1397 = vmatprep.subr.bf16.mxu0 0
        %1398 = vmatpush1.bf16.msra.mxu0 0
        %1399 = vmatprep.subr.bf16.mxu0 0
        %1400 = vmatpush1.bf16.msra.mxu0 0
        %1401 = vmatprep.subr.bf16.mxu0 0
        %1402 = vmatpush1.bf16.msra.mxu0 0
        %1403 = vmatprep.subr.bf16.mxu0 0
        %1404 = vmatpush1.bf16.msra.mxu0 0
        %1405 = vmatprep.subr.bf16.mxu0 0
        %1406 = vmatpush1.bf16.msra.mxu0 0
        %1407 = vmatprep.subr.bf16.mxu0 0
        %1408 = vmatpush1.bf16.msra.mxu0 0
        %1409 = vmatprep.subr.bf16.mxu0 0
        %1410 = vmatpush1.bf16.msra.mxu0 0
        %1411 = vmatprep.subr.bf16.mxu0 0
        %1412 = vmatpush1.bf16.msra.mxu0 0
        %1413 = vmatprep.subr.bf16.mxu0 0
        %1414 = vmatpush1.bf16.msra.mxu0 0
        %1415 = vmatprep.subr.bf16.mxu0 0
        %1416 = vmatpush1.bf16.msra.mxu0 0
        %1417 = vmatprep.subr.bf16.mxu0 0
        %1418 = vmatpush1.bf16.msra.mxu0 0
        %1419 = vmatprep.mubr.bf16.mxu0 0
        %1420 = vmatmul.mubr.bf16.gmra.mrb[0].mxu0 %v1376
        %v1421 = vpop.f32.mrb[0].mxu0
        %v1422 = vadd.f32 0.0, %v1421
        %v1423 = vpop.f32.mrb[0].mxu0
        %v1424 = vpop.f32.mrb[0].mxu0
        %v1425 = vadd.f32 0.0, %v1424
        %v1426 = vpop.f32.mrb[0].mxu0
        %1427 = vmatprep.mubr.bf16.mxu0 0
        %1428 = vmatmul.mubr.bf16.gmra.mrb[0].mxu0 %v1379
        %v1429 = vpop.f32.mrb[0].mxu0
        %v1430 = vadd.f32 0.0, %v1429
        %v1431 = vpop.f32.mrb[0].mxu0
        %v1432 = vpop.f32.mrb[0].mxu0
        %v1433 = vadd.f32 0.0, %v1432
        %v1434 = vpop.f32.mrb[0].mxu0
        %1435 = vmatprep.mubr.bf16.mxu0 0
        %1436 = vmatmul.mubr.bf16.gmra.mrb[0].mxu0 %v1382
        %v1437 = vpop.f32.mrb[0].mxu0
        %v1438 = vadd.f32 0.0, %v1437
        %v1439 = vpop.f32.mrb[0].mxu0
        %v1440 = vpop.f32.mrb[0].mxu0
        %v1441 = vadd.f32 0.0, %v1440
        %v1442 = vpop.f32.mrb[0].mxu0
        %1443 = vmatprep.mubr.bf16.mxu0 0
        %1444 = vmatmul.mubr.bf16.gmra.mrb[0].mxu0 %v1385
        %v1445 = vpop.f32.mrb[0].mxu0
        %v1446 = vadd.f32 0.0, %v1445
        %v1447 = vpop.f32.mrb[0].mxu0
        %v1448 = vpop.f32.mrb[0].mxu0
        %v1449 = vadd.f32 0.0, %v1448
        %v1450 = vpop.f32.mrb[0].mxu0
        %1451 = vdwg.mxu0
        %v1452 = vadd.f32 %v1305, %v1422
        %v1453 = vadd.f32 %v1306, %v1425
        %v1454 = vadd.f32 %v1307, %v1430
        %v1455 = vadd.f32 %v1308, %v1433
        %v1456 = vadd.f32 %v1309, %v1438
        %v1457 = vadd.f32 %v1310, %v1441
        %v1458 = vadd.f32 %v1311, %v1446
        %v1459 = vadd.f32 %v1312, %v1449
        %v1460 = vld [vmem:[%s1166] sm:$0xf]
        %v1461 = vld [vmem:[%s1166 + $0x4] sm:$0x1]
        %v1462 = vld [vmem:[%s1166 + $0x8] sm:$0xf]
        %v1463 = vld [vmem:[%s1166 + $0xc] sm:$0x1]
        %v1464 = vld [vmem:[%s1166 + $0x10] sm:$0xf]
        %v1465 = vld [vmem:[%s1166 + $0x14] sm:$0x1]
        %v1466 = vld [vmem:[%s1166 + $0x18] sm:$0xf]
        %v1467 = vld [vmem:[%s1166 + $0x1c] sm:$0x1]
        %v1468 = vld [vmem:[%s1166 + $0x20] sm:$0xf]
        %v1469 = vld [vmem:[%s1166 + $0x24] sm:$0x1]
        %v1470 = vld [vmem:[%s1166 + $0x28] sm:$0xf]
        %v1471 = vld [vmem:[%s1166 + $0x2c] sm:$0x1]
        %v1472 = vld [vmem:[%s1166 + $0x30] sm:$0xf]
        %v1473 = vld [vmem:[%s1166 + $0x34] sm:$0x1]
        %v1474 = vld [vmem:[%s1166 + $0x38] sm:$0xf]
        %v1475 = vld [vmem:[%s1166 + $0x3c] sm:$0x1]
        %v1477 = vshrl.u32 %v1460, 16
        %v1479 = vrot.slane %v1477, 4
        %v1480 = vshll.u32 %v1460, 16
        %v1482 = vrot.slane %v1480, 5
        %v1483 = vor.u32 %v1479, %v1482
        %v1484 = vrot.slane %v1483, 4
        %v1486 = vshll.u32 %v1461, 16
        %v1488 = vrot.slane %v1486, 5
        %v1489 = vsel %vm923, %v1484, %v1488
        %v1491 = vshrl.u32 %v1462, 16
        %v1493 = vrot.slane %v1491, 4
        %v1494 = vshll.u32 %v1462, 16
        %v1496 = vrot.slane %v1494, 5
        %v1497 = vor.u32 %v1493, %v1496
        %v1498 = vrot.slane %v1497, 4
        %v1500 = vshll.u32 %v1463, 16
        %v1502 = vrot.slane %v1500, 5
        %v1503 = vsel %vm923, %v1498, %v1502
        %v1505 = vshrl.u32 %v1464, 16
        %v1507 = vrot.slane %v1505, 4
        %v1508 = vshll.u32 %v1464, 16
        %v1510 = vrot.slane %v1508, 5
        %v1511 = vor.u32 %v1507, %v1510
        %v1512 = vrot.slane %v1511, 4
        %v1514 = vshll.u32 %v1465, 16
        %v1516 = vrot.slane %v1514, 5
        %v1517 = vsel %vm923, %v1512, %v1516
        %v1519 = vshrl.u32 %v1466, 16
        %v1521 = vrot.slane %v1519, 4
        %v1522 = vshll.u32 %v1466, 16
        %v1524 = vrot.slane %v1522, 5
        %v1525 = vor.u32 %v1521, %v1524
        %v1526 = vrot.slane %v1525, 4
        %v1528 = vshll.u32 %v1467, 16
        %v1530 = vrot.slane %v1528, 5
        %v1531 = vsel %vm923, %v1526, %v1530
        %v1533 = vshrl.u32 %v1468, 16
        %v1535 = vrot.slane %v1533, 4
        %v1536 = vshll.u32 %v1468, 16
        %v1538 = vrot.slane %v1536, 5
        %v1539 = vor.u32 %v1535, %v1538
        %v1540 = vrot.slane %v1539, 4
        %v1542 = vshll.u32 %v1469, 16
        %v1544 = vrot.slane %v1542, 5
        %v1545 = vsel %vm923, %v1540, %v1544
        %v1547 = vshrl.u32 %v1470, 16
        %v1549 = vrot.slane %v1547, 4
        %v1550 = vshll.u32 %v1470, 16
        %v1552 = vrot.slane %v1550, 5
        %v1553 = vor.u32 %v1549, %v1552
        %v1554 = vrot.slane %v1553, 4
        %v1556 = vshll.u32 %v1471, 16
        %v1558 = vrot.slane %v1556, 5
        %v1559 = vsel %vm923, %v1554, %v1558
        %v1561 = vshrl.u32 %v1472, 16
        %v1563 = vrot.slane %v1561, 4
        %v1564 = vshll.u32 %v1472, 16
        %v1566 = vrot.slane %v1564, 5
        %v1567 = vor.u32 %v1563, %v1566
        %v1568 = vrot.slane %v1567, 4
        %v1570 = vshll.u32 %v1473, 16
        %v1572 = vrot.slane %v1570, 5
        %v1573 = vsel %vm923, %v1568, %v1572
        %v1575 = vshrl.u32 %v1474, 16
        %v1577 = vrot.slane %v1575, 4
        %v1578 = vshll.u32 %v1474, 16
        %v1580 = vrot.slane %v1578, 5
        %v1581 = vor.u32 %v1577, %v1580
        %v1582 = vrot.slane %v1581, 4
        %v1584 = vshll.u32 %v1475, 16
        %v1586 = vrot.slane %v1584, 5
        %v1587 = vsel %vm923, %v1582, %v1586
        %s1588 = scalar_lea.vmem %s599, 160
        %v1589 = vld [vmem:[%s1588] sm:$0xf]
        %v1590 = vld [vmem:[%s1588 + $0x4] sm:$0xf]
        %v1591 = vld [vmem:[%s1588 + $0x8] sm:$0xf]
        %v1592 = vld [vmem:[%s1588 + $0xc] sm:$0xf]
        %v1593 = vld [vmem:[%s1588 + $0x10] sm:$0xf]
        %v1594 = vld [vmem:[%s1588 + $0x14] sm:$0xf]
        %v1595 = vld [vmem:[%s1588 + $0x18] sm:$0xf]
        %v1596 = vld [vmem:[%s1588 + $0x1c] sm:$0xf]
        %v1597 = vunpack.c.l.b16 %v1489
        %v1598 = vunpack.c.l.b16 %v1503
        %v1599 = vunpack.c.l.b16 %v1517
        %v1600 = vunpack.c.l.b16 %v1531
        %v1601 = vunpack.c.l.b16 %v1545
        %v1602 = vunpack.c.l.b16 %v1559
        %v1603 = vunpack.c.l.b16 %v1573
        %v1604 = vunpack.c.l.b16 %v1587
        %v1605 = vpack.c.b16 %v1598, %v1597
        %v1606 = vpack.c.b16 %v1600, %v1599
        %v1607 = vpack.c.b16 %v1602, %v1601
        %v1608 = vpack.c.b16 %v1604, %v1603
        %v1617 = vunpack.c.l.b16 %v1589
        %v1618 = vunpack.c.l.b16 %v1590
        %v1619 = vunpack.c.l.b16 %v1591
        %v1620 = vunpack.c.l.b16 %v1592
        %v1621 = vunpack.c.l.b16 %v1593
        %v1622 = vunpack.c.l.b16 %v1594
        %v1623 = vunpack.c.l.b16 %v1595
        %v1624 = vunpack.c.l.b16 %v1596
        %v1625 = vpack.c.b16 %v1618, %v1617
        %v1626 = vpack.c.b16 %v1620, %v1619
        %v1627 = vpack.c.b16 %v1622, %v1621
        %v1628 = vpack.c.b16 %v1624, %v1623
        %v1634 = vsel %vm706, %v1605, 0
        %v1637 = vsel %vm706, %v1606, 0
        %v1640 = vsel %vm706, %v1607, 0
        %v1643 = vsel %vm706, %v1608, 0
        %1645 = vmatprep.subr.bf16.mxu0 0
        %1646 = vmatpush1.bf16.msra.mxu0 %v1625
        %1647 = vmatprep.subr.bf16.mxu0 0
        %1648 = vmatpush1.bf16.msra.mxu0 %v1626
        %1649 = vmatprep.subr.bf16.mxu0 0
        %1650 = vmatpush1.bf16.msra.mxu0 %v1627
        %1651 = vmatprep.subr.bf16.mxu0 0
        %1652 = vmatpush1.bf16.msra.mxu0 %v1628
        %1653 = vmatprep.subr.bf16.mxu0 0
        %1654 = vmatpush1.bf16.msra.mxu0 0
        %1655 = vmatprep.subr.bf16.mxu0 0
        %1656 = vmatpush1.bf16.msra.mxu0 0
        %1657 = vmatprep.subr.bf16.mxu0 0
        %1658 = vmatpush1.bf16.msra.mxu0 0
        %1659 = vmatprep.subr.bf16.mxu0 0
        %1660 = vmatpush1.bf16.msra.mxu0 0
        %1661 = vmatprep.subr.bf16.mxu0 0
        %1662 = vmatpush1.bf16.msra.mxu0 0
        %1663 = vmatprep.subr.bf16.mxu0 0
        %1664 = vmatpush1.bf16.msra.mxu0 0
        %1665 = vmatprep.subr.bf16.mxu0 0
        %1666 = vmatpush1.bf16.msra.mxu0 0
        %1667 = vmatprep.subr.bf16.mxu0 0
        %1668 = vmatpush1.bf16.msra.mxu0 0
        %1669 = vmatprep.subr.bf16.mxu0 0
        %1670 = vmatpush1.bf16.msra.mxu0 0
        %1671 = vmatprep.subr.bf16.mxu0 0
        %1672 = vmatpush1.bf16.msra.mxu0 0
        %1673 = vmatprep.subr.bf16.mxu0 0
        %1674 = vmatpush1.bf16.msra.mxu0 0
        %1675 = vmatprep.subr.bf16.mxu0 0
        %1676 = vmatpush1.bf16.msra.mxu0 0
        %1677 = vmatprep.mubr.bf16.mxu0 0
        %1678 = vmatmul.mubr.bf16.gmra.mrb[0].mxu0 %v1634
        %v1679 = vpop.f32.mrb[0].mxu0
        %v1680 = vadd.f32 0.0, %v1679
        %v1681 = vpop.f32.mrb[0].mxu0
        %v1682 = vpop.f32.mrb[0].mxu0
        %v1683 = vadd.f32 0.0, %v1682
        %v1684 = vpop.f32.mrb[0].mxu0
        %1685 = vmatprep.mubr.bf16.mxu0 0
        %1686 = vmatmul.mubr.bf16.gmra.mrb[0].mxu0 %v1637
        %v1687 = vpop.f32.mrb[0].mxu0
        %v1688 = vadd.f32 0.0, %v1687
        %v1689 = vpop.f32.mrb[0].mxu0
        %v1690 = vpop.f32.mrb[0].mxu0
        %v1691 = vadd.f32 0.0, %v1690
        %v1692 = vpop.f32.mrb[0].mxu0
        %1693 = vmatprep.mubr.bf16.mxu0 0
        %1694 = vmatmul.mubr.bf16.gmra.mrb[0].mxu0 %v1640
        %v1695 = vpop.f32.mrb[0].mxu0
        %v1696 = vadd.f32 0.0, %v1695
        %v1697 = vpop.f32.mrb[0].mxu0
        %v1698 = vpop.f32.mrb[0].mxu0
        %v1699 = vadd.f32 0.0, %v1698
        %v1700 = vpop.f32.mrb[0].mxu0
        %1701 = vmatprep.mubr.bf16.mxu0 0
        %1702 = vmatmul.mubr.bf16.gmra.mrb[0].mxu0 %v1643
        %v1703 = vpop.f32.mrb[0].mxu0
        %v1704 = vadd.f32 0.0, %v1703
        %v1705 = vpop.f32.mrb[0].mxu0
        %v1706 = vpop.f32.mrb[0].mxu0
        %v1707 = vadd.f32 0.0, %v1706
        %v1708 = vpop.f32.mrb[0].mxu0
        %1709 = vdwg.mxu0
        %v1710 = vadd.f32 %v1452, %v1680
        %v1711 = vadd.f32 %v1453, %v1683
        %v1712 = vadd.f32 %v1454, %v1688
        %v1713 = vadd.f32 %v1455, %v1691
        %v1714 = vadd.f32 %v1456, %v1696
        %v1715 = vadd.f32 %v1457, %v1699
        %v1716 = vadd.f32 %v1458, %v1704
        %v1717 = vadd.f32 %v1459, %v1707
        %s1718 = scalar_lea.vmem %s552, 8 [#allocation3]
        %v1719 = vld [vmem:[%s1718] sm:$0xf]
        %v1720 = vld [vmem:[%s1718 + $0x8] sm:$0xf]
        %v1721 = vld [vmem:[%s1718 + $0x10] sm:$0xf]
        %v1722 = vld [vmem:[%s1718 + $0x18] sm:$0xf]
        %v1723 = vld [vmem:[%s1718 + $0x20] sm:$0xf]
        %v1724 = vld [vmem:[%s1718 + $0x28] sm:$0xf]
        %v1725 = vld [vmem:[%s1718 + $0x30] sm:$0xf]
        %v1726 = vld [vmem:[%s1718 + $0x38] sm:$0xf]
        %s1727 = scalar_lea.vmem %s599, 192
        %v1728 = vld [vmem:[%s1727] sm:$0xf]
        %v1729 = vld [vmem:[%s1727 + $0x4] sm:$0xf]
        %v1730 = vld [vmem:[%s1727 + $0x8] sm:$0xf]
        %v1731 = vld [vmem:[%s1727 + $0xc] sm:$0xf]
        %v1732 = vld [vmem:[%s1727 + $0x10] sm:$0xf]
        %v1733 = vld [vmem:[%s1727 + $0x14] sm:$0xf]
        %v1734 = vld [vmem:[%s1727 + $0x18] sm:$0xf]
        %v1735 = vld [vmem:[%s1727 + $0x1c] sm:$0xf]
        %v1744 = vunpack.c.l.b16 %v1719
        %v1745 = vunpack.c.l.b16 %v1720
        %v1746 = vunpack.c.l.b16 %v1721
        %v1747 = vunpack.c.l.b16 %v1722
        %v1748 = vunpack.c.l.b16 %v1723
        %v1749 = vunpack.c.l.b16 %v1724
        %v1750 = vunpack.c.l.b16 %v1725
        %v1751 = vunpack.c.l.b16 %v1726
        %v1752 = vpack.c.b16 %v1745, %v1744
        %v1753 = vpack.c.b16 %v1747, %v1746
        %v1754 = vpack.c.b16 %v1749, %v1748
        %v1755 = vpack.c.b16 %v1751, %v1750
        %v1764 = vunpack.c.l.b16 %v1728
        %v1765 = vunpack.c.l.b16 %v1729
        %v1766 = vunpack.c.l.b16 %v1730
        %v1767 = vunpack.c.l.b16 %v1731
        %v1768 = vunpack.c.l.b16 %v1732
        %v1769 = vunpack.c.l.b16 %v1733
        %v1770 = vunpack.c.l.b16 %v1734
        %v1771 = vunpack.c.l.b16 %v1735
        %v1772 = vpack.c.b16 %v1765, %v1764
        %v1773 = vpack.c.b16 %v1767, %v1766
        %v1774 = vpack.c.b16 %v1769, %v1768
        %v1775 = vpack.c.b16 %v1771, %v1770
        %v1781 = vsel %vm706, %v1752, 0
        %v1784 = vsel %vm706, %v1753, 0
        %v1787 = vsel %vm706, %v1754, 0
        %v1790 = vsel %vm706, %v1755, 0
        %1792 = vmatprep.subr.bf16.mxu0 0
        %1793 = vmatpush1.bf16.msra.mxu0 %v1772
        %1794 = vmatprep.subr.bf16.mxu0 0
        %1795 = vmatpush1.bf16.msra.mxu0 %v1773
        %1796 = vmatprep.subr.bf16.mxu0 0
        %1797 = vmatpush1.bf16.msra.mxu0 %v1774
        %1798 = vmatprep.subr.bf16.mxu0 0
        %1799 = vmatpush1.bf16.msra.mxu0 %v1775
        %1800 = vmatprep.subr.bf16.mxu0 0
        %1801 = vmatpush1.bf16.msra.mxu0 0
        %1802 = vmatprep.subr.bf16.mxu0 0
        %1803 = vmatpush1.bf16.msra.mxu0 0
        %1804 = vmatprep.subr.bf16.mxu0 0
        %1805 = vmatpush1.bf16.msra.mxu0 0
        %1806 = vmatprep.subr.bf16.mxu0 0
        %1807 = vmatpush1.bf16.msra.mxu0 0
        %1808 = vmatprep.subr.bf16.mxu0 0
        %1809 = vmatpush1.bf16.msra.mxu0 0
        %1810 = vmatprep.subr.bf16.mxu0 0
        %1811 = vmatpush1.bf16.msra.mxu0 0
        %1812 = vmatprep.subr.bf16.mxu0 0
        %1813 = vmatpush1.bf16.msra.mxu0 0
        %1814 = vmatprep.subr.bf16.mxu0 0
        %1815 = vmatpush1.bf16.msra.mxu0 0
        %1816 = vmatprep.subr.bf16.mxu0 0
        %1817 = vmatpush1.bf16.msra.mxu0 0
        %1818 = vmatprep.subr.bf16.mxu0 0
        %1819 = vmatpush1.bf16.msra.mxu0 0
        %1820 = vmatprep.subr.bf16.mxu0 0
        %1821 = vmatpush1.bf16.msra.mxu0 0
        %1822 = vmatprep.subr.bf16.mxu0 0
        %1823 = vmatpush1.bf16.msra.mxu0 0
        %1824 = vmatprep.mubr.bf16.mxu0 0
        %1825 = vmatmul.mubr.bf16.gmra.mrb[0].mxu0 %v1781
        %v1826 = vpop.f32.mrb[0].mxu0
        %v1827 = vadd.f32 0.0, %v1826
        %v1828 = vpop.f32.mrb[0].mxu0
        %v1829 = vpop.f32.mrb[0].mxu0
        %v1830 = vadd.f32 0.0, %v1829
        %v1831 = vpop.f32.mrb[0].mxu0
        %1832 = vmatprep.mubr.bf16.mxu0 0
        %1833 = vmatmul.mubr.bf16.gmra.mrb[0].mxu0 %v1784
        %v1834 = vpop.f32.mrb[0].mxu0
        %v1835 = vadd.f32 0.0, %v1834
        %v1836 = vpop.f32.mrb[0].mxu0
        %v1837 = vpop.f32.mrb[0].mxu0
        %v1838 = vadd.f32 0.0, %v1837
        %v1839 = vpop.f32.mrb[0].mxu0
        %1840 = vmatprep.mubr.bf16.mxu0 0
        %1841 = vmatmul.mubr.bf16.gmra.mrb[0].mxu0 %v1787
        %v1842 = vpop.f32.mrb[0].mxu0
        %v1843 = vadd.f32 0.0, %v1842
        %v1844 = vpop.f32.mrb[0].mxu0
        %v1845 = vpop.f32.mrb[0].mxu0
        %v1846 = vadd.f32 0.0, %v1845
        %v1847 = vpop.f32.mrb[0].mxu0
        %1848 = vmatprep.mubr.bf16.mxu0 0
        %1849 = vmatmul.mubr.bf16.gmra.mrb[0].mxu0 %v1790
        %v1850 = vpop.f32.mrb[0].mxu0
        %v1851 = vadd.f32 0.0, %v1850
        %v1852 = vpop.f32.mrb[0].mxu0
        %v1853 = vpop.f32.mrb[0].mxu0
        %v1854 = vadd.f32 0.0, %v1853
        %v1855 = vpop.f32.mrb[0].mxu0
        %1856 = vdwg.mxu0
        %v1857 = vadd.f32 %v1710, %v1827
        %v1858 = vadd.f32 %v1711, %v1830
        %v1859 = vadd.f32 %v1712, %v1835
        %v1860 = vadd.f32 %v1713, %v1838
        %v1861 = vadd.f32 %v1714, %v1843
        %v1862 = vadd.f32 %v1715, %v1846
        %v1863 = vadd.f32 %v1716, %v1851
        %v1864 = vadd.f32 %v1717, %v1854
        %s1865 = scalar_lea.vmem %s552, 80 [#allocation3]
        %v1866 = vld [vmem:[%s1865] sm:$0xf]
        %v1867 = vld [vmem:[%s1865 + $0x8] sm:$0xf]
        %v1868 = vld [vmem:[%s1865 + $0x10] sm:$0xf]
        %v1869 = vld [vmem:[%s1865 + $0x18] sm:$0xf]
        %v1870 = vld [vmem:[%s1865 + $0x20] sm:$0xf]
        %v1871 = vld [vmem:[%s1865 + $0x28] sm:$0xf]
        %v1872 = vld [vmem:[%s1865 + $0x30] sm:$0xf]
        %v1873 = vld [vmem:[%s1865 + $0x38] sm:$0xf]
        %s1874 = scalar_lea.vmem %s599, 224
        %v1875 = vld [vmem:[%s1874] sm:$0xf]
        %v1876 = vld [vmem:[%s1874 + $0x4] sm:$0xf]
        %v1877 = vld [vmem:[%s1874 + $0x8] sm:$0xf]
        %v1878 = vld [vmem:[%s1874 + $0xc] sm:$0xf]
        %v1879 = vld [vmem:[%s1874 + $0x10] sm:$0xf]
        %v1880 = vld [vmem:[%s1874 + $0x14] sm:$0xf]
        %v1881 = vld [vmem:[%s1874 + $0x18] sm:$0xf]
        %v1882 = vld [vmem:[%s1874 + $0x1c] sm:$0xf]
        %v1891 = vunpack.c.l.b16 %v1866
        %v1892 = vunpack.c.l.b16 %v1867
        %v1893 = vunpack.c.l.b16 %v1868
        %v1894 = vunpack.c.l.b16 %v1869
        %v1895 = vunpack.c.l.b16 %v1870
        %v1896 = vunpack.c.l.b16 %v1871
        %v1897 = vunpack.c.l.b16 %v1872
        %v1898 = vunpack.c.l.b16 %v1873
        %v1899 = vpack.c.b16 %v1892, %v1891
        %v1900 = vpack.c.b16 %v1894, %v1893
        %v1901 = vpack.c.b16 %v1896, %v1895
        %v1902 = vpack.c.b16 %v1898, %v1897
        %v1911 = vunpack.c.l.b16 %v1875
        %v1912 = vunpack.c.l.b16 %v1876
        %v1913 = vunpack.c.l.b16 %v1877
        %v1914 = vunpack.c.l.b16 %v1878
        %v1915 = vunpack.c.l.b16 %v1879
        %v1916 = vunpack.c.l.b16 %v1880
        %v1917 = vunpack.c.l.b16 %v1881
        %v1918 = vunpack.c.l.b16 %v1882
        %v1919 = vpack.c.b16 %v1912, %v1911
        %v1920 = vpack.c.b16 %v1914, %v1913
        %v1921 = vpack.c.b16 %v1916, %v1915
        %v1922 = vpack.c.b16 %v1918, %v1917
        %v1928 = vsel %vm706, %v1899, 0
        %v1931 = vsel %vm706, %v1900, 0
        %v1934 = vsel %vm706, %v1901, 0
        %v1937 = vsel %vm706, %v1902, 0
        %1939 = vmatprep.subr.bf16.mxu0 0
        %1940 = vmatpush1.bf16.msra.mxu0 %v1919
        %1941 = vmatprep.subr.bf16.mxu0 0
        %1942 = vmatpush1.bf16.msra.mxu0 %v1920
        %1943 = vmatprep.subr.bf16.mxu0 0
        %1944 = vmatpush1.bf16.msra.mxu0 %v1921
        %1945 = vmatprep.subr.bf16.mxu0 0
        %1946 = vmatpush1.bf16.msra.mxu0 %v1922
        %1947 = vmatprep.subr.bf16.mxu0 0
        %1948 = vmatpush1.bf16.msra.mxu0 0
        %1949 = vmatprep.subr.bf16.mxu0 0
        %1950 = vmatpush1.bf16.msra.mxu0 0
        %1951 = vmatprep.subr.bf16.mxu0 0
        %1952 = vmatpush1.bf16.msra.mxu0 0
        %1953 = vmatprep.subr.bf16.mxu0 0
        %1954 = vmatpush1.bf16.msra.mxu0 0
        %1955 = vmatprep.subr.bf16.mxu0 0
        %1956 = vmatpush1.bf16.msra.mxu0 0
        %1957 = vmatprep.subr.bf16.mxu0 0
        %1958 = vmatpush1.bf16.msra.mxu0 0
        %1959 = vmatprep.subr.bf16.mxu0 0
        %1960 = vmatpush1.bf16.msra.mxu0 0
        %1961 = vmatprep.subr.bf16.mxu0 0
        %1962 = vmatpush1.bf16.msra.mxu0 0
        %1963 = vmatprep.subr.bf16.mxu0 0
        %1964 = vmatpush1.bf16.msra.mxu0 0
        %1965 = vmatprep.subr.bf16.mxu0 0
        %1966 = vmatpush1.bf16.msra.mxu0 0
        %1967 = vmatprep.subr.bf16.mxu0 0
        %1968 = vmatpush1.bf16.msra.mxu0 0
        %1969 = vmatprep.subr.bf16.mxu0 0
        %1970 = vmatpush1.bf16.msra.mxu0 0
        %1971 = vmatprep.mubr.bf16.mxu0 0
        %1972 = vmatmul.mubr.bf16.gmra.mrb[0].mxu0 %v1928
        %v1973 = vpop.f32.mrb[0].mxu0
        %v1974 = vadd.f32 0.0, %v1973
        %v1975 = vpop.f32.mrb[0].mxu0
        %v1976 = vpop.f32.mrb[0].mxu0
        %v1977 = vadd.f32 0.0, %v1976
        %v1978 = vpop.f32.mrb[0].mxu0
        %1979 = vmatprep.mubr.bf16.mxu0 0
        %1980 = vmatmul.mubr.bf16.gmra.mrb[0].mxu0 %v1931
        %v1981 = vpop.f32.mrb[0].mxu0
        %v1982 = vadd.f32 0.0, %v1981
        %v1983 = vpop.f32.mrb[0].mxu0
        %v1984 = vpop.f32.mrb[0].mxu0
        %v1985 = vadd.f32 0.0, %v1984
        %v1986 = vpop.f32.mrb[0].mxu0
        %1987 = vmatprep.mubr.bf16.mxu0 0
        %1988 = vmatmul.mubr.bf16.gmra.mrb[0].mxu0 %v1934
        %v1989 = vpop.f32.mrb[0].mxu0
        %v1990 = vadd.f32 0.0, %v1989
        %v1991 = vpop.f32.mrb[0].mxu0
        %v1992 = vpop.f32.mrb[0].mxu0
        %v1993 = vadd.f32 0.0, %v1992
        %v1994 = vpop.f32.mrb[0].mxu0
        %1995 = vmatprep.mubr.bf16.mxu0 0
        %1996 = vmatmul.mubr.bf16.gmra.mrb[0].mxu0 %v1937
        %v1997 = vpop.f32.mrb[0].mxu0
        %v1998 = vadd.f32 0.0, %v1997
        %v1999 = vpop.f32.mrb[0].mxu0
        %v2000 = vpop.f32.mrb[0].mxu0
        %v2001 = vadd.f32 0.0, %v2000
        %v2002 = vpop.f32.mrb[0].mxu0
        %2003 = vdwg.mxu0
        %v2004 = vadd.f32 %v1857, %v1974
        %v2005 = vadd.f32 %v1858, %v1977
        %v2006 = vadd.f32 %v1859, %v1982
        %v2007 = vadd.f32 %v1860, %v1985
        %v2008 = vadd.f32 %v1861, %v1990
        %v2009 = vadd.f32 %v1862, %v1993
        %v2010 = vadd.f32 %v1863, %v1998
        %v2011 = vadd.f32 %v1864, %v2001
        %v2012 = vld [vmem:[%s1718] sm:$0xf]
        %v2013 = vld [vmem:[%s1718 + $0x4] sm:$0x1]
        %v2014 = vld [vmem:[%s1718 + $0x8] sm:$0xf]
        %v2015 = vld [vmem:[%s1718 + $0xc] sm:$0x1]
        %v2016 = vld [vmem:[%s1718 + $0x10] sm:$0xf]
        %v2017 = vld [vmem:[%s1718 + $0x14] sm:$0x1]
        %v2018 = vld [vmem:[%s1718 + $0x18] sm:$0xf]
        %v2019 = vld [vmem:[%s1718 + $0x1c] sm:$0x1]
        %v2020 = vld [vmem:[%s1718 + $0x20] sm:$0xf]
        %v2021 = vld [vmem:[%s1718 + $0x24] sm:$0x1]
        %v2022 = vld [vmem:[%s1718 + $0x28] sm:$0xf]
        %v2023 = vld [vmem:[%s1718 + $0x2c] sm:$0x1]
        %v2024 = vld [vmem:[%s1718 + $0x30] sm:$0xf]
        %v2025 = vld [vmem:[%s1718 + $0x34] sm:$0x1]
        %v2026 = vld [vmem:[%s1718 + $0x38] sm:$0xf]
        %v2027 = vld [vmem:[%s1718 + $0x3c] sm:$0x1]
        %v2029 = vshrl.u32 %v2012, 16
        %v2031 = vrot.slane %v2029, 4
        %v2032 = vshll.u32 %v2012, 16
        %v2034 = vrot.slane %v2032, 5
        %v2035 = vor.u32 %v2031, %v2034
        %v2036 = vrot.slane %v2035, 4
        %v2038 = vshll.u32 %v2013, 16
        %v2040 = vrot.slane %v2038, 5
        %v2041 = vsel %vm923, %v2036, %v2040
        %v2043 = vshrl.u32 %v2014, 16
        %v2045 = vrot.slane %v2043, 4
        %v2046 = vshll.u32 %v2014, 16
        %v2048 = vrot.slane %v2046, 5
        %v2049 = vor.u32 %v2045, %v2048
        %v2050 = vrot.slane %v2049, 4
        %v2052 = vshll.u32 %v2015, 16
        %v2054 = vrot.slane %v2052, 5
        %v2055 = vsel %vm923, %v2050, %v2054
        %v2057 = vshrl.u32 %v2016, 16
        %v2059 = vrot.slane %v2057, 4
        %v2060 = vshll.u32 %v2016, 16
        %v2062 = vrot.slane %v2060, 5
        %v2063 = vor.u32 %v2059, %v2062
        %v2064 = vrot.slane %v2063, 4
        %v2066 = vshll.u32 %v2017, 16
        %v2068 = vrot.slane %v2066, 5
        %v2069 = vsel %vm923, %v2064, %v2068
        %v2071 = vshrl.u32 %v2018, 16
        %v2073 = vrot.slane %v2071, 4
        %v2074 = vshll.u32 %v2018, 16
        %v2076 = vrot.slane %v2074, 5
        %v2077 = vor.u32 %v2073, %v2076
        %v2078 = vrot.slane %v2077, 4
        %v2080 = vshll.u32 %v2019, 16
        %v2082 = vrot.slane %v2080, 5
        %v2083 = vsel %vm923, %v2078, %v2082
        %v2085 = vshrl.u32 %v2020, 16
        %v2087 = vrot.slane %v2085, 4
        %v2088 = vshll.u32 %v2020, 16
        %v2090 = vrot.slane %v2088, 5
        %v2091 = vor.u32 %v2087, %v2090
        %v2092 = vrot.slane %v2091, 4
        %v2094 = vshll.u32 %v2021, 16
        %v2096 = vrot.slane %v2094, 5
        %v2097 = vsel %vm923, %v2092, %v2096
        %v2099 = vshrl.u32 %v2022, 16
        %v2101 = vrot.slane %v2099, 4
        %v2102 = vshll.u32 %v2022, 16
        %v2104 = vrot.slane %v2102, 5
        %v2105 = vor.u32 %v2101, %v2104
        %v2106 = vrot.slane %v2105, 4
        %v2108 = vshll.u32 %v2023, 16
        %v2110 = vrot.slane %v2108, 5
        %v2111 = vsel %vm923, %v2106, %v2110
        %v2113 = vshrl.u32 %v2024, 16
        %v2115 = vrot.slane %v2113, 4
        %v2116 = vshll.u32 %v2024, 16
        %v2118 = vrot.slane %v2116, 5
        %v2119 = vor.u32 %v2115, %v2118
        %v2120 = vrot.slane %v2119, 4
        %v2122 = vshll.u32 %v2025, 16
        %v2124 = vrot.slane %v2122, 5
        %v2125 = vsel %vm923, %v2120, %v2124
        %v2127 = vshrl.u32 %v2026, 16
        %v2129 = vrot.slane %v2127, 4
        %v2130 = vshll.u32 %v2026, 16
        %v2132 = vrot.slane %v2130, 5
        %v2133 = vor.u32 %v2129, %v2132
        %v2134 = vrot.slane %v2133, 4
        %v2136 = vshll.u32 %v2027, 16
        %v2138 = vrot.slane %v2136, 5
        %v2139 = vsel %vm923, %v2134, %v2138
        %s2140 = scalar_lea.vmem %s599, 256
        %v2141 = vld [vmem:[%s2140] sm:$0xf]
        %v2142 = vld [vmem:[%s2140 + $0x4] sm:$0xf]
        %v2143 = vld [vmem:[%s2140 + $0x8] sm:$0xf]
        %v2144 = vld [vmem:[%s2140 + $0xc] sm:$0xf]
        %v2145 = vld [vmem:[%s2140 + $0x10] sm:$0xf]
        %v2146 = vld [vmem:[%s2140 + $0x14] sm:$0xf]
        %v2147 = vld [vmem:[%s2140 + $0x18] sm:$0xf]
        %v2148 = vld [vmem:[%s2140 + $0x1c] sm:$0xf]
        %v2149 = vunpack.c.l.b16 %v2041
        %v2150 = vunpack.c.l.b16 %v2055
        %v2151 = vunpack.c.l.b16 %v2069
        %v2152 = vunpack.c.l.b16 %v2083
        %v2153 = vunpack.c.l.b16 %v2097
        %v2154 = vunpack.c.l.b16 %v2111
        %v2155 = vunpack.c.l.b16 %v2125
        %v2156 = vunpack.c.l.b16 %v2139
        %v2157 = vpack.c.b16 %v2150, %v2149
        %v2158 = vpack.c.b16 %v2152, %v2151
        %v2159 = vpack.c.b16 %v2154, %v2153
        %v2160 = vpack.c.b16 %v2156, %v2155
        %v2169 = vunpack.c.l.b16 %v2141
        %v2170 = vunpack.c.l.b16 %v2142
        %v2171 = vunpack.c.l.b16 %v2143
        %v2172 = vunpack.c.l.b16 %v2144
        %v2173 = vunpack.c.l.b16 %v2145
        %v2174 = vunpack.c.l.b16 %v2146
        %v2175 = vunpack.c.l.b16 %v2147
        %v2176 = vunpack.c.l.b16 %v2148
        %v2177 = vpack.c.b16 %v2170, %v2169
        %v2178 = vpack.c.b16 %v2172, %v2171
        %v2179 = vpack.c.b16 %v2174, %v2173
        %v2180 = vpack.c.b16 %v2176, %v2175
        %v2186 = vsel %vm706, %v2157, 0
        %v2189 = vsel %vm706, %v2158, 0
        %v2192 = vsel %vm706, %v2159, 0
        %v2195 = vsel %vm706, %v2160, 0
        %2197 = vmatprep.subr.bf16.mxu0 0
        %2198 = vmatpush1.bf16.msra.mxu0 %v2177
        %2199 = vmatprep.subr.bf16.mxu0 0
        %2200 = vmatpush1.bf16.msra.mxu0 %v2178
        %2201 = vmatprep.subr.bf16.mxu0 0
        %2202 = vmatpush1.bf16.msra.mxu0 %v2179
        %2203 = vmatprep.subr.bf16.mxu0 0
        %2204 = vmatpush1.bf16.msra.mxu0 %v2180
        %2205 = vmatprep.subr.bf16.mxu0 0
        %2206 = vmatpush1.bf16.msra.mxu0 0
        %2207 = vmatprep.subr.bf16.mxu0 0
        %2208 = vmatpush1.bf16.msra.mxu0 0
        %2209 = vmatprep.subr.bf16.mxu0 0
        %2210 = vmatpush1.bf16.msra.mxu0 0
        %2211 = vmatprep.subr.bf16.mxu0 0
        %2212 = vmatpush1.bf16.msra.mxu0 0
        %2213 = vmatprep.subr.bf16.mxu0 0
        %2214 = vmatpush1.bf16.msra.mxu0 0
        %2215 = vmatprep.subr.bf16.mxu0 0
        %2216 = vmatpush1.bf16.msra.mxu0 0
        %2217 = vmatprep.subr.bf16.mxu0 0
        %2218 = vmatpush1.bf16.msra.mxu0 0
        %2219 = vmatprep.subr.bf16.mxu0 0
        %2220 = vmatpush1.bf16.msra.mxu0 0
        %2221 = vmatprep.subr.bf16.mxu0 0
        %2222 = vmatpush1.bf16.msra.mxu0 0
        %2223 = vmatprep.subr.bf16.mxu0 0
        %2224 = vmatpush1.bf16.msra.mxu0 0
        %2225 = vmatprep.subr.bf16.mxu0 0
        %2226 = vmatpush1.bf16.msra.mxu0 0
        %2227 = vmatprep.subr.bf16.mxu0 0
        %2228 = vmatpush1.bf16.msra.mxu0 0
        %2229 = vmatprep.mubr.bf16.mxu0 0
        %2230 = vmatmul.mubr.bf16.gmra.mrb[0].mxu0 %v2186
        %v2231 = vpop.f32.mrb[0].mxu0
        %v2232 = vadd.f32 0.0, %v2231
        %v2233 = vpop.f32.mrb[0].mxu0
        %v2234 = vpop.f32.mrb[0].mxu0
        %v2235 = vadd.f32 0.0, %v2234
        %v2236 = vpop.f32.mrb[0].mxu0
        %2237 = vmatprep.mubr.bf16.mxu0 0
        %2238 = vmatmul.mubr.bf16.gmra.mrb[0].mxu0 %v2189
        %v2239 = vpop.f32.mrb[0].mxu0
        %v2240 = vadd.f32 0.0, %v2239
        %v2241 = vpop.f32.mrb[0].mxu0
        %v2242 = vpop.f32.mrb[0].mxu0
        %v2243 = vadd.f32 0.0, %v2242
        %v2244 = vpop.f32.mrb[0].mxu0
        %2245 = vmatprep.mubr.bf16.mxu0 0
        %2246 = vmatmul.mubr.bf16.gmra.mrb[0].mxu0 %v2192
        %v2247 = vpop.f32.mrb[0].mxu0
        %v2248 = vadd.f32 0.0, %v2247
        %v2249 = vpop.f32.mrb[0].mxu0
        %v2250 = vpop.f32.mrb[0].mxu0
        %v2251 = vadd.f32 0.0, %v2250
        %v2252 = vpop.f32.mrb[0].mxu0
        %2253 = vmatprep.mubr.bf16.mxu0 0
        %2254 = vmatmul.mubr.bf16.gmra.mrb[0].mxu0 %v2195
        %v2255 = vpop.f32.mrb[0].mxu0
        %v2256 = vadd.f32 0.0, %v2255
        %v2257 = vpop.f32.mrb[0].mxu0
        %v2258 = vpop.f32.mrb[0].mxu0
        %v2259 = vadd.f32 0.0, %v2258
        %v2260 = vpop.f32.mrb[0].mxu0
        %2261 = vdwg.mxu0
        %v2262 = vadd.f32 %v2004, %v2232
        %v2263 = vadd.f32 %v2005, %v2235
        %v2264 = vadd.f32 %v2006, %v2240
        %v2265 = vadd.f32 %v2007, %v2243
        %v2266 = vadd.f32 %v2008, %v2248
        %v2267 = vadd.f32 %v2009, %v2251
        %v2268 = vadd.f32 %v2010, %v2256
        %v2269 = vadd.f32 %v2011, %v2259
        %v2270 = vld [vmem:[#allocation2] sm:$0xff]
        %v2271 = vld [vmem:[#allocation2 + $0x8] sm:$0xff]
        %v2272 = vld [vmem:[#allocation2 + $0x10] sm:$0xff]
        %v2273 = vld [vmem:[#allocation2 + $0x18] sm:$0xff]
        %v2274 = vld [vmem:[#allocation2 + $0x20] sm:$0xff]
        %v2275 = vld [vmem:[#allocation2 + $0x28] sm:$0xff]
        %v2276 = vld [vmem:[#allocation2 + $0x30] sm:$0xff]
        %v2277 = vld [vmem:[#allocation2 + $0x38] sm:$0xff]
        %v2278 = vadd.f32 %v2270, %v2262
        %v2279 = vadd.f32 %v2271, %v2263
        %v2280 = vadd.f32 %v2272, %v2264
        %v2281 = vadd.f32 %v2273, %v2265
        %v2282 = vadd.f32 %v2274, %v2266
        %v2283 = vadd.f32 %v2275, %v2267
        %v2284 = vadd.f32 %v2276, %v2268
        %v2285 = vadd.f32 %v2277, %v2269
        %2286 = vst [vmem:[#allocation2] sm:$0xff] %v2278
        %2287 = vst [vmem:[#allocation2 + $0x8] sm:$0xff] %v2279
        %2288 = vst [vmem:[#allocation2 + $0x10] sm:$0xff] %v2280
        %2289 = vst [vmem:[#allocation2 + $0x18] sm:$0xff] %v2281
        %2290 = vst [vmem:[#allocation2 + $0x20] sm:$0xff] %v2282
        %2291 = vst [vmem:[#allocation2 + $0x28] sm:$0xff] %v2283
        %2292 = vst [vmem:[#allocation2 + $0x30] sm:$0xff] %v2284
        %2293 = vst [vmem:[#allocation2 + $0x38] sm:$0xff] %v2285
        // Predicated region
        $region82: #{_lambda_.6} parent=72 // pred_check
          %p2294 = pneg %p616
        $region83: #{_lambda_.6} parent=72 // pred_check_branch
          %2296 = sbr.rel (%p2294) target = $region85
        $region84: #{_lambda_.6} parent=72 // pred_region
          %v2297 = vld [vmem:[#allocation2] sm:$0xff]
          %v2298 = vld [vmem:[#allocation2 + $0x8] sm:$0xff]
          %v2299 = vld [vmem:[#allocation2 + $0x10] sm:$0xff]
          %v2300 = vld [vmem:[#allocation2 + $0x18] sm:$0xff]
          %v2301 = vld [vmem:[#allocation2 + $0x20] sm:$0xff]
          %v2302 = vld [vmem:[#allocation2 + $0x28] sm:$0xff]
          %v2303 = vld [vmem:[#allocation2 + $0x30] sm:$0xff]
          %v2304 = vld [vmem:[#allocation2 + $0x38] sm:$0xff]
          %v2305 = vld [vmem:[%s603] sm:$0x1]
          %v2307 = vlaneseq
          %v2308 = vshrl.u32 %v2307, 7
          %v2309 = vsub.s32 0, %v2308
          %v2310 = vrot.slane %v2305, %v2309
          %v2312 = vmul.f32 %v2297, %v2310
          %v2313 = vmul.f32 %v2298, %v2310
          %v2314 = vmul.f32 %v2299, %v2310
          %v2315 = vmul.f32 %v2300, %v2310
          %v2316 = vmul.f32 %v2301, %v2310
          %v2317 = vmul.f32 %v2302, %v2310
          %v2318 = vmul.f32 %v2303, %v2310
          %v2319 = vmul.f32 %v2304, %v2310
          %v2320 = vld [vmem:[%s606] sm:$0x1]
          %v2322 = vlaneseq
          %v2323 = vshrl.u32 %v2322, 7
          %v2324 = vsub.s32 0, %v2323
          %v2325 = vrot.slane %v2320, %v2324
          %v2327 = vadd.f32 %v2312, %v2325
          %v2328 = vadd.f32 %v2313, %v2325
          %v2329 = vadd.f32 %v2314, %v2325
          %v2330 = vadd.f32 %v2315, %v2325
          %v2331 = vadd.f32 %v2316, %v2325
          %v2332 = vadd.f32 %v2317, %v2325
          %v2333 = vadd.f32 %v2318, %v2325
          %v2334 = vadd.f32 %v2319, %v2325
          %v2335 = vmax.f32 %v2327, 0.0
          %v2336 = vmax.f32 %v2328, 0.0
          %v2337 = vmax.f32 %v2329, 0.0
          %v2338 = vmax.f32 %v2330, 0.0
          %v2339 = vmax.f32 %v2331, 0.0
          %v2340 = vmax.f32 %v2332, 0.0
          %v2341 = vmax.f32 %v2333, 0.0
          %v2342 = vmax.f32 %v2334, 0.0
          %v2343 = vpack.c.bf16 %v2336, %v2335
          %v2344 = vpack.c.bf16 %v2338, %v2337
          %v2345 = vpack.c.bf16 %v2340, %v2339
          %v2346 = vpack.c.bf16 %v2342, %v2341
          %v2351 = vunpack.c.l.b16 %v2343
          %v2352 = vunpack.c.h.b16 %v2343
          %v2353 = vunpack.c.l.b16 %v2344
          %v2354 = vunpack.c.h.b16 %v2344
          %v2355 = vunpack.c.l.b16 %v2345
          %v2356 = vunpack.c.h.b16 %v2345
          %v2357 = vunpack.c.l.b16 %v2346
          %v2358 = vunpack.c.h.b16 %v2346
          %v2359 = vpack.c.b16 %v2351, %v2351
          %v2360 = vpack.c.b16 %v2352, %v2352
          %v2361 = vpack.c.b16 %v2353, %v2353
          %v2362 = vpack.c.b16 %v2354, %v2354
          %v2363 = vpack.c.b16 %v2355, %v2355
          %v2364 = vpack.c.b16 %v2356, %v2356
          %v2365 = vpack.c.b16 %v2357, %v2357
          %v2366 = vpack.c.b16 %v2358, %v2358
          %2375 = vst [vmem:[%s614] sm:$0xf] %v2359
          %2376 = vst [vmem:[%s614 + $0x4] sm:$0xf] %v2360
          %2377 = vst [vmem:[%s614 + $0x8] sm:$0xf] %v2361
          %2378 = vst [vmem:[%s614 + $0xc] sm:$0xf] %v2362
          %2379 = vst [vmem:[%s614 + $0x10] sm:$0xf] %v2363
          %2380 = vst [vmem:[%s614 + $0x14] sm:$0xf] %v2364
          %2381 = vst [vmem:[%s614 + $0x18] sm:$0xf] %v2365
          %2382 = vst [vmem:[%s614 + $0x1c] sm:$0xf] %v2366
        $region85: #{_lambda_.6} parent=72 // pred_fallthru
          _
        %p2383 = scmp.lt.s32.totalorder %s20, 1
        %s2384 = scalar_select %p2383, %s20, 1
        %p2385 = scmp.lt.s32.totalorder %s21, 0
        %s2386 = scalar_select %p2385, %s21, 0
        %s2387 = smul.addr %s2384, 8
        %s2388 = sadd.s32 %s2386, %s2387
        %s2389 = smul.addr %s2388, 4
        %s2390 = scalar_lea.vmem %s4, %s2389
        // Predicated region
        $region86: #{_lambda_.6} parent=72 // pred_check
          %p2391 = pneg %p162
        $region87: #{_lambda_.6} parent=72 // pred_check_branch
          %2393 = sbr.rel (%p2391) target = $region89
        $region88: #{_lambda_.6} parent=72 // pred_region
          _
        $region89: #{_lambda_.6} parent=72 // pred_fallthru
          _
      $region73: #{_lambda_.6} parent=5 // pred_fallthru
        _
      %p2394 = scmp.le.s32.totalorder 2, %s10
      // Predicated region
      $region90: #{_lambda_.6} parent=5 // pred_check
        %p2395 = pneg %p2394
      $region91: #{_lambda_.6} parent=5 // pred_check_branch
        %2397 = sbr.rel (%p2395) target = $region93
      $region92: #{_lambda_.6} parent=5 // pred_region
        %s2398 = ssub.s32 %s10, 2
        // Predicated region
        $region94: #{_lambda_.6} parent=92 // pred_check
          %p2399 = pneg %p168
        $region95: #{_lambda_.6} parent=92 // pred_check_branch
          %2401 = sbr.rel (%p2399) target = $region97
        $region96: #{_lambda_.6} parent=92 // pred_region
          %p2402 = scmp.lt.s32.totalorder %s23, 1
          %s2403 = scalar_select %p2402, %s23, 1
          %p2404 = scmp.lt.s32.totalorder %s24, 0
          %s2405 = scalar_select %p2404, %s24, 0
          %s2406 = smul.addr %s2403, 8
          %s2407 = sadd.s32 %s2405, %s2406
          %s2408 = smul.addr %s2407, 4
          %s2409 = scalar_lea.vmem %s4, %s2408
        $region97: #{_lambda_.6} parent=92 // pred_fallthru
          _
      $region93: #{_lambda_.6} parent=5 // pred_fallthru
        _
    $region6: #{_lambda_.6} parent=1 // loop_footer
      %s14 = sadd.s32 1, %s10
    $region7: #{_lambda_.6} parent=1 // loop_footer_branch
      %9 = sbr.rel target = $region3
    $region8: #{_lambda_.6} parent=1 // loop_exit
      _

// kernel: _lambda_.7
$region0: #{_lambda_.7}
  #allocation0 [shape = 'u32[]', space=smem, size = 0x4, offset = 0x4, fixed_abs, tag = 'smem constant byte address 0x4 - core index']
  #allocation1 [shape = 'u32[144,128]{1,0:T(1,128)}', space=vmem, size = 0x12000, scoped, tag = 'internal scratch']
  #allocation2 [shape = 'f32[64,128]{1,0:T(8,128)}', space=vmem, size = 0x8000, scoped, tag = 'scratch operand']
  %s0 = inlined_call_operand.vmem [shape: bf16[1,2,10,10,128], index: 0, kind: input, shape index: {}]
  %s1 = inlined_call_operand.vmem [shape: bf16[3,3,128,128], index: 1, kind: input, shape index: {}]
  %s2 = inlined_call_operand.vmem [shape: f32[1,128], index: 2, kind: input, shape index: {}]
  %s3 = inlined_call_operand.vmem [shape: f32[1,128], index: 3, kind: input, shape index: {}]
  %s4 = inlined_call_operand.vmem [shape: bf16[2,64,128], index: 4, kind: input, shape index: {}]
  %s5 = inlined_call_operand.vmem [shape: f32[2,64,128], index: 5, kind: output, shape index: {}]
  %s6 = sld [smem:[#allocation0]]
  $region61: #{_lambda_.7} parent=0
    _
  %s8 = ssub.s32 1, %s6
  %s9 = scalar_select 0, %s8, %s6
  loop: start=0, step=1, limit=4
  $region2: #{_lambda_.7} parent=0 // loop_pre_header
    _
  $region3: #{_lambda_.7} parent=0 // loop_header
    %s11 = sphi 0, %s15
    %p12 = scmp.ge.s32.totalorder %s11, 4
    %s18 = sphi 0, %s37
    %s19 = sphi 0, %s33
    %s20 = sphi 0, %s29
    %s21 = sphi 0, %s18
    %s22 = sphi 0, %s19
    %s23 = sphi 0, %s20
    %s24 = sphi 0, %s21
    %s25 = sphi 0, %s22
    %s26 = sphi 0, %s23
    %s42 = sphi 0, %s44
    %s45 = sphi 0, %s42
    %s46 = sphi 0, %s45
    %s62 = sphi 0, %s46
    %s70 = sphi 0, %s72
    %s73 = sphi 0, %s70
    %s74 = sphi 0, %s73
    %s90 = sphi 0, %s74
    %s96 = sphi 0, %s98
    %s99 = sphi 0, %s96
    %s100 = sphi 0, %s99
    %s116 = sphi 0, %s100
    %s122 = sphi 0, %s124
    %s125 = sphi 0, %s122
    %s126 = sphi 0, %s125
    %s142 = sphi 0, %s126
    %s150 = sphi 0, %s152
    %s153 = sphi 0, %s150
    %s154 = sphi 0, %s153
    %s170 = sphi 0, %s154
    %s178 = sphi 0, %s180
    %s181 = sphi 0, %s178
    %s182 = sphi 0, %s181
    %s198 = sphi 0, %s182
  $region4: #{_lambda_.7} parent=0 // loop_header_branch
    %14 = sbr.rel (%p12) target = $region8
  $region5: #{_lambda_.7} parent=0 // loop_body
    %s16 = ssub.s32 %s11, 1
    %s17 = ssub.s32 %s11, 2
    %s27 = sadd.s32 1, %s20
    %p28 = scmp.ge.s32.totalorder %s27, 1
    %s29 = scalar_select %p28, 0, %s27
    %s30 = sadd.s32 1, %s19
    %s31 = scalar_select %p28, %s30, %s19
    %p32 = scmp.ge.s32.totalorder %s31, 1
    %s33 = scalar_select %p32, 0, %s31
    %s34 = sadd.s32 1, %s18
    %s35 = scalar_select %p32, %s34, %s18
    %p36 = scmp.ge.s32.totalorder %s35, 2
    %s37 = scalar_select %p36, 0, %s35
    %s38 = ssub.s32 %s18, %s37
    %s39 = ssub.s32 %s20, %s29
    %s40 = sor.u32 %s38, %s39
    %p41 = scmp.eq.s32.totalorder %s40, 0
    %s43 = sadd.s32 %s42, 1
    %s44 = scalar_select %p41, %s42, %s43
    %p47 = pneg %p41
    %p48 = scmp.eq.s32.totalorder %s11, 1
    %p49 = por %p47, %p48
    %p50 = scmp.ne.s32.totalorder %s42, %s45
    %p51 = scmp.eq.s32.totalorder %s11, 0
    %p52 = por %p50, %p51
    %p53 = scmp.ne.s32.totalorder %s42, %s45
    %p54 = scmp.eq.s32.totalorder %s16, 1
    %p55 = por %p53, %p54
    %p56 = scmp.ne.s32.totalorder %s45, %s46
    %p57 = scmp.eq.s32.totalorder %s16, 0
    %p58 = por %p56, %p57
    %p59 = scmp.ne.s32.totalorder %s45, %s46
    %p60 = scmp.eq.s32.totalorder %s17, 1
    %p61 = por %p59, %p60
    %p63 = scmp.ne.s32.totalorder %s46, %s62
    %p64 = scmp.eq.s32.totalorder %s17, 0
    %p65 = por %p63, %p64
    %s66 = ssub.s32 %s20, %s29
    %s67 = ssub.s32 %s19, %s33
    %s68 = sor.u32 %s66, %s67
    %p69 = scmp.eq.s32.totalorder %s68, 0
    %s71 = sadd.s32 %s70, 1
    %s72 = scalar_select %p69, %s70, %s71
    %p75 = pneg %p69
    %p76 = scmp.eq.s32.totalorder %s11, 1
    %p77 = por %p75, %p76
    %p78 = scmp.ne.s32.totalorder %s70, %s73
    %p79 = scmp.eq.s32.totalorder %s11, 0
    %p80 = por %p78, %p79
    %p81 = scmp.ne.s32.totalorder %s70, %s73
    %p82 = scmp.eq.s32.totalorder %s16, 1
    %p83 = por %p81, %p82
    %p84 = scmp.ne.s32.totalorder %s73, %s74
    %p85 = scmp.eq.s32.totalorder %s16, 0
    %p86 = por %p84, %p85
    %p87 = scmp.ne.s32.totalorder %s73, %s74
    %p88 = scmp.eq.s32.totalorder %s17, 1
    %p89 = por %p87, %p88
    %p91 = scmp.ne.s32.totalorder %s74, %s90
    %p92 = scmp.eq.s32.totalorder %s17, 0
    %p93 = por %p91, %p92
    %s94 = ssub.s32 %s19, %s33
    %p95 = scmp.eq.s32.totalorder %s94, 0
    %s97 = sadd.s32 %s96, 1
    %s98 = scalar_select %p95, %s96, %s97
    %p101 = pneg %p95
    %p102 = scmp.eq.s32.totalorder %s11, 1
    %p103 = por %p101, %p102
    %p104 = scmp.ne.s32.totalorder %s96, %s99
    %p105 = scmp.eq.s32.totalorder %s11, 0
    %p106 = por %p104, %p105
    %p107 = scmp.ne.s32.totalorder %s96, %s99
    %p108 = scmp.eq.s32.totalorder %s16, 1
    %p109 = por %p107, %p108
    %p110 = scmp.ne.s32.totalorder %s99, %s100
    %p111 = scmp.eq.s32.totalorder %s16, 0
    %p112 = por %p110, %p111
    %p113 = scmp.ne.s32.totalorder %s99, %s100
    %p114 = scmp.eq.s32.totalorder %s17, 1
    %p115 = por %p113, %p114
    %p117 = scmp.ne.s32.totalorder %s100, %s116
    %p118 = scmp.eq.s32.totalorder %s17, 0
    %p119 = por %p117, %p118
    %s120 = ssub.s32 %s19, %s33
    %p121 = scmp.eq.s32.totalorder %s120, 0
    %s123 = sadd.s32 %s122, 1
    %s124 = scalar_select %p121, %s122, %s123
    %p127 = pneg %p121
    %p128 = scmp.eq.s32.totalorder %s11, 1
    %p129 = por %p127, %p128
    %p130 = scmp.ne.s32.totalorder %s122, %s125
    %p131 = scmp.eq.s32.totalorder %s11, 0
    %p132 = por %p130, %p131
    %p133 = scmp.ne.s32.totalorder %s122, %s125
    %p134 = scmp.eq.s32.totalorder %s16, 1
    %p135 = por %p133, %p134
    %p136 = scmp.ne.s32.totalorder %s125, %s126
    %p137 = scmp.eq.s32.totalorder %s16, 0
    %p138 = por %p136, %p137
    %p139 = scmp.ne.s32.totalorder %s125, %s126
    %p140 = scmp.eq.s32.totalorder %s17, 1
    %p141 = por %p139, %p140
    %p143 = scmp.ne.s32.totalorder %s126, %s142
    %p144 = scmp.eq.s32.totalorder %s17, 0
    %p145 = por %p143, %p144
    %s146 = ssub.s32 %s18, %s37
    %s147 = ssub.s32 %s19, %s33
    %s148 = sor.u32 %s146, %s147
    %p149 = scmp.eq.s32.totalorder %s148, 0
    %s151 = sadd.s32 %s150, 1
    %s152 = scalar_select %p149, %s150, %s151
    %p155 = pneg %p149
    %p156 = scmp.eq.s32.totalorder %s11, 1
    %p157 = por %p155, %p156
    %p158 = scmp.ne.s32.totalorder %s150, %s153
    %p159 = scmp.eq.s32.totalorder %s11, 0
    %p160 = por %p158, %p159
    %p161 = scmp.ne.s32.totalorder %s150, %s153
    %p162 = scmp.eq.s32.totalorder %s16, 1
    %p163 = por %p161, %p162
    %p164 = scmp.ne.s32.totalorder %s153, %s154
    %p165 = scmp.eq.s32.totalorder %s16, 0
    %p166 = por %p164, %p165
    %p167 = scmp.ne.s32.totalorder %s153, %s154
    %p168 = scmp.eq.s32.totalorder %s17, 1
    %p169 = por %p167, %p168
    %p171 = scmp.ne.s32.totalorder %s154, %s170
    %p172 = scmp.eq.s32.totalorder %s17, 0
    %p173 = por %p171, %p172
    %s174 = ssub.s32 %s18, %s37
    %s175 = ssub.s32 %s19, %s33
    %s176 = sor.u32 %s174, %s175
    %p177 = scmp.eq.s32.totalorder %s176, 0
    %s179 = sadd.s32 %s178, 1
    %s180 = scalar_select %p177, %s178, %s179
    %p183 = pneg %p177
    %p184 = scmp.eq.s32.totalorder %s11, 1
    %p185 = por %p183, %p184
    %p186 = scmp.ne.s32.totalorder %s178, %s181
    %p187 = scmp.eq.s32.totalorder %s11, 0
    %p188 = por %p186, %p187
    %p189 = scmp.ne.s32.totalorder %s178, %s181
    %p190 = scmp.eq.s32.totalorder %s16, 1
    %p191 = por %p189, %p190
    %p192 = scmp.ne.s32.totalorder %s181, %s182
    %p193 = scmp.eq.s32.totalorder %s16, 0
    %p194 = por %p192, %p193
    %p195 = scmp.ne.s32.totalorder %s181, %s182
    %p196 = scmp.eq.s32.totalorder %s17, 1
    %p197 = por %p195, %p196
    %p199 = scmp.ne.s32.totalorder %s182, %s198
    %p200 = scmp.eq.s32.totalorder %s17, 0
    %p201 = por %p199, %p200
    %p202 = scmp.le.s32.totalorder 1, %s11
    %p203 = scmp.lt.s32.totalorder %s11, 3
    %p204 = pnand %p202, %p203
    %p205 = pneg %p204
    // Predicated region
    $region9: #{_lambda_.7} parent=5 // pred_check
      _
    $region10: #{_lambda_.7} parent=5 // pred_check_branch
      %207 = sbr.rel (%p204) target = $region12
    $region11: #{_lambda_.7} parent=5 // pred_region
      %s208 = ssub.s32 %s11, 1
      // Predicated region
      $region13: #{_lambda_.7} parent=11 // pred_check
        %p209 = pneg %p86
      $region14: #{_lambda_.7} parent=11 // pred_check_branch
        %211 = sbr.rel (%p209) target = $region16
      $region15: #{_lambda_.7} parent=11 // pred_region
        %s212 = smul.u32 16, %s23
        %p213 = scmp.lt.s32.totalorder %s212, 15
        %s214 = scalar_select %p213, %s212, 15
        %p215 = scmp.lt.s32.totalorder %s22, 0
        %s216 = scalar_select %p215, %s22, 0
        %s217 = sadd.s32 %s216, %s214
        %s218 = smul.addr %s217, 4
        %s219 = scalar_lea.vmem %s1, %s218
        %s220 = smul.u32 16, %s23
      $region16: #{_lambda_.7} parent=11 // pred_fallthru
        _
      // Predicated region
      $region17: #{_lambda_.7} parent=11 // pred_check
        %p221 = pneg %p112
      $region18: #{_lambda_.7} parent=11 // pred_check_branch
        %223 = sbr.rel (%p221) target = $region20
      $region19: #{_lambda_.7} parent=11 // pred_region
        %p224 = scmp.lt.s32.totalorder %s22, 0
        %s225 = scalar_select %p224, %s22, 0
        %s226 = scalar_lea.vmem %s2, %s225
      $region20: #{_lambda_.7} parent=11 // pred_fallthru
        _
      // Predicated region
      $region21: #{_lambda_.7} parent=11 // pred_check
        %p227 = pneg %p138
      $region22: #{_lambda_.7} parent=11 // pred_check_branch
        %229 = sbr.rel (%p227) target = $region24
      $region23: #{_lambda_.7} parent=11 // pred_region
        %p230 = scmp.lt.s32.totalorder %s22, 0
        %s231 = scalar_select %p230, %s22, 0
        %s232 = scalar_lea.vmem %s3, %s231
      $region24: #{_lambda_.7} parent=11 // pred_fallthru
        _
    $region12: #{_lambda_.7} parent=5 // pred_fallthru
      _
    %p233 = scmp.lt.s32.totalorder %s11, 2
    // Predicated region
    $region25: #{_lambda_.7} parent=5 // pred_check
      %p234 = pneg %p233
    $region26: #{_lambda_.7} parent=5 // pred_check_branch
      %236 = sbr.rel (%p234) target = $region28
    $region27: #{_lambda_.7} parent=5 // pred_region
      // Predicated region
      $region29: #{_lambda_.7} parent=27 // pred_check
        %p237 = pneg %p52
      $region30: #{_lambda_.7} parent=27 // pred_check_branch
        %239 = sbr.rel (%p237) target = $region32
      $region31: #{_lambda_.7} parent=27 // pred_region
        %p240 = scmp.lt.s32.totalorder %s18, 1
        %s241 = scalar_select %p240, %s18, 1
        %p242 = scmp.lt.s32.totalorder %s20, 0
        %s243 = scalar_select %p242, %s20, 0
        %s244 = smul.addr %s241, 20
        %s245 = sadd.s32 %s243, %s244
        %s246 = smul.addr %s245, 4
        %s247 = scalar_lea.vmem %s0, %s246
      $region32: #{_lambda_.7} parent=27 // pred_fallthru
        _
      // Predicated region
      $region33: #{_lambda_.7} parent=27 // pred_check
        %p248 = pneg %p160
      $region34: #{_lambda_.7} parent=27 // pred_check_branch
        %250 = sbr.rel (%p248) target = $region36
      $region35: #{_lambda_.7} parent=27 // pred_region
        %p251 = scmp.lt.s32.totalorder %s18, 1
        %s252 = scalar_select %p251, %s18, 1
        %p253 = scmp.lt.s32.totalorder %s19, 0
        %s254 = scalar_select %p253, %s19, 0
        %s255 = smul.addr %s252, 8
        %s256 = sadd.s32 %s254, %s255
        %s257 = smul.addr %s256, 4
        %s258 = scalar_lea.vmem %s4, %s257
      $region36: #{_lambda_.7} parent=27 // pred_fallthru
        _
    $region28: #{_lambda_.7} parent=5 // pred_fallthru
      _
    %p259 = scmp.le.s32.totalorder 1, %s11
    %p260 = scmp.lt.s32.totalorder %s11, 3
    %p261 = pnand %p259, %p260
    %p262 = pneg %p261
    // Predicated region
    $region37: #{_lambda_.7} parent=5 // pred_check
      _
    $region38: #{_lambda_.7} parent=5 // pred_check_branch
      %264 = sbr.rel (%p261) target = $region40
    $region39: #{_lambda_.7} parent=5 // pred_region
      %s265 = ssub.s32 %s11, 1
      %p266 = scmp.lt.s32.totalorder %s21, 1
      %s267 = scalar_select %p266, %s21, 1
      %p268 = scmp.lt.s32.totalorder %s23, 0
      %s269 = scalar_select %p268, %s23, 0
      %s270 = smul.addr %s267, 20
      %s271 = sadd.s32 %s269, %s270
      %s272 = smul.addr %s271, 4
      %s273 = scalar_lea.vmem %s0, %s272
      %p274 = pneg %p58
      %p275 = pneg %p55
      %s276 = smul.u32 16, %s23
      %p277 = scmp.lt.s32.totalorder %s276, 15
      %s278 = scalar_select %p277, %s276, 15
      %p279 = scmp.lt.s32.totalorder %s22, 0
      %s280 = scalar_select %p279, %s22, 0
      %s281 = sadd.s32 %s280, %s278
      %s282 = smul.addr %s281, 4
      %s283 = scalar_lea.vmem %s1, %s282
      %p284 = pneg %p86
      %p285 = pneg %p83
      %p286 = scmp.lt.s32.totalorder %s22, 0
      %s287 = scalar_select %p286, %s22, 0
      %s288 = scalar_lea.vmem %s2, %s287
      %p289 = pneg %p112
      %p290 = pneg %p109
      %p291 = scmp.lt.s32.totalorder %s22, 0
      %s292 = scalar_select %p291, %s22, 0
      %s293 = scalar_lea.vmem %s3, %s292
      %p294 = pneg %p138
      %p295 = pneg %p135
      %p296 = scmp.lt.s32.totalorder %s21, 1
      %s297 = scalar_select %p296, %s21, 1
      %p298 = scmp.lt.s32.totalorder %s22, 0
      %s299 = scalar_select %p298, %s22, 0
      %s300 = smul.addr %s297, 8
      %s301 = sadd.s32 %s299, %s300
      %s302 = smul.addr %s301, 4
      %s303 = scalar_lea.vmem %s4, %s302
      %p304 = pneg %p166
      %p305 = pneg %p163
      %p306 = pneg %p194
      %p307 = pneg %p191
      %p308 = scmp.lt.s32.totalorder %s21, 1
      %s309 = scalar_select %p308, %s21, 1
      %p310 = scmp.lt.s32.totalorder %s22, 0
      %s311 = scalar_select %p310, %s22, 0
      %s312 = smul.addr %s309, 8
      %s313 = sadd.s32 %s311, %s312
      %s314 = smul.addr %s313, 8
      %s315 = scalar_lea.vmem %s5, %s314
      %p316 = scmp.lt.s32.totalorder %s21, 1
      %s317 = scalar_select %p316, %s21, 1
      %p318 = scmp.lt.s32.totalorder %s23, 0
      %s319 = scalar_select %p318, %s23, 0
      %s320 = smul.addr %s317, 20
      %s321 = sadd.s32 %s319, %s320
      %s322 = smul.addr %s321, 4
      %s323 = scalar_lea.vmem %s0, %s322
      %s324 = smul.u32 16, %s23
      %p325 = scmp.lt.s32.totalorder %s324, 15
      %s326 = scalar_select %p325, %s324, 15
      %p327 = scmp.lt.s32.totalorder %s22, 0
      %s328 = scalar_select %p327, %s22, 0
      %s329 = sadd.s32 %s328, %s326
      %s330 = smul.addr %s329, 4
      %s331 = scalar_lea.vmem %s1, %s330
      %s332 = smul.u32 16, %s23
      %p333 = scmp.lt.s32.totalorder %s22, 0
      %s334 = scalar_select %p333, %s22, 0
      %s335 = scalar_lea.vmem %s2, %s334
      %p336 = scmp.lt.s32.totalorder %s22, 0
      %s337 = scalar_select %p336, %s22, 0
      %s338 = scalar_lea.vmem %s3, %s337
      %p339 = scmp.lt.s32.totalorder %s21, 1
      %s340 = scalar_select %p339, %s21, 1
      %p341 = scmp.lt.s32.totalorder %s22, 0
      %s342 = scalar_select %p341, %s22, 0
      %s343 = smul.addr %s340, 8
      %s344 = sadd.s32 %s342, %s343
      %s345 = smul.addr %s344, 4
      %s346 = scalar_lea.vmem %s4, %s345
      %p347 = scmp.lt.s32.totalorder %s21, 1
      %s348 = scalar_select %p347, %s21, 1
      %p349 = scmp.lt.s32.totalorder %s22, 0
      %s350 = scalar_select %p349, %s22, 0
      %s351 = smul.addr %s348, 8
      %s352 = sadd.s32 %s350, %s351
      %s353 = smul.addr %s352, 8
      %s354 = scalar_lea.vmem %s5, %s353
      %p356 = scmp.eq.s32.totalorder %s23, 0
      // Predicated region
      $region41: #{_lambda_.7} parent=39 // pred_check
        %p357 = pneg %p356
      $region42: #{_lambda_.7} parent=39 // pred_check_branch
        %359 = sbr.rel (%p357) target = $region44
      $region43: #{_lambda_.7} parent=39 // pred_region
        %360 = vst [vmem:[#allocation2] sm:$0xff] 0.0
        %361 = vst [vmem:[#allocation2 + $0x8] sm:$0xff] 0.0
        %362 = vst [vmem:[#allocation2 + $0x10] sm:$0xff] 0.0
        %363 = vst [vmem:[#allocation2 + $0x18] sm:$0xff] 0.0
        %364 = vst [vmem:[#allocation2 + $0x20] sm:$0xff] 0.0
        %365 = vst [vmem:[#allocation2 + $0x28] sm:$0xff] 0.0
        %366 = vst [vmem:[#allocation2 + $0x30] sm:$0xff] 0.0
        %367 = vst [vmem:[#allocation2 + $0x38] sm:$0xff] 0.0
      $region44: #{_lambda_.7} parent=39 // pred_fallthru
        _
      %v368 = vld [vmem:[%s323] sm:$0xf]
      %v369 = vld [vmem:[%s323 + $0x8] sm:$0xf]
      %v370 = vld [vmem:[%s323 + $0x10] sm:$0xf]
      %v371 = vld [vmem:[%s323 + $0x18] sm:$0xf]
      %v372 = vld [vmem:[%s323 + $0x20] sm:$0xf]
      %v373 = vld [vmem:[%s323 + $0x28] sm:$0xf]
      %v374 = vld [vmem:[%s323 + $0x30] sm:$0xf]
      %v375 = vld [vmem:[%s323 + $0x38] sm:$0xf]
      %v376 = vld [vmem:[%s331] sm:$0xf]
      %v377 = vld [vmem:[%s331 + $0x4] sm:$0xf]
      %v378 = vld [vmem:[%s331 + $0x8] sm:$0xf]
      %v379 = vld [vmem:[%s331 + $0xc] sm:$0xf]
      %v380 = vld [vmem:[%s331 + $0x10] sm:$0xf]
      %v381 = vld [vmem:[%s331 + $0x14] sm:$0xf]
      %v382 = vld [vmem:[%s331 + $0x18] sm:$0xf]
      %v383 = vld [vmem:[%s331 + $0x1c] sm:$0xf]
      %v384 = vld [vmem:[%s331 + $0x20] sm:$0xf]
      %v385 = vld [vmem:[%s331 + $0x24] sm:$0xf]
      %v386 = vld [vmem:[%s331 + $0x28] sm:$0xf]
      %v387 = vld [vmem:[%s331 + $0x2c] sm:$0xf]
      %v388 = vld [vmem:[%s331 + $0x30] sm:$0xf]
      %v389 = vld [vmem:[%s331 + $0x34] sm:$0xf]
      %v390 = vld [vmem:[%s331 + $0x38] sm:$0xf]
      %v391 = vld [vmem:[%s331 + $0x3c] sm:$0xf]
      %v392 = vld [vmem:[%s323 + $0x4] sm:$0x1]
      %v393 = vld [vmem:[%s323 + $0xc] sm:$0x1]
      %v394 = vld [vmem:[%s323 + $0x14] sm:$0x1]
      %v395 = vld [vmem:[%s323 + $0x1c] sm:$0x1]
      %v396 = vld [vmem:[%s323 + $0x24] sm:$0x1]
      %v397 = vld [vmem:[%s323 + $0x2c] sm:$0x1]
      %v398 = vld [vmem:[%s323 + $0x34] sm:$0x1]
      %v399 = vld [vmem:[%s323 + $0x3c] sm:$0x1]
      %vm400 = vsmask.f32 3328
      %vm401 = vsmask.f32 7440
      %vm402 = vmor %vm400, %vm401
      %v404 = vshrl.u32 %v368, 16
      %v406 = vrot.slane %v404, 4
      %v407 = vshll.u32 %v368, 16
      %v409 = vrot.slane %v407, 5
      %v410 = vor.u32 %v406, %v409
      %v411 = vrot.slane %v410, 4
      %v413 = vshll.u32 %v392, 16
      %v415 = vrot.slane %v413, 5
      %v416 = vsel %vm402, %v411, %v415
      %v418 = vshrl.u32 %v369, 16
      %v420 = vrot.slane %v418, 4
      %v421 = vshll.u32 %v369, 16
      %v423 = vrot.slane %v421, 5
      %v424 = vor.u32 %v420, %v423
      %v425 = vrot.slane %v424, 4
      %v427 = vshll.u32 %v393, 16
      %v429 = vrot.slane %v427, 5
      %v430 = vsel %vm402, %v425, %v429
      %v432 = vshrl.u32 %v370, 16
      %v434 = vrot.slane %v432, 4
      %v435 = vshll.u32 %v370, 16
      %v437 = vrot.slane %v435, 5
      %v438 = vor.u32 %v434, %v437
      %v439 = vrot.slane %v438, 4
      %v441 = vshll.u32 %v394, 16
      %v443 = vrot.slane %v441, 5
      %v444 = vsel %vm402, %v439, %v443
      %v446 = vshrl.u32 %v371, 16
      %v448 = vrot.slane %v446, 4
      %v449 = vshll.u32 %v371, 16
      %v451 = vrot.slane %v449, 5
      %v452 = vor.u32 %v448, %v451
      %v453 = vrot.slane %v452, 4
      %v455 = vshll.u32 %v395, 16
      %v457 = vrot.slane %v455, 5
      %v458 = vsel %vm402, %v453, %v457
      %v460 = vshrl.u32 %v372, 16
      %v462 = vrot.slane %v460, 4
      %v463 = vshll.u32 %v372, 16
      %v465 = vrot.slane %v463, 5
      %v466 = vor.u32 %v462, %v465
      %v467 = vrot.slane %v466, 4
      %v469 = vshll.u32 %v396, 16
      %v471 = vrot.slane %v469, 5
      %v472 = vsel %vm402, %v467, %v471
      %v474 = vshrl.u32 %v373, 16
      %v476 = vrot.slane %v474, 4
      %v477 = vshll.u32 %v373, 16
      %v479 = vrot.slane %v477, 5
      %v480 = vor.u32 %v476, %v479
      %v481 = vrot.slane %v480, 4
      %v483 = vshll.u32 %v397, 16
      %v485 = vrot.slane %v483, 5
      %v486 = vsel %vm402, %v481, %v485
      %v488 = vshrl.u32 %v374, 16
      %v490 = vrot.slane %v488, 4
      %v491 = vshll.u32 %v374, 16
      %v493 = vrot.slane %v491, 5
      %v494 = vor.u32 %v490, %v493
      %v495 = vrot.slane %v494, 4
      %v497 = vshll.u32 %v398, 16
      %v499 = vrot.slane %v497, 5
      %v500 = vsel %vm402, %v495, %v499
      %v502 = vshrl.u32 %v375, 16
      %v504 = vrot.slane %v502, 4
      %v505 = vshll.u32 %v375, 16
      %v507 = vrot.slane %v505, 5
      %v508 = vor.u32 %v504, %v507
      %v509 = vrot.slane %v508, 4
      %v511 = vshll.u32 %v399, 16
      %v513 = vrot.slane %v511, 5
      %v514 = vsel %vm402, %v509, %v513
      %s515 = scalar_lea.vmem %s331, 64
      %v516 = vld [vmem:[%s515] sm:$0xf]
      %v517 = vld [vmem:[%s515 + $0x4] sm:$0xf]
      %v518 = vld [vmem:[%s515 + $0x8] sm:$0xf]
      %v519 = vld [vmem:[%s515 + $0xc] sm:$0xf]
      %v520 = vld [vmem:[%s515 + $0x10] sm:$0xf]
      %v521 = vld [vmem:[%s515 + $0x14] sm:$0xf]
      %v522 = vld [vmem:[%s515 + $0x18] sm:$0xf]
      %v523 = vld [vmem:[%s515 + $0x1c] sm:$0xf]
      %v524 = vld [vmem:[%s515 + $0x20] sm:$0xf]
      %v525 = vld [vmem:[%s515 + $0x24] sm:$0xf]
      %v526 = vld [vmem:[%s515 + $0x28] sm:$0xf]
      %v527 = vld [vmem:[%s515 + $0x2c] sm:$0xf]
      %v528 = vld [vmem:[%s515 + $0x30] sm:$0xf]
      %v529 = vld [vmem:[%s515 + $0x34] sm:$0xf]
      %v530 = vld [vmem:[%s515 + $0x38] sm:$0xf]
      %v531 = vld [vmem:[%s515 + $0x3c] sm:$0xf]
      %v532 = vunpack.c.l.b16 %v416
      %v533 = vunpack.c.l.b16 %v430
      %v534 = vunpack.c.l.b16 %v444
      %v535 = vunpack.c.l.b16 %v458
      %v536 = vunpack.c.l.b16 %v472
      %v537 = vunpack.c.l.b16 %v486
      %v538 = vunpack.c.l.b16 %v500
      %v539 = vunpack.c.l.b16 %v514
      %v540 = vpack.c.b16 %v533, %v532
      %v541 = vpack.c.b16 %v535, %v534
      %v542 = vpack.c.b16 %v537, %v536
      %v543 = vpack.c.b16 %v539, %v538
      %v564 = vunpack.c.l.b16 %v516
      %v565 = vunpack.c.l.b16 %v517
      %v566 = vunpack.c.l.b16 %v518
      %v567 = vunpack.c.l.b16 %v519
      %v568 = vunpack.c.l.b16 %v520
      %v569 = vunpack.c.l.b16 %v521
      %v570 = vunpack.c.l.b16 %v522
      %v571 = vunpack.c.l.b16 %v523
      %v572 = vunpack.c.l.b16 %v524
      %v573 = vunpack.c.l.b16 %v525
      %v574 = vunpack.c.l.b16 %v526
      %v575 = vunpack.c.l.b16 %v527
      %v576 = vunpack.c.l.b16 %v528
      %v577 = vunpack.c.l.b16 %v529
      %v578 = vunpack.c.l.b16 %v530
      %v579 = vunpack.c.l.b16 %v531
      %v580 = vpack.c.b16 %v565, %v564
      %v581 = vpack.c.b16 %v567, %v566
      %v582 = vpack.c.b16 %v569, %v568
      %v583 = vpack.c.b16 %v571, %v570
      %v584 = vpack.c.b16 %v573, %v572
      %v585 = vpack.c.b16 %v575, %v574
      %v586 = vpack.c.b16 %v577, %v576
      %v587 = vpack.c.b16 %v579, %v578
      %596 = vmatprep.subr.bf16.mxu0 0
      %597 = vmatpush1.bf16.msra.mxu0 %v580
      %598 = vmatprep.subr.bf16.mxu0 0
      %599 = vmatpush1.bf16.msra.mxu0 %v581
      %600 = vmatprep.subr.bf16.mxu0 0
      %601 = vmatpush1.bf16.msra.mxu0 %v582
      %602 = vmatprep.subr.bf16.mxu0 0
      %603 = vmatpush1.bf16.msra.mxu0 %v583
      %604 = vmatprep.subr.bf16.mxu0 0
      %605 = vmatpush1.bf16.msra.mxu0 %v584
      %606 = vmatprep.subr.bf16.mxu0 0
      %607 = vmatpush1.bf16.msra.mxu0 %v585
      %608 = vmatprep.subr.bf16.mxu0 0
      %609 = vmatpush1.bf16.msra.mxu0 %v586
      %610 = vmatprep.subr.bf16.mxu0 0
      %611 = vmatpush1.bf16.msra.mxu0 %v587
      %612 = vmatprep.subr.bf16.mxu0 0
      %613 = vmatpush1.bf16.msra.mxu0 0
      %614 = vmatprep.subr.bf16.mxu0 0
      %615 = vmatpush1.bf16.msra.mxu0 0
      %616 = vmatprep.subr.bf16.mxu0 0
      %617 = vmatpush1.bf16.msra.mxu0 0
      %618 = vmatprep.subr.bf16.mxu0 0
      %619 = vmatpush1.bf16.msra.mxu0 0
      %620 = vmatprep.subr.bf16.mxu0 0
      %621 = vmatpush1.bf16.msra.mxu0 0
      %622 = vmatprep.subr.bf16.mxu0 0
      %623 = vmatpush1.bf16.msra.mxu0 0
      %624 = vmatprep.subr.bf16.mxu0 0
      %625 = vmatpush1.bf16.msra.mxu0 0
      %626 = vmatprep.subr.bf16.mxu0 0
      %627 = vmatpush1.bf16.msra.mxu0 0
      %628 = vmatprep.mubr.bf16.mxu0 0
      %629 = vmatmul.mubr.bf16.gmra.mrb[0].mxu0 %v540
      %v630 = vpop.f32.mrb[0].mxu0
      %v631 = vadd.f32 0.0, %v630
      %v632 = vpop.f32.mrb[0].mxu0
      %v633 = vpop.f32.mrb[0].mxu0
      %v634 = vadd.f32 0.0, %v633
      %v635 = vpop.f32.mrb[0].mxu0
      %636 = vmatprep.mubr.bf16.mxu0 0
      %637 = vmatmul.mubr.bf16.gmra.mrb[0].mxu0 %v541
      %v638 = vpop.f32.mrb[0].mxu0
      %v639 = vadd.f32 0.0, %v638
      %v640 = vpop.f32.mrb[0].mxu0
      %v641 = vpop.f32.mrb[0].mxu0
      %v642 = vadd.f32 0.0, %v641
      %v643 = vpop.f32.mrb[0].mxu0
      %644 = vmatprep.mubr.bf16.mxu0 0
      %645 = vmatmul.mubr.bf16.gmra.mrb[0].mxu0 %v542
      %v646 = vpop.f32.mrb[0].mxu0
      %v647 = vadd.f32 0.0, %v646
      %v648 = vpop.f32.mrb[0].mxu0
      %v649 = vpop.f32.mrb[0].mxu0
      %v650 = vadd.f32 0.0, %v649
      %v651 = vpop.f32.mrb[0].mxu0
      %652 = vmatprep.mubr.bf16.mxu0 0
      %653 = vmatmul.mubr.bf16.gmra.mrb[0].mxu0 %v543
      %v654 = vpop.f32.mrb[0].mxu0
      %v655 = vadd.f32 0.0, %v654
      %v656 = vpop.f32.mrb[0].mxu0
      %v657 = vpop.f32.mrb[0].mxu0
      %v658 = vadd.f32 0.0, %v657
      %v659 = vpop.f32.mrb[0].mxu0
      %660 = vdwg.mxu0
      %v669 = vunpack.c.l.b16 %v368
      %v670 = vunpack.c.l.b16 %v369
      %v671 = vunpack.c.l.b16 %v370
      %v672 = vunpack.c.l.b16 %v371
      %v673 = vunpack.c.l.b16 %v372
      %v674 = vunpack.c.l.b16 %v373
      %v675 = vunpack.c.l.b16 %v374
      %v676 = vunpack.c.l.b16 %v375
      %v677 = vpack.c.b16 %v670, %v669
      %v678 = vpack.c.b16 %v672, %v671
      %v679 = vpack.c.b16 %v674, %v673
      %v680 = vpack.c.b16 %v676, %v675
      %v701 = vunpack.c.l.b16 %v376
      %v702 = vunpack.c.l.b16 %v377
      %v703 = vunpack.c.l.b16 %v378
      %v704 = vunpack.c.l.b16 %v379
      %v705 = vunpack.c.l.b16 %v380
      %v706 = vunpack.c.l.b16 %v381
      %v707 = vunpack.c.l.b16 %v382
      %v708 = vunpack.c.l.b16 %v383
      %v709 = vunpack.c.l.b16 %v384
      %v710 = vunpack.c.l.b16 %v385
      %v711 = vunpack.c.l.b16 %v386
      %v712 = vunpack.c.l.b16 %v387
      %v713 = vunpack.c.l.b16 %v388
      %v714 = vunpack.c.l.b16 %v389
      %v715 = vunpack.c.l.b16 %v390
      %v716 = vunpack.c.l.b16 %v391
      %v717 = vpack.c.b16 %v702, %v701
      %v718 = vpack.c.b16 %v704, %v703
      %v719 = vpack.c.b16 %v706, %v705
      %v720 = vpack.c.b16 %v708, %v707
      %v721 = vpack.c.b16 %v710, %v709
      %v722 = vpack.c.b16 %v712, %v711
      %v723 = vpack.c.b16 %v714, %v713
      %v724 = vpack.c.b16 %v716, %v715
      %733 = vmatprep.subr.bf16.mxu0 0
      %734 = vmatpush1.bf16.msra.mxu0 %v717
      %735 = vmatprep.subr.bf16.mxu0 0
      %736 = vmatpush1.bf16.msra.mxu0 %v718
      %737 = vmatprep.subr.bf16.mxu0 0
      %738 = vmatpush1.bf16.msra.mxu0 %v719
      %739 = vmatprep.subr.bf16.mxu0 0
      %740 = vmatpush1.bf16.msra.mxu0 %v720
      %741 = vmatprep.subr.bf16.mxu0 0
      %742 = vmatpush1.bf16.msra.mxu0 %v721
      %743 = vmatprep.subr.bf16.mxu0 0
      %744 = vmatpush1.bf16.msra.mxu0 %v722
      %745 = vmatprep.subr.bf16.mxu0 0
      %746 = vmatpush1.bf16.msra.mxu0 %v723
      %747 = vmatprep.subr.bf16.mxu0 0
      %748 = vmatpush1.bf16.msra.mxu0 %v724
      %749 = vmatprep.subr.bf16.mxu0 0
      %750 = vmatpush1.bf16.msra.mxu0 0
      %751 = vmatprep.subr.bf16.mxu0 0
      %752 = vmatpush1.bf16.msra.mxu0 0
      %753 = vmatprep.subr.bf16.mxu0 0
      %754 = vmatpush1.bf16.msra.mxu0 0
      %755 = vmatprep.subr.bf16.mxu0 0
      %756 = vmatpush1.bf16.msra.mxu0 0
      %757 = vmatprep.subr.bf16.mxu0 0
      %758 = vmatpush1.bf16.msra.mxu0 0
      %759 = vmatprep.subr.bf16.mxu0 0
      %760 = vmatpush1.bf16.msra.mxu0 0
      %761 = vmatprep.subr.bf16.mxu0 0
      %762 = vmatpush1.bf16.msra.mxu0 0
      %763 = vmatprep.subr.bf16.mxu0 0
      %764 = vmatpush1.bf16.msra.mxu0 0
      %765 = vmatprep.mubr.bf16.mxu0 0
      %766 = vmatmul.mubr.bf16.gmra.mrb[0].mxu0 %v677
      %v767 = vpop.f32.mrb[0].mxu0
      %v768 = vadd.f32 %v631, %v767
      %v769 = vpop.f32.mrb[0].mxu0
      %v770 = vpop.f32.mrb[0].mxu0
      %v771 = vadd.f32 %v634, %v770
      %v772 = vpop.f32.mrb[0].mxu0
      %773 = vmatprep.mubr.bf16.mxu0 0
      %774 = vmatmul.mubr.bf16.gmra.mrb[0].mxu0 %v678
      %v775 = vpop.f32.mrb[0].mxu0
      %v776 = vadd.f32 %v639, %v775
      %v777 = vpop.f32.mrb[0].mxu0
      %v778 = vpop.f32.mrb[0].mxu0
      %v779 = vadd.f32 %v642, %v778
      %v780 = vpop.f32.mrb[0].mxu0
      %781 = vmatprep.mubr.bf16.mxu0 0
      %782 = vmatmul.mubr.bf16.gmra.mrb[0].mxu0 %v679
      %v783 = vpop.f32.mrb[0].mxu0
      %v784 = vadd.f32 %v647, %v783
      %v785 = vpop.f32.mrb[0].mxu0
      %v786 = vpop.f32.mrb[0].mxu0
      %v787 = vadd.f32 %v650, %v786
      %v788 = vpop.f32.mrb[0].mxu0
      %789 = vmatprep.mubr.bf16.mxu0 0
      %790 = vmatmul.mubr.bf16.gmra.mrb[0].mxu0 %v680
      %v791 = vpop.f32.mrb[0].mxu0
      %v792 = vadd.f32 %v655, %v791
      %v793 = vpop.f32.mrb[0].mxu0
      %v794 = vpop.f32.mrb[0].mxu0
      %v795 = vadd.f32 %v658, %v794
      %v796 = vpop.f32.mrb[0].mxu0
      %797 = vdwg.mxu0
      %v798 = vld [vmem:[%s323] sm:$0xe]
      %v799 = vld [vmem:[%s323 + $0x8] sm:$0xe]
      %v800 = vld [vmem:[%s323 + $0x10] sm:$0xe]
      %v801 = vld [vmem:[%s323 + $0x18] sm:$0xe]
      %v802 = vld [vmem:[%s323 + $0x20] sm:$0xe]
      %v803 = vld [vmem:[%s323 + $0x28] sm:$0xe]
      %v804 = vld [vmem:[%s323 + $0x30] sm:$0xe]
      %v805 = vld [vmem:[%s323 + $0x38] sm:$0xe]
      %vm822 = vcmask 1042432
      %vm823 = vcmask 1046532
      %vm824 = vmor %vm822, %vm823
      %v825 = vrot.slane %v798, 5
      %v826 = vrot.slane %v825, 4
      %v827 = vrot.slane %v392, 5
      %v828 = vsel %vm824, %v826, %v827
      %v829 = vrot.slane %v799, 5
      %v830 = vrot.slane %v829, 4
      %v831 = vrot.slane %v393, 5
      %v832 = vsel %vm824, %v830, %v831
      %v833 = vrot.slane %v800, 5
      %v834 = vrot.slane %v833, 4
      %v835 = vrot.slane %v394, 5
      %v836 = vsel %vm824, %v834, %v835
      %v837 = vrot.slane %v801, 5
      %v838 = vrot.slane %v837, 4
      %v839 = vrot.slane %v395, 5
      %v840 = vsel %vm824, %v838, %v839
      %v841 = vrot.slane %v802, 5
      %v842 = vrot.slane %v841, 4
      %v843 = vrot.slane %v396, 5
      %v844 = vsel %vm824, %v842, %v843
      %v845 = vrot.slane %v803, 5
      %v846 = vrot.slane %v845, 4
      %v847 = vrot.slane %v397, 5
      %v848 = vsel %vm824, %v846, %v847
      %v849 = vrot.slane %v804, 5
      %v850 = vrot.slane %v849, 4
      %v851 = vrot.slane %v398, 5
      %v852 = vsel %vm824, %v850, %v851
      %v853 = vrot.slane %v805, 5
      %v854 = vrot.slane %v853, 4
      %v855 = vrot.slane %v399, 5
      %v856 = vsel %vm824, %v854, %v855
      %s857 = scalar_lea.vmem %s331, 128
      %v858 = vld [vmem:[%s857] sm:$0xf]
      %v859 = vld [vmem:[%s857 + $0x4] sm:$0xf]
      %v860 = vld [vmem:[%s857 + $0x8] sm:$0xf]
      %v861 = vld [vmem:[%s857 + $0xc] sm:$0xf]
      %v862 = vld [vmem:[%s857 + $0x10] sm:$0xf]
      %v863 = vld [vmem:[%s857 + $0x14] sm:$0xf]
      %v864 = vld [vmem:[%s857 + $0x18] sm:$0xf]
      %v865 = vld [vmem:[%s857 + $0x1c] sm:$0xf]
      %v866 = vld [vmem:[%s857 + $0x20] sm:$0xf]
      %v867 = vld [vmem:[%s857 + $0x24] sm:$0xf]
      %v868 = vld [vmem:[%s857 + $0x28] sm:$0xf]
      %v869 = vld [vmem:[%s857 + $0x2c] sm:$0xf]
      %v870 = vld [vmem:[%s857 + $0x30] sm:$0xf]
      %v871 = vld [vmem:[%s857 + $0x34] sm:$0xf]
      %v872 = vld [vmem:[%s857 + $0x38] sm:$0xf]
      %v873 = vld [vmem:[%s857 + $0x3c] sm:$0xf]
      %v874 = vunpack.c.l.b16 %v828
      %v875 = vunpack.c.l.b16 %v832
      %v876 = vunpack.c.l.b16 %v836
      %v877 = vunpack.c.l.b16 %v840
      %v878 = vunpack.c.l.b16 %v844
      %v879 = vunpack.c.l.b16 %v848
      %v880 = vunpack.c.l.b16 %v852
      %v881 = vunpack.c.l.b16 %v856
      %v882 = vpack.c.b16 %v875, %v874
      %v883 = vpack.c.b16 %v877, %v876
      %v884 = vpack.c.b16 %v879, %v878
      %v885 = vpack.c.b16 %v881, %v880
      %v906 = vunpack.c.l.b16 %v858
      %v907 = vunpack.c.l.b16 %v859
      %v908 = vunpack.c.l.b16 %v860
      %v909 = vunpack.c.l.b16 %v861
      %v910 = vunpack.c.l.b16 %v862
      %v911 = vunpack.c.l.b16 %v863
      %v912 = vunpack.c.l.b16 %v864
      %v913 = vunpack.c.l.b16 %v865
      %v914 = vunpack.c.l.b16 %v866
      %v915 = vunpack.c.l.b16 %v867
      %v916 = vunpack.c.l.b16 %v868
      %v917 = vunpack.c.l.b16 %v869
      %v918 = vunpack.c.l.b16 %v870
      %v919 = vunpack.c.l.b16 %v871
      %v920 = vunpack.c.l.b16 %v872
      %v921 = vunpack.c.l.b16 %v873
      %v922 = vpack.c.b16 %v907, %v906
      %v923 = vpack.c.b16 %v909, %v908
      %v924 = vpack.c.b16 %v911, %v910
      %v925 = vpack.c.b16 %v913, %v912
      %v926 = vpack.c.b16 %v915, %v914
      %v927 = vpack.c.b16 %v917, %v916
      %v928 = vpack.c.b16 %v919, %v918
      %v929 = vpack.c.b16 %v921, %v920
      %938 = vmatprep.subr.bf16.mxu0 0
      %939 = vmatpush1.bf16.msra.mxu0 %v922
      %940 = vmatprep.subr.bf16.mxu0 0
      %941 = vmatpush1.bf16.msra.mxu0 %v923
      %942 = vmatprep.subr.bf16.mxu0 0
      %943 = vmatpush1.bf16.msra.mxu0 %v924
      %944 = vmatprep.subr.bf16.mxu0 0
      %945 = vmatpush1.bf16.msra.mxu0 %v925
      %946 = vmatprep.subr.bf16.mxu0 0
      %947 = vmatpush1.bf16.msra.mxu0 %v926
      %948 = vmatprep.subr.bf16.mxu0 0
      %949 = vmatpush1.bf16.msra.mxu0 %v927
      %950 = vmatprep.subr.bf16.mxu0 0
      %951 = vmatpush1.bf16.msra.mxu0 %v928
      %952 = vmatprep.subr.bf16.mxu0 0
      %953 = vmatpush1.bf16.msra.mxu0 %v929
      %954 = vmatprep.subr.bf16.mxu0 0
      %955 = vmatpush1.bf16.msra.mxu0 0
      %956 = vmatprep.subr.bf16.mxu0 0
      %957 = vmatpush1.bf16.msra.mxu0 0
      %958 = vmatprep.subr.bf16.mxu0 0
      %959 = vmatpush1.bf16.msra.mxu0 0
      %960 = vmatprep.subr.bf16.mxu0 0
      %961 = vmatpush1.bf16.msra.mxu0 0
      %962 = vmatprep.subr.bf16.mxu0 0
      %963 = vmatpush1.bf16.msra.mxu0 0
      %964 = vmatprep.subr.bf16.mxu0 0
      %965 = vmatpush1.bf16.msra.mxu0 0
      %966 = vmatprep.subr.bf16.mxu0 0
      %967 = vmatpush1.bf16.msra.mxu0 0
      %968 = vmatprep.subr.bf16.mxu0 0
      %969 = vmatpush1.bf16.msra.mxu0 0
      %970 = vmatprep.mubr.bf16.mxu0 0
      %971 = vmatmul.mubr.bf16.gmra.mrb[0].mxu0 %v882
      %v972 = vpop.f32.mrb[0].mxu0
      %v973 = vadd.f32 0.0, %v972
      %v974 = vpop.f32.mrb[0].mxu0
      %v975 = vpop.f32.mrb[0].mxu0
      %v976 = vadd.f32 0.0, %v975
      %v977 = vpop.f32.mrb[0].mxu0
      %978 = vmatprep.mubr.bf16.mxu0 0
      %979 = vmatmul.mubr.bf16.gmra.mrb[0].mxu0 %v883
      %v980 = vpop.f32.mrb[0].mxu0
      %v981 = vadd.f32 0.0, %v980
      %v982 = vpop.f32.mrb[0].mxu0
      %v983 = vpop.f32.mrb[0].mxu0
      %v984 = vadd.f32 0.0, %v983
      %v985 = vpop.f32.mrb[0].mxu0
      %986 = vmatprep.mubr.bf16.mxu0 0
      %987 = vmatmul.mubr.bf16.gmra.mrb[0].mxu0 %v884
      %v988 = vpop.f32.mrb[0].mxu0
      %v989 = vadd.f32 0.0, %v988
      %v990 = vpop.f32.mrb[0].mxu0
      %v991 = vpop.f32.mrb[0].mxu0
      %v992 = vadd.f32 0.0, %v991
      %v993 = vpop.f32.mrb[0].mxu0
      %994 = vmatprep.mubr.bf16.mxu0 0
      %995 = vmatmul.mubr.bf16.gmra.mrb[0].mxu0 %v885
      %v996 = vpop.f32.mrb[0].mxu0
      %v997 = vadd.f32 0.0, %v996
      %v998 = vpop.f32.mrb[0].mxu0
      %v999 = vpop.f32.mrb[0].mxu0
      %v1000 = vadd.f32 0.0, %v999
      %v1001 = vpop.f32.mrb[0].mxu0
      %1002 = vdwg.mxu0
      %v1003 = vadd.f32 %v768, %v973
      %v1004 = vadd.f32 %v771, %v976
      %v1005 = vadd.f32 %v776, %v981
      %v1006 = vadd.f32 %v779, %v984
      %v1007 = vadd.f32 %v784, %v989
      %v1008 = vadd.f32 %v787, %v992
      %v1009 = vadd.f32 %v792, %v997
      %v1010 = vadd.f32 %v795, %v1000
      %s1011 = scalar_lea.vmem %s323, 8
      %v1012 = vld [vmem:[%s1011] sm:$0xf]
      %v1013 = vld [vmem:[%s1011 + $0x8] sm:$0xf]
      %v1014 = vld [vmem:[%s1011 + $0x10] sm:$0xf]
      %v1015 = vld [vmem:[%s1011 + $0x18] sm:$0xf]
      %v1016 = vld [vmem:[%s1011 + $0x20] sm:$0xf]
      %v1017 = vld [vmem:[%s1011 + $0x28] sm:$0xf]
      %v1018 = vld [vmem:[%s1011 + $0x30] sm:$0xf]
      %v1019 = vld [vmem:[%s1011 + $0x38] sm:$0xf]
      %s1020 = scalar_lea.vmem %s331, 192
      %v1021 = vld [vmem:[%s1020] sm:$0xf]
      %v1022 = vld [vmem:[%s1020 + $0x4] sm:$0xf]
      %v1023 = vld [vmem:[%s1020 + $0x8] sm:$0xf]
      %v1024 = vld [vmem:[%s1020 + $0xc] sm:$0xf]
      %v1025 = vld [vmem:[%s1020 + $0x10] sm:$0xf]
      %v1026 = vld [vmem:[%s1020 + $0x14] sm:$0xf]
      %v1027 = vld [vmem:[%s1020 + $0x18] sm:$0xf]
      %v1028 = vld [vmem:[%s1020 + $0x1c] sm:$0xf]
      %v1029 = vld [vmem:[%s1020 + $0x20] sm:$0xf]
      %v1030 = vld [vmem:[%s1020 + $0x24] sm:$0xf]
      %v1031 = vld [vmem:[%s1020 + $0x28] sm:$0xf]
      %v1032 = vld [vmem:[%s1020 + $0x2c] sm:$0xf]
      %v1033 = vld [vmem:[%s1020 + $0x30] sm:$0xf]
      %v1034 = vld [vmem:[%s1020 + $0x34] sm:$0xf]
      %v1035 = vld [vmem:[%s1020 + $0x38] sm:$0xf]
      %v1036 = vld [vmem:[%s1020 + $0x3c] sm:$0xf]
      %v1045 = vunpack.c.l.b16 %v1012
      %v1046 = vunpack.c.l.b16 %v1013
      %v1047 = vunpack.c.l.b16 %v1014
      %v1048 = vunpack.c.l.b16 %v1015
      %v1049 = vunpack.c.l.b16 %v1016
      %v1050 = vunpack.c.l.b16 %v1017
      %v1051 = vunpack.c.l.b16 %v1018
      %v1052 = vunpack.c.l.b16 %v1019
      %v1053 = vpack.c.b16 %v1046, %v1045
      %v1054 = vpack.c.b16 %v1048, %v1047
      %v1055 = vpack.c.b16 %v1050, %v1049
      %v1056 = vpack.c.b16 %v1052, %v1051
      %v1077 = vunpack.c.l.b16 %v1021
      %v1078 = vunpack.c.l.b16 %v1022
      %v1079 = vunpack.c.l.b16 %v1023
      %v1080 = vunpack.c.l.b16 %v1024
      %v1081 = vunpack.c.l.b16 %v1025
      %v1082 = vunpack.c.l.b16 %v1026
      %v1083 = vunpack.c.l.b16 %v1027
      %v1084 = vunpack.c.l.b16 %v1028
      %v1085 = vunpack.c.l.b16 %v1029
      %v1086 = vunpack.c.l.b16 %v1030
      %v1087 = vunpack.c.l.b16 %v1031
      %v1088 = vunpack.c.l.b16 %v1032
      %v1089 = vunpack.c.l.b16 %v1033
      %v1090 = vunpack.c.l.b16 %v1034
      %v1091 = vunpack.c.l.b16 %v1035
      %v1092 = vunpack.c.l.b16 %v1036
      %v1093 = vpack.c.b16 %v1078, %v1077
      %v1094 = vpack.c.b16 %v1080, %v1079
      %v1095 = vpack.c.b16 %v1082, %v1081
      %v1096 = vpack.c.b16 %v1084, %v1083
      %v1097 = vpack.c.b16 %v1086, %v1085
      %v1098 = vpack.c.b16 %v1088, %v1087
      %v1099 = vpack.c.b16 %v1090, %v1089
      %v1100 = vpack.c.b16 %v1092, %v1091
      %1109 = vmatprep.subr.bf16.mxu0 0
      %1110 = vmatpush1.bf16.msra.mxu0 %v1093
      %1111 = vmatprep.subr.bf16.mxu0 0
      %1112 = vmatpush1.bf16.msra.mxu0 %v1094
      %1113 = vmatprep.subr.bf16.mxu0 0
      %1114 = vmatpush1.bf16.msra.mxu0 %v1095
      %1115 = vmatprep.subr.bf16.mxu0 0
      %1116 = vmatpush1.bf16.msra.mxu0 %v1096
      %1117 = vmatprep.subr.bf16.mxu0 0
      %1118 = vmatpush1.bf16.msra.mxu0 %v1097
      %1119 = vmatprep.subr.bf16.mxu0 0
      %1120 = vmatpush1.bf16.msra.mxu0 %v1098
      %1121 = vmatprep.subr.bf16.mxu0 0
      %1122 = vmatpush1.bf16.msra.mxu0 %v1099
      %1123 = vmatprep.subr.bf16.mxu0 0
      %1124 = vmatpush1.bf16.msra.mxu0 %v1100
      %1125 = vmatprep.subr.bf16.mxu0 0
      %1126 = vmatpush1.bf16.msra.mxu0 0
      %1127 = vmatprep.subr.bf16.mxu0 0
      %1128 = vmatpush1.bf16.msra.mxu0 0
      %1129 = vmatprep.subr.bf16.mxu0 0
      %1130 = vmatpush1.bf16.msra.mxu0 0
      %1131 = vmatprep.subr.bf16.mxu0 0
      %1132 = vmatpush1.bf16.msra.mxu0 0
      %1133 = vmatprep.subr.bf16.mxu0 0
      %1134 = vmatpush1.bf16.msra.mxu0 0
      %1135 = vmatprep.subr.bf16.mxu0 0
      %1136 = vmatpush1.bf16.msra.mxu0 0
      %1137 = vmatprep.subr.bf16.mxu0 0
      %1138 = vmatpush1.bf16.msra.mxu0 0
      %1139 = vmatprep.subr.bf16.mxu0 0
      %1140 = vmatpush1.bf16.msra.mxu0 0
      %1141 = vmatprep.mubr.bf16.mxu0 0
      %1142 = vmatmul.mubr.bf16.gmra.mrb[0].mxu0 %v1053
      %v1143 = vpop.f32.mrb[0].mxu0
      %v1144 = vadd.f32 0.0, %v1143
      %v1145 = vpop.f32.mrb[0].mxu0
      %v1146 = vpop.f32.mrb[0].mxu0
      %v1147 = vadd.f32 0.0, %v1146
      %v1148 = vpop.f32.mrb[0].mxu0
      %1149 = vmatprep.mubr.bf16.mxu0 0
      %1150 = vmatmul.mubr.bf16.gmra.mrb[0].mxu0 %v1054
      %v1151 = vpop.f32.mrb[0].mxu0
      %v1152 = vadd.f32 0.0, %v1151
      %v1153 = vpop.f32.mrb[0].mxu0
      %v1154 = vpop.f32.mrb[0].mxu0
      %v1155 = vadd.f32 0.0, %v1154
      %v1156 = vpop.f32.mrb[0].mxu0
      %1157 = vmatprep.mubr.bf16.mxu0 0
      %1158 = vmatmul.mubr.bf16.gmra.mrb[0].mxu0 %v1055
      %v1159 = vpop.f32.mrb[0].mxu0
      %v1160 = vadd.f32 0.0, %v1159
      %v1161 = vpop.f32.mrb[0].mxu0
      %v1162 = vpop.f32.mrb[0].mxu0
      %v1163 = vadd.f32 0.0, %v1162
      %v1164 = vpop.f32.mrb[0].mxu0
      %1165 = vmatprep.mubr.bf16.mxu0 0
      %1166 = vmatmul.mubr.bf16.gmra.mrb[0].mxu0 %v1056
      %v1167 = vpop.f32.mrb[0].mxu0
      %v1168 = vadd.f32 0.0, %v1167
      %v1169 = vpop.f32.mrb[0].mxu0
      %v1170 = vpop.f32.mrb[0].mxu0
      %v1171 = vadd.f32 0.0, %v1170
      %v1172 = vpop.f32.mrb[0].mxu0
      %1173 = vdwg.mxu0
      %v1174 = vadd.f32 %v1003, %v1144
      %v1175 = vadd.f32 %v1004, %v1147
      %v1176 = vadd.f32 %v1005, %v1152
      %v1177 = vadd.f32 %v1006, %v1155
      %v1178 = vadd.f32 %v1007, %v1160
      %v1179 = vadd.f32 %v1008, %v1163
      %v1180 = vadd.f32 %v1009, %v1168
      %v1181 = vadd.f32 %v1010, %v1171
      %v1182 = vld [vmem:[%s1011] sm:$0xf]
      %v1183 = vld [vmem:[%s1011 + $0x4] sm:$0x1]
      %v1184 = vld [vmem:[%s1011 + $0x8] sm:$0xf]
      %v1185 = vld [vmem:[%s1011 + $0xc] sm:$0x1]
      %v1186 = vld [vmem:[%s1011 + $0x10] sm:$0xf]
      %v1187 = vld [vmem:[%s1011 + $0x14] sm:$0x1]
      %v1188 = vld [vmem:[%s1011 + $0x18] sm:$0xf]
      %v1189 = vld [vmem:[%s1011 + $0x1c] sm:$0x1]
      %v1190 = vld [vmem:[%s1011 + $0x20] sm:$0xf]
      %v1191 = vld [vmem:[%s1011 + $0x24] sm:$0x1]
      %v1192 = vld [vmem:[%s1011 + $0x28] sm:$0xf]
      %v1193 = vld [vmem:[%s1011 + $0x2c] sm:$0x1]
      %v1194 = vld [vmem:[%s1011 + $0x30] sm:$0xf]
      %v1195 = vld [vmem:[%s1011 + $0x34] sm:$0x1]
      %v1196 = vld [vmem:[%s1011 + $0x38] sm:$0xf]
      %v1197 = vld [vmem:[%s1011 + $0x3c] sm:$0x1]
      %v1199 = vshrl.u32 %v1182, 16
      %v1201 = vrot.slane %v1199, 4
      %v1202 = vshll.u32 %v1182, 16
      %v1204 = vrot.slane %v1202, 5
      %v1205 = vor.u32 %v1201, %v1204
      %v1206 = vrot.slane %v1205, 4
      %v1208 = vshll.u32 %v1183, 16
      %v1210 = vrot.slane %v1208, 5
      %v1211 = vsel %vm402, %v1206, %v1210
      %v1213 = vshrl.u32 %v1184, 16
      %v1215 = vrot.slane %v1213, 4
      %v1216 = vshll.u32 %v1184, 16
      %v1218 = vrot.slane %v1216, 5
      %v1219 = vor.u32 %v1215, %v1218
      %v1220 = vrot.slane %v1219, 4
      %v1222 = vshll.u32 %v1185, 16
      %v1224 = vrot.slane %v1222, 5
      %v1225 = vsel %vm402, %v1220, %v1224
      %v1227 = vshrl.u32 %v1186, 16
      %v1229 = vrot.slane %v1227, 4
      %v1230 = vshll.u32 %v1186, 16
      %v1232 = vrot.slane %v1230, 5
      %v1233 = vor.u32 %v1229, %v1232
      %v1234 = vrot.slane %v1233, 4
      %v1236 = vshll.u32 %v1187, 16
      %v1238 = vrot.slane %v1236, 5
      %v1239 = vsel %vm402, %v1234, %v1238
      %v1241 = vshrl.u32 %v1188, 16
      %v1243 = vrot.slane %v1241, 4
      %v1244 = vshll.u32 %v1188, 16
      %v1246 = vrot.slane %v1244, 5
      %v1247 = vor.u32 %v1243, %v1246
      %v1248 = vrot.slane %v1247, 4
      %v1250 = vshll.u32 %v1189, 16
      %v1252 = vrot.slane %v1250, 5
      %v1253 = vsel %vm402, %v1248, %v1252
      %v1255 = vshrl.u32 %v1190, 16
      %v1257 = vrot.slane %v1255, 4
      %v1258 = vshll.u32 %v1190, 16
      %v1260 = vrot.slane %v1258, 5
      %v1261 = vor.u32 %v1257, %v1260
      %v1262 = vrot.slane %v1261, 4
      %v1264 = vshll.u32 %v1191, 16
      %v1266 = vrot.slane %v1264, 5
      %v1267 = vsel %vm402, %v1262, %v1266
      %v1269 = vshrl.u32 %v1192, 16
      %v1271 = vrot.slane %v1269, 4
      %v1272 = vshll.u32 %v1192, 16
      %v1274 = vrot.slane %v1272, 5
      %v1275 = vor.u32 %v1271, %v1274
      %v1276 = vrot.slane %v1275, 4
      %v1278 = vshll.u32 %v1193, 16
      %v1280 = vrot.slane %v1278, 5
      %v1281 = vsel %vm402, %v1276, %v1280
      %v1283 = vshrl.u32 %v1194, 16
      %v1285 = vrot.slane %v1283, 4
      %v1286 = vshll.u32 %v1194, 16
      %v1288 = vrot.slane %v1286, 5
      %v1289 = vor.u32 %v1285, %v1288
      %v1290 = vrot.slane %v1289, 4
      %v1292 = vshll.u32 %v1195, 16
      %v1294 = vrot.slane %v1292, 5
      %v1295 = vsel %vm402, %v1290, %v1294
      %v1297 = vshrl.u32 %v1196, 16
      %v1299 = vrot.slane %v1297, 4
      %v1300 = vshll.u32 %v1196, 16
      %v1302 = vrot.slane %v1300, 5
      %v1303 = vor.u32 %v1299, %v1302
      %v1304 = vrot.slane %v1303, 4
      %v1306 = vshll.u32 %v1197, 16
      %v1308 = vrot.slane %v1306, 5
      %v1309 = vsel %vm402, %v1304, %v1308
      %s1310 = scalar_lea.vmem %s331, 256
      %v1311 = vld [vmem:[%s1310] sm:$0xf]
      %v1312 = vld [vmem:[%s1310 + $0x4] sm:$0xf]
      %v1313 = vld [vmem:[%s1310 + $0x8] sm:$0xf]
      %v1314 = vld [vmem:[%s1310 + $0xc] sm:$0xf]
      %v1315 = vld [vmem:[%s1310 + $0x10] sm:$0xf]
      %v1316 = vld [vmem:[%s1310 + $0x14] sm:$0xf]
      %v1317 = vld [vmem:[%s1310 + $0x18] sm:$0xf]
      %v1318 = vld [vmem:[%s1310 + $0x1c] sm:$0xf]
      %v1319 = vld [vmem:[%s1310 + $0x20] sm:$0xf]
      %v1320 = vld [vmem:[%s1310 + $0x24] sm:$0xf]
      %v1321 = vld [vmem:[%s1310 + $0x28] sm:$0xf]
      %v1322 = vld [vmem:[%s1310 + $0x2c] sm:$0xf]
      %v1323 = vld [vmem:[%s1310 + $0x30] sm:$0xf]
      %v1324 = vld [vmem:[%s1310 + $0x34] sm:$0xf]
      %v1325 = vld [vmem:[%s1310 + $0x38] sm:$0xf]
      %v1326 = vld [vmem:[%s1310 + $0x3c] sm:$0xf]
      %v1327 = vunpack.c.l.b16 %v1211
      %v1328 = vunpack.c.l.b16 %v1225
      %v1329 = vunpack.c.l.b16 %v1239
      %v1330 = vunpack.c.l.b16 %v1253
      %v1331 = vunpack.c.l.b16 %v1267
      %v1332 = vunpack.c.l.b16 %v1281
      %v1333 = vunpack.c.l.b16 %v1295
      %v1334 = vunpack.c.l.b16 %v1309
      %v1335 = vpack.c.b16 %v1328, %v1327
      %v1336 = vpack.c.b16 %v1330, %v1329
      %v1337 = vpack.c.b16 %v1332, %v1331
      %v1338 = vpack.c.b16 %v1334, %v1333
      %v1359 = vunpack.c.l.b16 %v1311
      %v1360 = vunpack.c.l.b16 %v1312
      %v1361 = vunpack.c.l.b16 %v1313
      %v1362 = vunpack.c.l.b16 %v1314
      %v1363 = vunpack.c.l.b16 %v1315
      %v1364 = vunpack.c.l.b16 %v1316
      %v1365 = vunpack.c.l.b16 %v1317
      %v1366 = vunpack.c.l.b16 %v1318
      %v1367 = vunpack.c.l.b16 %v1319
      %v1368 = vunpack.c.l.b16 %v1320
      %v1369 = vunpack.c.l.b16 %v1321
      %v1370 = vunpack.c.l.b16 %v1322
      %v1371 = vunpack.c.l.b16 %v1323
      %v1372 = vunpack.c.l.b16 %v1324
      %v1373 = vunpack.c.l.b16 %v1325
      %v1374 = vunpack.c.l.b16 %v1326
      %v1375 = vpack.c.b16 %v1360, %v1359
      %v1376 = vpack.c.b16 %v1362, %v1361
      %v1377 = vpack.c.b16 %v1364, %v1363
      %v1378 = vpack.c.b16 %v1366, %v1365
      %v1379 = vpack.c.b16 %v1368, %v1367
      %v1380 = vpack.c.b16 %v1370, %v1369
      %v1381 = vpack.c.b16 %v1372, %v1371
      %v1382 = vpack.c.b16 %v1374, %v1373
      %1391 = vmatprep.subr.bf16.mxu0 0
      %1392 = vmatpush1.bf16.msra.mxu0 %v1375
      %1393 = vmatprep.subr.bf16.mxu0 0
      %1394 = vmatpush1.bf16.msra.mxu0 %v1376
      %1395 = vmatprep.subr.bf16.mxu0 0
      %1396 = vmatpush1.bf16.msra.mxu0 %v1377
      %1397 = vmatprep.subr.bf16.mxu0 0
      %1398 = vmatpush1.bf16.msra.mxu0 %v1378
      %1399 = vmatprep.subr.bf16.mxu0 0
      %1400 = vmatpush1.bf16.msra.mxu0 %v1379
      %1401 = vmatprep.subr.bf16.mxu0 0
      %1402 = vmatpush1.bf16.msra.mxu0 %v1380
      %1403 = vmatprep.subr.bf16.mxu0 0
      %1404 = vmatpush1.bf16.msra.mxu0 %v1381
      %1405 = vmatprep.subr.bf16.mxu0 0
      %1406 = vmatpush1.bf16.msra.mxu0 %v1382
      %1407 = vmatprep.subr.bf16.mxu0 0
      %1408 = vmatpush1.bf16.msra.mxu0 0
      %1409 = vmatprep.subr.bf16.mxu0 0
      %1410 = vmatpush1.bf16.msra.mxu0 0
      %1411 = vmatprep.subr.bf16.mxu0 0
      %1412 = vmatpush1.bf16.msra.mxu0 0
      %1413 = vmatprep.subr.bf16.mxu0 0
      %1414 = vmatpush1.bf16.msra.mxu0 0
      %1415 = vmatprep.subr.bf16.mxu0 0
      %1416 = vmatpush1.bf16.msra.mxu0 0
      %1417 = vmatprep.subr.bf16.mxu0 0
      %1418 = vmatpush1.bf16.msra.mxu0 0
      %1419 = vmatprep.subr.bf16.mxu0 0
      %1420 = vmatpush1.bf16.msra.mxu0 0
      %1421 = vmatprep.subr.bf16.mxu0 0
      %1422 = vmatpush1.bf16.msra.mxu0 0
      %1423 = vmatprep.mubr.bf16.mxu0 0
      %1424 = vmatmul.mubr.bf16.gmra.mrb[0].mxu0 %v1335
      %v1425 = vpop.f32.mrb[0].mxu0
      %v1426 = vadd.f32 0.0, %v1425
      %v1427 = vpop.f32.mrb[0].mxu0
      %v1428 = vpop.f32.mrb[0].mxu0
      %v1429 = vadd.f32 0.0, %v1428
      %v1430 = vpop.f32.mrb[0].mxu0
      %1431 = vmatprep.mubr.bf16.mxu0 0
      %1432 = vmatmul.mubr.bf16.gmra.mrb[0].mxu0 %v1336
      %v1433 = vpop.f32.mrb[0].mxu0
      %v1434 = vadd.f32 0.0, %v1433
      %v1435 = vpop.f32.mrb[0].mxu0
      %v1436 = vpop.f32.mrb[0].mxu0
      %v1437 = vadd.f32 0.0, %v1436
      %v1438 = vpop.f32.mrb[0].mxu0
      %1439 = vmatprep.mubr.bf16.mxu0 0
      %1440 = vmatmul.mubr.bf16.gmra.mrb[0].mxu0 %v1337
      %v1441 = vpop.f32.mrb[0].mxu0
      %v1442 = vadd.f32 0.0, %v1441
      %v1443 = vpop.f32.mrb[0].mxu0
      %v1444 = vpop.f32.mrb[0].mxu0
      %v1445 = vadd.f32 0.0, %v1444
      %v1446 = vpop.f32.mrb[0].mxu0
      %1447 = vmatprep.mubr.bf16.mxu0 0
      %1448 = vmatmul.mubr.bf16.gmra.mrb[0].mxu0 %v1338
      %v1449 = vpop.f32.mrb[0].mxu0
      %v1450 = vadd.f32 0.0, %v1449
      %v1451 = vpop.f32.mrb[0].mxu0
      %v1452 = vpop.f32.mrb[0].mxu0
      %v1453 = vadd.f32 0.0, %v1452
      %v1454 = vpop.f32.mrb[0].mxu0
      %1455 = vdwg.mxu0
      %v1456 = vadd.f32 %v1174, %v1426
      %v1457 = vadd.f32 %v1175, %v1429
      %v1458 = vadd.f32 %v1176, %v1434
      %v1459 = vadd.f32 %v1177, %v1437
      %v1460 = vadd.f32 %v1178, %v1442
      %v1461 = vadd.f32 %v1179, %v1445
      %v1462 = vadd.f32 %v1180, %v1450
      %v1463 = vadd.f32 %v1181, %v1453
      %v1464 = vld [vmem:[%s1011] sm:$0xe]
      %v1465 = vld [vmem:[%s1011 + $0x8] sm:$0xe]
      %v1466 = vld [vmem:[%s1011 + $0x10] sm:$0xe]
      %v1467 = vld [vmem:[%s1011 + $0x18] sm:$0xe]
      %v1468 = vld [vmem:[%s1011 + $0x20] sm:$0xe]
      %v1469 = vld [vmem:[%s1011 + $0x28] sm:$0xe]
      %v1470 = vld [vmem:[%s1011 + $0x30] sm:$0xe]
      %v1471 = vld [vmem:[%s1011 + $0x38] sm:$0xe]
      %v1488 = vrot.slane %v1464, 5
      %v1489 = vrot.slane %v1488, 4
      %v1490 = vrot.slane %v1183, 5
      %v1491 = vsel %vm824, %v1489, %v1490
      %v1492 = vrot.slane %v1465, 5
      %v1493 = vrot.slane %v1492, 4
      %v1494 = vrot.slane %v1185, 5
      %v1495 = vsel %vm824, %v1493, %v1494
      %v1496 = vrot.slane %v1466, 5
      %v1497 = vrot.slane %v1496, 4
      %v1498 = vrot.slane %v1187, 5
      %v1499 = vsel %vm824, %v1497, %v1498
      %v1500 = vrot.slane %v1467, 5
      %v1501 = vrot.slane %v1500, 4
      %v1502 = vrot.slane %v1189, 5
      %v1503 = vsel %vm824, %v1501, %v1502
      %v1504 = vrot.slane %v1468, 5
      %v1505 = vrot.slane %v1504, 4
      %v1506 = vrot.slane %v1191, 5
      %v1507 = vsel %vm824, %v1505, %v1506
      %v1508 = vrot.slane %v1469, 5
      %v1509 = vrot.slane %v1508, 4
      %v1510 = vrot.slane %v1193, 5
      %v1511 = vsel %vm824, %v1509, %v1510
      %v1512 = vrot.slane %v1470, 5
      %v1513 = vrot.slane %v1512, 4
      %v1514 = vrot.slane %v1195, 5
      %v1515 = vsel %vm824, %v1513, %v1514
      %v1516 = vrot.slane %v1471, 5
      %v1517 = vrot.slane %v1516, 4
      %v1518 = vrot.slane %v1197, 5
      %v1519 = vsel %vm824, %v1517, %v1518
      %s1520 = scalar_lea.vmem %s331, 320
      %v1521 = vld [vmem:[%s1520] sm:$0xf]
      %v1522 = vld [vmem:[%s1520 + $0x4] sm:$0xf]
      %v1523 = vld [vmem:[%s1520 + $0x8] sm:$0xf]
      %v1524 = vld [vmem:[%s1520 + $0xc] sm:$0xf]
      %v1525 = vld [vmem:[%s1520 + $0x10] sm:$0xf]
      %v1526 = vld [vmem:[%s1520 + $0x14] sm:$0xf]
      %v1527 = vld [vmem:[%s1520 + $0x18] sm:$0xf]
      %v1528 = vld [vmem:[%s1520 + $0x1c] sm:$0xf]
      %v1529 = vld [vmem:[%s1520 + $0x20] sm:$0xf]
      %v1530 = vld [vmem:[%s1520 + $0x24] sm:$0xf]
      %v1531 = vld [vmem:[%s1520 + $0x28] sm:$0xf]
      %v1532 = vld [vmem:[%s1520 + $0x2c] sm:$0xf]
      %v1533 = vld [vmem:[%s1520 + $0x30] sm:$0xf]
      %v1534 = vld [vmem:[%s1520 + $0x34] sm:$0xf]
      %v1535 = vld [vmem:[%s1520 + $0x38] sm:$0xf]
      %v1536 = vld [vmem:[%s1520 + $0x3c] sm:$0xf]
      %v1537 = vunpack.c.l.b16 %v1491
      %v1538 = vunpack.c.l.b16 %v1495
      %v1539 = vunpack.c.l.b16 %v1499
      %v1540 = vunpack.c.l.b16 %v1503
      %v1541 = vunpack.c.l.b16 %v1507
      %v1542 = vunpack.c.l.b16 %v1511
      %v1543 = vunpack.c.l.b16 %v1515
      %v1544 = vunpack.c.l.b16 %v1519
      %v1545 = vpack.c.b16 %v1538, %v1537
      %v1546 = vpack.c.b16 %v1540, %v1539
      %v1547 = vpack.c.b16 %v1542, %v1541
      %v1548 = vpack.c.b16 %v1544, %v1543
      %v1569 = vunpack.c.l.b16 %v1521
      %v1570 = vunpack.c.l.b16 %v1522
      %v1571 = vunpack.c.l.b16 %v1523
      %v1572 = vunpack.c.l.b16 %v1524
      %v1573 = vunpack.c.l.b16 %v1525
      %v1574 = vunpack.c.l.b16 %v1526
      %v1575 = vunpack.c.l.b16 %v1527
      %v1576 = vunpack.c.l.b16 %v1528
      %v1577 = vunpack.c.l.b16 %v1529
      %v1578 = vunpack.c.l.b16 %v1530
      %v1579 = vunpack.c.l.b16 %v1531
      %v1580 = vunpack.c.l.b16 %v1532
      %v1581 = vunpack.c.l.b16 %v1533
      %v1582 = vunpack.c.l.b16 %v1534
      %v1583 = vunpack.c.l.b16 %v1535
      %v1584 = vunpack.c.l.b16 %v1536
      %v1585 = vpack.c.b16 %v1570, %v1569
      %v1586 = vpack.c.b16 %v1572, %v1571
      %v1587 = vpack.c.b16 %v1574, %v1573
      %v1588 = vpack.c.b16 %v1576, %v1575
      %v1589 = vpack.c.b16 %v1578, %v1577
      %v1590 = vpack.c.b16 %v1580, %v1579
      %v1591 = vpack.c.b16 %v1582, %v1581
      %v1592 = vpack.c.b16 %v1584, %v1583
      %1601 = vmatprep.subr.bf16.mxu0 0
      %1602 = vmatpush1.bf16.msra.mxu0 %v1585
      %1603 = vmatprep.subr.bf16.mxu0 0
      %1604 = vmatpush1.bf16.msra.mxu0 %v1586
      %1605 = vmatprep.subr.bf16.mxu0 0
      %1606 = vmatpush1.bf16.msra.mxu0 %v1587
      %1607 = vmatprep.subr.bf16.mxu0 0
      %1608 = vmatpush1.bf16.msra.mxu0 %v1588
      %1609 = vmatprep.subr.bf16.mxu0 0
      %1610 = vmatpush1.bf16.msra.mxu0 %v1589
      %1611 = vmatprep.subr.bf16.mxu0 0
      %1612 = vmatpush1.bf16.msra.mxu0 %v1590
      %1613 = vmatprep.subr.bf16.mxu0 0
      %1614 = vmatpush1.bf16.msra.mxu0 %v1591
      %1615 = vmatprep.subr.bf16.mxu0 0
      %1616 = vmatpush1.bf16.msra.mxu0 %v1592
      %1617 = vmatprep.subr.bf16.mxu0 0
      %1618 = vmatpush1.bf16.msra.mxu0 0
      %1619 = vmatprep.subr.bf16.mxu0 0
      %1620 = vmatpush1.bf16.msra.mxu0 0
      %1621 = vmatprep.subr.bf16.mxu0 0
      %1622 = vmatpush1.bf16.msra.mxu0 0
      %1623 = vmatprep.subr.bf16.mxu0 0
      %1624 = vmatpush1.bf16.msra.mxu0 0
      %1625 = vmatprep.subr.bf16.mxu0 0
      %1626 = vmatpush1.bf16.msra.mxu0 0
      %1627 = vmatprep.subr.bf16.mxu0 0
      %1628 = vmatpush1.bf16.msra.mxu0 0
      %1629 = vmatprep.subr.bf16.mxu0 0
      %1630 = vmatpush1.bf16.msra.mxu0 0
      %1631 = vmatprep.subr.bf16.mxu0 0
      %1632 = vmatpush1.bf16.msra.mxu0 0
      %1633 = vmatprep.mubr.bf16.mxu0 0
      %1634 = vmatmul.mubr.bf16.gmra.mrb[0].mxu0 %v1545
      %v1635 = vpop.f32.mrb[0].mxu0
      %v1636 = vadd.f32 0.0, %v1635
      %v1637 = vpop.f32.mrb[0].mxu0
      %v1638 = vpop.f32.mrb[0].mxu0
      %v1639 = vadd.f32 0.0, %v1638
      %v1640 = vpop.f32.mrb[0].mxu0
      %1641 = vmatprep.mubr.bf16.mxu0 0
      %1642 = vmatmul.mubr.bf16.gmra.mrb[0].mxu0 %v1546
      %v1643 = vpop.f32.mrb[0].mxu0
      %v1644 = vadd.f32 0.0, %v1643
      %v1645 = vpop.f32.mrb[0].mxu0
      %v1646 = vpop.f32.mrb[0].mxu0
      %v1647 = vadd.f32 0.0, %v1646
      %v1648 = vpop.f32.mrb[0].mxu0
      %1649 = vmatprep.mubr.bf16.mxu0 0
      %1650 = vmatmul.mubr.bf16.gmra.mrb[0].mxu0 %v1547
      %v1651 = vpop.f32.mrb[0].mxu0
      %v1652 = vadd.f32 0.0, %v1651
      %v1653 = vpop.f32.mrb[0].mxu0
      %v1654 = vpop.f32.mrb[0].mxu0
      %v1655 = vadd.f32 0.0, %v1654
      %v1656 = vpop.f32.mrb[0].mxu0
      %1657 = vmatprep.mubr.bf16.mxu0 0
      %1658 = vmatmul.mubr.bf16.gmra.mrb[0].mxu0 %v1548
      %v1659 = vpop.f32.mrb[0].mxu0
      %v1660 = vadd.f32 0.0, %v1659
      %v1661 = vpop.f32.mrb[0].mxu0
      %v1662 = vpop.f32.mrb[0].mxu0
      %v1663 = vadd.f32 0.0, %v1662
      %v1664 = vpop.f32.mrb[0].mxu0
      %1665 = vdwg.mxu0
      %v1666 = vadd.f32 %v1456, %v1636
      %v1667 = vadd.f32 %v1457, %v1639
      %v1668 = vadd.f32 %v1458, %v1644
      %v1669 = vadd.f32 %v1459, %v1647
      %v1670 = vadd.f32 %v1460, %v1652
      %v1671 = vadd.f32 %v1461, %v1655
      %v1672 = vadd.f32 %v1462, %v1660
      %v1673 = vadd.f32 %v1463, %v1663
      %s1674 = scalar_lea.vmem %s323, 16
      %v1675 = vld [vmem:[%s1674] sm:$0xf]
      %v1676 = vld [vmem:[%s1674 + $0x8] sm:$0xf]
      %v1677 = vld [vmem:[%s1674 + $0x10] sm:$0xf]
      %v1678 = vld [vmem:[%s1674 + $0x18] sm:$0xf]
      %v1679 = vld [vmem:[%s1674 + $0x20] sm:$0xf]
      %v1680 = vld [vmem:[%s1674 + $0x28] sm:$0xf]
      %v1681 = vld [vmem:[%s1674 + $0x30] sm:$0xf]
      %v1682 = vld [vmem:[%s1674 + $0x38] sm:$0xf]
      %s1683 = scalar_lea.vmem %s331, 384
      %v1684 = vld [vmem:[%s1683] sm:$0xf]
      %v1685 = vld [vmem:[%s1683 + $0x4] sm:$0xf]
      %v1686 = vld [vmem:[%s1683 + $0x8] sm:$0xf]
      %v1687 = vld [vmem:[%s1683 + $0xc] sm:$0xf]
      %v1688 = vld [vmem:[%s1683 + $0x10] sm:$0xf]
      %v1689 = vld [vmem:[%s1683 + $0x14] sm:$0xf]
      %v1690 = vld [vmem:[%s1683 + $0x18] sm:$0xf]
      %v1691 = vld [vmem:[%s1683 + $0x1c] sm:$0xf]
      %v1692 = vld [vmem:[%s1683 + $0x20] sm:$0xf]
      %v1693 = vld [vmem:[%s1683 + $0x24] sm:$0xf]
      %v1694 = vld [vmem:[%s1683 + $0x28] sm:$0xf]
      %v1695 = vld [vmem:[%s1683 + $0x2c] sm:$0xf]
      %v1696 = vld [vmem:[%s1683 + $0x30] sm:$0xf]
      %v1697 = vld [vmem:[%s1683 + $0x34] sm:$0xf]
      %v1698 = vld [vmem:[%s1683 + $0x38] sm:$0xf]
      %v1699 = vld [vmem:[%s1683 + $0x3c] sm:$0xf]
      %v1708 = vunpack.c.l.b16 %v1675
      %v1709 = vunpack.c.l.b16 %v1676
      %v1710 = vunpack.c.l.b16 %v1677
      %v1711 = vunpack.c.l.b16 %v1678
      %v1712 = vunpack.c.l.b16 %v1679
      %v1713 = vunpack.c.l.b16 %v1680
      %v1714 = vunpack.c.l.b16 %v1681
      %v1715 = vunpack.c.l.b16 %v1682
      %v1716 = vpack.c.b16 %v1709, %v1708
      %v1717 = vpack.c.b16 %v1711, %v1710
      %v1718 = vpack.c.b16 %v1713, %v1712
      %v1719 = vpack.c.b16 %v1715, %v1714
      %v1740 = vunpack.c.l.b16 %v1684
      %v1741 = vunpack.c.l.b16 %v1685
      %v1742 = vunpack.c.l.b16 %v1686
      %v1743 = vunpack.c.l.b16 %v1687
      %v1744 = vunpack.c.l.b16 %v1688
      %v1745 = vunpack.c.l.b16 %v1689
      %v1746 = vunpack.c.l.b16 %v1690
      %v1747 = vunpack.c.l.b16 %v1691
      %v1748 = vunpack.c.l.b16 %v1692
      %v1749 = vunpack.c.l.b16 %v1693
      %v1750 = vunpack.c.l.b16 %v1694
      %v1751 = vunpack.c.l.b16 %v1695
      %v1752 = vunpack.c.l.b16 %v1696
      %v1753 = vunpack.c.l.b16 %v1697
      %v1754 = vunpack.c.l.b16 %v1698
      %v1755 = vunpack.c.l.b16 %v1699
      %v1756 = vpack.c.b16 %v1741, %v1740
      %v1757 = vpack.c.b16 %v1743, %v1742
      %v1758 = vpack.c.b16 %v1745, %v1744
      %v1759 = vpack.c.b16 %v1747, %v1746
      %v1760 = vpack.c.b16 %v1749, %v1748
      %v1761 = vpack.c.b16 %v1751, %v1750
      %v1762 = vpack.c.b16 %v1753, %v1752
      %v1763 = vpack.c.b16 %v1755, %v1754
      %1772 = vmatprep.subr.bf16.mxu0 0
      %1773 = vmatpush1.bf16.msra.mxu0 %v1756
      %1774 = vmatprep.subr.bf16.mxu0 0
      %1775 = vmatpush1.bf16.msra.mxu0 %v1757
      %1776 = vmatprep.subr.bf16.mxu0 0
      %1777 = vmatpush1.bf16.msra.mxu0 %v1758
      %1778 = vmatprep.subr.bf16.mxu0 0
      %1779 = vmatpush1.bf16.msra.mxu0 %v1759
      %1780 = vmatprep.subr.bf16.mxu0 0
      %1781 = vmatpush1.bf16.msra.mxu0 %v1760
      %1782 = vmatprep.subr.bf16.mxu0 0
      %1783 = vmatpush1.bf16.msra.mxu0 %v1761
      %1784 = vmatprep.subr.bf16.mxu0 0
      %1785 = vmatpush1.bf16.msra.mxu0 %v1762
      %1786 = vmatprep.subr.bf16.mxu0 0
      %1787 = vmatpush1.bf16.msra.mxu0 %v1763
      %1788 = vmatprep.subr.bf16.mxu0 0
      %1789 = vmatpush1.bf16.msra.mxu0 0
      %1790 = vmatprep.subr.bf16.mxu0 0
      %1791 = vmatpush1.bf16.msra.mxu0 0
      %1792 = vmatprep.subr.bf16.mxu0 0
      %1793 = vmatpush1.bf16.msra.mxu0 0
      %1794 = vmatprep.subr.bf16.mxu0 0
      %1795 = vmatpush1.bf16.msra.mxu0 0
      %1796 = vmatprep.subr.bf16.mxu0 0
      %1797 = vmatpush1.bf16.msra.mxu0 0
      %1798 = vmatprep.subr.bf16.mxu0 0
      %1799 = vmatpush1.bf16.msra.mxu0 0
      %1800 = vmatprep.subr.bf16.mxu0 0
      %1801 = vmatpush1.bf16.msra.mxu0 0
      %1802 = vmatprep.subr.bf16.mxu0 0
      %1803 = vmatpush1.bf16.msra.mxu0 0
      %1804 = vmatprep.mubr.bf16.mxu0 0
      %1805 = vmatmul.mubr.bf16.gmra.mrb[0].mxu0 %v1716
      %v1806 = vpop.f32.mrb[0].mxu0
      %v1807 = vadd.f32 0.0, %v1806
      %v1808 = vpop.f32.mrb[0].mxu0
      %v1809 = vpop.f32.mrb[0].mxu0
      %v1810 = vadd.f32 0.0, %v1809
      %v1811 = vpop.f32.mrb[0].mxu0
      %1812 = vmatprep.mubr.bf16.mxu0 0
      %1813 = vmatmul.mubr.bf16.gmra.mrb[0].mxu0 %v1717
      %v1814 = vpop.f32.mrb[0].mxu0
      %v1815 = vadd.f32 0.0, %v1814
      %v1816 = vpop.f32.mrb[0].mxu0
      %v1817 = vpop.f32.mrb[0].mxu0
      %v1818 = vadd.f32 0.0, %v1817
      %v1819 = vpop.f32.mrb[0].mxu0
      %1820 = vmatprep.mubr.bf16.mxu0 0
      %1821 = vmatmul.mubr.bf16.gmra.mrb[0].mxu0 %v1718
      %v1822 = vpop.f32.mrb[0].mxu0
      %v1823 = vadd.f32 0.0, %v1822
      %v1824 = vpop.f32.mrb[0].mxu0
      %v1825 = vpop.f32.mrb[0].mxu0
      %v1826 = vadd.f32 0.0, %v1825
      %v1827 = vpop.f32.mrb[0].mxu0
      %1828 = vmatprep.mubr.bf16.mxu0 0
      %1829 = vmatmul.mubr.bf16.gmra.mrb[0].mxu0 %v1719
      %v1830 = vpop.f32.mrb[0].mxu0
      %v1831 = vadd.f32 0.0, %v1830
      %v1832 = vpop.f32.mrb[0].mxu0
      %v1833 = vpop.f32.mrb[0].mxu0
      %v1834 = vadd.f32 0.0, %v1833
      %v1835 = vpop.f32.mrb[0].mxu0
      %1836 = vdwg.mxu0
      %v1837 = vadd.f32 %v1666, %v1807
      %v1838 = vadd.f32 %v1667, %v1810
      %v1839 = vadd.f32 %v1668, %v1815
      %v1840 = vadd.f32 %v1669, %v1818
      %v1841 = vadd.f32 %v1670, %v1823
      %v1842 = vadd.f32 %v1671, %v1826
      %v1843 = vadd.f32 %v1672, %v1831
      %v1844 = vadd.f32 %v1673, %v1834
      %v1845 = vld [vmem:[%s1674] sm:$0xf]
      %v1846 = vld [vmem:[%s1674 + $0x4] sm:$0x1]
      %v1847 = vld [vmem:[%s1674 + $0x8] sm:$0xf]
      %v1848 = vld [vmem:[%s1674 + $0xc] sm:$0x1]
      %v1849 = vld [vmem:[%s1674 + $0x10] sm:$0xf]
      %v1850 = vld [vmem:[%s1674 + $0x14] sm:$0x1]
      %v1851 = vld [vmem:[%s1674 + $0x18] sm:$0xf]
      %v1852 = vld [vmem:[%s1674 + $0x1c] sm:$0x1]
      %v1853 = vld [vmem:[%s1674 + $0x20] sm:$0xf]
      %v1854 = vld [vmem:[%s1674 + $0x24] sm:$0x1]
      %v1855 = vld [vmem:[%s1674 + $0x28] sm:$0xf]
      %v1856 = vld [vmem:[%s1674 + $0x2c] sm:$0x1]
      %v1857 = vld [vmem:[%s1674 + $0x30] sm:$0xf]
      %v1858 = vld [vmem:[%s1674 + $0x34] sm:$0x1]
      %v1859 = vld [vmem:[%s1674 + $0x38] sm:$0xf]
      %v1860 = vld [vmem:[%s1674 + $0x3c] sm:$0x1]
      %v1862 = vshrl.u32 %v1845, 16
      %v1864 = vrot.slane %v1862, 4
      %v1865 = vshll.u32 %v1845, 16
      %v1867 = vrot.slane %v1865, 5
      %v1868 = vor.u32 %v1864, %v1867
      %v1869 = vrot.slane %v1868, 4
      %v1871 = vshll.u32 %v1846, 16
      %v1873 = vrot.slane %v1871, 5
      %v1874 = vsel %vm402, %v1869, %v1873
      %v1876 = vshrl.u32 %v1847, 16
      %v1878 = vrot.slane %v1876, 4
      %v1879 = vshll.u32 %v1847, 16
      %v1881 = vrot.slane %v1879, 5
      %v1882 = vor.u32 %v1878, %v1881
      %v1883 = vrot.slane %v1882, 4
      %v1885 = vshll.u32 %v1848, 16
      %v1887 = vrot.slane %v1885, 5
      %v1888 = vsel %vm402, %v1883, %v1887
      %v1890 = vshrl.u32 %v1849, 16
      %v1892 = vrot.slane %v1890, 4
      %v1893 = vshll.u32 %v1849, 16
      %v1895 = vrot.slane %v1893, 5
      %v1896 = vor.u32 %v1892, %v1895
      %v1897 = vrot.slane %v1896, 4
      %v1899 = vshll.u32 %v1850, 16
      %v1901 = vrot.slane %v1899, 5
      %v1902 = vsel %vm402, %v1897, %v1901
      %v1904 = vshrl.u32 %v1851, 16
      %v1906 = vrot.slane %v1904, 4
      %v1907 = vshll.u32 %v1851, 16
      %v1909 = vrot.slane %v1907, 5
      %v1910 = vor.u32 %v1906, %v1909
      %v1911 = vrot.slane %v1910, 4
      %v1913 = vshll.u32 %v1852, 16
      %v1915 = vrot.slane %v1913, 5
      %v1916 = vsel %vm402, %v1911, %v1915
      %v1918 = vshrl.u32 %v1853, 16
      %v1920 = vrot.slane %v1918, 4
      %v1921 = vshll.u32 %v1853, 16
      %v1923 = vrot.slane %v1921, 5
      %v1924 = vor.u32 %v1920, %v1923
      %v1925 = vrot.slane %v1924, 4
      %v1927 = vshll.u32 %v1854, 16
      %v1929 = vrot.slane %v1927, 5
      %v1930 = vsel %vm402, %v1925, %v1929
      %v1932 = vshrl.u32 %v1855, 16
      %v1934 = vrot.slane %v1932, 4
      %v1935 = vshll.u32 %v1855, 16
      %v1937 = vrot.slane %v1935, 5
      %v1938 = vor.u32 %v1934, %v1937
      %v1939 = vrot.slane %v1938, 4
      %v1941 = vshll.u32 %v1856, 16
      %v1943 = vrot.slane %v1941, 5
      %v1944 = vsel %vm402, %v1939, %v1943
      %v1946 = vshrl.u32 %v1857, 16
      %v1948 = vrot.slane %v1946, 4
      %v1949 = vshll.u32 %v1857, 16
      %v1951 = vrot.slane %v1949, 5
      %v1952 = vor.u32 %v1948, %v1951
      %v1953 = vrot.slane %v1952, 4
      %v1955 = vshll.u32 %v1858, 16
      %v1957 = vrot.slane %v1955, 5
      %v1958 = vsel %vm402, %v1953, %v1957
      %v1960 = vshrl.u32 %v1859, 16
      %v1962 = vrot.slane %v1960, 4
      %v1963 = vshll.u32 %v1859, 16
      %v1965 = vrot.slane %v1963, 5
      %v1966 = vor.u32 %v1962, %v1965
      %v1967 = vrot.slane %v1966, 4
      %v1969 = vshll.u32 %v1860, 16
      %v1971 = vrot.slane %v1969, 5
      %v1972 = vsel %vm402, %v1967, %v1971
      %s1973 = scalar_lea.vmem %s331, 448
      %v1974 = vld [vmem:[%s1973] sm:$0xf]
      %v1975 = vld [vmem:[%s1973 + $0x4] sm:$0xf]
      %v1976 = vld [vmem:[%s1973 + $0x8] sm:$0xf]
      %v1977 = vld [vmem:[%s1973 + $0xc] sm:$0xf]
      %v1978 = vld [vmem:[%s1973 + $0x10] sm:$0xf]
      %v1979 = vld [vmem:[%s1973 + $0x14] sm:$0xf]
      %v1980 = vld [vmem:[%s1973 + $0x18] sm:$0xf]
      %v1981 = vld [vmem:[%s1973 + $0x1c] sm:$0xf]
      %v1982 = vld [vmem:[%s1973 + $0x20] sm:$0xf]
      %v1983 = vld [vmem:[%s1973 + $0x24] sm:$0xf]
      %v1984 = vld [vmem:[%s1973 + $0x28] sm:$0xf]
      %v1985 = vld [vmem:[%s1973 + $0x2c] sm:$0xf]
      %v1986 = vld [vmem:[%s1973 + $0x30] sm:$0xf]
      %v1987 = vld [vmem:[%s1973 + $0x34] sm:$0xf]
      %v1988 = vld [vmem:[%s1973 + $0x38] sm:$0xf]
      %v1989 = vld [vmem:[%s1973 + $0x3c] sm:$0xf]
      %v1990 = vunpack.c.l.b16 %v1874
      %v1991 = vunpack.c.l.b16 %v1888
      %v1992 = vunpack.c.l.b16 %v1902
      %v1993 = vunpack.c.l.b16 %v1916
      %v1994 = vunpack.c.l.b16 %v1930
      %v1995 = vunpack.c.l.b16 %v1944
      %v1996 = vunpack.c.l.b16 %v1958
      %v1997 = vunpack.c.l.b16 %v1972
      %v1998 = vpack.c.b16 %v1991, %v1990
      %v1999 = vpack.c.b16 %v1993, %v1992
      %v2000 = vpack.c.b16 %v1995, %v1994
      %v2001 = vpack.c.b16 %v1997, %v1996
      %v2022 = vunpack.c.l.b16 %v1974
      %v2023 = vunpack.c.l.b16 %v1975
      %v2024 = vunpack.c.l.b16 %v1976
      %v2025 = vunpack.c.l.b16 %v1977
      %v2026 = vunpack.c.l.b16 %v1978
      %v2027 = vunpack.c.l.b16 %v1979
      %v2028 = vunpack.c.l.b16 %v1980
      %v2029 = vunpack.c.l.b16 %v1981
      %v2030 = vunpack.c.l.b16 %v1982
      %v2031 = vunpack.c.l.b16 %v1983
      %v2032 = vunpack.c.l.b16 %v1984
      %v2033 = vunpack.c.l.b16 %v1985
      %v2034 = vunpack.c.l.b16 %v1986
      %v2035 = vunpack.c.l.b16 %v1987
      %v2036 = vunpack.c.l.b16 %v1988
      %v2037 = vunpack.c.l.b16 %v1989
      %v2038 = vpack.c.b16 %v2023, %v2022
      %v2039 = vpack.c.b16 %v2025, %v2024
      %v2040 = vpack.c.b16 %v2027, %v2026
      %v2041 = vpack.c.b16 %v2029, %v2028
      %v2042 = vpack.c.b16 %v2031, %v2030
      %v2043 = vpack.c.b16 %v2033, %v2032
      %v2044 = vpack.c.b16 %v2035, %v2034
      %v2045 = vpack.c.b16 %v2037, %v2036
      %2054 = vmatprep.subr.bf16.mxu0 0
      %2055 = vmatpush1.bf16.msra.mxu0 %v2038
      %2056 = vmatprep.subr.bf16.mxu0 0
      %2057 = vmatpush1.bf16.msra.mxu0 %v2039
      %2058 = vmatprep.subr.bf16.mxu0 0
      %2059 = vmatpush1.bf16.msra.mxu0 %v2040
      %2060 = vmatprep.subr.bf16.mxu0 0
      %2061 = vmatpush1.bf16.msra.mxu0 %v2041
      %2062 = vmatprep.subr.bf16.mxu0 0
      %2063 = vmatpush1.bf16.msra.mxu0 %v2042
      %2064 = vmatprep.subr.bf16.mxu0 0
      %2065 = vmatpush1.bf16.msra.mxu0 %v2043
      %2066 = vmatprep.subr.bf16.mxu0 0
      %2067 = vmatpush1.bf16.msra.mxu0 %v2044
      %2068 = vmatprep.subr.bf16.mxu0 0
      %2069 = vmatpush1.bf16.msra.mxu0 %v2045
      %2070 = vmatprep.subr.bf16.mxu0 0
      %2071 = vmatpush1.bf16.msra.mxu0 0
      %2072 = vmatprep.subr.bf16.mxu0 0
      %2073 = vmatpush1.bf16.msra.mxu0 0
      %2074 = vmatprep.subr.bf16.mxu0 0
      %2075 = vmatpush1.bf16.msra.mxu0 0
      %2076 = vmatprep.subr.bf16.mxu0 0
      %2077 = vmatpush1.bf16.msra.mxu0 0
      %2078 = vmatprep.subr.bf16.mxu0 0
      %2079 = vmatpush1.bf16.msra.mxu0 0
      %2080 = vmatprep.subr.bf16.mxu0 0
      %2081 = vmatpush1.bf16.msra.mxu0 0
      %2082 = vmatprep.subr.bf16.mxu0 0
      %2083 = vmatpush1.bf16.msra.mxu0 0
      %2084 = vmatprep.subr.bf16.mxu0 0
      %2085 = vmatpush1.bf16.msra.mxu0 0
      %2086 = vmatprep.mubr.bf16.mxu0 0
      %2087 = vmatmul.mubr.bf16.gmra.mrb[0].mxu0 %v1998
      %v2088 = vpop.f32.mrb[0].mxu0
      %v2089 = vadd.f32 0.0, %v2088
      %v2090 = vpop.f32.mrb[0].mxu0
      %v2091 = vpop.f32.mrb[0].mxu0
      %v2092 = vadd.f32 0.0, %v2091
      %v2093 = vpop.f32.mrb[0].mxu0
      %2094 = vmatprep.mubr.bf16.mxu0 0
      %2095 = vmatmul.mubr.bf16.gmra.mrb[0].mxu0 %v1999
      %v2096 = vpop.f32.mrb[0].mxu0
      %v2097 = vadd.f32 0.0, %v2096
      %v2098 = vpop.f32.mrb[0].mxu0
      %v2099 = vpop.f32.mrb[0].mxu0
      %v2100 = vadd.f32 0.0, %v2099
      %v2101 = vpop.f32.mrb[0].mxu0
      %2102 = vmatprep.mubr.bf16.mxu0 0
      %2103 = vmatmul.mubr.bf16.gmra.mrb[0].mxu0 %v2000
      %v2104 = vpop.f32.mrb[0].mxu0
      %v2105 = vadd.f32 0.0, %v2104
      %v2106 = vpop.f32.mrb[0].mxu0
      %v2107 = vpop.f32.mrb[0].mxu0
      %v2108 = vadd.f32 0.0, %v2107
      %v2109 = vpop.f32.mrb[0].mxu0
      %2110 = vmatprep.mubr.bf16.mxu0 0
      %2111 = vmatmul.mubr.bf16.gmra.mrb[0].mxu0 %v2001
      %v2112 = vpop.f32.mrb[0].mxu0
      %v2113 = vadd.f32 0.0, %v2112
      %v2114 = vpop.f32.mrb[0].mxu0
      %v2115 = vpop.f32.mrb[0].mxu0
      %v2116 = vadd.f32 0.0, %v2115
      %v2117 = vpop.f32.mrb[0].mxu0
      %2118 = vdwg.mxu0
      %v2119 = vadd.f32 %v1837, %v2089
      %v2120 = vadd.f32 %v1838, %v2092
      %v2121 = vadd.f32 %v1839, %v2097
      %v2122 = vadd.f32 %v1840, %v2100
      %v2123 = vadd.f32 %v1841, %v2105
      %v2124 = vadd.f32 %v1842, %v2108
      %v2125 = vadd.f32 %v1843, %v2113
      %v2126 = vadd.f32 %v1844, %v2116
      %v2127 = vld [vmem:[%s1674] sm:$0xe]
      %v2128 = vld [vmem:[%s1674 + $0x8] sm:$0xe]
      %v2129 = vld [vmem:[%s1674 + $0x10] sm:$0xe]
      %v2130 = vld [vmem:[%s1674 + $0x18] sm:$0xe]
      %v2131 = vld [vmem:[%s1674 + $0x20] sm:$0xe]
      %v2132 = vld [vmem:[%s1674 + $0x28] sm:$0xe]
      %v2133 = vld [vmem:[%s1674 + $0x30] sm:$0xe]
      %v2134 = vld [vmem:[%s1674 + $0x38] sm:$0xe]
      %v2151 = vrot.slane %v2127, 5
      %v2152 = vrot.slane %v2151, 4
      %v2153 = vrot.slane %v1846, 5
      %v2154 = vsel %vm824, %v2152, %v2153
      %v2155 = vrot.slane %v2128, 5
      %v2156 = vrot.slane %v2155, 4
      %v2157 = vrot.slane %v1848, 5
      %v2158 = vsel %vm824, %v2156, %v2157
      %v2159 = vrot.slane %v2129, 5
      %v2160 = vrot.slane %v2159, 4
      %v2161 = vrot.slane %v1850, 5
      %v2162 = vsel %vm824, %v2160, %v2161
      %v2163 = vrot.slane %v2130, 5
      %v2164 = vrot.slane %v2163, 4
      %v2165 = vrot.slane %v1852, 5
      %v2166 = vsel %vm824, %v2164, %v2165
      %v2167 = vrot.slane %v2131, 5
      %v2168 = vrot.slane %v2167, 4
      %v2169 = vrot.slane %v1854, 5
      %v2170 = vsel %vm824, %v2168, %v2169
      %v2171 = vrot.slane %v2132, 5
      %v2172 = vrot.slane %v2171, 4
      %v2173 = vrot.slane %v1856, 5
      %v2174 = vsel %vm824, %v2172, %v2173
      %v2175 = vrot.slane %v2133, 5
      %v2176 = vrot.slane %v2175, 4
      %v2177 = vrot.slane %v1858, 5
      %v2178 = vsel %vm824, %v2176, %v2177
      %v2179 = vrot.slane %v2134, 5
      %v2180 = vrot.slane %v2179, 4
      %v2181 = vrot.slane %v1860, 5
      %v2182 = vsel %vm824, %v2180, %v2181
      %s2183 = scalar_lea.vmem %s331, 512
      %v2184 = vld [vmem:[%s2183] sm:$0xf]
      %v2185 = vld [vmem:[%s2183 + $0x4] sm:$0xf]
      %v2186 = vld [vmem:[%s2183 + $0x8] sm:$0xf]
      %v2187 = vld [vmem:[%s2183 + $0xc] sm:$0xf]
      %v2188 = vld [vmem:[%s2183 + $0x10] sm:$0xf]
      %v2189 = vld [vmem:[%s2183 + $0x14] sm:$0xf]
      %v2190 = vld [vmem:[%s2183 + $0x18] sm:$0xf]
      %v2191 = vld [vmem:[%s2183 + $0x1c] sm:$0xf]
      %v2192 = vld [vmem:[%s2183 + $0x20] sm:$0xf]
      %v2193 = vld [vmem:[%s2183 + $0x24] sm:$0xf]
      %v2194 = vld [vmem:[%s2183 + $0x28] sm:$0xf]
      %v2195 = vld [vmem:[%s2183 + $0x2c] sm:$0xf]
      %v2196 = vld [vmem:[%s2183 + $0x30] sm:$0xf]
      %v2197 = vld [vmem:[%s2183 + $0x34] sm:$0xf]
      %v2198 = vld [vmem:[%s2183 + $0x38] sm:$0xf]
      %v2199 = vld [vmem:[%s2183 + $0x3c] sm:$0xf]
      %v2200 = vunpack.c.l.b16 %v2154
      %v2201 = vunpack.c.l.b16 %v2158
      %v2202 = vunpack.c.l.b16 %v2162
      %v2203 = vunpack.c.l.b16 %v2166
      %v2204 = vunpack.c.l.b16 %v2170
      %v2205 = vunpack.c.l.b16 %v2174
      %v2206 = vunpack.c.l.b16 %v2178
      %v2207 = vunpack.c.l.b16 %v2182
      %v2208 = vpack.c.b16 %v2201, %v2200
      %v2209 = vpack.c.b16 %v2203, %v2202
      %v2210 = vpack.c.b16 %v2205, %v2204
      %v2211 = vpack.c.b16 %v2207, %v2206
      %v2232 = vunpack.c.l.b16 %v2184
      %v2233 = vunpack.c.l.b16 %v2185
      %v2234 = vunpack.c.l.b16 %v2186
      %v2235 = vunpack.c.l.b16 %v2187
      %v2236 = vunpack.c.l.b16 %v2188
      %v2237 = vunpack.c.l.b16 %v2189
      %v2238 = vunpack.c.l.b16 %v2190
      %v2239 = vunpack.c.l.b16 %v2191
      %v2240 = vunpack.c.l.b16 %v2192
      %v2241 = vunpack.c.l.b16 %v2193
      %v2242 = vunpack.c.l.b16 %v2194
      %v2243 = vunpack.c.l.b16 %v2195
      %v2244 = vunpack.c.l.b16 %v2196
      %v2245 = vunpack.c.l.b16 %v2197
      %v2246 = vunpack.c.l.b16 %v2198
      %v2247 = vunpack.c.l.b16 %v2199
      %v2248 = vpack.c.b16 %v2233, %v2232
      %v2249 = vpack.c.b16 %v2235, %v2234
      %v2250 = vpack.c.b16 %v2237, %v2236
      %v2251 = vpack.c.b16 %v2239, %v2238
      %v2252 = vpack.c.b16 %v2241, %v2240
      %v2253 = vpack.c.b16 %v2243, %v2242
      %v2254 = vpack.c.b16 %v2245, %v2244
      %v2255 = vpack.c.b16 %v2247, %v2246
      %2264 = vmatprep.subr.bf16.mxu0 0
      %2265 = vmatpush1.bf16.msra.mxu0 %v2248
      %2266 = vmatprep.subr.bf16.mxu0 0
      %2267 = vmatpush1.bf16.msra.mxu0 %v2249
      %2268 = vmatprep.subr.bf16.mxu0 0
      %2269 = vmatpush1.bf16.msra.mxu0 %v2250
      %2270 = vmatprep.subr.bf16.mxu0 0
      %2271 = vmatpush1.bf16.msra.mxu0 %v2251
      %2272 = vmatprep.subr.bf16.mxu0 0
      %2273 = vmatpush1.bf16.msra.mxu0 %v2252
      %2274 = vmatprep.subr.bf16.mxu0 0
      %2275 = vmatpush1.bf16.msra.mxu0 %v2253
      %2276 = vmatprep.subr.bf16.mxu0 0
      %2277 = vmatpush1.bf16.msra.mxu0 %v2254
      %2278 = vmatprep.subr.bf16.mxu0 0
      %2279 = vmatpush1.bf16.msra.mxu0 %v2255
      %2280 = vmatprep.subr.bf16.mxu0 0
      %2281 = vmatpush1.bf16.msra.mxu0 0
      %2282 = vmatprep.subr.bf16.mxu0 0
      %2283 = vmatpush1.bf16.msra.mxu0 0
      %2284 = vmatprep.subr.bf16.mxu0 0
      %2285 = vmatpush1.bf16.msra.mxu0 0
      %2286 = vmatprep.subr.bf16.mxu0 0
      %2287 = vmatpush1.bf16.msra.mxu0 0
      %2288 = vmatprep.subr.bf16.mxu0 0
      %2289 = vmatpush1.bf16.msra.mxu0 0
      %2290 = vmatprep.subr.bf16.mxu0 0
      %2291 = vmatpush1.bf16.msra.mxu0 0
      %2292 = vmatprep.subr.bf16.mxu0 0
      %2293 = vmatpush1.bf16.msra.mxu0 0
      %2294 = vmatprep.subr.bf16.mxu0 0
      %2295 = vmatpush1.bf16.msra.mxu0 0
      %2296 = vmatprep.mubr.bf16.mxu0 0
      %2297 = vmatmul.mubr.bf16.gmra.mrb[0].mxu0 %v2208
      %v2298 = vpop.f32.mrb[0].mxu0
      %v2299 = vadd.f32 0.0, %v2298
      %v2300 = vpop.f32.mrb[0].mxu0
      %v2301 = vpop.f32.mrb[0].mxu0
      %v2302 = vadd.f32 0.0, %v2301
      %v2303 = vpop.f32.mrb[0].mxu0
      %2304 = vmatprep.mubr.bf16.mxu0 0
      %2305 = vmatmul.mubr.bf16.gmra.mrb[0].mxu0 %v2209
      %v2306 = vpop.f32.mrb[0].mxu0
      %v2307 = vadd.f32 0.0, %v2306
      %v2308 = vpop.f32.mrb[0].mxu0
      %v2309 = vpop.f32.mrb[0].mxu0
      %v2310 = vadd.f32 0.0, %v2309
      %v2311 = vpop.f32.mrb[0].mxu0
      %2312 = vmatprep.mubr.bf16.mxu0 0
      %2313 = vmatmul.mubr.bf16.gmra.mrb[0].mxu0 %v2210
      %v2314 = vpop.f32.mrb[0].mxu0
      %v2315 = vadd.f32 0.0, %v2314
      %v2316 = vpop.f32.mrb[0].mxu0
      %v2317 = vpop.f32.mrb[0].mxu0
      %v2318 = vadd.f32 0.0, %v2317
      %v2319 = vpop.f32.mrb[0].mxu0
      %2320 = vmatprep.mubr.bf16.mxu0 0
      %2321 = vmatmul.mubr.bf16.gmra.mrb[0].mxu0 %v2211
      %v2322 = vpop.f32.mrb[0].mxu0
      %v2323 = vadd.f32 0.0, %v2322
      %v2324 = vpop.f32.mrb[0].mxu0
      %v2325 = vpop.f32.mrb[0].mxu0
      %v2326 = vadd.f32 0.0, %v2325
      %v2327 = vpop.f32.mrb[0].mxu0
      %2328 = vdwg.mxu0
      %v2329 = vadd.f32 %v2119, %v2299
      %v2330 = vadd.f32 %v2120, %v2302
      %v2331 = vadd.f32 %v2121, %v2307
      %v2332 = vadd.f32 %v2122, %v2310
      %v2333 = vadd.f32 %v2123, %v2315
      %v2334 = vadd.f32 %v2124, %v2318
      %v2335 = vadd.f32 %v2125, %v2323
      %v2336 = vadd.f32 %v2126, %v2326
      %v2337 = vld [vmem:[#allocation2] sm:$0xff]
      %v2338 = vld [vmem:[#allocation2 + $0x8] sm:$0xff]
      %v2339 = vld [vmem:[#allocation2 + $0x10] sm:$0xff]
      %v2340 = vld [vmem:[#allocation2 + $0x18] sm:$0xff]
      %v2341 = vld [vmem:[#allocation2 + $0x20] sm:$0xff]
      %v2342 = vld [vmem:[#allocation2 + $0x28] sm:$0xff]
      %v2343 = vld [vmem:[#allocation2 + $0x30] sm:$0xff]
      %v2344 = vld [vmem:[#allocation2 + $0x38] sm:$0xff]
      %v2345 = vadd.f32 %v2337, %v2329
      %v2346 = vadd.f32 %v2338, %v2330
      %v2347 = vadd.f32 %v2339, %v2331
      %v2348 = vadd.f32 %v2340, %v2332
      %v2349 = vadd.f32 %v2341, %v2333
      %v2350 = vadd.f32 %v2342, %v2334
      %v2351 = vadd.f32 %v2343, %v2335
      %v2352 = vadd.f32 %v2344, %v2336
      %2353 = vst [vmem:[#allocation2] sm:$0xff] %v2345
      %2354 = vst [vmem:[#allocation2 + $0x8] sm:$0xff] %v2346
      %2355 = vst [vmem:[#allocation2 + $0x10] sm:$0xff] %v2347
      %2356 = vst [vmem:[#allocation2 + $0x18] sm:$0xff] %v2348
      %2357 = vst [vmem:[#allocation2 + $0x20] sm:$0xff] %v2349
      %2358 = vst [vmem:[#allocation2 + $0x28] sm:$0xff] %v2350
      %2359 = vst [vmem:[#allocation2 + $0x30] sm:$0xff] %v2351
      %2360 = vst [vmem:[#allocation2 + $0x38] sm:$0xff] %v2352
      // Predicated region
      $region45: #{_lambda_.7} parent=39 // pred_check
        %p2361 = pneg %p356
      $region46: #{_lambda_.7} parent=39 // pred_check_branch
        %2363 = sbr.rel (%p2361) target = $region48
      $region47: #{_lambda_.7} parent=39 // pred_region
        %v2364 = vld [vmem:[#allocation2] sm:$0xff]
        %v2365 = vld [vmem:[#allocation2 + $0x8] sm:$0xff]
        %v2366 = vld [vmem:[#allocation2 + $0x10] sm:$0xff]
        %v2367 = vld [vmem:[#allocation2 + $0x18] sm:$0xff]
        %v2368 = vld [vmem:[#allocation2 + $0x20] sm:$0xff]
        %v2369 = vld [vmem:[#allocation2 + $0x28] sm:$0xff]
        %v2370 = vld [vmem:[#allocation2 + $0x30] sm:$0xff]
        %v2371 = vld [vmem:[#allocation2 + $0x38] sm:$0xff]
        %v2372 = vld [vmem:[%s335] sm:$0x1]
        %v2374 = vlaneseq
        %v2375 = vshrl.u32 %v2374, 7
        %v2376 = vsub.s32 0, %v2375
        %v2377 = vrot.slane %v2372, %v2376
        %v2379 = vmul.f32 %v2364, %v2377
        %v2380 = vmul.f32 %v2365, %v2377
        %v2381 = vmul.f32 %v2366, %v2377
        %v2382 = vmul.f32 %v2367, %v2377
        %v2383 = vmul.f32 %v2368, %v2377
        %v2384 = vmul.f32 %v2369, %v2377
        %v2385 = vmul.f32 %v2370, %v2377
        %v2386 = vmul.f32 %v2371, %v2377
        %v2387 = vld [vmem:[%s338] sm:$0x1]
        %v2389 = vlaneseq
        %v2390 = vshrl.u32 %v2389, 7
        %v2391 = vsub.s32 0, %v2390
        %v2392 = vrot.slane %v2387, %v2391
        %v2394 = vadd.f32 %v2379, %v2392
        %v2395 = vadd.f32 %v2380, %v2392
        %v2396 = vadd.f32 %v2381, %v2392
        %v2397 = vadd.f32 %v2382, %v2392
        %v2398 = vadd.f32 %v2383, %v2392
        %v2399 = vadd.f32 %v2384, %v2392
        %v2400 = vadd.f32 %v2385, %v2392
        %v2401 = vadd.f32 %v2386, %v2392
        %v2402 = vld [vmem:[%s346] sm:$0xf]
        %v2403 = vld [vmem:[%s346 + $0x4] sm:$0xf]
        %v2404 = vld [vmem:[%s346 + $0x8] sm:$0xf]
        %v2405 = vld [vmem:[%s346 + $0xc] sm:$0xf]
        %v2406 = vld [vmem:[%s346 + $0x10] sm:$0xf]
        %v2407 = vld [vmem:[%s346 + $0x14] sm:$0xf]
        %v2408 = vld [vmem:[%s346 + $0x18] sm:$0xf]
        %v2409 = vld [vmem:[%s346 + $0x1c] sm:$0xf]
        %v2410 = vunpack.c.l.bf16 %v2402
        %v2411 = vunpack.c.l.bf16 %v2403
        %v2412 = vunpack.c.l.bf16 %v2404
        %v2413 = vunpack.c.l.bf16 %v2405
        %v2414 = vunpack.c.l.bf16 %v2406
        %v2415 = vunpack.c.l.bf16 %v2407
        %v2416 = vunpack.c.l.bf16 %v2408
        %v2417 = vunpack.c.l.bf16 %v2409
        %v2418 = vadd.f32 %v2394, %v2410
        %v2419 = vadd.f32 %v2395, %v2411
        %v2420 = vadd.f32 %v2396, %v2412
        %v2421 = vadd.f32 %v2397, %v2413
        %v2422 = vadd.f32 %v2398, %v2414
        %v2423 = vadd.f32 %v2399, %v2415
        %v2424 = vadd.f32 %v2400, %v2416
        %v2425 = vadd.f32 %v2401, %v2417
        %v2426 = vmax.f32 %v2418, 0.0
        %v2427 = vmax.f32 %v2419, 0.0
        %v2428 = vmax.f32 %v2420, 0.0
        %v2429 = vmax.f32 %v2421, 0.0
        %v2430 = vmax.f32 %v2422, 0.0
        %v2431 = vmax.f32 %v2423, 0.0
        %v2432 = vmax.f32 %v2424, 0.0
        %v2433 = vmax.f32 %v2425, 0.0
        %2434 = vst [vmem:[%s354] sm:$0xff] %v2426
        %2435 = vst [vmem:[%s354 + $0x8] sm:$0xff] %v2427
        %2436 = vst [vmem:[%s354 + $0x10] sm:$0xff] %v2428
        %2437 = vst [vmem:[%s354 + $0x18] sm:$0xff] %v2429
        %2438 = vst [vmem:[%s354 + $0x20] sm:$0xff] %v2430
        %2439 = vst [vmem:[%s354 + $0x28] sm:$0xff] %v2431
        %2440 = vst [vmem:[%s354 + $0x30] sm:$0xff] %v2432
        %2441 = vst [vmem:[%s354 + $0x38] sm:$0xff] %v2433
      $region48: #{_lambda_.7} parent=39 // pred_fallthru
        _
      %p2442 = scmp.lt.s32.totalorder %s21, 1
      %s2443 = scalar_select %p2442, %s21, 1
      %p2444 = scmp.lt.s32.totalorder %s22, 0
      %s2445 = scalar_select %p2444, %s22, 0
      %s2446 = smul.addr %s2443, 8
      %s2447 = sadd.s32 %s2445, %s2446
      %s2448 = smul.addr %s2447, 8
      %s2449 = scalar_lea.vmem %s5, %s2448
      // Predicated region
      $region49: #{_lambda_.7} parent=39 // pred_check
        %p2450 = pneg %p191
      $region50: #{_lambda_.7} parent=39 // pred_check_branch
        %2452 = sbr.rel (%p2450) target = $region52
      $region51: #{_lambda_.7} parent=39 // pred_region
        _
      $region52: #{_lambda_.7} parent=39 // pred_fallthru
        _
    $region40: #{_lambda_.7} parent=5 // pred_fallthru
      _
    %p2453 = scmp.le.s32.totalorder 2, %s11
    // Predicated region
    $region53: #{_lambda_.7} parent=5 // pred_check
      %p2454 = pneg %p2453
    $region54: #{_lambda_.7} parent=5 // pred_check_branch
      %2456 = sbr.rel (%p2454) target = $region56
    $region55: #{_lambda_.7} parent=5 // pred_region
      %s2457 = ssub.s32 %s11, 2
      // Predicated region
      $region57: #{_lambda_.7} parent=55 // pred_check
        %p2458 = pneg %p197
      $region58: #{_lambda_.7} parent=55 // pred_check_branch
        %2460 = sbr.rel (%p2458) target = $region60
      $region59: #{_lambda_.7} parent=55 // pred_region
        %p2461 = scmp.lt.s32.totalorder %s24, 1
        %s2462 = scalar_select %p2461, %s24, 1
        %p2463 = scmp.lt.s32.totalorder %s25, 0
        %s2464 = scalar_select %p2463, %s25, 0
        %s2465 = smul.addr %s2462, 8
        %s2466 = sadd.s32 %s2464, %s2465
        %s2467 = smul.addr %s2466, 8
        %s2468 = scalar_lea.vmem %s5, %s2467
      $region60: #{_lambda_.7} parent=55 // pred_fallthru
        _
    $region56: #{_lambda_.7} parent=5 // pred_fallthru
      _
  $region6: #{_lambda_.7} parent=0 // loop_footer
    %s15 = sadd.s32 1, %s11
  $region7: #{_lambda_.7} parent=0 // loop_footer_branch
    %10 = sbr.rel target = $region3
  $region8: #{_lambda_.7} parent=0 // loop_exit
    _

// kernel: _lambda_.8
$region0: #{_lambda_.8}
  #allocation0 [shape = 'u32[]', space=smem, size = 0x4, offset = 0x4, fixed_abs, tag = 'smem constant byte address 0x4 - core index']
  #allocation1 [shape = 'u32[144,128]{1,0:T(1,128)}', space=vmem, size = 0x12000, scoped, tag = 'internal scratch']
  #allocation2 [shape = 'f32[64,128]{1,0:T(8,128)}', space=vmem, size = 0x8000, scoped, tag = 'scratch operand']
  %s0 = inlined_call_operand.vmem [shape: bf16[1,2,10,10,128], index: 0, kind: input, shape index: {}]
  %s1 = inlined_call_operand.vmem [shape: bf16[3,3,128,128], index: 1, kind: input, shape index: {}]
  %s2 = inlined_call_operand.vmem [shape: f32[1,128], index: 2, kind: input, shape index: {}]
  %s3 = inlined_call_operand.vmem [shape: f32[1,128], index: 3, kind: input, shape index: {}]
  %s4 = inlined_call_operand.vmem [shape: bf16[2,64,128], index: 4, kind: output, shape index: {}]
  %s5 = sld [smem:[#allocation0]]
  $region57: #{_lambda_.8} parent=0
    _
  %s7 = ssub.s32 1, %s5
  %s8 = scalar_select 0, %s7, %s5
  loop: start=0, step=1, limit=4
  $region2: #{_lambda_.8} parent=0 // loop_pre_header
    _
  $region3: #{_lambda_.8} parent=0 // loop_header
    %s10 = sphi 0, %s14
    %p11 = scmp.ge.s32.totalorder %s10, 4
    %s17 = sphi 0, %s36
    %s18 = sphi 0, %s32
    %s19 = sphi 0, %s28
    %s20 = sphi 0, %s17
    %s21 = sphi 0, %s18
    %s22 = sphi 0, %s19
    %s23 = sphi 0, %s20
    %s24 = sphi 0, %s21
    %s25 = sphi 0, %s22
    %s41 = sphi 0, %s43
    %s44 = sphi 0, %s41
    %s45 = sphi 0, %s44
    %s61 = sphi 0, %s45
    %s69 = sphi 0, %s71
    %s72 = sphi 0, %s69
    %s73 = sphi 0, %s72
    %s89 = sphi 0, %s73
    %s95 = sphi 0, %s97
    %s98 = sphi 0, %s95
    %s99 = sphi 0, %s98
    %s115 = sphi 0, %s99
    %s121 = sphi 0, %s123
    %s124 = sphi 0, %s121
    %s125 = sphi 0, %s124
    %s141 = sphi 0, %s125
    %s149 = sphi 0, %s151
    %s152 = sphi 0, %s149
    %s153 = sphi 0, %s152
    %s169 = sphi 0, %s153
  $region4: #{_lambda_.8} parent=0 // loop_header_branch
    %13 = sbr.rel (%p11) target = $region8
  $region5: #{_lambda_.8} parent=0 // loop_body
    %s15 = ssub.s32 %s10, 1
    %s16 = ssub.s32 %s10, 2
    %s26 = sadd.s32 1, %s19
    %p27 = scmp.ge.s32.totalorder %s26, 1
    %s28 = scalar_select %p27, 0, %s26
    %s29 = sadd.s32 1, %s18
    %s30 = scalar_select %p27, %s29, %s18
    %p31 = scmp.ge.s32.totalorder %s30, 1
    %s32 = scalar_select %p31, 0, %s30
    %s33 = sadd.s32 1, %s17
    %s34 = scalar_select %p31, %s33, %s17
    %p35 = scmp.ge.s32.totalorder %s34, 2
    %s36 = scalar_select %p35, 0, %s34
    %s37 = ssub.s32 %s17, %s36
    %s38 = ssub.s32 %s19, %s28
    %s39 = sor.u32 %s37, %s38
    %p40 = scmp.eq.s32.totalorder %s39, 0
    %s42 = sadd.s32 %s41, 1
    %s43 = scalar_select %p40, %s41, %s42
    %p46 = pneg %p40
    %p47 = scmp.eq.s32.totalorder %s10, 1
    %p48 = por %p46, %p47
    %p49 = scmp.ne.s32.totalorder %s41, %s44
    %p50 = scmp.eq.s32.totalorder %s10, 0
    %p51 = por %p49, %p50
    %p52 = scmp.ne.s32.totalorder %s41, %s44
    %p53 = scmp.eq.s32.totalorder %s15, 1
    %p54 = por %p52, %p53
    %p55 = scmp.ne.s32.totalorder %s44, %s45
    %p56 = scmp.eq.s32.totalorder %s15, 0
    %p57 = por %p55, %p56
    %p58 = scmp.ne.s32.totalorder %s44, %s45
    %p59 = scmp.eq.s32.totalorder %s16, 1
    %p60 = por %p58, %p59
    %p62 = scmp.ne.s32.totalorder %s45, %s61
    %p63 = scmp.eq.s32.totalorder %s16, 0
    %p64 = por %p62, %p63
    %s65 = ssub.s32 %s19, %s28
    %s66 = ssub.s32 %s18, %s32
    %s67 = sor.u32 %s65, %s66
    %p68 = scmp.eq.s32.totalorder %s67, 0
    %s70 = sadd.s32 %s69, 1
    %s71 = scalar_select %p68, %s69, %s70
    %p74 = pneg %p68
    %p75 = scmp.eq.s32.totalorder %s10, 1
    %p76 = por %p74, %p75
    %p77 = scmp.ne.s32.totalorder %s69, %s72
    %p78 = scmp.eq.s32.totalorder %s10, 0
    %p79 = por %p77, %p78
    %p80 = scmp.ne.s32.totalorder %s69, %s72
    %p81 = scmp.eq.s32.totalorder %s15, 1
    %p82 = por %p80, %p81
    %p83 = scmp.ne.s32.totalorder %s72, %s73
    %p84 = scmp.eq.s32.totalorder %s15, 0
    %p85 = por %p83, %p84
    %p86 = scmp.ne.s32.totalorder %s72, %s73
    %p87 = scmp.eq.s32.totalorder %s16, 1
    %p88 = por %p86, %p87
    %p90 = scmp.ne.s32.totalorder %s73, %s89
    %p91 = scmp.eq.s32.totalorder %s16, 0
    %p92 = por %p90, %p91
    %s93 = ssub.s32 %s18, %s32
    %p94 = scmp.eq.s32.totalorder %s93, 0
    %s96 = sadd.s32 %s95, 1
    %s97 = scalar_select %p94, %s95, %s96
    %p100 = pneg %p94
    %p101 = scmp.eq.s32.totalorder %s10, 1
    %p102 = por %p100, %p101
    %p103 = scmp.ne.s32.totalorder %s95, %s98
    %p104 = scmp.eq.s32.totalorder %s10, 0
    %p105 = por %p103, %p104
    %p106 = scmp.ne.s32.totalorder %s95, %s98
    %p107 = scmp.eq.s32.totalorder %s15, 1
    %p108 = por %p106, %p107
    %p109 = scmp.ne.s32.totalorder %s98, %s99
    %p110 = scmp.eq.s32.totalorder %s15, 0
    %p111 = por %p109, %p110
    %p112 = scmp.ne.s32.totalorder %s98, %s99
    %p113 = scmp.eq.s32.totalorder %s16, 1
    %p114 = por %p112, %p113
    %p116 = scmp.ne.s32.totalorder %s99, %s115
    %p117 = scmp.eq.s32.totalorder %s16, 0
    %p118 = por %p116, %p117
    %s119 = ssub.s32 %s18, %s32
    %p120 = scmp.eq.s32.totalorder %s119, 0
    %s122 = sadd.s32 %s121, 1
    %s123 = scalar_select %p120, %s121, %s122
    %p126 = pneg %p120
    %p127 = scmp.eq.s32.totalorder %s10, 1
    %p128 = por %p126, %p127
    %p129 = scmp.ne.s32.totalorder %s121, %s124
    %p130 = scmp.eq.s32.totalorder %s10, 0
    %p131 = por %p129, %p130
    %p132 = scmp.ne.s32.totalorder %s121, %s124
    %p133 = scmp.eq.s32.totalorder %s15, 1
    %p134 = por %p132, %p133
    %p135 = scmp.ne.s32.totalorder %s124, %s125
    %p136 = scmp.eq.s32.totalorder %s15, 0
    %p137 = por %p135, %p136
    %p138 = scmp.ne.s32.totalorder %s124, %s125
    %p139 = scmp.eq.s32.totalorder %s16, 1
    %p140 = por %p138, %p139
    %p142 = scmp.ne.s32.totalorder %s125, %s141
    %p143 = scmp.eq.s32.totalorder %s16, 0
    %p144 = por %p142, %p143
    %s145 = ssub.s32 %s17, %s36
    %s146 = ssub.s32 %s18, %s32
    %s147 = sor.u32 %s145, %s146
    %p148 = scmp.eq.s32.totalorder %s147, 0
    %s150 = sadd.s32 %s149, 1
    %s151 = scalar_select %p148, %s149, %s150
    %p154 = pneg %p148
    %p155 = scmp.eq.s32.totalorder %s10, 1
    %p156 = por %p154, %p155
    %p157 = scmp.ne.s32.totalorder %s149, %s152
    %p158 = scmp.eq.s32.totalorder %s10, 0
    %p159 = por %p157, %p158
    %p160 = scmp.ne.s32.totalorder %s149, %s152
    %p161 = scmp.eq.s32.totalorder %s15, 1
    %p162 = por %p160, %p161
    %p163 = scmp.ne.s32.totalorder %s152, %s153
    %p164 = scmp.eq.s32.totalorder %s15, 0
    %p165 = por %p163, %p164
    %p166 = scmp.ne.s32.totalorder %s152, %s153
    %p167 = scmp.eq.s32.totalorder %s16, 1
    %p168 = por %p166, %p167
    %p170 = scmp.ne.s32.totalorder %s153, %s169
    %p171 = scmp.eq.s32.totalorder %s16, 0
    %p172 = por %p170, %p171
    %p173 = scmp.le.s32.totalorder 1, %s10
    %p174 = scmp.lt.s32.totalorder %s10, 3
    %p175 = pnand %p173, %p174
    %p176 = pneg %p175
    // Predicated region
    $region9: #{_lambda_.8} parent=5 // pred_check
      _
    $region10: #{_lambda_.8} parent=5 // pred_check_branch
      %178 = sbr.rel (%p175) target = $region12
    $region11: #{_lambda_.8} parent=5 // pred_region
      %s179 = ssub.s32 %s10, 1
      // Predicated region
      $region13: #{_lambda_.8} parent=11 // pred_check
        %p180 = pneg %p85
      $region14: #{_lambda_.8} parent=11 // pred_check_branch
        %182 = sbr.rel (%p180) target = $region16
      $region15: #{_lambda_.8} parent=11 // pred_region
        %s183 = smul.u32 16, %s22
        %p184 = scmp.lt.s32.totalorder %s183, 15
        %s185 = scalar_select %p184, %s183, 15
        %p186 = scmp.lt.s32.totalorder %s21, 0
        %s187 = scalar_select %p186, %s21, 0
        %s188 = sadd.s32 %s187, %s185
        %s189 = smul.addr %s188, 4
        %s190 = scalar_lea.vmem %s1, %s189
        %s191 = smul.u32 16, %s22
      $region16: #{_lambda_.8} parent=11 // pred_fallthru
        _
      // Predicated region
      $region17: #{_lambda_.8} parent=11 // pred_check
        %p192 = pneg %p111
      $region18: #{_lambda_.8} parent=11 // pred_check_branch
        %194 = sbr.rel (%p192) target = $region20
      $region19: #{_lambda_.8} parent=11 // pred_region
        %p195 = scmp.lt.s32.totalorder %s21, 0
        %s196 = scalar_select %p195, %s21, 0
        %s197 = scalar_lea.vmem %s2, %s196
      $region20: #{_lambda_.8} parent=11 // pred_fallthru
        _
      // Predicated region
      $region21: #{_lambda_.8} parent=11 // pred_check
        %p198 = pneg %p137
      $region22: #{_lambda_.8} parent=11 // pred_check_branch
        %200 = sbr.rel (%p198) target = $region24
      $region23: #{_lambda_.8} parent=11 // pred_region
        %p201 = scmp.lt.s32.totalorder %s21, 0
        %s202 = scalar_select %p201, %s21, 0
        %s203 = scalar_lea.vmem %s3, %s202
      $region24: #{_lambda_.8} parent=11 // pred_fallthru
        _
    $region12: #{_lambda_.8} parent=5 // pred_fallthru
      _
    %p204 = scmp.lt.s32.totalorder %s10, 2
    // Predicated region
    $region25: #{_lambda_.8} parent=5 // pred_check
      %p205 = pneg %p204
    $region26: #{_lambda_.8} parent=5 // pred_check_branch
      %207 = sbr.rel (%p205) target = $region28
    $region27: #{_lambda_.8} parent=5 // pred_region
      // Predicated region
      $region29: #{_lambda_.8} parent=27 // pred_check
        %p208 = pneg %p51
      $region30: #{_lambda_.8} parent=27 // pred_check_branch
        %210 = sbr.rel (%p208) target = $region32
      $region31: #{_lambda_.8} parent=27 // pred_region
        %p211 = scmp.lt.s32.totalorder %s17, 1
        %s212 = scalar_select %p211, %s17, 1
        %p213 = scmp.lt.s32.totalorder %s19, 0
        %s214 = scalar_select %p213, %s19, 0
        %s215 = smul.addr %s212, 20
        %s216 = sadd.s32 %s214, %s215
        %s217 = smul.addr %s216, 4
        %s218 = scalar_lea.vmem %s0, %s217
      $region32: #{_lambda_.8} parent=27 // pred_fallthru
        _
    $region28: #{_lambda_.8} parent=5 // pred_fallthru
      _
    %p219 = scmp.le.s32.totalorder 1, %s10
    %p220 = scmp.lt.s32.totalorder %s10, 3
    %p221 = pnand %p219, %p220
    %p222 = pneg %p221
    // Predicated region
    $region33: #{_lambda_.8} parent=5 // pred_check
      _
    $region34: #{_lambda_.8} parent=5 // pred_check_branch
      %224 = sbr.rel (%p221) target = $region36
    $region35: #{_lambda_.8} parent=5 // pred_region
      %s225 = ssub.s32 %s10, 1
      %p226 = scmp.lt.s32.totalorder %s20, 1
      %s227 = scalar_select %p226, %s20, 1
      %p228 = scmp.lt.s32.totalorder %s22, 0
      %s229 = scalar_select %p228, %s22, 0
      %s230 = smul.addr %s227, 20
      %s231 = sadd.s32 %s229, %s230
      %s232 = smul.addr %s231, 4
      %s233 = scalar_lea.vmem %s0, %s232
      %p234 = pneg %p57
      %p235 = pneg %p54
      %s236 = smul.u32 16, %s22
      %p237 = scmp.lt.s32.totalorder %s236, 15
      %s238 = scalar_select %p237, %s236, 15
      %p239 = scmp.lt.s32.totalorder %s21, 0
      %s240 = scalar_select %p239, %s21, 0
      %s241 = sadd.s32 %s240, %s238
      %s242 = smul.addr %s241, 4
      %s243 = scalar_lea.vmem %s1, %s242
      %p244 = pneg %p85
      %p245 = pneg %p82
      %p246 = scmp.lt.s32.totalorder %s21, 0
      %s247 = scalar_select %p246, %s21, 0
      %s248 = scalar_lea.vmem %s2, %s247
      %p249 = pneg %p111
      %p250 = pneg %p108
      %p251 = scmp.lt.s32.totalorder %s21, 0
      %s252 = scalar_select %p251, %s21, 0
      %s253 = scalar_lea.vmem %s3, %s252
      %p254 = pneg %p137
      %p255 = pneg %p134
      %p256 = pneg %p165
      %p257 = pneg %p162
      %p258 = scmp.lt.s32.totalorder %s20, 1
      %s259 = scalar_select %p258, %s20, 1
      %p260 = scmp.lt.s32.totalorder %s21, 0
      %s261 = scalar_select %p260, %s21, 0
      %s262 = smul.addr %s259, 8
      %s263 = sadd.s32 %s261, %s262
      %s264 = smul.addr %s263, 4
      %s265 = scalar_lea.vmem %s4, %s264
      %p266 = scmp.lt.s32.totalorder %s20, 1
      %s267 = scalar_select %p266, %s20, 1
      %p268 = scmp.lt.s32.totalorder %s22, 0
      %s269 = scalar_select %p268, %s22, 0
      %s270 = smul.addr %s267, 20
      %s271 = sadd.s32 %s269, %s270
      %s272 = smul.addr %s271, 4
      %s273 = scalar_lea.vmem %s0, %s272
      %s274 = smul.u32 16, %s22
      %p275 = scmp.lt.s32.totalorder %s274, 15
      %s276 = scalar_select %p275, %s274, 15
      %p277 = scmp.lt.s32.totalorder %s21, 0
      %s278 = scalar_select %p277, %s21, 0
      %s279 = sadd.s32 %s278, %s276
      %s280 = smul.addr %s279, 4
      %s281 = scalar_lea.vmem %s1, %s280
      %s282 = smul.u32 16, %s22
      %p283 = scmp.lt.s32.totalorder %s21, 0
      %s284 = scalar_select %p283, %s21, 0
      %s285 = scalar_lea.vmem %s2, %s284
      %p286 = scmp.lt.s32.totalorder %s21, 0
      %s287 = scalar_select %p286, %s21, 0
      %s288 = scalar_lea.vmem %s3, %s287
      %p289 = scmp.lt.s32.totalorder %s20, 1
      %s290 = scalar_select %p289, %s20, 1
      %p291 = scmp.lt.s32.totalorder %s21, 0
      %s292 = scalar_select %p291, %s21, 0
      %s293 = smul.addr %s290, 8
      %s294 = sadd.s32 %s292, %s293
      %s295 = smul.addr %s294, 4
      %s296 = scalar_lea.vmem %s4, %s295
      %p298 = scmp.eq.s32.totalorder %s22, 0
      // Predicated region
      $region37: #{_lambda_.8} parent=35 // pred_check
        %p299 = pneg %p298
      $region38: #{_lambda_.8} parent=35 // pred_check_branch
        %301 = sbr.rel (%p299) target = $region40
      $region39: #{_lambda_.8} parent=35 // pred_region
        %302 = vst [vmem:[#allocation2] sm:$0xff] 0.0
        %303 = vst [vmem:[#allocation2 + $0x8] sm:$0xff] 0.0
        %304 = vst [vmem:[#allocation2 + $0x10] sm:$0xff] 0.0
        %305 = vst [vmem:[#allocation2 + $0x18] sm:$0xff] 0.0
        %306 = vst [vmem:[#allocation2 + $0x20] sm:$0xff] 0.0
        %307 = vst [vmem:[#allocation2 + $0x28] sm:$0xff] 0.0
        %308 = vst [vmem:[#allocation2 + $0x30] sm:$0xff] 0.0
        %309 = vst [vmem:[#allocation2 + $0x38] sm:$0xff] 0.0
      $region40: #{_lambda_.8} parent=35 // pred_fallthru
        _
      %v310 = vld [vmem:[%s273] sm:$0xf]
      %v311 = vld [vmem:[%s273 + $0x8] sm:$0xf]
      %v312 = vld [vmem:[%s273 + $0x10] sm:$0xf]
      %v313 = vld [vmem:[%s273 + $0x18] sm:$0xf]
      %v314 = vld [vmem:[%s273 + $0x20] sm:$0xf]
      %v315 = vld [vmem:[%s273 + $0x28] sm:$0xf]
      %v316 = vld [vmem:[%s273 + $0x30] sm:$0xf]
      %v317 = vld [vmem:[%s273 + $0x38] sm:$0xf]
      %v318 = vld [vmem:[%s281] sm:$0xf]
      %v319 = vld [vmem:[%s281 + $0x4] sm:$0xf]
      %v320 = vld [vmem:[%s281 + $0x8] sm:$0xf]
      %v321 = vld [vmem:[%s281 + $0xc] sm:$0xf]
      %v322 = vld [vmem:[%s281 + $0x10] sm:$0xf]
      %v323 = vld [vmem:[%s281 + $0x14] sm:$0xf]
      %v324 = vld [vmem:[%s281 + $0x18] sm:$0xf]
      %v325 = vld [vmem:[%s281 + $0x1c] sm:$0xf]
      %v326 = vld [vmem:[%s281 + $0x20] sm:$0xf]
      %v327 = vld [vmem:[%s281 + $0x24] sm:$0xf]
      %v328 = vld [vmem:[%s281 + $0x28] sm:$0xf]
      %v329 = vld [vmem:[%s281 + $0x2c] sm:$0xf]
      %v330 = vld [vmem:[%s281 + $0x30] sm:$0xf]
      %v331 = vld [vmem:[%s281 + $0x34] sm:$0xf]
      %v332 = vld [vmem:[%s281 + $0x38] sm:$0xf]
      %v333 = vld [vmem:[%s281 + $0x3c] sm:$0xf]
      %v334 = vld [vmem:[%s273 + $0x4] sm:$0x1]
      %v335 = vld [vmem:[%s273 + $0xc] sm:$0x1]
      %v336 = vld [vmem:[%s273 + $0x14] sm:$0x1]
      %v337 = vld [vmem:[%s273 + $0x1c] sm:$0x1]
      %v338 = vld [vmem:[%s273 + $0x24] sm:$0x1]
      %v339 = vld [vmem:[%s273 + $0x2c] sm:$0x1]
      %v340 = vld [vmem:[%s273 + $0x34] sm:$0x1]
      %v341 = vld [vmem:[%s273 + $0x3c] sm:$0x1]
      %vm342 = vsmask.f32 3328
      %vm343 = vsmask.f32 7440
      %vm344 = vmor %vm342, %vm343
      %v346 = vshrl.u32 %v310, 16
      %v348 = vrot.slane %v346, 4
      %v349 = vshll.u32 %v310, 16
      %v351 = vrot.slane %v349, 5
      %v352 = vor.u32 %v348, %v351
      %v353 = vrot.slane %v352, 4
      %v355 = vshll.u32 %v334, 16
      %v357 = vrot.slane %v355, 5
      %v358 = vsel %vm344, %v353, %v357
      %v360 = vshrl.u32 %v311, 16
      %v362 = vrot.slane %v360, 4
      %v363 = vshll.u32 %v311, 16
      %v365 = vrot.slane %v363, 5
      %v366 = vor.u32 %v362, %v365
      %v367 = vrot.slane %v366, 4
      %v369 = vshll.u32 %v335, 16
      %v371 = vrot.slane %v369, 5
      %v372 = vsel %vm344, %v367, %v371
      %v374 = vshrl.u32 %v312, 16
      %v376 = vrot.slane %v374, 4
      %v377 = vshll.u32 %v312, 16
      %v379 = vrot.slane %v377, 5
      %v380 = vor.u32 %v376, %v379
      %v381 = vrot.slane %v380, 4
      %v383 = vshll.u32 %v336, 16
      %v385 = vrot.slane %v383, 5
      %v386 = vsel %vm344, %v381, %v385
      %v388 = vshrl.u32 %v313, 16
      %v390 = vrot.slane %v388, 4
      %v391 = vshll.u32 %v313, 16
      %v393 = vrot.slane %v391, 5
      %v394 = vor.u32 %v390, %v393
      %v395 = vrot.slane %v394, 4
      %v397 = vshll.u32 %v337, 16
      %v399 = vrot.slane %v397, 5
      %v400 = vsel %vm344, %v395, %v399
      %v402 = vshrl.u32 %v314, 16
      %v404 = vrot.slane %v402, 4
      %v405 = vshll.u32 %v314, 16
      %v407 = vrot.slane %v405, 5
      %v408 = vor.u32 %v404, %v407
      %v409 = vrot.slane %v408, 4
      %v411 = vshll.u32 %v338, 16
      %v413 = vrot.slane %v411, 5
      %v414 = vsel %vm344, %v409, %v413
      %v416 = vshrl.u32 %v315, 16
      %v418 = vrot.slane %v416, 4
      %v419 = vshll.u32 %v315, 16
      %v421 = vrot.slane %v419, 5
      %v422 = vor.u32 %v418, %v421
      %v423 = vrot.slane %v422, 4
      %v425 = vshll.u32 %v339, 16
      %v427 = vrot.slane %v425, 5
      %v428 = vsel %vm344, %v423, %v427
      %v430 = vshrl.u32 %v316, 16
      %v432 = vrot.slane %v430, 4
      %v433 = vshll.u32 %v316, 16
      %v435 = vrot.slane %v433, 5
      %v436 = vor.u32 %v432, %v435
      %v437 = vrot.slane %v436, 4
      %v439 = vshll.u32 %v340, 16
      %v441 = vrot.slane %v439, 5
      %v442 = vsel %vm344, %v437, %v441
      %v444 = vshrl.u32 %v317, 16
      %v446 = vrot.slane %v444, 4
      %v447 = vshll.u32 %v317, 16
      %v449 = vrot.slane %v447, 5
      %v450 = vor.u32 %v446, %v449
      %v451 = vrot.slane %v450, 4
      %v453 = vshll.u32 %v341, 16
      %v455 = vrot.slane %v453, 5
      %v456 = vsel %vm344, %v451, %v455
      %s457 = scalar_lea.vmem %s281, 64
      %v458 = vld [vmem:[%s457] sm:$0xf]
      %v459 = vld [vmem:[%s457 + $0x4] sm:$0xf]
      %v460 = vld [vmem:[%s457 + $0x8] sm:$0xf]
      %v461 = vld [vmem:[%s457 + $0xc] sm:$0xf]
      %v462 = vld [vmem:[%s457 + $0x10] sm:$0xf]
      %v463 = vld [vmem:[%s457 + $0x14] sm:$0xf]
      %v464 = vld [vmem:[%s457 + $0x18] sm:$0xf]
      %v465 = vld [vmem:[%s457 + $0x1c] sm:$0xf]
      %v466 = vld [vmem:[%s457 + $0x20] sm:$0xf]
      %v467 = vld [vmem:[%s457 + $0x24] sm:$0xf]
      %v468 = vld [vmem:[%s457 + $0x28] sm:$0xf]
      %v469 = vld [vmem:[%s457 + $0x2c] sm:$0xf]
      %v470 = vld [vmem:[%s457 + $0x30] sm:$0xf]
      %v471 = vld [vmem:[%s457 + $0x34] sm:$0xf]
      %v472 = vld [vmem:[%s457 + $0x38] sm:$0xf]
      %v473 = vld [vmem:[%s457 + $0x3c] sm:$0xf]
      %v474 = vunpack.c.l.b16 %v358
      %v475 = vunpack.c.l.b16 %v372
      %v476 = vunpack.c.l.b16 %v386
      %v477 = vunpack.c.l.b16 %v400
      %v478 = vunpack.c.l.b16 %v414
      %v479 = vunpack.c.l.b16 %v428
      %v480 = vunpack.c.l.b16 %v442
      %v481 = vunpack.c.l.b16 %v456
      %v482 = vpack.c.b16 %v475, %v474
      %v483 = vpack.c.b16 %v477, %v476
      %v484 = vpack.c.b16 %v479, %v478
      %v485 = vpack.c.b16 %v481, %v480
      %v506 = vunpack.c.l.b16 %v458
      %v507 = vunpack.c.l.b16 %v459
      %v508 = vunpack.c.l.b16 %v460
      %v509 = vunpack.c.l.b16 %v461
      %v510 = vunpack.c.l.b16 %v462
      %v511 = vunpack.c.l.b16 %v463
      %v512 = vunpack.c.l.b16 %v464
      %v513 = vunpack.c.l.b16 %v465
      %v514 = vunpack.c.l.b16 %v466
      %v515 = vunpack.c.l.b16 %v467
      %v516 = vunpack.c.l.b16 %v468
      %v517 = vunpack.c.l.b16 %v469
      %v518 = vunpack.c.l.b16 %v470
      %v519 = vunpack.c.l.b16 %v471
      %v520 = vunpack.c.l.b16 %v472
      %v521 = vunpack.c.l.b16 %v473
      %v522 = vpack.c.b16 %v507, %v506
      %v523 = vpack.c.b16 %v509, %v508
      %v524 = vpack.c.b16 %v511, %v510
      %v525 = vpack.c.b16 %v513, %v512
      %v526 = vpack.c.b16 %v515, %v514
      %v527 = vpack.c.b16 %v517, %v516
      %v528 = vpack.c.b16 %v519, %v518
      %v529 = vpack.c.b16 %v521, %v520
      %538 = vmatprep.subr.bf16.mxu0 0
      %539 = vmatpush1.bf16.msra.mxu0 %v522
      %540 = vmatprep.subr.bf16.mxu0 0
      %541 = vmatpush1.bf16.msra.mxu0 %v523
      %542 = vmatprep.subr.bf16.mxu0 0
      %543 = vmatpush1.bf16.msra.mxu0 %v524
      %544 = vmatprep.subr.bf16.mxu0 0
      %545 = vmatpush1.bf16.msra.mxu0 %v525
      %546 = vmatprep.subr.bf16.mxu0 0
      %547 = vmatpush1.bf16.msra.mxu0 %v526
      %548 = vmatprep.subr.bf16.mxu0 0
      %549 = vmatpush1.bf16.msra.mxu0 %v527
      %550 = vmatprep.subr.bf16.mxu0 0
      %551 = vmatpush1.bf16.msra.mxu0 %v528
      %552 = vmatprep.subr.bf16.mxu0 0
      %553 = vmatpush1.bf16.msra.mxu0 %v529
      %554 = vmatprep.subr.bf16.mxu0 0
      %555 = vmatpush1.bf16.msra.mxu0 0
      %556 = vmatprep.subr.bf16.mxu0 0
      %557 = vmatpush1.bf16.msra.mxu0 0
      %558 = vmatprep.subr.bf16.mxu0 0
      %559 = vmatpush1.bf16.msra.mxu0 0
      %560 = vmatprep.subr.bf16.mxu0 0
      %561 = vmatpush1.bf16.msra.mxu0 0
      %562 = vmatprep.subr.bf16.mxu0 0
      %563 = vmatpush1.bf16.msra.mxu0 0
      %564 = vmatprep.subr.bf16.mxu0 0
      %565 = vmatpush1.bf16.msra.mxu0 0
      %566 = vmatprep.subr.bf16.mxu0 0
      %567 = vmatpush1.bf16.msra.mxu0 0
      %568 = vmatprep.subr.bf16.mxu0 0
      %569 = vmatpush1.bf16.msra.mxu0 0
      %570 = vmatprep.mubr.bf16.mxu0 0
      %571 = vmatmul.mubr.bf16.gmra.mrb[0].mxu0 %v482
      %v572 = vpop.f32.mrb[0].mxu0
      %v573 = vadd.f32 0.0, %v572
      %v574 = vpop.f32.mrb[0].mxu0
      %v575 = vpop.f32.mrb[0].mxu0
      %v576 = vadd.f32 0.0, %v575
      %v577 = vpop.f32.mrb[0].mxu0
      %578 = vmatprep.mubr.bf16.mxu0 0
      %579 = vmatmul.mubr.bf16.gmra.mrb[0].mxu0 %v483
      %v580 = vpop.f32.mrb[0].mxu0
      %v581 = vadd.f32 0.0, %v580
      %v582 = vpop.f32.mrb[0].mxu0
      %v583 = vpop.f32.mrb[0].mxu0
      %v584 = vadd.f32 0.0, %v583
      %v585 = vpop.f32.mrb[0].mxu0
      %586 = vmatprep.mubr.bf16.mxu0 0
      %587 = vmatmul.mubr.bf16.gmra.mrb[0].mxu0 %v484
      %v588 = vpop.f32.mrb[0].mxu0
      %v589 = vadd.f32 0.0, %v588
      %v590 = vpop.f32.mrb[0].mxu0
      %v591 = vpop.f32.mrb[0].mxu0
      %v592 = vadd.f32 0.0, %v591
      %v593 = vpop.f32.mrb[0].mxu0
      %594 = vmatprep.mubr.bf16.mxu0 0
      %595 = vmatmul.mubr.bf16.gmra.mrb[0].mxu0 %v485
      %v596 = vpop.f32.mrb[0].mxu0
      %v597 = vadd.f32 0.0, %v596
      %v598 = vpop.f32.mrb[0].mxu0
      %v599 = vpop.f32.mrb[0].mxu0
      %v600 = vadd.f32 0.0, %v599
      %v601 = vpop.f32.mrb[0].mxu0
      %602 = vdwg.mxu0
      %v611 = vunpack.c.l.b16 %v310
      %v612 = vunpack.c.l.b16 %v311
      %v613 = vunpack.c.l.b16 %v312
      %v614 = vunpack.c.l.b16 %v313
      %v615 = vunpack.c.l.b16 %v314
      %v616 = vunpack.c.l.b16 %v315
      %v617 = vunpack.c.l.b16 %v316
      %v618 = vunpack.c.l.b16 %v317
      %v619 = vpack.c.b16 %v612, %v611
      %v620 = vpack.c.b16 %v614, %v613
      %v621 = vpack.c.b16 %v616, %v615
      %v622 = vpack.c.b16 %v618, %v617
      %v643 = vunpack.c.l.b16 %v318
      %v644 = vunpack.c.l.b16 %v319
      %v645 = vunpack.c.l.b16 %v320
      %v646 = vunpack.c.l.b16 %v321
      %v647 = vunpack.c.l.b16 %v322
      %v648 = vunpack.c.l.b16 %v323
      %v649 = vunpack.c.l.b16 %v324
      %v650 = vunpack.c.l.b16 %v325
      %v651 = vunpack.c.l.b16 %v326
      %v652 = vunpack.c.l.b16 %v327
      %v653 = vunpack.c.l.b16 %v328
      %v654 = vunpack.c.l.b16 %v329
      %v655 = vunpack.c.l.b16 %v330
      %v656 = vunpack.c.l.b16 %v331
      %v657 = vunpack.c.l.b16 %v332
      %v658 = vunpack.c.l.b16 %v333
      %v659 = vpack.c.b16 %v644, %v643
      %v660 = vpack.c.b16 %v646, %v645
      %v661 = vpack.c.b16 %v648, %v647
      %v662 = vpack.c.b16 %v650, %v649
      %v663 = vpack.c.b16 %v652, %v651
      %v664 = vpack.c.b16 %v654, %v653
      %v665 = vpack.c.b16 %v656, %v655
      %v666 = vpack.c.b16 %v658, %v657
      %675 = vmatprep.subr.bf16.mxu0 0
      %676 = vmatpush1.bf16.msra.mxu0 %v659
      %677 = vmatprep.subr.bf16.mxu0 0
      %678 = vmatpush1.bf16.msra.mxu0 %v660
      %679 = vmatprep.subr.bf16.mxu0 0
      %680 = vmatpush1.bf16.msra.mxu0 %v661
      %681 = vmatprep.subr.bf16.mxu0 0
      %682 = vmatpush1.bf16.msra.mxu0 %v662
      %683 = vmatprep.subr.bf16.mxu0 0
      %684 = vmatpush1.bf16.msra.mxu0 %v663
      %685 = vmatprep.subr.bf16.mxu0 0
      %686 = vmatpush1.bf16.msra.mxu0 %v664
      %687 = vmatprep.subr.bf16.mxu0 0
      %688 = vmatpush1.bf16.msra.mxu0 %v665
      %689 = vmatprep.subr.bf16.mxu0 0
      %690 = vmatpush1.bf16.msra.mxu0 %v666
      %691 = vmatprep.subr.bf16.mxu0 0
      %692 = vmatpush1.bf16.msra.mxu0 0
      %693 = vmatprep.subr.bf16.mxu0 0
      %694 = vmatpush1.bf16.msra.mxu0 0
      %695 = vmatprep.subr.bf16.mxu0 0
      %696 = vmatpush1.bf16.msra.mxu0 0
      %697 = vmatprep.subr.bf16.mxu0 0
      %698 = vmatpush1.bf16.msra.mxu0 0
      %699 = vmatprep.subr.bf16.mxu0 0
      %700 = vmatpush1.bf16.msra.mxu0 0
      %701 = vmatprep.subr.bf16.mxu0 0
      %702 = vmatpush1.bf16.msra.mxu0 0
      %703 = vmatprep.subr.bf16.mxu0 0
      %704 = vmatpush1.bf16.msra.mxu0 0
      %705 = vmatprep.subr.bf16.mxu0 0
      %706 = vmatpush1.bf16.msra.mxu0 0
      %707 = vmatprep.mubr.bf16.mxu0 0
      %708 = vmatmul.mubr.bf16.gmra.mrb[0].mxu0 %v619
      %v709 = vpop.f32.mrb[0].mxu0
      %v710 = vadd.f32 %v573, %v709
      %v711 = vpop.f32.mrb[0].mxu0
      %v712 = vpop.f32.mrb[0].mxu0
      %v713 = vadd.f32 %v576, %v712
      %v714 = vpop.f32.mrb[0].mxu0
      %715 = vmatprep.mubr.bf16.mxu0 0
      %716 = vmatmul.mubr.bf16.gmra.mrb[0].mxu0 %v620
      %v717 = vpop.f32.mrb[0].mxu0
      %v718 = vadd.f32 %v581, %v717
      %v719 = vpop.f32.mrb[0].mxu0
      %v720 = vpop.f32.mrb[0].mxu0
      %v721 = vadd.f32 %v584, %v720
      %v722 = vpop.f32.mrb[0].mxu0
      %723 = vmatprep.mubr.bf16.mxu0 0
      %724 = vmatmul.mubr.bf16.gmra.mrb[0].mxu0 %v621
      %v725 = vpop.f32.mrb[0].mxu0
      %v726 = vadd.f32 %v589, %v725
      %v727 = vpop.f32.mrb[0].mxu0
      %v728 = vpop.f32.mrb[0].mxu0
      %v729 = vadd.f32 %v592, %v728
      %v730 = vpop.f32.mrb[0].mxu0
      %731 = vmatprep.mubr.bf16.mxu0 0
      %732 = vmatmul.mubr.bf16.gmra.mrb[0].mxu0 %v622
      %v733 = vpop.f32.mrb[0].mxu0
      %v734 = vadd.f32 %v597, %v733
      %v735 = vpop.f32.mrb[0].mxu0
      %v736 = vpop.f32.mrb[0].mxu0
      %v737 = vadd.f32 %v600, %v736
      %v738 = vpop.f32.mrb[0].mxu0
      %739 = vdwg.mxu0
      %v740 = vld [vmem:[%s273] sm:$0xe]
      %v741 = vld [vmem:[%s273 + $0x8] sm:$0xe]
      %v742 = vld [vmem:[%s273 + $0x10] sm:$0xe]
      %v743 = vld [vmem:[%s273 + $0x18] sm:$0xe]
      %v744 = vld [vmem:[%s273 + $0x20] sm:$0xe]
      %v745 = vld [vmem:[%s273 + $0x28] sm:$0xe]
      %v746 = vld [vmem:[%s273 + $0x30] sm:$0xe]
      %v747 = vld [vmem:[%s273 + $0x38] sm:$0xe]
      %vm764 = vcmask 1042432
      %vm765 = vcmask 1046532
      %vm766 = vmor %vm764, %vm765
      %v767 = vrot.slane %v740, 5
      %v768 = vrot.slane %v767, 4
      %v769 = vrot.slane %v334, 5
      %v770 = vsel %vm766, %v768, %v769
      %v771 = vrot.slane %v741, 5
      %v772 = vrot.slane %v771, 4
      %v773 = vrot.slane %v335, 5
      %v774 = vsel %vm766, %v772, %v773
      %v775 = vrot.slane %v742, 5
      %v776 = vrot.slane %v775, 4
      %v777 = vrot.slane %v336, 5
      %v778 = vsel %vm766, %v776, %v777
      %v779 = vrot.slane %v743, 5
      %v780 = vrot.slane %v779, 4
      %v781 = vrot.slane %v337, 5
      %v782 = vsel %vm766, %v780, %v781
      %v783 = vrot.slane %v744, 5
      %v784 = vrot.slane %v783, 4
      %v785 = vrot.slane %v338, 5
      %v786 = vsel %vm766, %v784, %v785
      %v787 = vrot.slane %v745, 5
      %v788 = vrot.slane %v787, 4
      %v789 = vrot.slane %v339, 5
      %v790 = vsel %vm766, %v788, %v789
      %v791 = vrot.slane %v746, 5
      %v792 = vrot.slane %v791, 4
      %v793 = vrot.slane %v340, 5
      %v794 = vsel %vm766, %v792, %v793
      %v795 = vrot.slane %v747, 5
      %v796 = vrot.slane %v795, 4
      %v797 = vrot.slane %v341, 5
      %v798 = vsel %vm766, %v796, %v797
      %s799 = scalar_lea.vmem %s281, 128
      %v800 = vld [vmem:[%s799] sm:$0xf]
      %v801 = vld [vmem:[%s799 + $0x4] sm:$0xf]
      %v802 = vld [vmem:[%s799 + $0x8] sm:$0xf]
      %v803 = vld [vmem:[%s799 + $0xc] sm:$0xf]
      %v804 = vld [vmem:[%s799 + $0x10] sm:$0xf]
      %v805 = vld [vmem:[%s799 + $0x14] sm:$0xf]
      %v806 = vld [vmem:[%s799 + $0x18] sm:$0xf]
      %v807 = vld [vmem:[%s799 + $0x1c] sm:$0xf]
      %v808 = vld [vmem:[%s799 + $0x20] sm:$0xf]
      %v809 = vld [vmem:[%s799 + $0x24] sm:$0xf]
      %v810 = vld [vmem:[%s799 + $0x28] sm:$0xf]
      %v811 = vld [vmem:[%s799 + $0x2c] sm:$0xf]
      %v812 = vld [vmem:[%s799 + $0x30] sm:$0xf]
      %v813 = vld [vmem:[%s799 + $0x34] sm:$0xf]
      %v814 = vld [vmem:[%s799 + $0x38] sm:$0xf]
      %v815 = vld [vmem:[%s799 + $0x3c] sm:$0xf]
      %v816 = vunpack.c.l.b16 %v770
      %v817 = vunpack.c.l.b16 %v774
      %v818 = vunpack.c.l.b16 %v778
      %v819 = vunpack.c.l.b16 %v782
      %v820 = vunpack.c.l.b16 %v786
      %v821 = vunpack.c.l.b16 %v790
      %v822 = vunpack.c.l.b16 %v794
      %v823 = vunpack.c.l.b16 %v798
      %v824 = vpack.c.b16 %v817, %v816
      %v825 = vpack.c.b16 %v819, %v818
      %v826 = vpack.c.b16 %v821, %v820
      %v827 = vpack.c.b16 %v823, %v822
      %v848 = vunpack.c.l.b16 %v800
      %v849 = vunpack.c.l.b16 %v801
      %v850 = vunpack.c.l.b16 %v802
      %v851 = vunpack.c.l.b16 %v803
      %v852 = vunpack.c.l.b16 %v804
      %v853 = vunpack.c.l.b16 %v805
      %v854 = vunpack.c.l.b16 %v806
      %v855 = vunpack.c.l.b16 %v807
      %v856 = vunpack.c.l.b16 %v808
      %v857 = vunpack.c.l.b16 %v809
      %v858 = vunpack.c.l.b16 %v810
      %v859 = vunpack.c.l.b16 %v811
      %v860 = vunpack.c.l.b16 %v812
      %v861 = vunpack.c.l.b16 %v813
      %v862 = vunpack.c.l.b16 %v814
      %v863 = vunpack.c.l.b16 %v815
      %v864 = vpack.c.b16 %v849, %v848
      %v865 = vpack.c.b16 %v851, %v850
      %v866 = vpack.c.b16 %v853, %v852
      %v867 = vpack.c.b16 %v855, %v854
      %v868 = vpack.c.b16 %v857, %v856
      %v869 = vpack.c.b16 %v859, %v858
      %v870 = vpack.c.b16 %v861, %v860
      %v871 = vpack.c.b16 %v863, %v862
      %880 = vmatprep.subr.bf16.mxu0 0
      %881 = vmatpush1.bf16.msra.mxu0 %v864
      %882 = vmatprep.subr.bf16.mxu0 0
      %883 = vmatpush1.bf16.msra.mxu0 %v865
      %884 = vmatprep.subr.bf16.mxu0 0
      %885 = vmatpush1.bf16.msra.mxu0 %v866
      %886 = vmatprep.subr.bf16.mxu0 0
      %887 = vmatpush1.bf16.msra.mxu0 %v867
      %888 = vmatprep.subr.bf16.mxu0 0
      %889 = vmatpush1.bf16.msra.mxu0 %v868
      %890 = vmatprep.subr.bf16.mxu0 0
      %891 = vmatpush1.bf16.msra.mxu0 %v869
      %892 = vmatprep.subr.bf16.mxu0 0
      %893 = vmatpush1.bf16.msra.mxu0 %v870
      %894 = vmatprep.subr.bf16.mxu0 0
      %895 = vmatpush1.bf16.msra.mxu0 %v871
      %896 = vmatprep.subr.bf16.mxu0 0
      %897 = vmatpush1.bf16.msra.mxu0 0
      %898 = vmatprep.subr.bf16.mxu0 0
      %899 = vmatpush1.bf16.msra.mxu0 0
      %900 = vmatprep.subr.bf16.mxu0 0
      %901 = vmatpush1.bf16.msra.mxu0 0
      %902 = vmatprep.subr.bf16.mxu0 0
      %903 = vmatpush1.bf16.msra.mxu0 0
      %904 = vmatprep.subr.bf16.mxu0 0
      %905 = vmatpush1.bf16.msra.mxu0 0
      %906 = vmatprep.subr.bf16.mxu0 0
      %907 = vmatpush1.bf16.msra.mxu0 0
      %908 = vmatprep.subr.bf16.mxu0 0
      %909 = vmatpush1.bf16.msra.mxu0 0
      %910 = vmatprep.subr.bf16.mxu0 0
      %911 = vmatpush1.bf16.msra.mxu0 0
      %912 = vmatprep.mubr.bf16.mxu0 0
      %913 = vmatmul.mubr.bf16.gmra.mrb[0].mxu0 %v824
      %v914 = vpop.f32.mrb[0].mxu0
      %v915 = vadd.f32 0.0, %v914
      %v916 = vpop.f32.mrb[0].mxu0
      %v917 = vpop.f32.mrb[0].mxu0
      %v918 = vadd.f32 0.0, %v917
      %v919 = vpop.f32.mrb[0].mxu0
      %920 = vmatprep.mubr.bf16.mxu0 0
      %921 = vmatmul.mubr.bf16.gmra.mrb[0].mxu0 %v825
      %v922 = vpop.f32.mrb[0].mxu0
      %v923 = vadd.f32 0.0, %v922
      %v924 = vpop.f32.mrb[0].mxu0
      %v925 = vpop.f32.mrb[0].mxu0
      %v926 = vadd.f32 0.0, %v925
      %v927 = vpop.f32.mrb[0].mxu0
      %928 = vmatprep.mubr.bf16.mxu0 0
      %929 = vmatmul.mubr.bf16.gmra.mrb[0].mxu0 %v826
      %v930 = vpop.f32.mrb[0].mxu0
      %v931 = vadd.f32 0.0, %v930
      %v932 = vpop.f32.mrb[0].mxu0
      %v933 = vpop.f32.mrb[0].mxu0
      %v934 = vadd.f32 0.0, %v933
      %v935 = vpop.f32.mrb[0].mxu0
      %936 = vmatprep.mubr.bf16.mxu0 0
      %937 = vmatmul.mubr.bf16.gmra.mrb[0].mxu0 %v827
      %v938 = vpop.f32.mrb[0].mxu0
      %v939 = vadd.f32 0.0, %v938
      %v940 = vpop.f32.mrb[0].mxu0
      %v941 = vpop.f32.mrb[0].mxu0
      %v942 = vadd.f32 0.0, %v941
      %v943 = vpop.f32.mrb[0].mxu0
      %944 = vdwg.mxu0
      %v945 = vadd.f32 %v710, %v915
      %v946 = vadd.f32 %v713, %v918
      %v947 = vadd.f32 %v718, %v923
      %v948 = vadd.f32 %v721, %v926
      %v949 = vadd.f32 %v726, %v931
      %v950 = vadd.f32 %v729, %v934
      %v951 = vadd.f32 %v734, %v939
      %v952 = vadd.f32 %v737, %v942
      %s953 = scalar_lea.vmem %s273, 8
      %v954 = vld [vmem:[%s953] sm:$0xf]
      %v955 = vld [vmem:[%s953 + $0x8] sm:$0xf]
      %v956 = vld [vmem:[%s953 + $0x10] sm:$0xf]
      %v957 = vld [vmem:[%s953 + $0x18] sm:$0xf]
      %v958 = vld [vmem:[%s953 + $0x20] sm:$0xf]
      %v959 = vld [vmem:[%s953 + $0x28] sm:$0xf]
      %v960 = vld [vmem:[%s953 + $0x30] sm:$0xf]
      %v961 = vld [vmem:[%s953 + $0x38] sm:$0xf]
      %s962 = scalar_lea.vmem %s281, 192
      %v963 = vld [vmem:[%s962] sm:$0xf]
      %v964 = vld [vmem:[%s962 + $0x4] sm:$0xf]
      %v965 = vld [vmem:[%s962 + $0x8] sm:$0xf]
      %v966 = vld [vmem:[%s962 + $0xc] sm:$0xf]
      %v967 = vld [vmem:[%s962 + $0x10] sm:$0xf]
      %v968 = vld [vmem:[%s962 + $0x14] sm:$0xf]
      %v969 = vld [vmem:[%s962 + $0x18] sm:$0xf]
      %v970 = vld [vmem:[%s962 + $0x1c] sm:$0xf]
      %v971 = vld [vmem:[%s962 + $0x20] sm:$0xf]
      %v972 = vld [vmem:[%s962 + $0x24] sm:$0xf]
      %v973 = vld [vmem:[%s962 + $0x28] sm:$0xf]
      %v974 = vld [vmem:[%s962 + $0x2c] sm:$0xf]
      %v975 = vld [vmem:[%s962 + $0x30] sm:$0xf]
      %v976 = vld [vmem:[%s962 + $0x34] sm:$0xf]
      %v977 = vld [vmem:[%s962 + $0x38] sm:$0xf]
      %v978 = vld [vmem:[%s962 + $0x3c] sm:$0xf]
      %v987 = vunpack.c.l.b16 %v954
      %v988 = vunpack.c.l.b16 %v955
      %v989 = vunpack.c.l.b16 %v956
      %v990 = vunpack.c.l.b16 %v957
      %v991 = vunpack.c.l.b16 %v958
      %v992 = vunpack.c.l.b16 %v959
      %v993 = vunpack.c.l.b16 %v960
      %v994 = vunpack.c.l.b16 %v961
      %v995 = vpack.c.b16 %v988, %v987
      %v996 = vpack.c.b16 %v990, %v989
      %v997 = vpack.c.b16 %v992, %v991
      %v998 = vpack.c.b16 %v994, %v993
      %v1019 = vunpack.c.l.b16 %v963
      %v1020 = vunpack.c.l.b16 %v964
      %v1021 = vunpack.c.l.b16 %v965
      %v1022 = vunpack.c.l.b16 %v966
      %v1023 = vunpack.c.l.b16 %v967
      %v1024 = vunpack.c.l.b16 %v968
      %v1025 = vunpack.c.l.b16 %v969
      %v1026 = vunpack.c.l.b16 %v970
      %v1027 = vunpack.c.l.b16 %v971
      %v1028 = vunpack.c.l.b16 %v972
      %v1029 = vunpack.c.l.b16 %v973
      %v1030 = vunpack.c.l.b16 %v974
      %v1031 = vunpack.c.l.b16 %v975
      %v1032 = vunpack.c.l.b16 %v976
      %v1033 = vunpack.c.l.b16 %v977
      %v1034 = vunpack.c.l.b16 %v978
      %v1035 = vpack.c.b16 %v1020, %v1019
      %v1036 = vpack.c.b16 %v1022, %v1021
      %v1037 = vpack.c.b16 %v1024, %v1023
      %v1038 = vpack.c.b16 %v1026, %v1025
      %v1039 = vpack.c.b16 %v1028, %v1027
      %v1040 = vpack.c.b16 %v1030, %v1029
      %v1041 = vpack.c.b16 %v1032, %v1031
      %v1042 = vpack.c.b16 %v1034, %v1033
      %1051 = vmatprep.subr.bf16.mxu0 0
      %1052 = vmatpush1.bf16.msra.mxu0 %v1035
      %1053 = vmatprep.subr.bf16.mxu0 0
      %1054 = vmatpush1.bf16.msra.mxu0 %v1036
      %1055 = vmatprep.subr.bf16.mxu0 0
      %1056 = vmatpush1.bf16.msra.mxu0 %v1037
      %1057 = vmatprep.subr.bf16.mxu0 0
      %1058 = vmatpush1.bf16.msra.mxu0 %v1038
      %1059 = vmatprep.subr.bf16.mxu0 0
      %1060 = vmatpush1.bf16.msra.mxu0 %v1039
      %1061 = vmatprep.subr.bf16.mxu0 0
      %1062 = vmatpush1.bf16.msra.mxu0 %v1040
      %1063 = vmatprep.subr.bf16.mxu0 0
      %1064 = vmatpush1.bf16.msra.mxu0 %v1041
      %1065 = vmatprep.subr.bf16.mxu0 0
      %1066 = vmatpush1.bf16.msra.mxu0 %v1042
      %1067 = vmatprep.subr.bf16.mxu0 0
      %1068 = vmatpush1.bf16.msra.mxu0 0
      %1069 = vmatprep.subr.bf16.mxu0 0
      %1070 = vmatpush1.bf16.msra.mxu0 0
      %1071 = vmatprep.subr.bf16.mxu0 0
      %1072 = vmatpush1.bf16.msra.mxu0 0
      %1073 = vmatprep.subr.bf16.mxu0 0
      %1074 = vmatpush1.bf16.msra.mxu0 0
      %1075 = vmatprep.subr.bf16.mxu0 0
      %1076 = vmatpush1.bf16.msra.mxu0 0
      %1077 = vmatprep.subr.bf16.mxu0 0
      %1078 = vmatpush1.bf16.msra.mxu0 0
      %1079 = vmatprep.subr.bf16.mxu0 0
      %1080 = vmatpush1.bf16.msra.mxu0 0
      %1081 = vmatprep.subr.bf16.mxu0 0
      %1082 = vmatpush1.bf16.msra.mxu0 0
      %1083 = vmatprep.mubr.bf16.mxu0 0
      %1084 = vmatmul.mubr.bf16.gmra.mrb[0].mxu0 %v995
      %v1085 = vpop.f32.mrb[0].mxu0
      %v1086 = vadd.f32 0.0, %v1085
      %v1087 = vpop.f32.mrb[0].mxu0
      %v1088 = vpop.f32.mrb[0].mxu0
      %v1089 = vadd.f32 0.0, %v1088
      %v1090 = vpop.f32.mrb[0].mxu0
      %1091 = vmatprep.mubr.bf16.mxu0 0
      %1092 = vmatmul.mubr.bf16.gmra.mrb[0].mxu0 %v996
      %v1093 = vpop.f32.mrb[0].mxu0
      %v1094 = vadd.f32 0.0, %v1093
      %v1095 = vpop.f32.mrb[0].mxu0
      %v1096 = vpop.f32.mrb[0].mxu0
      %v1097 = vadd.f32 0.0, %v1096
      %v1098 = vpop.f32.mrb[0].mxu0
      %1099 = vmatprep.mubr.bf16.mxu0 0
      %1100 = vmatmul.mubr.bf16.gmra.mrb[0].mxu0 %v997
      %v1101 = vpop.f32.mrb[0].mxu0
      %v1102 = vadd.f32 0.0, %v1101
      %v1103 = vpop.f32.mrb[0].mxu0
      %v1104 = vpop.f32.mrb[0].mxu0
      %v1105 = vadd.f32 0.0, %v1104
      %v1106 = vpop.f32.mrb[0].mxu0
      %1107 = vmatprep.mubr.bf16.mxu0 0
      %1108 = vmatmul.mubr.bf16.gmra.mrb[0].mxu0 %v998
      %v1109 = vpop.f32.mrb[0].mxu0
      %v1110 = vadd.f32 0.0, %v1109
      %v1111 = vpop.f32.mrb[0].mxu0
      %v1112 = vpop.f32.mrb[0].mxu0
      %v1113 = vadd.f32 0.0, %v1112
      %v1114 = vpop.f32.mrb[0].mxu0
      %1115 = vdwg.mxu0
      %v1116 = vadd.f32 %v945, %v1086
      %v1117 = vadd.f32 %v946, %v1089
      %v1118 = vadd.f32 %v947, %v1094
      %v1119 = vadd.f32 %v948, %v1097
      %v1120 = vadd.f32 %v949, %v1102
      %v1121 = vadd.f32 %v950, %v1105
      %v1122 = vadd.f32 %v951, %v1110
      %v1123 = vadd.f32 %v952, %v1113
      %v1124 = vld [vmem:[%s953] sm:$0xf]
      %v1125 = vld [vmem:[%s953 + $0x4] sm:$0x1]
      %v1126 = vld [vmem:[%s953 + $0x8] sm:$0xf]
      %v1127 = vld [vmem:[%s953 + $0xc] sm:$0x1]
      %v1128 = vld [vmem:[%s953 + $0x10] sm:$0xf]
      %v1129 = vld [vmem:[%s953 + $0x14] sm:$0x1]
      %v1130 = vld [vmem:[%s953 + $0x18] sm:$0xf]
      %v1131 = vld [vmem:[%s953 + $0x1c] sm:$0x1]
      %v1132 = vld [vmem:[%s953 + $0x20] sm:$0xf]
      %v1133 = vld [vmem:[%s953 + $0x24] sm:$0x1]
      %v1134 = vld [vmem:[%s953 + $0x28] sm:$0xf]
      %v1135 = vld [vmem:[%s953 + $0x2c] sm:$0x1]
      %v1136 = vld [vmem:[%s953 + $0x30] sm:$0xf]
      %v1137 = vld [vmem:[%s953 + $0x34] sm:$0x1]
      %v1138 = vld [vmem:[%s953 + $0x38] sm:$0xf]
      %v1139 = vld [vmem:[%s953 + $0x3c] sm:$0x1]
      %v1141 = vshrl.u32 %v1124, 16
      %v1143 = vrot.slane %v1141, 4
      %v1144 = vshll.u32 %v1124, 16
      %v1146 = vrot.slane %v1144, 5
      %v1147 = vor.u32 %v1143, %v1146
      %v1148 = vrot.slane %v1147, 4
      %v1150 = vshll.u32 %v1125, 16
      %v1152 = vrot.slane %v1150, 5
      %v1153 = vsel %vm344, %v1148, %v1152
      %v1155 = vshrl.u32 %v1126, 16
      %v1157 = vrot.slane %v1155, 4
      %v1158 = vshll.u32 %v1126, 16
      %v1160 = vrot.slane %v1158, 5
      %v1161 = vor.u32 %v1157, %v1160
      %v1162 = vrot.slane %v1161, 4
      %v1164 = vshll.u32 %v1127, 16
      %v1166 = vrot.slane %v1164, 5
      %v1167 = vsel %vm344, %v1162, %v1166
      %v1169 = vshrl.u32 %v1128, 16
      %v1171 = vrot.slane %v1169, 4
      %v1172 = vshll.u32 %v1128, 16
      %v1174 = vrot.slane %v1172, 5
      %v1175 = vor.u32 %v1171, %v1174
      %v1176 = vrot.slane %v1175, 4
      %v1178 = vshll.u32 %v1129, 16
      %v1180 = vrot.slane %v1178, 5
      %v1181 = vsel %vm344, %v1176, %v1180
      %v1183 = vshrl.u32 %v1130, 16
      %v1185 = vrot.slane %v1183, 4
      %v1186 = vshll.u32 %v1130, 16
      %v1188 = vrot.slane %v1186, 5
      %v1189 = vor.u32 %v1185, %v1188
      %v1190 = vrot.slane %v1189, 4
      %v1192 = vshll.u32 %v1131, 16
      %v1194 = vrot.slane %v1192, 5
      %v1195 = vsel %vm344, %v1190, %v1194
      %v1197 = vshrl.u32 %v1132, 16
      %v1199 = vrot.slane %v1197, 4
      %v1200 = vshll.u32 %v1132, 16
      %v1202 = vrot.slane %v1200, 5
      %v1203 = vor.u32 %v1199, %v1202
      %v1204 = vrot.slane %v1203, 4
      %v1206 = vshll.u32 %v1133, 16
      %v1208 = vrot.slane %v1206, 5
      %v1209 = vsel %vm344, %v1204, %v1208
      %v1211 = vshrl.u32 %v1134, 16
      %v1213 = vrot.slane %v1211, 4
      %v1214 = vshll.u32 %v1134, 16
      %v1216 = vrot.slane %v1214, 5
      %v1217 = vor.u32 %v1213, %v1216
      %v1218 = vrot.slane %v1217, 4
      %v1220 = vshll.u32 %v1135, 16
      %v1222 = vrot.slane %v1220, 5
      %v1223 = vsel %vm344, %v1218, %v1222
      %v1225 = vshrl.u32 %v1136, 16
      %v1227 = vrot.slane %v1225, 4
      %v1228 = vshll.u32 %v1136, 16
      %v1230 = vrot.slane %v1228, 5
      %v1231 = vor.u32 %v1227, %v1230
      %v1232 = vrot.slane %v1231, 4
      %v1234 = vshll.u32 %v1137, 16
      %v1236 = vrot.slane %v1234, 5
      %v1237 = vsel %vm344, %v1232, %v1236
      %v1239 = vshrl.u32 %v1138, 16
      %v1241 = vrot.slane %v1239, 4
      %v1242 = vshll.u32 %v1138, 16
      %v1244 = vrot.slane %v1242, 5
      %v1245 = vor.u32 %v1241, %v1244
      %v1246 = vrot.slane %v1245, 4
      %v1248 = vshll.u32 %v1139, 16
      %v1250 = vrot.slane %v1248, 5
      %v1251 = vsel %vm344, %v1246, %v1250
      %s1252 = scalar_lea.vmem %s281, 256
      %v1253 = vld [vmem:[%s1252] sm:$0xf]
      %v1254 = vld [vmem:[%s1252 + $0x4] sm:$0xf]
      %v1255 = vld [vmem:[%s1252 + $0x8] sm:$0xf]
      %v1256 = vld [vmem:[%s1252 + $0xc] sm:$0xf]
      %v1257 = vld [vmem:[%s1252 + $0x10] sm:$0xf]
      %v1258 = vld [vmem:[%s1252 + $0x14] sm:$0xf]
      %v1259 = vld [vmem:[%s1252 + $0x18] sm:$0xf]
      %v1260 = vld [vmem:[%s1252 + $0x1c] sm:$0xf]
      %v1261 = vld [vmem:[%s1252 + $0x20] sm:$0xf]
      %v1262 = vld [vmem:[%s1252 + $0x24] sm:$0xf]
      %v1263 = vld [vmem:[%s1252 + $0x28] sm:$0xf]
      %v1264 = vld [vmem:[%s1252 + $0x2c] sm:$0xf]
      %v1265 = vld [vmem:[%s1252 + $0x30] sm:$0xf]
      %v1266 = vld [vmem:[%s1252 + $0x34] sm:$0xf]
      %v1267 = vld [vmem:[%s1252 + $0x38] sm:$0xf]
      %v1268 = vld [vmem:[%s1252 + $0x3c] sm:$0xf]
      %v1269 = vunpack.c.l.b16 %v1153
      %v1270 = vunpack.c.l.b16 %v1167
      %v1271 = vunpack.c.l.b16 %v1181
      %v1272 = vunpack.c.l.b16 %v1195
      %v1273 = vunpack.c.l.b16 %v1209
      %v1274 = vunpack.c.l.b16 %v1223
      %v1275 = vunpack.c.l.b16 %v1237
      %v1276 = vunpack.c.l.b16 %v1251
      %v1277 = vpack.c.b16 %v1270, %v1269
      %v1278 = vpack.c.b16 %v1272, %v1271
      %v1279 = vpack.c.b16 %v1274, %v1273
      %v1280 = vpack.c.b16 %v1276, %v1275
      %v1301 = vunpack.c.l.b16 %v1253
      %v1302 = vunpack.c.l.b16 %v1254
      %v1303 = vunpack.c.l.b16 %v1255
      %v1304 = vunpack.c.l.b16 %v1256
      %v1305 = vunpack.c.l.b16 %v1257
      %v1306 = vunpack.c.l.b16 %v1258
      %v1307 = vunpack.c.l.b16 %v1259
      %v1308 = vunpack.c.l.b16 %v1260
      %v1309 = vunpack.c.l.b16 %v1261
      %v1310 = vunpack.c.l.b16 %v1262
      %v1311 = vunpack.c.l.b16 %v1263
      %v1312 = vunpack.c.l.b16 %v1264
      %v1313 = vunpack.c.l.b16 %v1265
      %v1314 = vunpack.c.l.b16 %v1266
      %v1315 = vunpack.c.l.b16 %v1267
      %v1316 = vunpack.c.l.b16 %v1268
      %v1317 = vpack.c.b16 %v1302, %v1301
      %v1318 = vpack.c.b16 %v1304, %v1303
      %v1319 = vpack.c.b16 %v1306, %v1305
      %v1320 = vpack.c.b16 %v1308, %v1307
      %v1321 = vpack.c.b16 %v1310, %v1309
      %v1322 = vpack.c.b16 %v1312, %v1311
      %v1323 = vpack.c.b16 %v1314, %v1313
      %v1324 = vpack.c.b16 %v1316, %v1315
      %1333 = vmatprep.subr.bf16.mxu0 0
      %1334 = vmatpush1.bf16.msra.mxu0 %v1317
      %1335 = vmatprep.subr.bf16.mxu0 0
      %1336 = vmatpush1.bf16.msra.mxu0 %v1318
      %1337 = vmatprep.subr.bf16.mxu0 0
      %1338 = vmatpush1.bf16.msra.mxu0 %v1319
      %1339 = vmatprep.subr.bf16.mxu0 0
      %1340 = vmatpush1.bf16.msra.mxu0 %v1320
      %1341 = vmatprep.subr.bf16.mxu0 0
      %1342 = vmatpush1.bf16.msra.mxu0 %v1321
      %1343 = vmatprep.subr.bf16.mxu0 0
      %1344 = vmatpush1.bf16.msra.mxu0 %v1322
      %1345 = vmatprep.subr.bf16.mxu0 0
      %1346 = vmatpush1.bf16.msra.mxu0 %v1323
      %1347 = vmatprep.subr.bf16.mxu0 0
      %1348 = vmatpush1.bf16.msra.mxu0 %v1324
      %1349 = vmatprep.subr.bf16.mxu0 0
      %1350 = vmatpush1.bf16.msra.mxu0 0
      %1351 = vmatprep.subr.bf16.mxu0 0
      %1352 = vmatpush1.bf16.msra.mxu0 0
      %1353 = vmatprep.subr.bf16.mxu0 0
      %1354 = vmatpush1.bf16.msra.mxu0 0
      %1355 = vmatprep.subr.bf16.mxu0 0
      %1356 = vmatpush1.bf16.msra.mxu0 0
      %1357 = vmatprep.subr.bf16.mxu0 0
      %1358 = vmatpush1.bf16.msra.mxu0 0
      %1359 = vmatprep.subr.bf16.mxu0 0
      %1360 = vmatpush1.bf16.msra.mxu0 0
      %1361 = vmatprep.subr.bf16.mxu0 0
      %1362 = vmatpush1.bf16.msra.mxu0 0
      %1363 = vmatprep.subr.bf16.mxu0 0
      %1364 = vmatpush1.bf16.msra.mxu0 0
      %1365 = vmatprep.mubr.bf16.mxu0 0
      %1366 = vmatmul.mubr.bf16.gmra.mrb[0].mxu0 %v1277
      %v1367 = vpop.f32.mrb[0].mxu0
      %v1368 = vadd.f32 0.0, %v1367
      %v1369 = vpop.f32.mrb[0].mxu0
      %v1370 = vpop.f32.mrb[0].mxu0
      %v1371 = vadd.f32 0.0, %v1370
      %v1372 = vpop.f32.mrb[0].mxu0
      %1373 = vmatprep.mubr.bf16.mxu0 0
      %1374 = vmatmul.mubr.bf16.gmra.mrb[0].mxu0 %v1278
      %v1375 = vpop.f32.mrb[0].mxu0
      %v1376 = vadd.f32 0.0, %v1375
      %v1377 = vpop.f32.mrb[0].mxu0
      %v1378 = vpop.f32.mrb[0].mxu0
      %v1379 = vadd.f32 0.0, %v1378
      %v1380 = vpop.f32.mrb[0].mxu0
      %1381 = vmatprep.mubr.bf16.mxu0 0
      %1382 = vmatmul.mubr.bf16.gmra.mrb[0].mxu0 %v1279
      %v1383 = vpop.f32.mrb[0].mxu0
      %v1384 = vadd.f32 0.0, %v1383
      %v1385 = vpop.f32.mrb[0].mxu0
      %v1386 = vpop.f32.mrb[0].mxu0
      %v1387 = vadd.f32 0.0, %v1386
      %v1388 = vpop.f32.mrb[0].mxu0
      %1389 = vmatprep.mubr.bf16.mxu0 0
      %1390 = vmatmul.mubr.bf16.gmra.mrb[0].mxu0 %v1280
      %v1391 = vpop.f32.mrb[0].mxu0
      %v1392 = vadd.f32 0.0, %v1391
      %v1393 = vpop.f32.mrb[0].mxu0
      %v1394 = vpop.f32.mrb[0].mxu0
      %v1395 = vadd.f32 0.0, %v1394
      %v1396 = vpop.f32.mrb[0].mxu0
      %1397 = vdwg.mxu0
      %v1398 = vadd.f32 %v1116, %v1368
      %v1399 = vadd.f32 %v1117, %v1371
      %v1400 = vadd.f32 %v1118, %v1376
      %v1401 = vadd.f32 %v1119, %v1379
      %v1402 = vadd.f32 %v1120, %v1384
      %v1403 = vadd.f32 %v1121, %v1387
      %v1404 = vadd.f32 %v1122, %v1392
      %v1405 = vadd.f32 %v1123, %v1395
      %v1406 = vld [vmem:[%s953] sm:$0xe]
      %v1407 = vld [vmem:[%s953 + $0x8] sm:$0xe]
      %v1408 = vld [vmem:[%s953 + $0x10] sm:$0xe]
      %v1409 = vld [vmem:[%s953 + $0x18] sm:$0xe]
      %v1410 = vld [vmem:[%s953 + $0x20] sm:$0xe]
      %v1411 = vld [vmem:[%s953 + $0x28] sm:$0xe]
      %v1412 = vld [vmem:[%s953 + $0x30] sm:$0xe]
      %v1413 = vld [vmem:[%s953 + $0x38] sm:$0xe]
      %v1430 = vrot.slane %v1406, 5
      %v1431 = vrot.slane %v1430, 4
      %v1432 = vrot.slane %v1125, 5
      %v1433 = vsel %vm766, %v1431, %v1432
      %v1434 = vrot.slane %v1407, 5
      %v1435 = vrot.slane %v1434, 4
      %v1436 = vrot.slane %v1127, 5
      %v1437 = vsel %vm766, %v1435, %v1436
      %v1438 = vrot.slane %v1408, 5
      %v1439 = vrot.slane %v1438, 4
      %v1440 = vrot.slane %v1129, 5
      %v1441 = vsel %vm766, %v1439, %v1440
      %v1442 = vrot.slane %v1409, 5
      %v1443 = vrot.slane %v1442, 4
      %v1444 = vrot.slane %v1131, 5
      %v1445 = vsel %vm766, %v1443, %v1444
      %v1446 = vrot.slane %v1410, 5
      %v1447 = vrot.slane %v1446, 4
      %v1448 = vrot.slane %v1133, 5
      %v1449 = vsel %vm766, %v1447, %v1448
      %v1450 = vrot.slane %v1411, 5
      %v1451 = vrot.slane %v1450, 4
      %v1452 = vrot.slane %v1135, 5
      %v1453 = vsel %vm766, %v1451, %v1452
      %v1454 = vrot.slane %v1412, 5
      %v1455 = vrot.slane %v1454, 4
      %v1456 = vrot.slane %v1137, 5
      %v1457 = vsel %vm766, %v1455, %v1456
      %v1458 = vrot.slane %v1413, 5
      %v1459 = vrot.slane %v1458, 4
      %v1460 = vrot.slane %v1139, 5
      %v1461 = vsel %vm766, %v1459, %v1460
      %s1462 = scalar_lea.vmem %s281, 320
      %v1463 = vld [vmem:[%s1462] sm:$0xf]
      %v1464 = vld [vmem:[%s1462 + $0x4] sm:$0xf]
      %v1465 = vld [vmem:[%s1462 + $0x8] sm:$0xf]
      %v1466 = vld [vmem:[%s1462 + $0xc] sm:$0xf]
      %v1467 = vld [vmem:[%s1462 + $0x10] sm:$0xf]
      %v1468 = vld [vmem:[%s1462 + $0x14] sm:$0xf]
      %v1469 = vld [vmem:[%s1462 + $0x18] sm:$0xf]
      %v1470 = vld [vmem:[%s1462 + $0x1c] sm:$0xf]
      %v1471 = vld [vmem:[%s1462 + $0x20] sm:$0xf]
      %v1472 = vld [vmem:[%s1462 + $0x24] sm:$0xf]
      %v1473 = vld [vmem:[%s1462 + $0x28] sm:$0xf]
      %v1474 = vld [vmem:[%s1462 + $0x2c] sm:$0xf]
      %v1475 = vld [vmem:[%s1462 + $0x30] sm:$0xf]
      %v1476 = vld [vmem:[%s1462 + $0x34] sm:$0xf]
      %v1477 = vld [vmem:[%s1462 + $0x38] sm:$0xf]
      %v1478 = vld [vmem:[%s1462 + $0x3c] sm:$0xf]
      %v1479 = vunpack.c.l.b16 %v1433
      %v1480 = vunpack.c.l.b16 %v1437
      %v1481 = vunpack.c.l.b16 %v1441
      %v1482 = vunpack.c.l.b16 %v1445
      %v1483 = vunpack.c.l.b16 %v1449
      %v1484 = vunpack.c.l.b16 %v1453
      %v1485 = vunpack.c.l.b16 %v1457
      %v1486 = vunpack.c.l.b16 %v1461
      %v1487 = vpack.c.b16 %v1480, %v1479
      %v1488 = vpack.c.b16 %v1482, %v1481
      %v1489 = vpack.c.b16 %v1484, %v1483
      %v1490 = vpack.c.b16 %v1486, %v1485
      %v1511 = vunpack.c.l.b16 %v1463
      %v1512 = vunpack.c.l.b16 %v1464
      %v1513 = vunpack.c.l.b16 %v1465
      %v1514 = vunpack.c.l.b16 %v1466
      %v1515 = vunpack.c.l.b16 %v1467
      %v1516 = vunpack.c.l.b16 %v1468
      %v1517 = vunpack.c.l.b16 %v1469
      %v1518 = vunpack.c.l.b16 %v1470
      %v1519 = vunpack.c.l.b16 %v1471
      %v1520 = vunpack.c.l.b16 %v1472
      %v1521 = vunpack.c.l.b16 %v1473
      %v1522 = vunpack.c.l.b16 %v1474
      %v1523 = vunpack.c.l.b16 %v1475
      %v1524 = vunpack.c.l.b16 %v1476
      %v1525 = vunpack.c.l.b16 %v1477
      %v1526 = vunpack.c.l.b16 %v1478
      %v1527 = vpack.c.b16 %v1512, %v1511
      %v1528 = vpack.c.b16 %v1514, %v1513
      %v1529 = vpack.c.b16 %v1516, %v1515
      %v1530 = vpack.c.b16 %v1518, %v1517
      %v1531 = vpack.c.b16 %v1520, %v1519
      %v1532 = vpack.c.b16 %v1522, %v1521
      %v1533 = vpack.c.b16 %v1524, %v1523
      %v1534 = vpack.c.b16 %v1526, %v1525
      %1543 = vmatprep.subr.bf16.mxu0 0
      %1544 = vmatpush1.bf16.msra.mxu0 %v1527
      %1545 = vmatprep.subr.bf16.mxu0 0
      %1546 = vmatpush1.bf16.msra.mxu0 %v1528
      %1547 = vmatprep.subr.bf16.mxu0 0
      %1548 = vmatpush1.bf16.msra.mxu0 %v1529
      %1549 = vmatprep.subr.bf16.mxu0 0
      %1550 = vmatpush1.bf16.msra.mxu0 %v1530
      %1551 = vmatprep.subr.bf16.mxu0 0
      %1552 = vmatpush1.bf16.msra.mxu0 %v1531
      %1553 = vmatprep.subr.bf16.mxu0 0
      %1554 = vmatpush1.bf16.msra.mxu0 %v1532
      %1555 = vmatprep.subr.bf16.mxu0 0
      %1556 = vmatpush1.bf16.msra.mxu0 %v1533
      %1557 = vmatprep.subr.bf16.mxu0 0
      %1558 = vmatpush1.bf16.msra.mxu0 %v1534
      %1559 = vmatprep.subr.bf16.mxu0 0
      %1560 = vmatpush1.bf16.msra.mxu0 0
      %1561 = vmatprep.subr.bf16.mxu0 0
      %1562 = vmatpush1.bf16.msra.mxu0 0
      %1563 = vmatprep.subr.bf16.mxu0 0
      %1564 = vmatpush1.bf16.msra.mxu0 0
      %1565 = vmatprep.subr.bf16.mxu0 0
      %1566 = vmatpush1.bf16.msra.mxu0 0
      %1567 = vmatprep.subr.bf16.mxu0 0
      %1568 = vmatpush1.bf16.msra.mxu0 0
      %1569 = vmatprep.subr.bf16.mxu0 0
      %1570 = vmatpush1.bf16.msra.mxu0 0
      %1571 = vmatprep.subr.bf16.mxu0 0
      %1572 = vmatpush1.bf16.msra.mxu0 0
      %1573 = vmatprep.subr.bf16.mxu0 0
      %1574 = vmatpush1.bf16.msra.mxu0 0
      %1575 = vmatprep.mubr.bf16.mxu0 0
      %1576 = vmatmul.mubr.bf16.gmra.mrb[0].mxu0 %v1487
      %v1577 = vpop.f32.mrb[0].mxu0
      %v1578 = vadd.f32 0.0, %v1577
      %v1579 = vpop.f32.mrb[0].mxu0
      %v1580 = vpop.f32.mrb[0].mxu0
      %v1581 = vadd.f32 0.0, %v1580
      %v1582 = vpop.f32.mrb[0].mxu0
      %1583 = vmatprep.mubr.bf16.mxu0 0
      %1584 = vmatmul.mubr.bf16.gmra.mrb[0].mxu0 %v1488
      %v1585 = vpop.f32.mrb[0].mxu0
      %v1586 = vadd.f32 0.0, %v1585
      %v1587 = vpop.f32.mrb[0].mxu0
      %v1588 = vpop.f32.mrb[0].mxu0
      %v1589 = vadd.f32 0.0, %v1588
      %v1590 = vpop.f32.mrb[0].mxu0
      %1591 = vmatprep.mubr.bf16.mxu0 0
      %1592 = vmatmul.mubr.bf16.gmra.mrb[0].mxu0 %v1489
      %v1593 = vpop.f32.mrb[0].mxu0
      %v1594 = vadd.f32 0.0, %v1593
      %v1595 = vpop.f32.mrb[0].mxu0
      %v1596 = vpop.f32.mrb[0].mxu0
      %v1597 = vadd.f32 0.0, %v1596
      %v1598 = vpop.f32.mrb[0].mxu0
      %1599 = vmatprep.mubr.bf16.mxu0 0
      %1600 = vmatmul.mubr.bf16.gmra.mrb[0].mxu0 %v1490
      %v1601 = vpop.f32.mrb[0].mxu0
      %v1602 = vadd.f32 0.0, %v1601
      %v1603 = vpop.f32.mrb[0].mxu0
      %v1604 = vpop.f32.mrb[0].mxu0
      %v1605 = vadd.f32 0.0, %v1604
      %v1606 = vpop.f32.mrb[0].mxu0
      %1607 = vdwg.mxu0
      %v1608 = vadd.f32 %v1398, %v1578
      %v1609 = vadd.f32 %v1399, %v1581
      %v1610 = vadd.f32 %v1400, %v1586
      %v1611 = vadd.f32 %v1401, %v1589
      %v1612 = vadd.f32 %v1402, %v1594
      %v1613 = vadd.f32 %v1403, %v1597
      %v1614 = vadd.f32 %v1404, %v1602
      %v1615 = vadd.f32 %v1405, %v1605
      %s1616 = scalar_lea.vmem %s273, 16
      %v1617 = vld [vmem:[%s1616] sm:$0xf]
      %v1618 = vld [vmem:[%s1616 + $0x8] sm:$0xf]
      %v1619 = vld [vmem:[%s1616 + $0x10] sm:$0xf]
      %v1620 = vld [vmem:[%s1616 + $0x18] sm:$0xf]
      %v1621 = vld [vmem:[%s1616 + $0x20] sm:$0xf]
      %v1622 = vld [vmem:[%s1616 + $0x28] sm:$0xf]
      %v1623 = vld [vmem:[%s1616 + $0x30] sm:$0xf]
      %v1624 = vld [vmem:[%s1616 + $0x38] sm:$0xf]
      %s1625 = scalar_lea.vmem %s281, 384
      %v1626 = vld [vmem:[%s1625] sm:$0xf]
      %v1627 = vld [vmem:[%s1625 + $0x4] sm:$0xf]
      %v1628 = vld [vmem:[%s1625 + $0x8] sm:$0xf]
      %v1629 = vld [vmem:[%s1625 + $0xc] sm:$0xf]
      %v1630 = vld [vmem:[%s1625 + $0x10] sm:$0xf]
      %v1631 = vld [vmem:[%s1625 + $0x14] sm:$0xf]
      %v1632 = vld [vmem:[%s1625 + $0x18] sm:$0xf]
      %v1633 = vld [vmem:[%s1625 + $0x1c] sm:$0xf]
      %v1634 = vld [vmem:[%s1625 + $0x20] sm:$0xf]
      %v1635 = vld [vmem:[%s1625 + $0x24] sm:$0xf]
      %v1636 = vld [vmem:[%s1625 + $0x28] sm:$0xf]
      %v1637 = vld [vmem:[%s1625 + $0x2c] sm:$0xf]
      %v1638 = vld [vmem:[%s1625 + $0x30] sm:$0xf]
      %v1639 = vld [vmem:[%s1625 + $0x34] sm:$0xf]
      %v1640 = vld [vmem:[%s1625 + $0x38] sm:$0xf]
      %v1641 = vld [vmem:[%s1625 + $0x3c] sm:$0xf]
      %v1650 = vunpack.c.l.b16 %v1617
      %v1651 = vunpack.c.l.b16 %v1618
      %v1652 = vunpack.c.l.b16 %v1619
      %v1653 = vunpack.c.l.b16 %v1620
      %v1654 = vunpack.c.l.b16 %v1621
      %v1655 = vunpack.c.l.b16 %v1622
      %v1656 = vunpack.c.l.b16 %v1623
      %v1657 = vunpack.c.l.b16 %v1624
      %v1658 = vpack.c.b16 %v1651, %v1650
      %v1659 = vpack.c.b16 %v1653, %v1652
      %v1660 = vpack.c.b16 %v1655, %v1654
      %v1661 = vpack.c.b16 %v1657, %v1656
      %v1682 = vunpack.c.l.b16 %v1626
      %v1683 = vunpack.c.l.b16 %v1627
      %v1684 = vunpack.c.l.b16 %v1628
      %v1685 = vunpack.c.l.b16 %v1629
      %v1686 = vunpack.c.l.b16 %v1630
      %v1687 = vunpack.c.l.b16 %v1631
      %v1688 = vunpack.c.l.b16 %v1632
      %v1689 = vunpack.c.l.b16 %v1633
      %v1690 = vunpack.c.l.b16 %v1634
      %v1691 = vunpack.c.l.b16 %v1635
      %v1692 = vunpack.c.l.b16 %v1636
      %v1693 = vunpack.c.l.b16 %v1637
      %v1694 = vunpack.c.l.b16 %v1638
      %v1695 = vunpack.c.l.b16 %v1639
      %v1696 = vunpack.c.l.b16 %v1640
      %v1697 = vunpack.c.l.b16 %v1641
      %v1698 = vpack.c.b16 %v1683, %v1682
      %v1699 = vpack.c.b16 %v1685, %v1684
      %v1700 = vpack.c.b16 %v1687, %v1686
      %v1701 = vpack.c.b16 %v1689, %v1688
      %v1702 = vpack.c.b16 %v1691, %v1690
      %v1703 = vpack.c.b16 %v1693, %v1692
      %v1704 = vpack.c.b16 %v1695, %v1694
      %v1705 = vpack.c.b16 %v1697, %v1696
      %1714 = vmatprep.subr.bf16.mxu0 0
      %1715 = vmatpush1.bf16.msra.mxu0 %v1698
      %1716 = vmatprep.subr.bf16.mxu0 0
      %1717 = vmatpush1.bf16.msra.mxu0 %v1699
      %1718 = vmatprep.subr.bf16.mxu0 0
      %1719 = vmatpush1.bf16.msra.mxu0 %v1700
      %1720 = vmatprep.subr.bf16.mxu0 0
      %1721 = vmatpush1.bf16.msra.mxu0 %v1701
      %1722 = vmatprep.subr.bf16.mxu0 0
      %1723 = vmatpush1.bf16.msra.mxu0 %v1702
      %1724 = vmatprep.subr.bf16.mxu0 0
      %1725 = vmatpush1.bf16.msra.mxu0 %v1703
      %1726 = vmatprep.subr.bf16.mxu0 0
      %1727 = vmatpush1.bf16.msra.mxu0 %v1704
      %1728 = vmatprep.subr.bf16.mxu0 0
      %1729 = vmatpush1.bf16.msra.mxu0 %v1705
      %1730 = vmatprep.subr.bf16.mxu0 0
      %1731 = vmatpush1.bf16.msra.mxu0 0
      %1732 = vmatprep.subr.bf16.mxu0 0
      %1733 = vmatpush1.bf16.msra.mxu0 0
      %1734 = vmatprep.subr.bf16.mxu0 0
      %1735 = vmatpush1.bf16.msra.mxu0 0
      %1736 = vmatprep.subr.bf16.mxu0 0
      %1737 = vmatpush1.bf16.msra.mxu0 0
      %1738 = vmatprep.subr.bf16.mxu0 0
      %1739 = vmatpush1.bf16.msra.mxu0 0
      %1740 = vmatprep.subr.bf16.mxu0 0
      %1741 = vmatpush1.bf16.msra.mxu0 0
      %1742 = vmatprep.subr.bf16.mxu0 0
      %1743 = vmatpush1.bf16.msra.mxu0 0
      %1744 = vmatprep.subr.bf16.mxu0 0
      %1745 = vmatpush1.bf16.msra.mxu0 0
      %1746 = vmatprep.mubr.bf16.mxu0 0
      %1747 = vmatmul.mubr.bf16.gmra.mrb[0].mxu0 %v1658
      %v1748 = vpop.f32.mrb[0].mxu0
      %v1749 = vadd.f32 0.0, %v1748
      %v1750 = vpop.f32.mrb[0].mxu0
      %v1751 = vpop.f32.mrb[0].mxu0
      %v1752 = vadd.f32 0.0, %v1751
      %v1753 = vpop.f32.mrb[0].mxu0
      %1754 = vmatprep.mubr.bf16.mxu0 0
      %1755 = vmatmul.mubr.bf16.gmra.mrb[0].mxu0 %v1659
      %v1756 = vpop.f32.mrb[0].mxu0
      %v1757 = vadd.f32 0.0, %v1756
      %v1758 = vpop.f32.mrb[0].mxu0
      %v1759 = vpop.f32.mrb[0].mxu0
      %v1760 = vadd.f32 0.0, %v1759
      %v1761 = vpop.f32.mrb[0].mxu0
      %1762 = vmatprep.mubr.bf16.mxu0 0
      %1763 = vmatmul.mubr.bf16.gmra.mrb[0].mxu0 %v1660
      %v1764 = vpop.f32.mrb[0].mxu0
      %v1765 = vadd.f32 0.0, %v1764
      %v1766 = vpop.f32.mrb[0].mxu0
      %v1767 = vpop.f32.mrb[0].mxu0
      %v1768 = vadd.f32 0.0, %v1767
      %v1769 = vpop.f32.mrb[0].mxu0
      %1770 = vmatprep.mubr.bf16.mxu0 0
      %1771 = vmatmul.mubr.bf16.gmra.mrb[0].mxu0 %v1661
      %v1772 = vpop.f32.mrb[0].mxu0
      %v1773 = vadd.f32 0.0, %v1772
      %v1774 = vpop.f32.mrb[0].mxu0
      %v1775 = vpop.f32.mrb[0].mxu0
      %v1776 = vadd.f32 0.0, %v1775
      %v1777 = vpop.f32.mrb[0].mxu0
      %1778 = vdwg.mxu0
      %v1779 = vadd.f32 %v1608, %v1749
      %v1780 = vadd.f32 %v1609, %v1752
      %v1781 = vadd.f32 %v1610, %v1757
      %v1782 = vadd.f32 %v1611, %v1760
      %v1783 = vadd.f32 %v1612, %v1765
      %v1784 = vadd.f32 %v1613, %v1768
      %v1785 = vadd.f32 %v1614, %v1773
      %v1786 = vadd.f32 %v1615, %v1776
      %v1787 = vld [vmem:[%s1616] sm:$0xf]
      %v1788 = vld [vmem:[%s1616 + $0x4] sm:$0x1]
      %v1789 = vld [vmem:[%s1616 + $0x8] sm:$0xf]
      %v1790 = vld [vmem:[%s1616 + $0xc] sm:$0x1]
      %v1791 = vld [vmem:[%s1616 + $0x10] sm:$0xf]
      %v1792 = vld [vmem:[%s1616 + $0x14] sm:$0x1]
      %v1793 = vld [vmem:[%s1616 + $0x18] sm:$0xf]
      %v1794 = vld [vmem:[%s1616 + $0x1c] sm:$0x1]
      %v1795 = vld [vmem:[%s1616 + $0x20] sm:$0xf]
      %v1796 = vld [vmem:[%s1616 + $0x24] sm:$0x1]
      %v1797 = vld [vmem:[%s1616 + $0x28] sm:$0xf]
      %v1798 = vld [vmem:[%s1616 + $0x2c] sm:$0x1]
      %v1799 = vld [vmem:[%s1616 + $0x30] sm:$0xf]
      %v1800 = vld [vmem:[%s1616 + $0x34] sm:$0x1]
      %v1801 = vld [vmem:[%s1616 + $0x38] sm:$0xf]
      %v1802 = vld [vmem:[%s1616 + $0x3c] sm:$0x1]
      %v1804 = vshrl.u32 %v1787, 16
      %v1806 = vrot.slane %v1804, 4
      %v1807 = vshll.u32 %v1787, 16
      %v1809 = vrot.slane %v1807, 5
      %v1810 = vor.u32 %v1806, %v1809
      %v1811 = vrot.slane %v1810, 4
      %v1813 = vshll.u32 %v1788, 16
      %v1815 = vrot.slane %v1813, 5
      %v1816 = vsel %vm344, %v1811, %v1815
      %v1818 = vshrl.u32 %v1789, 16
      %v1820 = vrot.slane %v1818, 4
      %v1821 = vshll.u32 %v1789, 16
      %v1823 = vrot.slane %v1821, 5
      %v1824 = vor.u32 %v1820, %v1823
      %v1825 = vrot.slane %v1824, 4
      %v1827 = vshll.u32 %v1790, 16
      %v1829 = vrot.slane %v1827, 5
      %v1830 = vsel %vm344, %v1825, %v1829
      %v1832 = vshrl.u32 %v1791, 16
      %v1834 = vrot.slane %v1832, 4
      %v1835 = vshll.u32 %v1791, 16
      %v1837 = vrot.slane %v1835, 5
      %v1838 = vor.u32 %v1834, %v1837
      %v1839 = vrot.slane %v1838, 4
      %v1841 = vshll.u32 %v1792, 16
      %v1843 = vrot.slane %v1841, 5
      %v1844 = vsel %vm344, %v1839, %v1843
      %v1846 = vshrl.u32 %v1793, 16
      %v1848 = vrot.slane %v1846, 4
      %v1849 = vshll.u32 %v1793, 16
      %v1851 = vrot.slane %v1849, 5
      %v1852 = vor.u32 %v1848, %v1851
      %v1853 = vrot.slane %v1852, 4
      %v1855 = vshll.u32 %v1794, 16
      %v1857 = vrot.slane %v1855, 5
      %v1858 = vsel %vm344, %v1853, %v1857
      %v1860 = vshrl.u32 %v1795, 16
      %v1862 = vrot.slane %v1860, 4
      %v1863 = vshll.u32 %v1795, 16
      %v1865 = vrot.slane %v1863, 5
      %v1866 = vor.u32 %v1862, %v1865
      %v1867 = vrot.slane %v1866, 4
      %v1869 = vshll.u32 %v1796, 16
      %v1871 = vrot.slane %v1869, 5
      %v1872 = vsel %vm344, %v1867, %v1871
      %v1874 = vshrl.u32 %v1797, 16
      %v1876 = vrot.slane %v1874, 4
      %v1877 = vshll.u32 %v1797, 16
      %v1879 = vrot.slane %v1877, 5
      %v1880 = vor.u32 %v1876, %v1879
      %v1881 = vrot.slane %v1880, 4
      %v1883 = vshll.u32 %v1798, 16
      %v1885 = vrot.slane %v1883, 5
      %v1886 = vsel %vm344, %v1881, %v1885
      %v1888 = vshrl.u32 %v1799, 16
      %v1890 = vrot.slane %v1888, 4
      %v1891 = vshll.u32 %v1799, 16
      %v1893 = vrot.slane %v1891, 5
      %v1894 = vor.u32 %v1890, %v1893
      %v1895 = vrot.slane %v1894, 4
      %v1897 = vshll.u32 %v1800, 16
      %v1899 = vrot.slane %v1897, 5
      %v1900 = vsel %vm344, %v1895, %v1899
      %v1902 = vshrl.u32 %v1801, 16
      %v1904 = vrot.slane %v1902, 4
      %v1905 = vshll.u32 %v1801, 16
      %v1907 = vrot.slane %v1905, 5
      %v1908 = vor.u32 %v1904, %v1907
      %v1909 = vrot.slane %v1908, 4
      %v1911 = vshll.u32 %v1802, 16
      %v1913 = vrot.slane %v1911, 5
      %v1914 = vsel %vm344, %v1909, %v1913
      %s1915 = scalar_lea.vmem %s281, 448
      %v1916 = vld [vmem:[%s1915] sm:$0xf]
      %v1917 = vld [vmem:[%s1915 + $0x4] sm:$0xf]
      %v1918 = vld [vmem:[%s1915 + $0x8] sm:$0xf]
      %v1919 = vld [vmem:[%s1915 + $0xc] sm:$0xf]
      %v1920 = vld [vmem:[%s1915 + $0x10] sm:$0xf]
      %v1921 = vld [vmem:[%s1915 + $0x14] sm:$0xf]
      %v1922 = vld [vmem:[%s1915 + $0x18] sm:$0xf]
      %v1923 = vld [vmem:[%s1915 + $0x1c] sm:$0xf]
      %v1924 = vld [vmem:[%s1915 + $0x20] sm:$0xf]
      %v1925 = vld [vmem:[%s1915 + $0x24] sm:$0xf]
      %v1926 = vld [vmem:[%s1915 + $0x28] sm:$0xf]
      %v1927 = vld [vmem:[%s1915 + $0x2c] sm:$0xf]
      %v1928 = vld [vmem:[%s1915 + $0x30] sm:$0xf]
      %v1929 = vld [vmem:[%s1915 + $0x34] sm:$0xf]
      %v1930 = vld [vmem:[%s1915 + $0x38] sm:$0xf]
      %v1931 = vld [vmem:[%s1915 + $0x3c] sm:$0xf]
      %v1932 = vunpack.c.l.b16 %v1816
      %v1933 = vunpack.c.l.b16 %v1830
      %v1934 = vunpack.c.l.b16 %v1844
      %v1935 = vunpack.c.l.b16 %v1858
      %v1936 = vunpack.c.l.b16 %v1872
      %v1937 = vunpack.c.l.b16 %v1886
      %v1938 = vunpack.c.l.b16 %v1900
      %v1939 = vunpack.c.l.b16 %v1914
      %v1940 = vpack.c.b16 %v1933, %v1932
      %v1941 = vpack.c.b16 %v1935, %v1934
      %v1942 = vpack.c.b16 %v1937, %v1936
      %v1943 = vpack.c.b16 %v1939, %v1938
      %v1964 = vunpack.c.l.b16 %v1916
      %v1965 = vunpack.c.l.b16 %v1917
      %v1966 = vunpack.c.l.b16 %v1918
      %v1967 = vunpack.c.l.b16 %v1919
      %v1968 = vunpack.c.l.b16 %v1920
      %v1969 = vunpack.c.l.b16 %v1921
      %v1970 = vunpack.c.l.b16 %v1922
      %v1971 = vunpack.c.l.b16 %v1923
      %v1972 = vunpack.c.l.b16 %v1924
      %v1973 = vunpack.c.l.b16 %v1925
      %v1974 = vunpack.c.l.b16 %v1926
      %v1975 = vunpack.c.l.b16 %v1927
      %v1976 = vunpack.c.l.b16 %v1928
      %v1977 = vunpack.c.l.b16 %v1929
      %v1978 = vunpack.c.l.b16 %v1930
      %v1979 = vunpack.c.l.b16 %v1931
      %v1980 = vpack.c.b16 %v1965, %v1964
      %v1981 = vpack.c.b16 %v1967, %v1966
      %v1982 = vpack.c.b16 %v1969, %v1968
      %v1983 = vpack.c.b16 %v1971, %v1970
      %v1984 = vpack.c.b16 %v1973, %v1972
      %v1985 = vpack.c.b16 %v1975, %v1974
      %v1986 = vpack.c.b16 %v1977, %v1976
      %v1987 = vpack.c.b16 %v1979, %v1978
      %1996 = vmatprep.subr.bf16.mxu0 0
      %1997 = vmatpush1.bf16.msra.mxu0 %v1980
      %1998 = vmatprep.subr.bf16.mxu0 0
      %1999 = vmatpush1.bf16.msra.mxu0 %v1981
      %2000 = vmatprep.subr.bf16.mxu0 0
      %2001 = vmatpush1.bf16.msra.mxu0 %v1982
      %2002 = vmatprep.subr.bf16.mxu0 0
      %2003 = vmatpush1.bf16.msra.mxu0 %v1983
      %2004 = vmatprep.subr.bf16.mxu0 0
      %2005 = vmatpush1.bf16.msra.mxu0 %v1984
      %2006 = vmatprep.subr.bf16.mxu0 0
      %2007 = vmatpush1.bf16.msra.mxu0 %v1985
      %2008 = vmatprep.subr.bf16.mxu0 0
      %2009 = vmatpush1.bf16.msra.mxu0 %v1986
      %2010 = vmatprep.subr.bf16.mxu0 0
      %2011 = vmatpush1.bf16.msra.mxu0 %v1987
      %2012 = vmatprep.subr.bf16.mxu0 0
      %2013 = vmatpush1.bf16.msra.mxu0 0
      %2014 = vmatprep.subr.bf16.mxu0 0
      %2015 = vmatpush1.bf16.msra.mxu0 0
      %2016 = vmatprep.subr.bf16.mxu0 0
      %2017 = vmatpush1.bf16.msra.mxu0 0
      %2018 = vmatprep.subr.bf16.mxu0 0
      %2019 = vmatpush1.bf16.msra.mxu0 0
      %2020 = vmatprep.subr.bf16.mxu0 0
      %2021 = vmatpush1.bf16.msra.mxu0 0
      %2022 = vmatprep.subr.bf16.mxu0 0
      %2023 = vmatpush1.bf16.msra.mxu0 0
      %2024 = vmatprep.subr.bf16.mxu0 0
      %2025 = vmatpush1.bf16.msra.mxu0 0
      %2026 = vmatprep.subr.bf16.mxu0 0
      %2027 = vmatpush1.bf16.msra.mxu0 0
      %2028 = vmatprep.mubr.bf16.mxu0 0
      %2029 = vmatmul.mubr.bf16.gmra.mrb[0].mxu0 %v1940
      %v2030 = vpop.f32.mrb[0].mxu0
      %v2031 = vadd.f32 0.0, %v2030
      %v2032 = vpop.f32.mrb[0].mxu0
      %v2033 = vpop.f32.mrb[0].mxu0
      %v2034 = vadd.f32 0.0, %v2033
      %v2035 = vpop.f32.mrb[0].mxu0
      %2036 = vmatprep.mubr.bf16.mxu0 0
      %2037 = vmatmul.mubr.bf16.gmra.mrb[0].mxu0 %v1941
      %v2038 = vpop.f32.mrb[0].mxu0
      %v2039 = vadd.f32 0.0, %v2038
      %v2040 = vpop.f32.mrb[0].mxu0
      %v2041 = vpop.f32.mrb[0].mxu0
      %v2042 = vadd.f32 0.0, %v2041
      %v2043 = vpop.f32.mrb[0].mxu0
      %2044 = vmatprep.mubr.bf16.mxu0 0
      %2045 = vmatmul.mubr.bf16.gmra.mrb[0].mxu0 %v1942
      %v2046 = vpop.f32.mrb[0].mxu0
      %v2047 = vadd.f32 0.0, %v2046
      %v2048 = vpop.f32.mrb[0].mxu0
      %v2049 = vpop.f32.mrb[0].mxu0
      %v2050 = vadd.f32 0.0, %v2049
      %v2051 = vpop.f32.mrb[0].mxu0
      %2052 = vmatprep.mubr.bf16.mxu0 0
      %2053 = vmatmul.mubr.bf16.gmra.mrb[0].mxu0 %v1943
      %v2054 = vpop.f32.mrb[0].mxu0
      %v2055 = vadd.f32 0.0, %v2054
      %v2056 = vpop.f32.mrb[0].mxu0
      %v2057 = vpop.f32.mrb[0].mxu0
      %v2058 = vadd.f32 0.0, %v2057
      %v2059 = vpop.f32.mrb[0].mxu0
      %2060 = vdwg.mxu0
      %v2061 = vadd.f32 %v1779, %v2031
      %v2062 = vadd.f32 %v1780, %v2034
      %v2063 = vadd.f32 %v1781, %v2039
      %v2064 = vadd.f32 %v1782, %v2042
      %v2065 = vadd.f32 %v1783, %v2047
      %v2066 = vadd.f32 %v1784, %v2050
      %v2067 = vadd.f32 %v1785, %v2055
      %v2068 = vadd.f32 %v1786, %v2058
      %v2069 = vld [vmem:[%s1616] sm:$0xe]
      %v2070 = vld [vmem:[%s1616 + $0x8] sm:$0xe]
      %v2071 = vld [vmem:[%s1616 + $0x10] sm:$0xe]
      %v2072 = vld [vmem:[%s1616 + $0x18] sm:$0xe]
      %v2073 = vld [vmem:[%s1616 + $0x20] sm:$0xe]
      %v2074 = vld [vmem:[%s1616 + $0x28] sm:$0xe]
      %v2075 = vld [vmem:[%s1616 + $0x30] sm:$0xe]
      %v2076 = vld [vmem:[%s1616 + $0x38] sm:$0xe]
      %v2093 = vrot.slane %v2069, 5
      %v2094 = vrot.slane %v2093, 4
      %v2095 = vrot.slane %v1788, 5
      %v2096 = vsel %vm766, %v2094, %v2095
      %v2097 = vrot.slane %v2070, 5
      %v2098 = vrot.slane %v2097, 4
      %v2099 = vrot.slane %v1790, 5
      %v2100 = vsel %vm766, %v2098, %v2099
      %v2101 = vrot.slane %v2071, 5
      %v2102 = vrot.slane %v2101, 4
      %v2103 = vrot.slane %v1792, 5
      %v2104 = vsel %vm766, %v2102, %v2103
      %v2105 = vrot.slane %v2072, 5
      %v2106 = vrot.slane %v2105, 4
      %v2107 = vrot.slane %v1794, 5
      %v2108 = vsel %vm766, %v2106, %v2107
      %v2109 = vrot.slane %v2073, 5
      %v2110 = vrot.slane %v2109, 4
      %v2111 = vrot.slane %v1796, 5
      %v2112 = vsel %vm766, %v2110, %v2111
      %v2113 = vrot.slane %v2074, 5
      %v2114 = vrot.slane %v2113, 4
      %v2115 = vrot.slane %v1798, 5
      %v2116 = vsel %vm766, %v2114, %v2115
      %v2117 = vrot.slane %v2075, 5
      %v2118 = vrot.slane %v2117, 4
      %v2119 = vrot.slane %v1800, 5
      %v2120 = vsel %vm766, %v2118, %v2119
      %v2121 = vrot.slane %v2076, 5
      %v2122 = vrot.slane %v2121, 4
      %v2123 = vrot.slane %v1802, 5
      %v2124 = vsel %vm766, %v2122, %v2123
      %s2125 = scalar_lea.vmem %s281, 512
      %v2126 = vld [vmem:[%s2125] sm:$0xf]
      %v2127 = vld [vmem:[%s2125 + $0x4] sm:$0xf]
      %v2128 = vld [vmem:[%s2125 + $0x8] sm:$0xf]
      %v2129 = vld [vmem:[%s2125 + $0xc] sm:$0xf]
      %v2130 = vld [vmem:[%s2125 + $0x10] sm:$0xf]
      %v2131 = vld [vmem:[%s2125 + $0x14] sm:$0xf]
      %v2132 = vld [vmem:[%s2125 + $0x18] sm:$0xf]
      %v2133 = vld [vmem:[%s2125 + $0x1c] sm:$0xf]
      %v2134 = vld [vmem:[%s2125 + $0x20] sm:$0xf]
      %v2135 = vld [vmem:[%s2125 + $0x24] sm:$0xf]
      %v2136 = vld [vmem:[%s2125 + $0x28] sm:$0xf]
      %v2137 = vld [vmem:[%s2125 + $0x2c] sm:$0xf]
      %v2138 = vld [vmem:[%s2125 + $0x30] sm:$0xf]
      %v2139 = vld [vmem:[%s2125 + $0x34] sm:$0xf]
      %v2140 = vld [vmem:[%s2125 + $0x38] sm:$0xf]
      %v2141 = vld [vmem:[%s2125 + $0x3c] sm:$0xf]
      %v2142 = vunpack.c.l.b16 %v2096
      %v2143 = vunpack.c.l.b16 %v2100
      %v2144 = vunpack.c.l.b16 %v2104
      %v2145 = vunpack.c.l.b16 %v2108
      %v2146 = vunpack.c.l.b16 %v2112
      %v2147 = vunpack.c.l.b16 %v2116
      %v2148 = vunpack.c.l.b16 %v2120
      %v2149 = vunpack.c.l.b16 %v2124
      %v2150 = vpack.c.b16 %v2143, %v2142
      %v2151 = vpack.c.b16 %v2145, %v2144
      %v2152 = vpack.c.b16 %v2147, %v2146
      %v2153 = vpack.c.b16 %v2149, %v2148
      %v2174 = vunpack.c.l.b16 %v2126
      %v2175 = vunpack.c.l.b16 %v2127
      %v2176 = vunpack.c.l.b16 %v2128
      %v2177 = vunpack.c.l.b16 %v2129
      %v2178 = vunpack.c.l.b16 %v2130
      %v2179 = vunpack.c.l.b16 %v2131
      %v2180 = vunpack.c.l.b16 %v2132
      %v2181 = vunpack.c.l.b16 %v2133
      %v2182 = vunpack.c.l.b16 %v2134
      %v2183 = vunpack.c.l.b16 %v2135
      %v2184 = vunpack.c.l.b16 %v2136
      %v2185 = vunpack.c.l.b16 %v2137
      %v2186 = vunpack.c.l.b16 %v2138
      %v2187 = vunpack.c.l.b16 %v2139
      %v2188 = vunpack.c.l.b16 %v2140
      %v2189 = vunpack.c.l.b16 %v2141
      %v2190 = vpack.c.b16 %v2175, %v2174
      %v2191 = vpack.c.b16 %v2177, %v2176
      %v2192 = vpack.c.b16 %v2179, %v2178
      %v2193 = vpack.c.b16 %v2181, %v2180
      %v2194 = vpack.c.b16 %v2183, %v2182
      %v2195 = vpack.c.b16 %v2185, %v2184
      %v2196 = vpack.c.b16 %v2187, %v2186
      %v2197 = vpack.c.b16 %v2189, %v2188
      %2206 = vmatprep.subr.bf16.mxu0 0
      %2207 = vmatpush1.bf16.msra.mxu0 %v2190
      %2208 = vmatprep.subr.bf16.mxu0 0
      %2209 = vmatpush1.bf16.msra.mxu0 %v2191
      %2210 = vmatprep.subr.bf16.mxu0 0
      %2211 = vmatpush1.bf16.msra.mxu0 %v2192
      %2212 = vmatprep.subr.bf16.mxu0 0
      %2213 = vmatpush1.bf16.msra.mxu0 %v2193
      %2214 = vmatprep.subr.bf16.mxu0 0
      %2215 = vmatpush1.bf16.msra.mxu0 %v2194
      %2216 = vmatprep.subr.bf16.mxu0 0
      %2217 = vmatpush1.bf16.msra.mxu0 %v2195
      %2218 = vmatprep.subr.bf16.mxu0 0
      %2219 = vmatpush1.bf16.msra.mxu0 %v2196
      %2220 = vmatprep.subr.bf16.mxu0 0
      %2221 = vmatpush1.bf16.msra.mxu0 %v2197
      %2222 = vmatprep.subr.bf16.mxu0 0
      %2223 = vmatpush1.bf16.msra.mxu0 0
      %2224 = vmatprep.subr.bf16.mxu0 0
      %2225 = vmatpush1.bf16.msra.mxu0 0
      %2226 = vmatprep.subr.bf16.mxu0 0
      %2227 = vmatpush1.bf16.msra.mxu0 0
      %2228 = vmatprep.subr.bf16.mxu0 0
      %2229 = vmatpush1.bf16.msra.mxu0 0
      %2230 = vmatprep.subr.bf16.mxu0 0
      %2231 = vmatpush1.bf16.msra.mxu0 0
      %2232 = vmatprep.subr.bf16.mxu0 0
      %2233 = vmatpush1.bf16.msra.mxu0 0
      %2234 = vmatprep.subr.bf16.mxu0 0
      %2235 = vmatpush1.bf16.msra.mxu0 0
      %2236 = vmatprep.subr.bf16.mxu0 0
      %2237 = vmatpush1.bf16.msra.mxu0 0
      %2238 = vmatprep.mubr.bf16.mxu0 0
      %2239 = vmatmul.mubr.bf16.gmra.mrb[0].mxu0 %v2150
      %v2240 = vpop.f32.mrb[0].mxu0
      %v2241 = vadd.f32 0.0, %v2240
      %v2242 = vpop.f32.mrb[0].mxu0
      %v2243 = vpop.f32.mrb[0].mxu0
      %v2244 = vadd.f32 0.0, %v2243
      %v2245 = vpop.f32.mrb[0].mxu0
      %2246 = vmatprep.mubr.bf16.mxu0 0
      %2247 = vmatmul.mubr.bf16.gmra.mrb[0].mxu0 %v2151
      %v2248 = vpop.f32.mrb[0].mxu0
      %v2249 = vadd.f32 0.0, %v2248
      %v2250 = vpop.f32.mrb[0].mxu0
      %v2251 = vpop.f32.mrb[0].mxu0
      %v2252 = vadd.f32 0.0, %v2251
      %v2253 = vpop.f32.mrb[0].mxu0
      %2254 = vmatprep.mubr.bf16.mxu0 0
      %2255 = vmatmul.mubr.bf16.gmra.mrb[0].mxu0 %v2152
      %v2256 = vpop.f32.mrb[0].mxu0
      %v2257 = vadd.f32 0.0, %v2256
      %v2258 = vpop.f32.mrb[0].mxu0
      %v2259 = vpop.f32.mrb[0].mxu0
      %v2260 = vadd.f32 0.0, %v2259
      %v2261 = vpop.f32.mrb[0].mxu0
      %2262 = vmatprep.mubr.bf16.mxu0 0
      %2263 = vmatmul.mubr.bf16.gmra.mrb[0].mxu0 %v2153
      %v2264 = vpop.f32.mrb[0].mxu0
      %v2265 = vadd.f32 0.0, %v2264
      %v2266 = vpop.f32.mrb[0].mxu0
      %v2267 = vpop.f32.mrb[0].mxu0
      %v2268 = vadd.f32 0.0, %v2267
      %v2269 = vpop.f32.mrb[0].mxu0
      %2270 = vdwg.mxu0
      %v2271 = vadd.f32 %v2061, %v2241
      %v2272 = vadd.f32 %v2062, %v2244
      %v2273 = vadd.f32 %v2063, %v2249
      %v2274 = vadd.f32 %v2064, %v2252
      %v2275 = vadd.f32 %v2065, %v2257
      %v2276 = vadd.f32 %v2066, %v2260
      %v2277 = vadd.f32 %v2067, %v2265
      %v2278 = vadd.f32 %v2068, %v2268
      %v2279 = vld [vmem:[#allocation2] sm:$0xff]
      %v2280 = vld [vmem:[#allocation2 + $0x8] sm:$0xff]
      %v2281 = vld [vmem:[#allocation2 + $0x10] sm:$0xff]
      %v2282 = vld [vmem:[#allocation2 + $0x18] sm:$0xff]
      %v2283 = vld [vmem:[#allocation2 + $0x20] sm:$0xff]
      %v2284 = vld [vmem:[#allocation2 + $0x28] sm:$0xff]
      %v2285 = vld [vmem:[#allocation2 + $0x30] sm:$0xff]
      %v2286 = vld [vmem:[#allocation2 + $0x38] sm:$0xff]
      %v2287 = vadd.f32 %v2279, %v2271
      %v2288 = vadd.f32 %v2280, %v2272
      %v2289 = vadd.f32 %v2281, %v2273
      %v2290 = vadd.f32 %v2282, %v2274
      %v2291 = vadd.f32 %v2283, %v2275
      %v2292 = vadd.f32 %v2284, %v2276
      %v2293 = vadd.f32 %v2285, %v2277
      %v2294 = vadd.f32 %v2286, %v2278
      %2295 = vst [vmem:[#allocation2] sm:$0xff] %v2287
      %2296 = vst [vmem:[#allocation2 + $0x8] sm:$0xff] %v2288
      %2297 = vst [vmem:[#allocation2 + $0x10] sm:$0xff] %v2289
      %2298 = vst [vmem:[#allocation2 + $0x18] sm:$0xff] %v2290
      %2299 = vst [vmem:[#allocation2 + $0x20] sm:$0xff] %v2291
      %2300 = vst [vmem:[#allocation2 + $0x28] sm:$0xff] %v2292
      %2301 = vst [vmem:[#allocation2 + $0x30] sm:$0xff] %v2293
      %2302 = vst [vmem:[#allocation2 + $0x38] sm:$0xff] %v2294
      // Predicated region
      $region41: #{_lambda_.8} parent=35 // pred_check
        %p2303 = pneg %p298
      $region42: #{_lambda_.8} parent=35 // pred_check_branch
        %2305 = sbr.rel (%p2303) target = $region44
      $region43: #{_lambda_.8} parent=35 // pred_region
        %v2306 = vld [vmem:[#allocation2] sm:$0xff]
        %v2307 = vld [vmem:[#allocation2 + $0x8] sm:$0xff]
        %v2308 = vld [vmem:[#allocation2 + $0x10] sm:$0xff]
        %v2309 = vld [vmem:[#allocation2 + $0x18] sm:$0xff]
        %v2310 = vld [vmem:[#allocation2 + $0x20] sm:$0xff]
        %v2311 = vld [vmem:[#allocation2 + $0x28] sm:$0xff]
        %v2312 = vld [vmem:[#allocation2 + $0x30] sm:$0xff]
        %v2313 = vld [vmem:[#allocation2 + $0x38] sm:$0xff]
        %v2314 = vld [vmem:[%s285] sm:$0x1]
        %v2316 = vlaneseq
        %v2317 = vshrl.u32 %v2316, 7
        %v2318 = vsub.s32 0, %v2317
        %v2319 = vrot.slane %v2314, %v2318
        %v2321 = vmul.f32 %v2306, %v2319
        %v2322 = vmul.f32 %v2307, %v2319
        %v2323 = vmul.f32 %v2308, %v2319
        %v2324 = vmul.f32 %v2309, %v2319
        %v2325 = vmul.f32 %v2310, %v2319
        %v2326 = vmul.f32 %v2311, %v2319
        %v2327 = vmul.f32 %v2312, %v2319
        %v2328 = vmul.f32 %v2313, %v2319
        %v2329 = vld [vmem:[%s288] sm:$0x1]
        %v2331 = vlaneseq
        %v2332 = vshrl.u32 %v2331, 7
        %v2333 = vsub.s32 0, %v2332
        %v2334 = vrot.slane %v2329, %v2333
        %v2336 = vadd.f32 %v2321, %v2334
        %v2337 = vadd.f32 %v2322, %v2334
        %v2338 = vadd.f32 %v2323, %v2334
        %v2339 = vadd.f32 %v2324, %v2334
        %v2340 = vadd.f32 %v2325, %v2334
        %v2341 = vadd.f32 %v2326, %v2334
        %v2342 = vadd.f32 %v2327, %v2334
        %v2343 = vadd.f32 %v2328, %v2334
        %v2344 = vmax.f32 %v2336, 0.0
        %v2345 = vmax.f32 %v2337, 0.0
        %v2346 = vmax.f32 %v2338, 0.0
        %v2347 = vmax.f32 %v2339, 0.0
        %v2348 = vmax.f32 %v2340, 0.0
        %v2349 = vmax.f32 %v2341, 0.0
        %v2350 = vmax.f32 %v2342, 0.0
        %v2351 = vmax.f32 %v2343, 0.0
        %v2352 = vpack.c.bf16 %v2345, %v2344
        %v2353 = vpack.c.bf16 %v2347, %v2346
        %v2354 = vpack.c.bf16 %v2349, %v2348
        %v2355 = vpack.c.bf16 %v2351, %v2350
        %v2360 = vunpack.c.l.b16 %v2352
        %v2361 = vunpack.c.h.b16 %v2352
        %v2362 = vunpack.c.l.b16 %v2353
        %v2363 = vunpack.c.h.b16 %v2353
        %v2364 = vunpack.c.l.b16 %v2354
        %v2365 = vunpack.c.h.b16 %v2354
        %v2366 = vunpack.c.l.b16 %v2355
        %v2367 = vunpack.c.h.b16 %v2355
        %v2368 = vpack.c.b16 %v2360, %v2360
        %v2369 = vpack.c.b16 %v2361, %v2361
        %v2370 = vpack.c.b16 %v2362, %v2362
        %v2371 = vpack.c.b16 %v2363, %v2363
        %v2372 = vpack.c.b16 %v2364, %v2364
        %v2373 = vpack.c.b16 %v2365, %v2365
        %v2374 = vpack.c.b16 %v2366, %v2366
        %v2375 = vpack.c.b16 %v2367, %v2367
        %2384 = vst [vmem:[%s296] sm:$0xf] %v2368
        %2385 = vst [vmem:[%s296 + $0x4] sm:$0xf] %v2369
        %2386 = vst [vmem:[%s296 + $0x8] sm:$0xf] %v2370
        %2387 = vst [vmem:[%s296 + $0xc] sm:$0xf] %v2371
        %2388 = vst [vmem:[%s296 + $0x10] sm:$0xf] %v2372
        %2389 = vst [vmem:[%s296 + $0x14] sm:$0xf] %v2373
        %2390 = vst [vmem:[%s296 + $0x18] sm:$0xf] %v2374
        %2391 = vst [vmem:[%s296 + $0x1c] sm:$0xf] %v2375
      $region44: #{_lambda_.8} parent=35 // pred_fallthru
        _
      %p2392 = scmp.lt.s32.totalorder %s20, 1
      %s2393 = scalar_select %p2392, %s20, 1
      %p2394 = scmp.lt.s32.totalorder %s21, 0
      %s2395 = scalar_select %p2394, %s21, 0
      %s2396 = smul.addr %s2393, 8
      %s2397 = sadd.s32 %s2395, %s2396
      %s2398 = smul.addr %s2397, 4
      %s2399 = scalar_lea.vmem %s4, %s2398
      // Predicated region
      $region45: #{_lambda_.8} parent=35 // pred_check
        %p2400 = pneg %p162
      $region46: #{_lambda_.8} parent=35 // pred_check_branch
        %2402 = sbr.rel (%p2400) target = $region48
      $region47: #{_lambda_.8} parent=35 // pred_region
        _
      $region48: #{_lambda_.8} parent=35 // pred_fallthru
        _
    $region36: #{_lambda_.8} parent=5 // pred_fallthru
      _
    %p2403 = scmp.le.s32.totalorder 2, %s10
    // Predicated region
    $region49: #{_lambda_.8} parent=5 // pred_check
      %p2404 = pneg %p2403
    $region50: #{_lambda_.8} parent=5 // pred_check_branch
      %2406 = sbr.rel (%p2404) target = $region52
    $region51: #{_lambda_.8} parent=5 // pred_region
      %s2407 = ssub.s32 %s10, 2
      // Predicated region
      $region53: #{_lambda_.8} parent=51 // pred_check
        %p2408 = pneg %p168
      $region54: #{_lambda_.8} parent=51 // pred_check_branch
        %2410 = sbr.rel (%p2408) target = $region56
      $region55: #{_lambda_.8} parent=51 // pred_region
        %p2411 = scmp.lt.s32.totalorder %s23, 1
        %s2412 = scalar_select %p2411, %s23, 1
        %p2413 = scmp.lt.s32.totalorder %s24, 0
        %s2414 = scalar_select %p2413, %s24, 0
        %s2415 = smul.addr %s2412, 8
        %s2416 = sadd.s32 %s2414, %s2415
        %s2417 = smul.addr %s2416, 4
        %s2418 = scalar_lea.vmem %s4, %s2417
      $region56: #{_lambda_.8} parent=51 // pred_fallthru
        _
    $region52: #{_lambda_.8} parent=5 // pred_fallthru
      _
  $region6: #{_lambda_.8} parent=0 // loop_footer
    %s14 = sadd.s32 1, %s10
  $region7: #{_lambda_.8} parent=0 // loop_footer_branch
    %9 = sbr.rel target = $region3
  $region8: #{_lambda_.8} parent=0 // loop_exit
    _

// kernel: _lambda_.9
$region0: #{_lambda_.9}
  #allocation0 [shape = 'u32[]', space=smem, size = 0x4, offset = 0x4, fixed_abs, tag = 'smem constant byte address 0x4 - core index']
  #allocation1 [shape = 'u32[144,128]{1,0:T(1,128)}', space=vmem, size = 0x12000, scoped, tag = 'internal scratch']
  #allocation2 [shape = 'f32[64,128]{1,0:T(8,128)}', space=vmem, size = 0x8000, scoped, tag = 'scratch operand']
  %s0 = inlined_call_operand.vmem [shape: bf16[1,2,10,10,128], index: 0, kind: input, shape index: {}]
  %s1 = inlined_call_operand.vmem [shape: bf16[3,3,128,128], index: 1, kind: input, shape index: {}]
  %s2 = inlined_call_operand.vmem [shape: f32[1,128], index: 2, kind: input, shape index: {}]
  %s3 = inlined_call_operand.vmem [shape: f32[1,128], index: 3, kind: input, shape index: {}]
  %s4 = inlined_call_operand.vmem [shape: bf16[2,64,128], index: 4, kind: input, shape index: {}]
  %s5 = inlined_call_operand.hbm [shape: f32[2,64,128], index: 5, kind: output, shape index: {}]
  %s6 = sld [smem:[#allocation0]]
  $region61: #{_lambda_.9} parent=0
    _
  %s8 = ssub.s32 1, %s6
  %s9 = scalar_select 0, %s8, %s6
  $region1: #{_lambda_.9} parent=0
    #allocation3 [shape = 'u8[65536]{0}', space=vmem, size = 0x10000, scoped, tag = 'output window, operand 0']
    #allocation4 [shape = 's32[2]{0}', space=sflag, size = 0x8, scoped, tag = 'scoped memory for _lambda_.9']
    %10 = vsyncpa [#allocation4], 0
    %s11 = scalar_lea.sflag [#allocation4], 1
    %12 = vsyncpa %s11, 0
    loop: start=0, step=1, limit=4
    $region2: #{_lambda_.9} parent=1 // loop_pre_header
      _
    $region3: #{_lambda_.9} parent=1 // loop_header
      %s14 = sphi 0, %s18
      %p15 = scmp.ge.s32.totalorder %s14, 4
      %s21 = sphi 0, %s40
      %s22 = sphi 0, %s36
      %s23 = sphi 0, %s32
      %s24 = sphi 0, %s21
      %s25 = sphi 0, %s22
      %s26 = sphi 0, %s23
      %s27 = sphi 0, %s24
      %s28 = sphi 0, %s25
      %s29 = sphi 0, %s26
      %s45 = sphi 0, %s47
      %s48 = sphi 0, %s45
      %s49 = sphi 0, %s48
      %s65 = sphi 0, %s49
      %s73 = sphi 0, %s75
      %s76 = sphi 0, %s73
      %s77 = sphi 0, %s76
      %s93 = sphi 0, %s77
      %s99 = sphi 0, %s101
      %s102 = sphi 0, %s99
      %s103 = sphi 0, %s102
      %s119 = sphi 0, %s103
      %s125 = sphi 0, %s127
      %s128 = sphi 0, %s125
      %s129 = sphi 0, %s128
      %s145 = sphi 0, %s129
      %s153 = sphi 0, %s155
      %s156 = sphi 0, %s153
      %s157 = sphi 0, %s156
      %s173 = sphi 0, %s157
      %s181 = sphi 0, %s183
      %s184 = sphi 0, %s181
      %s185 = sphi 0, %s184
      %s201 = sphi 0, %s185
    $region4: #{_lambda_.9} parent=1 // loop_header_branch
      %17 = sbr.rel (%p15) target = $region8
    $region5: #{_lambda_.9} parent=1 // loop_body
      %s19 = ssub.s32 %s14, 1
      %s20 = ssub.s32 %s14, 2
      %s30 = sadd.s32 1, %s23
      %p31 = scmp.ge.s32.totalorder %s30, 1
      %s32 = scalar_select %p31, 0, %s30
      %s33 = sadd.s32 1, %s22
      %s34 = scalar_select %p31, %s33, %s22
      %p35 = scmp.ge.s32.totalorder %s34, 1
      %s36 = scalar_select %p35, 0, %s34
      %s37 = sadd.s32 1, %s21
      %s38 = scalar_select %p35, %s37, %s21
      %p39 = scmp.ge.s32.totalorder %s38, 2
      %s40 = scalar_select %p39, 0, %s38
      %s41 = ssub.s32 %s21, %s40
      %s42 = ssub.s32 %s23, %s32
      %s43 = sor.u32 %s41, %s42
      %p44 = scmp.eq.s32.totalorder %s43, 0
      %s46 = sadd.s32 %s45, 1
      %s47 = scalar_select %p44, %s45, %s46
      %p50 = pneg %p44
      %p51 = scmp.eq.s32.totalorder %s14, 1
      %p52 = por %p50, %p51
      %p53 = scmp.ne.s32.totalorder %s45, %s48
      %p54 = scmp.eq.s32.totalorder %s14, 0
      %p55 = por %p53, %p54
      %p56 = scmp.ne.s32.totalorder %s45, %s48
      %p57 = scmp.eq.s32.totalorder %s19, 1
      %p58 = por %p56, %p57
      %p59 = scmp.ne.s32.totalorder %s48, %s49
      %p60 = scmp.eq.s32.totalorder %s19, 0
      %p61 = por %p59, %p60
      %p62 = scmp.ne.s32.totalorder %s48, %s49
      %p63 = scmp.eq.s32.totalorder %s20, 1
      %p64 = por %p62, %p63
      %p66 = scmp.ne.s32.totalorder %s49, %s65
      %p67 = scmp.eq.s32.totalorder %s20, 0
      %p68 = por %p66, %p67
      %s69 = ssub.s32 %s23, %s32
      %s70 = ssub.s32 %s22, %s36
      %s71 = sor.u32 %s69, %s70
      %p72 = scmp.eq.s32.totalorder %s71, 0
      %s74 = sadd.s32 %s73, 1
      %s75 = scalar_select %p72, %s73, %s74
      %p78 = pneg %p72
      %p79 = scmp.eq.s32.totalorder %s14, 1
      %p80 = por %p78, %p79
      %p81 = scmp.ne.s32.totalorder %s73, %s76
      %p82 = scmp.eq.s32.totalorder %s14, 0
      %p83 = por %p81, %p82
      %p84 = scmp.ne.s32.totalorder %s73, %s76
      %p85 = scmp.eq.s32.totalorder %s19, 1
      %p86 = por %p84, %p85
      %p87 = scmp.ne.s32.totalorder %s76, %s77
      %p88 = scmp.eq.s32.totalorder %s19, 0
      %p89 = por %p87, %p88
      %p90 = scmp.ne.s32.totalorder %s76, %s77
      %p91 = scmp.eq.s32.totalorder %s20, 1
      %p92 = por %p90, %p91
      %p94 = scmp.ne.s32.totalorder %s77, %s93
      %p95 = scmp.eq.s32.totalorder %s20, 0
      %p96 = por %p94, %p95
      %s97 = ssub.s32 %s22, %s36
      %p98 = scmp.eq.s32.totalorder %s97, 0
      %s100 = sadd.s32 %s99, 1
      %s101 = scalar_select %p98, %s99, %s100
      %p104 = pneg %p98
      %p105 = scmp.eq.s32.totalorder %s14, 1
      %p106 = por %p104, %p105
      %p107 = scmp.ne.s32.totalorder %s99, %s102
      %p108 = scmp.eq.s32.totalorder %s14, 0
      %p109 = por %p107, %p108
      %p110 = scmp.ne.s32.totalorder %s99, %s102
      %p111 = scmp.eq.s32.totalorder %s19, 1
      %p112 = por %p110, %p111
      %p113 = scmp.ne.s32.totalorder %s102, %s103
      %p114 = scmp.eq.s32.totalorder %s19, 0
      %p115 = por %p113, %p114
      %p116 = scmp.ne.s32.totalorder %s102, %s103
      %p117 = scmp.eq.s32.totalorder %s20, 1
      %p118 = por %p116, %p117
      %p120 = scmp.ne.s32.totalorder %s103, %s119
      %p121 = scmp.eq.s32.totalorder %s20, 0
      %p122 = por %p120, %p121
      %s123 = ssub.s32 %s22, %s36
      %p124 = scmp.eq.s32.totalorder %s123, 0
      %s126 = sadd.s32 %s125, 1
      %s127 = scalar_select %p124, %s125, %s126
      %p130 = pneg %p124
      %p131 = scmp.eq.s32.totalorder %s14, 1
      %p132 = por %p130, %p131
      %p133 = scmp.ne.s32.totalorder %s125, %s128
      %p134 = scmp.eq.s32.totalorder %s14, 0
      %p135 = por %p133, %p134
      %p136 = scmp.ne.s32.totalorder %s125, %s128
      %p137 = scmp.eq.s32.totalorder %s19, 1
      %p138 = por %p136, %p137
      %p139 = scmp.ne.s32.totalorder %s128, %s129
      %p140 = scmp.eq.s32.totalorder %s19, 0
      %p141 = por %p139, %p140
      %p142 = scmp.ne.s32.totalorder %s128, %s129
      %p143 = scmp.eq.s32.totalorder %s20, 1
      %p144 = por %p142, %p143
      %p146 = scmp.ne.s32.totalorder %s129, %s145
      %p147 = scmp.eq.s32.totalorder %s20, 0
      %p148 = por %p146, %p147
      %s149 = ssub.s32 %s21, %s40
      %s150 = ssub.s32 %s22, %s36
      %s151 = sor.u32 %s149, %s150
      %p152 = scmp.eq.s32.totalorder %s151, 0
      %s154 = sadd.s32 %s153, 1
      %s155 = scalar_select %p152, %s153, %s154
      %p158 = pneg %p152
      %p159 = scmp.eq.s32.totalorder %s14, 1
      %p160 = por %p158, %p159
      %p161 = scmp.ne.s32.totalorder %s153, %s156
      %p162 = scmp.eq.s32.totalorder %s14, 0
      %p163 = por %p161, %p162
      %p164 = scmp.ne.s32.totalorder %s153, %s156
      %p165 = scmp.eq.s32.totalorder %s19, 1
      %p166 = por %p164, %p165
      %p167 = scmp.ne.s32.totalorder %s156, %s157
      %p168 = scmp.eq.s32.totalorder %s19, 0
      %p169 = por %p167, %p168
      %p170 = scmp.ne.s32.totalorder %s156, %s157
      %p171 = scmp.eq.s32.totalorder %s20, 1
      %p172 = por %p170, %p171
      %p174 = scmp.ne.s32.totalorder %s157, %s173
      %p175 = scmp.eq.s32.totalorder %s20, 0
      %p176 = por %p174, %p175
      %s177 = ssub.s32 %s21, %s40
      %s178 = ssub.s32 %s22, %s36
      %s179 = sor.u32 %s177, %s178
      %p180 = scmp.eq.s32.totalorder %s179, 0
      %s182 = sadd.s32 %s181, 1
      %s183 = scalar_select %p180, %s181, %s182
      %p186 = pneg %p180
      %p187 = scmp.eq.s32.totalorder %s14, 1
      %p188 = por %p186, %p187
      %p189 = scmp.ne.s32.totalorder %s181, %s184
      %p190 = scmp.eq.s32.totalorder %s14, 0
      %p191 = por %p189, %p190
      %p192 = scmp.ne.s32.totalorder %s181, %s184
      %p193 = scmp.eq.s32.totalorder %s19, 1
      %p194 = por %p192, %p193
      %p195 = scmp.ne.s32.totalorder %s184, %s185
      %p196 = scmp.eq.s32.totalorder %s19, 0
      %p197 = por %p195, %p196
      %p198 = scmp.ne.s32.totalorder %s184, %s185
      %p199 = scmp.eq.s32.totalorder %s20, 1
      %p200 = por %p198, %p199
      %p202 = scmp.ne.s32.totalorder %s185, %s201
      %p203 = scmp.eq.s32.totalorder %s20, 0
      %p204 = por %p202, %p203
      %p205 = scmp.le.s32.totalorder 1, %s14
      %p206 = scmp.lt.s32.totalorder %s14, 3
      %p207 = pnand %p205, %p206
      %p208 = pneg %p207
      // Predicated region
      $region9: #{_lambda_.9} parent=5 // pred_check
        _
      $region10: #{_lambda_.9} parent=5 // pred_check_branch
        %210 = sbr.rel (%p207) target = $region12
      $region11: #{_lambda_.9} parent=5 // pred_region
        %s211 = ssub.s32 %s14, 1
        // Predicated region
        $region13: #{_lambda_.9} parent=11 // pred_check
          %p212 = pneg %p89
        $region14: #{_lambda_.9} parent=11 // pred_check_branch
          %214 = sbr.rel (%p212) target = $region16
        $region15: #{_lambda_.9} parent=11 // pred_region
          %s215 = smul.u32 16, %s26
          %p216 = scmp.lt.s32.totalorder %s215, 15
          %s217 = scalar_select %p216, %s215, 15
          %p218 = scmp.lt.s32.totalorder %s25, 0
          %s219 = scalar_select %p218, %s25, 0
          %s220 = sadd.s32 %s219, %s217
          %s221 = smul.addr %s220, 4
          %s222 = scalar_lea.vmem %s1, %s221
          %s223 = smul.u32 16, %s26
        $region16: #{_lambda_.9} parent=11 // pred_fallthru
          _
        // Predicated region
        $region17: #{_lambda_.9} parent=11 // pred_check
          %p224 = pneg %p115
        $region18: #{_lambda_.9} parent=11 // pred_check_branch
          %226 = sbr.rel (%p224) target = $region20
        $region19: #{_lambda_.9} parent=11 // pred_region
          %p227 = scmp.lt.s32.totalorder %s25, 0
          %s228 = scalar_select %p227, %s25, 0
          %s229 = scalar_lea.vmem %s2, %s228
        $region20: #{_lambda_.9} parent=11 // pred_fallthru
          _
        // Predicated region
        $region21: #{_lambda_.9} parent=11 // pred_check
          %p230 = pneg %p141
        $region22: #{_lambda_.9} parent=11 // pred_check_branch
          %232 = sbr.rel (%p230) target = $region24
        $region23: #{_lambda_.9} parent=11 // pred_region
          %p233 = scmp.lt.s32.totalorder %s25, 0
          %s234 = scalar_select %p233, %s25, 0
          %s235 = scalar_lea.vmem %s3, %s234
        $region24: #{_lambda_.9} parent=11 // pred_fallthru
          _
      $region12: #{_lambda_.9} parent=5 // pred_fallthru
        _
      %p236 = scmp.lt.s32.totalorder %s14, 2
      // Predicated region
      $region25: #{_lambda_.9} parent=5 // pred_check
        %p237 = pneg %p236
      $region26: #{_lambda_.9} parent=5 // pred_check_branch
        %239 = sbr.rel (%p237) target = $region28
      $region27: #{_lambda_.9} parent=5 // pred_region
        // Predicated region
        $region29: #{_lambda_.9} parent=27 // pred_check
          %p240 = pneg %p55
        $region30: #{_lambda_.9} parent=27 // pred_check_branch
          %242 = sbr.rel (%p240) target = $region32
        $region31: #{_lambda_.9} parent=27 // pred_region
          %p243 = scmp.lt.s32.totalorder %s21, 1
          %s244 = scalar_select %p243, %s21, 1
          %p245 = scmp.lt.s32.totalorder %s23, 0
          %s246 = scalar_select %p245, %s23, 0
          %s247 = smul.addr %s244, 20
          %s248 = sadd.s32 %s246, %s247
          %s249 = smul.addr %s248, 4
          %s250 = scalar_lea.vmem %s0, %s249
        $region32: #{_lambda_.9} parent=27 // pred_fallthru
          _
        // Predicated region
        $region33: #{_lambda_.9} parent=27 // pred_check
          %p251 = pneg %p163
        $region34: #{_lambda_.9} parent=27 // pred_check_branch
          %253 = sbr.rel (%p251) target = $region36
        $region35: #{_lambda_.9} parent=27 // pred_region
          %p254 = scmp.lt.s32.totalorder %s21, 1
          %s255 = scalar_select %p254, %s21, 1
          %p256 = scmp.lt.s32.totalorder %s22, 0
          %s257 = scalar_select %p256, %s22, 0
          %s258 = smul.addr %s255, 8
          %s259 = sadd.s32 %s257, %s258
          %s260 = smul.addr %s259, 4
          %s261 = scalar_lea.vmem %s4, %s260
        $region36: #{_lambda_.9} parent=27 // pred_fallthru
          _
      $region28: #{_lambda_.9} parent=5 // pred_fallthru
        _
      %p262 = scmp.le.s32.totalorder 1, %s14
      %p263 = scmp.lt.s32.totalorder %s14, 3
      %p264 = pnand %p262, %p263
      %p265 = pneg %p264
      // Predicated region
      $region37: #{_lambda_.9} parent=5 // pred_check
        _
      $region38: #{_lambda_.9} parent=5 // pred_check_branch
        %267 = sbr.rel (%p264) target = $region40
      $region39: #{_lambda_.9} parent=5 // pred_region
        %s268 = ssub.s32 %s14, 1
        %p269 = scmp.lt.s32.totalorder %s24, 1
        %s270 = scalar_select %p269, %s24, 1
        %p271 = scmp.lt.s32.totalorder %s26, 0
        %s272 = scalar_select %p271, %s26, 0
        %s273 = smul.addr %s270, 20
        %s274 = sadd.s32 %s272, %s273
        %s275 = smul.addr %s274, 4
        %s276 = scalar_lea.vmem %s0, %s275
        %p277 = pneg %p61
        %p278 = pneg %p58
        %s279 = smul.u32 16, %s26
        %p280 = scmp.lt.s32.totalorder %s279, 15
        %s281 = scalar_select %p280, %s279, 15
        %p282 = scmp.lt.s32.totalorder %s25, 0
        %s283 = scalar_select %p282, %s25, 0
        %s284 = sadd.s32 %s283, %s281
        %s285 = smul.addr %s284, 4
        %s286 = scalar_lea.vmem %s1, %s285
        %p287 = pneg %p89
        %p288 = pneg %p86
        %p289 = scmp.lt.s32.totalorder %s25, 0
        %s290 = scalar_select %p289, %s25, 0
        %s291 = scalar_lea.vmem %s2, %s290
        %p292 = pneg %p115
        %p293 = pneg %p112
        %p294 = scmp.lt.s32.totalorder %s25, 0
        %s295 = scalar_select %p294, %s25, 0
        %s296 = scalar_lea.vmem %s3, %s295
        %p297 = pneg %p141
        %p298 = pneg %p138
        %p299 = scmp.lt.s32.totalorder %s24, 1
        %s300 = scalar_select %p299, %s24, 1
        %p301 = scmp.lt.s32.totalorder %s25, 0
        %s302 = scalar_select %p301, %s25, 0
        %s303 = smul.addr %s300, 8
        %s304 = sadd.s32 %s302, %s303
        %s305 = smul.addr %s304, 4
        %s306 = scalar_lea.vmem %s4, %s305
        %p307 = pneg %p169
        %p308 = pneg %p166
        %p309 = pneg %p197
        %p310 = pneg %p194
        %s311 = sand.u32 %s184, 1
        %s312 = scalar_lea.sflag [#allocation4], %s311
        %s313 = sand.u32 %s184, 1
        %s314 = smul.addr %s313, 64
        %s315 = scalar_lea.vmem [#allocation3], %s314
        %p316 = scmp.lt.s32.totalorder %s24, 1
        %s317 = scalar_select %p316, %s24, 1
        %p318 = scmp.lt.s32.totalorder %s26, 0
        %s319 = scalar_select %p318, %s26, 0
        %s320 = smul.addr %s317, 20
        %s321 = sadd.s32 %s319, %s320
        %s322 = smul.addr %s321, 4
        %s323 = scalar_lea.vmem %s0, %s322
        %s324 = smul.u32 16, %s26
        %p325 = scmp.lt.s32.totalorder %s324, 15
        %s326 = scalar_select %p325, %s324, 15
        %p327 = scmp.lt.s32.totalorder %s25, 0
        %s328 = scalar_select %p327, %s25, 0
        %s329 = sadd.s32 %s328, %s326
        %s330 = smul.addr %s329, 4
        %s331 = scalar_lea.vmem %s1, %s330
        %s332 = smul.u32 16, %s26
        %p333 = scmp.lt.s32.totalorder %s25, 0
        %s334 = scalar_select %p333, %s25, 0
        %s335 = scalar_lea.vmem %s2, %s334
        %p336 = scmp.lt.s32.totalorder %s25, 0
        %s337 = scalar_select %p336, %s25, 0
        %s338 = scalar_lea.vmem %s3, %s337
        %p339 = scmp.lt.s32.totalorder %s24, 1
        %s340 = scalar_select %p339, %s24, 1
        %p341 = scmp.lt.s32.totalorder %s25, 0
        %s342 = scalar_select %p341, %s25, 0
        %s343 = smul.addr %s340, 8
        %s344 = sadd.s32 %s342, %s343
        %s345 = smul.addr %s344, 4
        %s346 = scalar_lea.vmem %s4, %s345
        %p348 = scmp.eq.s32.totalorder %s26, 0
        // Predicated region
        $region41: #{_lambda_.9} parent=39 // pred_check
          %p349 = pneg %p348
        $region42: #{_lambda_.9} parent=39 // pred_check_branch
          %351 = sbr.rel (%p349) target = $region44
        $region43: #{_lambda_.9} parent=39 // pred_region
          %352 = vst [vmem:[#allocation2] sm:$0xff] 0.0
          %353 = vst [vmem:[#allocation2 + $0x8] sm:$0xff] 0.0
          %354 = vst [vmem:[#allocation2 + $0x10] sm:$0xff] 0.0
          %355 = vst [vmem:[#allocation2 + $0x18] sm:$0xff] 0.0
          %356 = vst [vmem:[#allocation2 + $0x20] sm:$0xff] 0.0
          %357 = vst [vmem:[#allocation2 + $0x28] sm:$0xff] 0.0
          %358 = vst [vmem:[#allocation2 + $0x30] sm:$0xff] 0.0
          %359 = vst [vmem:[#allocation2 + $0x38] sm:$0xff] 0.0
        $region44: #{_lambda_.9} parent=39 // pred_fallthru
          _
        %v360 = vld [vmem:[%s323] sm:$0xf]
        %v361 = vld [vmem:[%s323 + $0x8] sm:$0xf]
        %v362 = vld [vmem:[%s323 + $0x10] sm:$0xf]
        %v363 = vld [vmem:[%s323 + $0x18] sm:$0xf]
        %v364 = vld [vmem:[%s323 + $0x20] sm:$0xf]
        %v365 = vld [vmem:[%s323 + $0x28] sm:$0xf]
        %v366 = vld [vmem:[%s323 + $0x30] sm:$0xf]
        %v367 = vld [vmem:[%s323 + $0x38] sm:$0xf]
        %v368 = vld [vmem:[%s331] sm:$0xf]
        %v369 = vld [vmem:[%s331 + $0x4] sm:$0xf]
        %v370 = vld [vmem:[%s331 + $0x8] sm:$0xf]
        %v371 = vld [vmem:[%s331 + $0xc] sm:$0xf]
        %v372 = vld [vmem:[%s331 + $0x10] sm:$0xf]
        %v373 = vld [vmem:[%s331 + $0x14] sm:$0xf]
        %v374 = vld [vmem:[%s331 + $0x18] sm:$0xf]
        %v375 = vld [vmem:[%s331 + $0x1c] sm:$0xf]
        %v376 = vld [vmem:[%s331 + $0x20] sm:$0xf]
        %v377 = vld [vmem:[%s331 + $0x24] sm:$0xf]
        %v378 = vld [vmem:[%s331 + $0x28] sm:$0xf]
        %v379 = vld [vmem:[%s331 + $0x2c] sm:$0xf]
        %v380 = vld [vmem:[%s331 + $0x30] sm:$0xf]
        %v381 = vld [vmem:[%s331 + $0x34] sm:$0xf]
        %v382 = vld [vmem:[%s331 + $0x38] sm:$0xf]
        %v383 = vld [vmem:[%s331 + $0x3c] sm:$0xf]
        %v384 = vld [vmem:[%s323 + $0x4] sm:$0x1]
        %v385 = vld [vmem:[%s323 + $0xc] sm:$0x1]
        %v386 = vld [vmem:[%s323 + $0x14] sm:$0x1]
        %v387 = vld [vmem:[%s323 + $0x1c] sm:$0x1]
        %v388 = vld [vmem:[%s323 + $0x24] sm:$0x1]
        %v389 = vld [vmem:[%s323 + $0x2c] sm:$0x1]
        %v390 = vld [vmem:[%s323 + $0x34] sm:$0x1]
        %v391 = vld [vmem:[%s323 + $0x3c] sm:$0x1]
        %vm392 = vsmask.f32 3328
        %vm393 = vsmask.f32 7440
        %vm394 = vmor %vm392, %vm393
        %v396 = vshrl.u32 %v360, 16
        %v398 = vrot.slane %v396, 4
        %v399 = vshll.u32 %v360, 16
        %v401 = vrot.slane %v399, 5
        %v402 = vor.u32 %v398, %v401
        %v403 = vrot.slane %v402, 4
        %v405 = vshll.u32 %v384, 16
        %v407 = vrot.slane %v405, 5
        %v408 = vsel %vm394, %v403, %v407
        %v410 = vshrl.u32 %v361, 16
        %v412 = vrot.slane %v410, 4
        %v413 = vshll.u32 %v361, 16
        %v415 = vrot.slane %v413, 5
        %v416 = vor.u32 %v412, %v415
        %v417 = vrot.slane %v416, 4
        %v419 = vshll.u32 %v385, 16
        %v421 = vrot.slane %v419, 5
        %v422 = vsel %vm394, %v417, %v421
        %v424 = vshrl.u32 %v362, 16
        %v426 = vrot.slane %v424, 4
        %v427 = vshll.u32 %v362, 16
        %v429 = vrot.slane %v427, 5
        %v430 = vor.u32 %v426, %v429
        %v431 = vrot.slane %v430, 4
        %v433 = vshll.u32 %v386, 16
        %v435 = vrot.slane %v433, 5
        %v436 = vsel %vm394, %v431, %v435
        %v438 = vshrl.u32 %v363, 16
        %v440 = vrot.slane %v438, 4
        %v441 = vshll.u32 %v363, 16
        %v443 = vrot.slane %v441, 5
        %v444 = vor.u32 %v440, %v443
        %v445 = vrot.slane %v444, 4
        %v447 = vshll.u32 %v387, 16
        %v449 = vrot.slane %v447, 5
        %v450 = vsel %vm394, %v445, %v449
        %v452 = vshrl.u32 %v364, 16
        %v454 = vrot.slane %v452, 4
        %v455 = vshll.u32 %v364, 16
        %v457 = vrot.slane %v455, 5
        %v458 = vor.u32 %v454, %v457
        %v459 = vrot.slane %v458, 4
        %v461 = vshll.u32 %v388, 16
        %v463 = vrot.slane %v461, 5
        %v464 = vsel %vm394, %v459, %v463
        %v466 = vshrl.u32 %v365, 16
        %v468 = vrot.slane %v466, 4
        %v469 = vshll.u32 %v365, 16
        %v471 = vrot.slane %v469, 5
        %v472 = vor.u32 %v468, %v471
        %v473 = vrot.slane %v472, 4
        %v475 = vshll.u32 %v389, 16
        %v477 = vrot.slane %v475, 5
        %v478 = vsel %vm394, %v473, %v477
        %v480 = vshrl.u32 %v366, 16
        %v482 = vrot.slane %v480, 4
        %v483 = vshll.u32 %v366, 16
        %v485 = vrot.slane %v483, 5
        %v486 = vor.u32 %v482, %v485
        %v487 = vrot.slane %v486, 4
        %v489 = vshll.u32 %v390, 16
        %v491 = vrot.slane %v489, 5
        %v492 = vsel %vm394, %v487, %v491
        %v494 = vshrl.u32 %v367, 16
        %v496 = vrot.slane %v494, 4
        %v497 = vshll.u32 %v367, 16
        %v499 = vrot.slane %v497, 5
        %v500 = vor.u32 %v496, %v499
        %v501 = vrot.slane %v500, 4
        %v503 = vshll.u32 %v391, 16
        %v505 = vrot.slane %v503, 5
        %v506 = vsel %vm394, %v501, %v505
        %s507 = scalar_lea.vmem %s331, 64
        %v508 = vld [vmem:[%s507] sm:$0xf]
        %v509 = vld [vmem:[%s507 + $0x4] sm:$0xf]
        %v510 = vld [vmem:[%s507 + $0x8] sm:$0xf]
        %v511 = vld [vmem:[%s507 + $0xc] sm:$0xf]
        %v512 = vld [vmem:[%s507 + $0x10] sm:$0xf]
        %v513 = vld [vmem:[%s507 + $0x14] sm:$0xf]
        %v514 = vld [vmem:[%s507 + $0x18] sm:$0xf]
        %v515 = vld [vmem:[%s507 + $0x1c] sm:$0xf]
        %v516 = vld [vmem:[%s507 + $0x20] sm:$0xf]
        %v517 = vld [vmem:[%s507 + $0x24] sm:$0xf]
        %v518 = vld [vmem:[%s507 + $0x28] sm:$0xf]
        %v519 = vld [vmem:[%s507 + $0x2c] sm:$0xf]
        %v520 = vld [vmem:[%s507 + $0x30] sm:$0xf]
        %v521 = vld [vmem:[%s507 + $0x34] sm:$0xf]
        %v522 = vld [vmem:[%s507 + $0x38] sm:$0xf]
        %v523 = vld [vmem:[%s507 + $0x3c] sm:$0xf]
        %v524 = vunpack.c.l.b16 %v408
        %v525 = vunpack.c.l.b16 %v422
        %v526 = vunpack.c.l.b16 %v436
        %v527 = vunpack.c.l.b16 %v450
        %v528 = vunpack.c.l.b16 %v464
        %v529 = vunpack.c.l.b16 %v478
        %v530 = vunpack.c.l.b16 %v492
        %v531 = vunpack.c.l.b16 %v506
        %v532 = vpack.c.b16 %v525, %v524
        %v533 = vpack.c.b16 %v527, %v526
        %v534 = vpack.c.b16 %v529, %v528
        %v535 = vpack.c.b16 %v531, %v530
        %v556 = vunpack.c.l.b16 %v508
        %v557 = vunpack.c.l.b16 %v509
        %v558 = vunpack.c.l.b16 %v510
        %v559 = vunpack.c.l.b16 %v511
        %v560 = vunpack.c.l.b16 %v512
        %v561 = vunpack.c.l.b16 %v513
        %v562 = vunpack.c.l.b16 %v514
        %v563 = vunpack.c.l.b16 %v515
        %v564 = vunpack.c.l.b16 %v516
        %v565 = vunpack.c.l.b16 %v517
        %v566 = vunpack.c.l.b16 %v518
        %v567 = vunpack.c.l.b16 %v519
        %v568 = vunpack.c.l.b16 %v520
        %v569 = vunpack.c.l.b16 %v521
        %v570 = vunpack.c.l.b16 %v522
        %v571 = vunpack.c.l.b16 %v523
        %v572 = vpack.c.b16 %v557, %v556
        %v573 = vpack.c.b16 %v559, %v558
        %v574 = vpack.c.b16 %v561, %v560
        %v575 = vpack.c.b16 %v563, %v562
        %v576 = vpack.c.b16 %v565, %v564
        %v577 = vpack.c.b16 %v567, %v566
        %v578 = vpack.c.b16 %v569, %v568
        %v579 = vpack.c.b16 %v571, %v570
        %588 = vmatprep.subr.bf16.mxu0 0
        %589 = vmatpush1.bf16.msra.mxu0 %v572
        %590 = vmatprep.subr.bf16.mxu0 0
        %591 = vmatpush1.bf16.msra.mxu0 %v573
        %592 = vmatprep.subr.bf16.mxu0 0
        %593 = vmatpush1.bf16.msra.mxu0 %v574
        %594 = vmatprep.subr.bf16.mxu0 0
        %595 = vmatpush1.bf16.msra.mxu0 %v575
        %596 = vmatprep.subr.bf16.mxu0 0
        %597 = vmatpush1.bf16.msra.mxu0 %v576
        %598 = vmatprep.subr.bf16.mxu0 0
        %599 = vmatpush1.bf16.msra.mxu0 %v577
        %600 = vmatprep.subr.bf16.mxu0 0
        %601 = vmatpush1.bf16.msra.mxu0 %v578
        %602 = vmatprep.subr.bf16.mxu0 0
        %603 = vmatpush1.bf16.msra.mxu0 %v579
        %604 = vmatprep.subr.bf16.mxu0 0
        %605 = vmatpush1.bf16.msra.mxu0 0
        %606 = vmatprep.subr.bf16.mxu0 0
        %607 = vmatpush1.bf16.msra.mxu0 0
        %608 = vmatprep.subr.bf16.mxu0 0
        %609 = vmatpush1.bf16.msra.mxu0 0
        %610 = vmatprep.subr.bf16.mxu0 0
        %611 = vmatpush1.bf16.msra.mxu0 0
        %612 = vmatprep.subr.bf16.mxu0 0
        %613 = vmatpush1.bf16.msra.mxu0 0
        %614 = vmatprep.subr.bf16.mxu0 0
        %615 = vmatpush1.bf16.msra.mxu0 0
        %616 = vmatprep.subr.bf16.mxu0 0
        %617 = vmatpush1.bf16.msra.mxu0 0
        %618 = vmatprep.subr.bf16.mxu0 0
        %619 = vmatpush1.bf16.msra.mxu0 0
        %620 = vmatprep.mubr.bf16.mxu0 0
        %621 = vmatmul.mubr.bf16.gmra.mrb[0].mxu0 %v532
        %v622 = vpop.f32.mrb[0].mxu0
        %v623 = vadd.f32 0.0, %v622
        %v624 = vpop.f32.mrb[0].mxu0
        %v625 = vpop.f32.mrb[0].mxu0
        %v626 = vadd.f32 0.0, %v625
        %v627 = vpop.f32.mrb[0].mxu0
        %628 = vmatprep.mubr.bf16.mxu0 0
        %629 = vmatmul.mubr.bf16.gmra.mrb[0].mxu0 %v533
        %v630 = vpop.f32.mrb[0].mxu0
        %v631 = vadd.f32 0.0, %v630
        %v632 = vpop.f32.mrb[0].mxu0
        %v633 = vpop.f32.mrb[0].mxu0
        %v634 = vadd.f32 0.0, %v633
        %v635 = vpop.f32.mrb[0].mxu0
        %636 = vmatprep.mubr.bf16.mxu0 0
        %637 = vmatmul.mubr.bf16.gmra.mrb[0].mxu0 %v534
        %v638 = vpop.f32.mrb[0].mxu0
        %v639 = vadd.f32 0.0, %v638
        %v640 = vpop.f32.mrb[0].mxu0
        %v641 = vpop.f32.mrb[0].mxu0
        %v642 = vadd.f32 0.0, %v641
        %v643 = vpop.f32.mrb[0].mxu0
        %644 = vmatprep.mubr.bf16.mxu0 0
        %645 = vmatmul.mubr.bf16.gmra.mrb[0].mxu0 %v535
        %v646 = vpop.f32.mrb[0].mxu0
        %v647 = vadd.f32 0.0, %v646
        %v648 = vpop.f32.mrb[0].mxu0
        %v649 = vpop.f32.mrb[0].mxu0
        %v650 = vadd.f32 0.0, %v649
        %v651 = vpop.f32.mrb[0].mxu0
        %652 = vdwg.mxu0
        %v661 = vunpack.c.l.b16 %v360
        %v662 = vunpack.c.l.b16 %v361
        %v663 = vunpack.c.l.b16 %v362
        %v664 = vunpack.c.l.b16 %v363
        %v665 = vunpack.c.l.b16 %v364
        %v666 = vunpack.c.l.b16 %v365
        %v667 = vunpack.c.l.b16 %v366
        %v668 = vunpack.c.l.b16 %v367
        %v669 = vpack.c.b16 %v662, %v661
        %v670 = vpack.c.b16 %v664, %v663
        %v671 = vpack.c.b16 %v666, %v665
        %v672 = vpack.c.b16 %v668, %v667
        %v693 = vunpack.c.l.b16 %v368
        %v694 = vunpack.c.l.b16 %v369
        %v695 = vunpack.c.l.b16 %v370
        %v696 = vunpack.c.l.b16 %v371
        %v697 = vunpack.c.l.b16 %v372
        %v698 = vunpack.c.l.b16 %v373
        %v699 = vunpack.c.l.b16 %v374
        %v700 = vunpack.c.l.b16 %v375
        %v701 = vunpack.c.l.b16 %v376
        %v702 = vunpack.c.l.b16 %v377
        %v703 = vunpack.c.l.b16 %v378
        %v704 = vunpack.c.l.b16 %v379
        %v705 = vunpack.c.l.b16 %v380
        %v706 = vunpack.c.l.b16 %v381
        %v707 = vunpack.c.l.b16 %v382
        %v708 = vunpack.c.l.b16 %v383
        %v709 = vpack.c.b16 %v694, %v693
        %v710 = vpack.c.b16 %v696, %v695
        %v711 = vpack.c.b16 %v698, %v697
        %v712 = vpack.c.b16 %v700, %v699
        %v713 = vpack.c.b16 %v702, %v701
        %v714 = vpack.c.b16 %v704, %v703
        %v715 = vpack.c.b16 %v706, %v705
        %v716 = vpack.c.b16 %v708, %v707
        %725 = vmatprep.subr.bf16.mxu0 0
        %726 = vmatpush1.bf16.msra.mxu0 %v709
        %727 = vmatprep.subr.bf16.mxu0 0
        %728 = vmatpush1.bf16.msra.mxu0 %v710
        %729 = vmatprep.subr.bf16.mxu0 0
        %730 = vmatpush1.bf16.msra.mxu0 %v711
        %731 = vmatprep.subr.bf16.mxu0 0
        %732 = vmatpush1.bf16.msra.mxu0 %v712
        %733 = vmatprep.subr.bf16.mxu0 0
        %734 = vmatpush1.bf16.msra.mxu0 %v713
        %735 = vmatprep.subr.bf16.mxu0 0
        %736 = vmatpush1.bf16.msra.mxu0 %v714
        %737 = vmatprep.subr.bf16.mxu0 0
        %738 = vmatpush1.bf16.msra.mxu0 %v715
        %739 = vmatprep.subr.bf16.mxu0 0
        %740 = vmatpush1.bf16.msra.mxu0 %v716
        %741 = vmatprep.subr.bf16.mxu0 0
        %742 = vmatpush1.bf16.msra.mxu0 0
        %743 = vmatprep.subr.bf16.mxu0 0
        %744 = vmatpush1.bf16.msra.mxu0 0
        %745 = vmatprep.subr.bf16.mxu0 0
        %746 = vmatpush1.bf16.msra.mxu0 0
        %747 = vmatprep.subr.bf16.mxu0 0
        %748 = vmatpush1.bf16.msra.mxu0 0
        %749 = vmatprep.subr.bf16.mxu0 0
        %750 = vmatpush1.bf16.msra.mxu0 0
        %751 = vmatprep.subr.bf16.mxu0 0
        %752 = vmatpush1.bf16.msra.mxu0 0
        %753 = vmatprep.subr.bf16.mxu0 0
        %754 = vmatpush1.bf16.msra.mxu0 0
        %755 = vmatprep.subr.bf16.mxu0 0
        %756 = vmatpush1.bf16.msra.mxu0 0
        %757 = vmatprep.mubr.bf16.mxu0 0
        %758 = vmatmul.mubr.bf16.gmra.mrb[0].mxu0 %v669
        %v759 = vpop.f32.mrb[0].mxu0
        %v760 = vadd.f32 %v623, %v759
        %v761 = vpop.f32.mrb[0].mxu0
        %v762 = vpop.f32.mrb[0].mxu0
        %v763 = vadd.f32 %v626, %v762
        %v764 = vpop.f32.mrb[0].mxu0
        %765 = vmatprep.mubr.bf16.mxu0 0
        %766 = vmatmul.mubr.bf16.gmra.mrb[0].mxu0 %v670
        %v767 = vpop.f32.mrb[0].mxu0
        %v768 = vadd.f32 %v631, %v767
        %v769 = vpop.f32.mrb[0].mxu0
        %v770 = vpop.f32.mrb[0].mxu0
        %v771 = vadd.f32 %v634, %v770
        %v772 = vpop.f32.mrb[0].mxu0
        %773 = vmatprep.mubr.bf16.mxu0 0
        %774 = vmatmul.mubr.bf16.gmra.mrb[0].mxu0 %v671
        %v775 = vpop.f32.mrb[0].mxu0
        %v776 = vadd.f32 %v639, %v775
        %v777 = vpop.f32.mrb[0].mxu0
        %v778 = vpop.f32.mrb[0].mxu0
        %v779 = vadd.f32 %v642, %v778
        %v780 = vpop.f32.mrb[0].mxu0
        %781 = vmatprep.mubr.bf16.mxu0 0
        %782 = vmatmul.mubr.bf16.gmra.mrb[0].mxu0 %v672
        %v783 = vpop.f32.mrb[0].mxu0
        %v784 = vadd.f32 %v647, %v783
        %v785 = vpop.f32.mrb[0].mxu0
        %v786 = vpop.f32.mrb[0].mxu0
        %v787 = vadd.f32 %v650, %v786
        %v788 = vpop.f32.mrb[0].mxu0
        %789 = vdwg.mxu0
        %v790 = vld [vmem:[%s323] sm:$0xe]
        %v791 = vld [vmem:[%s323 + $0x8] sm:$0xe]
        %v792 = vld [vmem:[%s323 + $0x10] sm:$0xe]
        %v793 = vld [vmem:[%s323 + $0x18] sm:$0xe]
        %v794 = vld [vmem:[%s323 + $0x20] sm:$0xe]
        %v795 = vld [vmem:[%s323 + $0x28] sm:$0xe]
        %v796 = vld [vmem:[%s323 + $0x30] sm:$0xe]
        %v797 = vld [vmem:[%s323 + $0x38] sm:$0xe]
        %vm814 = vcmask 1042432
        %vm815 = vcmask 1046532
        %vm816 = vmor %vm814, %vm815
        %v817 = vrot.slane %v790, 5
        %v818 = vrot.slane %v817, 4
        %v819 = vrot.slane %v384, 5
        %v820 = vsel %vm816, %v818, %v819
        %v821 = vrot.slane %v791, 5
        %v822 = vrot.slane %v821, 4
        %v823 = vrot.slane %v385, 5
        %v824 = vsel %vm816, %v822, %v823
        %v825 = vrot.slane %v792, 5
        %v826 = vrot.slane %v825, 4
        %v827 = vrot.slane %v386, 5
        %v828 = vsel %vm816, %v826, %v827
        %v829 = vrot.slane %v793, 5
        %v830 = vrot.slane %v829, 4
        %v831 = vrot.slane %v387, 5
        %v832 = vsel %vm816, %v830, %v831
        %v833 = vrot.slane %v794, 5
        %v834 = vrot.slane %v833, 4
        %v835 = vrot.slane %v388, 5
        %v836 = vsel %vm816, %v834, %v835
        %v837 = vrot.slane %v795, 5
        %v838 = vrot.slane %v837, 4
        %v839 = vrot.slane %v389, 5
        %v840 = vsel %vm816, %v838, %v839
        %v841 = vrot.slane %v796, 5
        %v842 = vrot.slane %v841, 4
        %v843 = vrot.slane %v390, 5
        %v844 = vsel %vm816, %v842, %v843
        %v845 = vrot.slane %v797, 5
        %v846 = vrot.slane %v845, 4
        %v847 = vrot.slane %v391, 5
        %v848 = vsel %vm816, %v846, %v847
        %s849 = scalar_lea.vmem %s331, 128
        %v850 = vld [vmem:[%s849] sm:$0xf]
        %v851 = vld [vmem:[%s849 + $0x4] sm:$0xf]
        %v852 = vld [vmem:[%s849 + $0x8] sm:$0xf]
        %v853 = vld [vmem:[%s849 + $0xc] sm:$0xf]
        %v854 = vld [vmem:[%s849 + $0x10] sm:$0xf]
        %v855 = vld [vmem:[%s849 + $0x14] sm:$0xf]
        %v856 = vld [vmem:[%s849 + $0x18] sm:$0xf]
        %v857 = vld [vmem:[%s849 + $0x1c] sm:$0xf]
        %v858 = vld [vmem:[%s849 + $0x20] sm:$0xf]
        %v859 = vld [vmem:[%s849 + $0x24] sm:$0xf]
        %v860 = vld [vmem:[%s849 + $0x28] sm:$0xf]
        %v861 = vld [vmem:[%s849 + $0x2c] sm:$0xf]
        %v862 = vld [vmem:[%s849 + $0x30] sm:$0xf]
        %v863 = vld [vmem:[%s849 + $0x34] sm:$0xf]
        %v864 = vld [vmem:[%s849 + $0x38] sm:$0xf]
        %v865 = vld [vmem:[%s849 + $0x3c] sm:$0xf]
        %v866 = vunpack.c.l.b16 %v820
        %v867 = vunpack.c.l.b16 %v824
        %v868 = vunpack.c.l.b16 %v828
        %v869 = vunpack.c.l.b16 %v832
        %v870 = vunpack.c.l.b16 %v836
        %v871 = vunpack.c.l.b16 %v840
        %v872 = vunpack.c.l.b16 %v844
        %v873 = vunpack.c.l.b16 %v848
        %v874 = vpack.c.b16 %v867, %v866
        %v875 = vpack.c.b16 %v869, %v868
        %v876 = vpack.c.b16 %v871, %v870
        %v877 = vpack.c.b16 %v873, %v872
        %v898 = vunpack.c.l.b16 %v850
        %v899 = vunpack.c.l.b16 %v851
        %v900 = vunpack.c.l.b16 %v852
        %v901 = vunpack.c.l.b16 %v853
        %v902 = vunpack.c.l.b16 %v854
        %v903 = vunpack.c.l.b16 %v855
        %v904 = vunpack.c.l.b16 %v856
        %v905 = vunpack.c.l.b16 %v857
        %v906 = vunpack.c.l.b16 %v858
        %v907 = vunpack.c.l.b16 %v859
        %v908 = vunpack.c.l.b16 %v860
        %v909 = vunpack.c.l.b16 %v861
        %v910 = vunpack.c.l.b16 %v862
        %v911 = vunpack.c.l.b16 %v863
        %v912 = vunpack.c.l.b16 %v864
        %v913 = vunpack.c.l.b16 %v865
        %v914 = vpack.c.b16 %v899, %v898
        %v915 = vpack.c.b16 %v901, %v900
        %v916 = vpack.c.b16 %v903, %v902
        %v917 = vpack.c.b16 %v905, %v904
        %v918 = vpack.c.b16 %v907, %v906
        %v919 = vpack.c.b16 %v909, %v908
        %v920 = vpack.c.b16 %v911, %v910
        %v921 = vpack.c.b16 %v913, %v912
        %930 = vmatprep.subr.bf16.mxu0 0
        %931 = vmatpush1.bf16.msra.mxu0 %v914
        %932 = vmatprep.subr.bf16.mxu0 0
        %933 = vmatpush1.bf16.msra.mxu0 %v915
        %934 = vmatprep.subr.bf16.mxu0 0
        %935 = vmatpush1.bf16.msra.mxu0 %v916
        %936 = vmatprep.subr.bf16.mxu0 0
        %937 = vmatpush1.bf16.msra.mxu0 %v917
        %938 = vmatprep.subr.bf16.mxu0 0
        %939 = vmatpush1.bf16.msra.mxu0 %v918
        %940 = vmatprep.subr.bf16.mxu0 0
        %941 = vmatpush1.bf16.msra.mxu0 %v919
        %942 = vmatprep.subr.bf16.mxu0 0
        %943 = vmatpush1.bf16.msra.mxu0 %v920
        %944 = vmatprep.subr.bf16.mxu0 0
        %945 = vmatpush1.bf16.msra.mxu0 %v921
        %946 = vmatprep.subr.bf16.mxu0 0
        %947 = vmatpush1.bf16.msra.mxu0 0
        %948 = vmatprep.subr.bf16.mxu0 0
        %949 = vmatpush1.bf16.msra.mxu0 0
        %950 = vmatprep.subr.bf16.mxu0 0
        %951 = vmatpush1.bf16.msra.mxu0 0
        %952 = vmatprep.subr.bf16.mxu0 0
        %953 = vmatpush1.bf16.msra.mxu0 0
        %954 = vmatprep.subr.bf16.mxu0 0
        %955 = vmatpush1.bf16.msra.mxu0 0
        %956 = vmatprep.subr.bf16.mxu0 0
        %957 = vmatpush1.bf16.msra.mxu0 0
        %958 = vmatprep.subr.bf16.mxu0 0
        %959 = vmatpush1.bf16.msra.mxu0 0
        %960 = vmatprep.subr.bf16.mxu0 0
        %961 = vmatpush1.bf16.msra.mxu0 0
        %962 = vmatprep.mubr.bf16.mxu0 0
        %963 = vmatmul.mubr.bf16.gmra.mrb[0].mxu0 %v874
        %v964 = vpop.f32.mrb[0].mxu0
        %v965 = vadd.f32 0.0, %v964
        %v966 = vpop.f32.mrb[0].mxu0
        %v967 = vpop.f32.mrb[0].mxu0
        %v968 = vadd.f32 0.0, %v967
        %v969 = vpop.f32.mrb[0].mxu0
        %970 = vmatprep.mubr.bf16.mxu0 0
        %971 = vmatmul.mubr.bf16.gmra.mrb[0].mxu0 %v875
        %v972 = vpop.f32.mrb[0].mxu0
        %v973 = vadd.f32 0.0, %v972
        %v974 = vpop.f32.mrb[0].mxu0
        %v975 = vpop.f32.mrb[0].mxu0
        %v976 = vadd.f32 0.0, %v975
        %v977 = vpop.f32.mrb[0].mxu0
        %978 = vmatprep.mubr.bf16.mxu0 0
        %979 = vmatmul.mubr.bf16.gmra.mrb[0].mxu0 %v876
        %v980 = vpop.f32.mrb[0].mxu0
        %v981 = vadd.f32 0.0, %v980
        %v982 = vpop.f32.mrb[0].mxu0
        %v983 = vpop.f32.mrb[0].mxu0
        %v984 = vadd.f32 0.0, %v983
        %v985 = vpop.f32.mrb[0].mxu0
        %986 = vmatprep.mubr.bf16.mxu0 0
        %987 = vmatmul.mubr.bf16.gmra.mrb[0].mxu0 %v877
        %v988 = vpop.f32.mrb[0].mxu0
        %v989 = vadd.f32 0.0, %v988
        %v990 = vpop.f32.mrb[0].mxu0
        %v991 = vpop.f32.mrb[0].mxu0
        %v992 = vadd.f32 0.0, %v991
        %v993 = vpop.f32.mrb[0].mxu0
        %994 = vdwg.mxu0
        %v995 = vadd.f32 %v760, %v965
        %v996 = vadd.f32 %v763, %v968
        %v997 = vadd.f32 %v768, %v973
        %v998 = vadd.f32 %v771, %v976
        %v999 = vadd.f32 %v776, %v981
        %v1000 = vadd.f32 %v779, %v984
        %v1001 = vadd.f32 %v784, %v989
        %v1002 = vadd.f32 %v787, %v992
        %s1003 = scalar_lea.vmem %s323, 8
        %v1004 = vld [vmem:[%s1003] sm:$0xf]
        %v1005 = vld [vmem:[%s1003 + $0x8] sm:$0xf]
        %v1006 = vld [vmem:[%s1003 + $0x10] sm:$0xf]
        %v1007 = vld [vmem:[%s1003 + $0x18] sm:$0xf]
        %v1008 = vld [vmem:[%s1003 + $0x20] sm:$0xf]
        %v1009 = vld [vmem:[%s1003 + $0x28] sm:$0xf]
        %v1010 = vld [vmem:[%s1003 + $0x30] sm:$0xf]
        %v1011 = vld [vmem:[%s1003 + $0x38] sm:$0xf]
        %s1012 = scalar_lea.vmem %s331, 192
        %v1013 = vld [vmem:[%s1012] sm:$0xf]
        %v1014 = vld [vmem:[%s1012 + $0x4] sm:$0xf]
        %v1015 = vld [vmem:[%s1012 + $0x8] sm:$0xf]
        %v1016 = vld [vmem:[%s1012 + $0xc] sm:$0xf]
        %v1017 = vld [vmem:[%s1012 + $0x10] sm:$0xf]
        %v1018 = vld [vmem:[%s1012 + $0x14] sm:$0xf]
        %v1019 = vld [vmem:[%s1012 + $0x18] sm:$0xf]
        %v1020 = vld [vmem:[%s1012 + $0x1c] sm:$0xf]
        %v1021 = vld [vmem:[%s1012 + $0x20] sm:$0xf]
        %v1022 = vld [vmem:[%s1012 + $0x24] sm:$0xf]
        %v1023 = vld [vmem:[%s1012 + $0x28] sm:$0xf]
        %v1024 = vld [vmem:[%s1012 + $0x2c] sm:$0xf]
        %v1025 = vld [vmem:[%s1012 + $0x30] sm:$0xf]
        %v1026 = vld [vmem:[%s1012 + $0x34] sm:$0xf]
        %v1027 = vld [vmem:[%s1012 + $0x38] sm:$0xf]
        %v1028 = vld [vmem:[%s1012 + $0x3c] sm:$0xf]
        %v1037 = vunpack.c.l.b16 %v1004
        %v1038 = vunpack.c.l.b16 %v1005
        %v1039 = vunpack.c.l.b16 %v1006
        %v1040 = vunpack.c.l.b16 %v1007
        %v1041 = vunpack.c.l.b16 %v1008
        %v1042 = vunpack.c.l.b16 %v1009
        %v1043 = vunpack.c.l.b16 %v1010
        %v1044 = vunpack.c.l.b16 %v1011
        %v1045 = vpack.c.b16 %v1038, %v1037
        %v1046 = vpack.c.b16 %v1040, %v1039
        %v1047 = vpack.c.b16 %v1042, %v1041
        %v1048 = vpack.c.b16 %v1044, %v1043
        %v1069 = vunpack.c.l.b16 %v1013
        %v1070 = vunpack.c.l.b16 %v1014
        %v1071 = vunpack.c.l.b16 %v1015
        %v1072 = vunpack.c.l.b16 %v1016
        %v1073 = vunpack.c.l.b16 %v1017
        %v1074 = vunpack.c.l.b16 %v1018
        %v1075 = vunpack.c.l.b16 %v1019
        %v1076 = vunpack.c.l.b16 %v1020
        %v1077 = vunpack.c.l.b16 %v1021
        %v1078 = vunpack.c.l.b16 %v1022
        %v1079 = vunpack.c.l.b16 %v1023
        %v1080 = vunpack.c.l.b16 %v1024
        %v1081 = vunpack.c.l.b16 %v1025
        %v1082 = vunpack.c.l.b16 %v1026
        %v1083 = vunpack.c.l.b16 %v1027
        %v1084 = vunpack.c.l.b16 %v1028
        %v1085 = vpack.c.b16 %v1070, %v1069
        %v1086 = vpack.c.b16 %v1072, %v1071
        %v1087 = vpack.c.b16 %v1074, %v1073
        %v1088 = vpack.c.b16 %v1076, %v1075
        %v1089 = vpack.c.b16 %v1078, %v1077
        %v1090 = vpack.c.b16 %v1080, %v1079
        %v1091 = vpack.c.b16 %v1082, %v1081
        %v1092 = vpack.c.b16 %v1084, %v1083
        %1101 = vmatprep.subr.bf16.mxu0 0
        %1102 = vmatpush1.bf16.msra.mxu0 %v1085
        %1103 = vmatprep.subr.bf16.mxu0 0
        %1104 = vmatpush1.bf16.msra.mxu0 %v1086
        %1105 = vmatprep.subr.bf16.mxu0 0
        %1106 = vmatpush1.bf16.msra.mxu0 %v1087
        %1107 = vmatprep.subr.bf16.mxu0 0
        %1108 = vmatpush1.bf16.msra.mxu0 %v1088
        %1109 = vmatprep.subr.bf16.mxu0 0
        %1110 = vmatpush1.bf16.msra.mxu0 %v1089
        %1111 = vmatprep.subr.bf16.mxu0 0
        %1112 = vmatpush1.bf16.msra.mxu0 %v1090
        %1113 = vmatprep.subr.bf16.mxu0 0
        %1114 = vmatpush1.bf16.msra.mxu0 %v1091
        %1115 = vmatprep.subr.bf16.mxu0 0
        %1116 = vmatpush1.bf16.msra.mxu0 %v1092
        %1117 = vmatprep.subr.bf16.mxu0 0
        %1118 = vmatpush1.bf16.msra.mxu0 0
        %1119 = vmatprep.subr.bf16.mxu0 0
        %1120 = vmatpush1.bf16.msra.mxu0 0
        %1121 = vmatprep.subr.bf16.mxu0 0
        %1122 = vmatpush1.bf16.msra.mxu0 0
        %1123 = vmatprep.subr.bf16.mxu0 0
        %1124 = vmatpush1.bf16.msra.mxu0 0
        %1125 = vmatprep.subr.bf16.mxu0 0
        %1126 = vmatpush1.bf16.msra.mxu0 0
        %1127 = vmatprep.subr.bf16.mxu0 0
        %1128 = vmatpush1.bf16.msra.mxu0 0
        %1129 = vmatprep.subr.bf16.mxu0 0
        %1130 = vmatpush1.bf16.msra.mxu0 0
        %1131 = vmatprep.subr.bf16.mxu0 0
        %1132 = vmatpush1.bf16.msra.mxu0 0
        %1133 = vmatprep.mubr.bf16.mxu0 0
        %1134 = vmatmul.mubr.bf16.gmra.mrb[0].mxu0 %v1045
        %v1135 = vpop.f32.mrb[0].mxu0
        %v1136 = vadd.f32 0.0, %v1135
        %v1137 = vpop.f32.mrb[0].mxu0
        %v1138 = vpop.f32.mrb[0].mxu0
        %v1139 = vadd.f32 0.0, %v1138
        %v1140 = vpop.f32.mrb[0].mxu0
        %1141 = vmatprep.mubr.bf16.mxu0 0
        %1142 = vmatmul.mubr.bf16.gmra.mrb[0].mxu0 %v1046
        %v1143 = vpop.f32.mrb[0].mxu0
        %v1144 = vadd.f32 0.0, %v1143
        %v1145 = vpop.f32.mrb[0].mxu0
        %v1146 = vpop.f32.mrb[0].mxu0
        %v1147 = vadd.f32 0.0, %v1146
        %v1148 = vpop.f32.mrb[0].mxu0
        %1149 = vmatprep.mubr.bf16.mxu0 0
        %1150 = vmatmul.mubr.bf16.gmra.mrb[0].mxu0 %v1047
        %v1151 = vpop.f32.mrb[0].mxu0
        %v1152 = vadd.f32 0.0, %v1151
        %v1153 = vpop.f32.mrb[0].mxu0
        %v1154 = vpop.f32.mrb[0].mxu0
        %v1155 = vadd.f32 0.0, %v1154
        %v1156 = vpop.f32.mrb[0].mxu0
        %1157 = vmatprep.mubr.bf16.mxu0 0
        %1158 = vmatmul.mubr.bf16.gmra.mrb[0].mxu0 %v1048
        %v1159 = vpop.f32.mrb[0].mxu0
        %v1160 = vadd.f32 0.0, %v1159
        %v1161 = vpop.f32.mrb[0].mxu0
        %v1162 = vpop.f32.mrb[0].mxu0
        %v1163 = vadd.f32 0.0, %v1162
        %v1164 = vpop.f32.mrb[0].mxu0
        %1165 = vdwg.mxu0
        %v1166 = vadd.f32 %v995, %v1136
        %v1167 = vadd.f32 %v996, %v1139
        %v1168 = vadd.f32 %v997, %v1144
        %v1169 = vadd.f32 %v998, %v1147
        %v1170 = vadd.f32 %v999, %v1152
        %v1171 = vadd.f32 %v1000, %v1155
        %v1172 = vadd.f32 %v1001, %v1160
        %v1173 = vadd.f32 %v1002, %v1163
        %v1174 = vld [vmem:[%s1003] sm:$0xf]
        %v1175 = vld [vmem:[%s1003 + $0x4] sm:$0x1]
        %v1176 = vld [vmem:[%s1003 + $0x8] sm:$0xf]
        %v1177 = vld [vmem:[%s1003 + $0xc] sm:$0x1]
        %v1178 = vld [vmem:[%s1003 + $0x10] sm:$0xf]
        %v1179 = vld [vmem:[%s1003 + $0x14] sm:$0x1]
        %v1180 = vld [vmem:[%s1003 + $0x18] sm:$0xf]
        %v1181 = vld [vmem:[%s1003 + $0x1c] sm:$0x1]
        %v1182 = vld [vmem:[%s1003 + $0x20] sm:$0xf]
        %v1183 = vld [vmem:[%s1003 + $0x24] sm:$0x1]
        %v1184 = vld [vmem:[%s1003 + $0x28] sm:$0xf]
        %v1185 = vld [vmem:[%s1003 + $0x2c] sm:$0x1]
        %v1186 = vld [vmem:[%s1003 + $0x30] sm:$0xf]
        %v1187 = vld [vmem:[%s1003 + $0x34] sm:$0x1]
        %v1188 = vld [vmem:[%s1003 + $0x38] sm:$0xf]
        %v1189 = vld [vmem:[%s1003 + $0x3c] sm:$0x1]
        %v1191 = vshrl.u32 %v1174, 16
        %v1193 = vrot.slane %v1191, 4
        %v1194 = vshll.u32 %v1174, 16
        %v1196 = vrot.slane %v1194, 5
        %v1197 = vor.u32 %v1193, %v1196
        %v1198 = vrot.slane %v1197, 4
        %v1200 = vshll.u32 %v1175, 16
        %v1202 = vrot.slane %v1200, 5
        %v1203 = vsel %vm394, %v1198, %v1202
        %v1205 = vshrl.u32 %v1176, 16
        %v1207 = vrot.slane %v1205, 4
        %v1208 = vshll.u32 %v1176, 16
        %v1210 = vrot.slane %v1208, 5
        %v1211 = vor.u32 %v1207, %v1210
        %v1212 = vrot.slane %v1211, 4
        %v1214 = vshll.u32 %v1177, 16
        %v1216 = vrot.slane %v1214, 5
        %v1217 = vsel %vm394, %v1212, %v1216
        %v1219 = vshrl.u32 %v1178, 16
        %v1221 = vrot.slane %v1219, 4
        %v1222 = vshll.u32 %v1178, 16
        %v1224 = vrot.slane %v1222, 5
        %v1225 = vor.u32 %v1221, %v1224
        %v1226 = vrot.slane %v1225, 4
        %v1228 = vshll.u32 %v1179, 16
        %v1230 = vrot.slane %v1228, 5
        %v1231 = vsel %vm394, %v1226, %v1230
        %v1233 = vshrl.u32 %v1180, 16
        %v1235 = vrot.slane %v1233, 4
        %v1236 = vshll.u32 %v1180, 16
        %v1238 = vrot.slane %v1236, 5
        %v1239 = vor.u32 %v1235, %v1238
        %v1240 = vrot.slane %v1239, 4
        %v1242 = vshll.u32 %v1181, 16
        %v1244 = vrot.slane %v1242, 5
        %v1245 = vsel %vm394, %v1240, %v1244
        %v1247 = vshrl.u32 %v1182, 16
        %v1249 = vrot.slane %v1247, 4
        %v1250 = vshll.u32 %v1182, 16
        %v1252 = vrot.slane %v1250, 5
        %v1253 = vor.u32 %v1249, %v1252
        %v1254 = vrot.slane %v1253, 4
        %v1256 = vshll.u32 %v1183, 16
        %v1258 = vrot.slane %v1256, 5
        %v1259 = vsel %vm394, %v1254, %v1258
        %v1261 = vshrl.u32 %v1184, 16
        %v1263 = vrot.slane %v1261, 4
        %v1264 = vshll.u32 %v1184, 16
        %v1266 = vrot.slane %v1264, 5
        %v1267 = vor.u32 %v1263, %v1266
        %v1268 = vrot.slane %v1267, 4
        %v1270 = vshll.u32 %v1185, 16
        %v1272 = vrot.slane %v1270, 5
        %v1273 = vsel %vm394, %v1268, %v1272
        %v1275 = vshrl.u32 %v1186, 16
        %v1277 = vrot.slane %v1275, 4
        %v1278 = vshll.u32 %v1186, 16
        %v1280 = vrot.slane %v1278, 5
        %v1281 = vor.u32 %v1277, %v1280
        %v1282 = vrot.slane %v1281, 4
        %v1284 = vshll.u32 %v1187, 16
        %v1286 = vrot.slane %v1284, 5
        %v1287 = vsel %vm394, %v1282, %v1286
        %v1289 = vshrl.u32 %v1188, 16
        %v1291 = vrot.slane %v1289, 4
        %v1292 = vshll.u32 %v1188, 16
        %v1294 = vrot.slane %v1292, 5
        %v1295 = vor.u32 %v1291, %v1294
        %v1296 = vrot.slane %v1295, 4
        %v1298 = vshll.u32 %v1189, 16
        %v1300 = vrot.slane %v1298, 5
        %v1301 = vsel %vm394, %v1296, %v1300
        %s1302 = scalar_lea.vmem %s331, 256
        %v1303 = vld [vmem:[%s1302] sm:$0xf]
        %v1304 = vld [vmem:[%s1302 + $0x4] sm:$0xf]
        %v1305 = vld [vmem:[%s1302 + $0x8] sm:$0xf]
        %v1306 = vld [vmem:[%s1302 + $0xc] sm:$0xf]
        %v1307 = vld [vmem:[%s1302 + $0x10] sm:$0xf]
        %v1308 = vld [vmem:[%s1302 + $0x14] sm:$0xf]
        %v1309 = vld [vmem:[%s1302 + $0x18] sm:$0xf]
        %v1310 = vld [vmem:[%s1302 + $0x1c] sm:$0xf]
        %v1311 = vld [vmem:[%s1302 + $0x20] sm:$0xf]
        %v1312 = vld [vmem:[%s1302 + $0x24] sm:$0xf]
        %v1313 = vld [vmem:[%s1302 + $0x28] sm:$0xf]
        %v1314 = vld [vmem:[%s1302 + $0x2c] sm:$0xf]
        %v1315 = vld [vmem:[%s1302 + $0x30] sm:$0xf]
        %v1316 = vld [vmem:[%s1302 + $0x34] sm:$0xf]
        %v1317 = vld [vmem:[%s1302 + $0x38] sm:$0xf]
        %v1318 = vld [vmem:[%s1302 + $0x3c] sm:$0xf]
        %v1319 = vunpack.c.l.b16 %v1203
        %v1320 = vunpack.c.l.b16 %v1217
        %v1321 = vunpack.c.l.b16 %v1231
        %v1322 = vunpack.c.l.b16 %v1245
        %v1323 = vunpack.c.l.b16 %v1259
        %v1324 = vunpack.c.l.b16 %v1273
        %v1325 = vunpack.c.l.b16 %v1287
        %v1326 = vunpack.c.l.b16 %v1301
        %v1327 = vpack.c.b16 %v1320, %v1319
        %v1328 = vpack.c.b16 %v1322, %v1321
        %v1329 = vpack.c.b16 %v1324, %v1323
        %v1330 = vpack.c.b16 %v1326, %v1325
        %v1351 = vunpack.c.l.b16 %v1303
        %v1352 = vunpack.c.l.b16 %v1304
        %v1353 = vunpack.c.l.b16 %v1305
        %v1354 = vunpack.c.l.b16 %v1306
        %v1355 = vunpack.c.l.b16 %v1307
        %v1356 = vunpack.c.l.b16 %v1308
        %v1357 = vunpack.c.l.b16 %v1309
        %v1358 = vunpack.c.l.b16 %v1310
        %v1359 = vunpack.c.l.b16 %v1311
        %v1360 = vunpack.c.l.b16 %v1312
        %v1361 = vunpack.c.l.b16 %v1313
        %v1362 = vunpack.c.l.b16 %v1314
        %v1363 = vunpack.c.l.b16 %v1315
        %v1364 = vunpack.c.l.b16 %v1316
        %v1365 = vunpack.c.l.b16 %v1317
        %v1366 = vunpack.c.l.b16 %v1318
        %v1367 = vpack.c.b16 %v1352, %v1351
        %v1368 = vpack.c.b16 %v1354, %v1353
        %v1369 = vpack.c.b16 %v1356, %v1355
        %v1370 = vpack.c.b16 %v1358, %v1357
        %v1371 = vpack.c.b16 %v1360, %v1359
        %v1372 = vpack.c.b16 %v1362, %v1361
        %v1373 = vpack.c.b16 %v1364, %v1363
        %v1374 = vpack.c.b16 %v1366, %v1365
        %1383 = vmatprep.subr.bf16.mxu0 0
        %1384 = vmatpush1.bf16.msra.mxu0 %v1367
        %1385 = vmatprep.subr.bf16.mxu0 0
        %1386 = vmatpush1.bf16.msra.mxu0 %v1368
        %1387 = vmatprep.subr.bf16.mxu0 0
        %1388 = vmatpush1.bf16.msra.mxu0 %v1369
        %1389 = vmatprep.subr.bf16.mxu0 0
        %1390 = vmatpush1.bf16.msra.mxu0 %v1370
        %1391 = vmatprep.subr.bf16.mxu0 0
        %1392 = vmatpush1.bf16.msra.mxu0 %v1371
        %1393 = vmatprep.subr.bf16.mxu0 0
        %1394 = vmatpush1.bf16.msra.mxu0 %v1372
        %1395 = vmatprep.subr.bf16.mxu0 0
        %1396 = vmatpush1.bf16.msra.mxu0 %v1373
        %1397 = vmatprep.subr.bf16.mxu0 0
        %1398 = vmatpush1.bf16.msra.mxu0 %v1374
        %1399 = vmatprep.subr.bf16.mxu0 0
        %1400 = vmatpush1.bf16.msra.mxu0 0
        %1401 = vmatprep.subr.bf16.mxu0 0
        %1402 = vmatpush1.bf16.msra.mxu0 0
        %1403 = vmatprep.subr.bf16.mxu0 0
        %1404 = vmatpush1.bf16.msra.mxu0 0
        %1405 = vmatprep.subr.bf16.mxu0 0
        %1406 = vmatpush1.bf16.msra.mxu0 0
        %1407 = vmatprep.subr.bf16.mxu0 0
        %1408 = vmatpush1.bf16.msra.mxu0 0
        %1409 = vmatprep.subr.bf16.mxu0 0
        %1410 = vmatpush1.bf16.msra.mxu0 0
        %1411 = vmatprep.subr.bf16.mxu0 0
        %1412 = vmatpush1.bf16.msra.mxu0 0
        %1413 = vmatprep.subr.bf16.mxu0 0
        %1414 = vmatpush1.bf16.msra.mxu0 0
        %1415 = vmatprep.mubr.bf16.mxu0 0
        %1416 = vmatmul.mubr.bf16.gmra.mrb[0].mxu0 %v1327
        %v1417 = vpop.f32.mrb[0].mxu0
        %v1418 = vadd.f32 0.0, %v1417
        %v1419 = vpop.f32.mrb[0].mxu0
        %v1420 = vpop.f32.mrb[0].mxu0
        %v1421 = vadd.f32 0.0, %v1420
        %v1422 = vpop.f32.mrb[0].mxu0
        %1423 = vmatprep.mubr.bf16.mxu0 0
        %1424 = vmatmul.mubr.bf16.gmra.mrb[0].mxu0 %v1328
        %v1425 = vpop.f32.mrb[0].mxu0
        %v1426 = vadd.f32 0.0, %v1425
        %v1427 = vpop.f32.mrb[0].mxu0
        %v1428 = vpop.f32.mrb[0].mxu0
        %v1429 = vadd.f32 0.0, %v1428
        %v1430 = vpop.f32.mrb[0].mxu0
        %1431 = vmatprep.mubr.bf16.mxu0 0
        %1432 = vmatmul.mubr.bf16.gmra.mrb[0].mxu0 %v1329
        %v1433 = vpop.f32.mrb[0].mxu0
        %v1434 = vadd.f32 0.0, %v1433
        %v1435 = vpop.f32.mrb[0].mxu0
        %v1436 = vpop.f32.mrb[0].mxu0
        %v1437 = vadd.f32 0.0, %v1436
        %v1438 = vpop.f32.mrb[0].mxu0
        %1439 = vmatprep.mubr.bf16.mxu0 0
        %1440 = vmatmul.mubr.bf16.gmra.mrb[0].mxu0 %v1330
        %v1441 = vpop.f32.mrb[0].mxu0
        %v1442 = vadd.f32 0.0, %v1441
        %v1443 = vpop.f32.mrb[0].mxu0
        %v1444 = vpop.f32.mrb[0].mxu0
        %v1445 = vadd.f32 0.0, %v1444
        %v1446 = vpop.f32.mrb[0].mxu0
        %1447 = vdwg.mxu0
        %v1448 = vadd.f32 %v1166, %v1418
        %v1449 = vadd.f32 %v1167, %v1421
        %v1450 = vadd.f32 %v1168, %v1426
        %v1451 = vadd.f32 %v1169, %v1429
        %v1452 = vadd.f32 %v1170, %v1434
        %v1453 = vadd.f32 %v1171, %v1437
        %v1454 = vadd.f32 %v1172, %v1442
        %v1455 = vadd.f32 %v1173, %v1445
        %v1456 = vld [vmem:[%s1003] sm:$0xe]
        %v1457 = vld [vmem:[%s1003 + $0x8] sm:$0xe]
        %v1458 = vld [vmem:[%s1003 + $0x10] sm:$0xe]
        %v1459 = vld [vmem:[%s1003 + $0x18] sm:$0xe]
        %v1460 = vld [vmem:[%s1003 + $0x20] sm:$0xe]
        %v1461 = vld [vmem:[%s1003 + $0x28] sm:$0xe]
        %v1462 = vld [vmem:[%s1003 + $0x30] sm:$0xe]
        %v1463 = vld [vmem:[%s1003 + $0x38] sm:$0xe]
        %v1480 = vrot.slane %v1456, 5
        %v1481 = vrot.slane %v1480, 4
        %v1482 = vrot.slane %v1175, 5
        %v1483 = vsel %vm816, %v1481, %v1482
        %v1484 = vrot.slane %v1457, 5
        %v1485 = vrot.slane %v1484, 4
        %v1486 = vrot.slane %v1177, 5
        %v1487 = vsel %vm816, %v1485, %v1486
        %v1488 = vrot.slane %v1458, 5
        %v1489 = vrot.slane %v1488, 4
        %v1490 = vrot.slane %v1179, 5
        %v1491 = vsel %vm816, %v1489, %v1490
        %v1492 = vrot.slane %v1459, 5
        %v1493 = vrot.slane %v1492, 4
        %v1494 = vrot.slane %v1181, 5
        %v1495 = vsel %vm816, %v1493, %v1494
        %v1496 = vrot.slane %v1460, 5
        %v1497 = vrot.slane %v1496, 4
        %v1498 = vrot.slane %v1183, 5
        %v1499 = vsel %vm816, %v1497, %v1498
        %v1500 = vrot.slane %v1461, 5
        %v1501 = vrot.slane %v1500, 4
        %v1502 = vrot.slane %v1185, 5
        %v1503 = vsel %vm816, %v1501, %v1502
        %v1504 = vrot.slane %v1462, 5
        %v1505 = vrot.slane %v1504, 4
        %v1506 = vrot.slane %v1187, 5
        %v1507 = vsel %vm816, %v1505, %v1506
        %v1508 = vrot.slane %v1463, 5
        %v1509 = vrot.slane %v1508, 4
        %v1510 = vrot.slane %v1189, 5
        %v1511 = vsel %vm816, %v1509, %v1510
        %s1512 = scalar_lea.vmem %s331, 320
        %v1513 = vld [vmem:[%s1512] sm:$0xf]
        %v1514 = vld [vmem:[%s1512 + $0x4] sm:$0xf]
        %v1515 = vld [vmem:[%s1512 + $0x8] sm:$0xf]
        %v1516 = vld [vmem:[%s1512 + $0xc] sm:$0xf]
        %v1517 = vld [vmem:[%s1512 + $0x10] sm:$0xf]
        %v1518 = vld [vmem:[%s1512 + $0x14] sm:$0xf]
        %v1519 = vld [vmem:[%s1512 + $0x18] sm:$0xf]
        %v1520 = vld [vmem:[%s1512 + $0x1c] sm:$0xf]
        %v1521 = vld [vmem:[%s1512 + $0x20] sm:$0xf]
        %v1522 = vld [vmem:[%s1512 + $0x24] sm:$0xf]
        %v1523 = vld [vmem:[%s1512 + $0x28] sm:$0xf]
        %v1524 = vld [vmem:[%s1512 + $0x2c] sm:$0xf]
        %v1525 = vld [vmem:[%s1512 + $0x30] sm:$0xf]
        %v1526 = vld [vmem:[%s1512 + $0x34] sm:$0xf]
        %v1527 = vld [vmem:[%s1512 + $0x38] sm:$0xf]
        %v1528 = vld [vmem:[%s1512 + $0x3c] sm:$0xf]
        %v1529 = vunpack.c.l.b16 %v1483
        %v1530 = vunpack.c.l.b16 %v1487
        %v1531 = vunpack.c.l.b16 %v1491
        %v1532 = vunpack.c.l.b16 %v1495
        %v1533 = vunpack.c.l.b16 %v1499
        %v1534 = vunpack.c.l.b16 %v1503
        %v1535 = vunpack.c.l.b16 %v1507
        %v1536 = vunpack.c.l.b16 %v1511
        %v1537 = vpack.c.b16 %v1530, %v1529
        %v1538 = vpack.c.b16 %v1532, %v1531
        %v1539 = vpack.c.b16 %v1534, %v1533
        %v1540 = vpack.c.b16 %v1536, %v1535
        %v1561 = vunpack.c.l.b16 %v1513
        %v1562 = vunpack.c.l.b16 %v1514
        %v1563 = vunpack.c.l.b16 %v1515
        %v1564 = vunpack.c.l.b16 %v1516
        %v1565 = vunpack.c.l.b16 %v1517
        %v1566 = vunpack.c.l.b16 %v1518
        %v1567 = vunpack.c.l.b16 %v1519
        %v1568 = vunpack.c.l.b16 %v1520
        %v1569 = vunpack.c.l.b16 %v1521
        %v1570 = vunpack.c.l.b16 %v1522
        %v1571 = vunpack.c.l.b16 %v1523
        %v1572 = vunpack.c.l.b16 %v1524
        %v1573 = vunpack.c.l.b16 %v1525
        %v1574 = vunpack.c.l.b16 %v1526
        %v1575 = vunpack.c.l.b16 %v1527
        %v1576 = vunpack.c.l.b16 %v1528
        %v1577 = vpack.c.b16 %v1562, %v1561
        %v1578 = vpack.c.b16 %v1564, %v1563
        %v1579 = vpack.c.b16 %v1566, %v1565
        %v1580 = vpack.c.b16 %v1568, %v1567
        %v1581 = vpack.c.b16 %v1570, %v1569
        %v1582 = vpack.c.b16 %v1572, %v1571
        %v1583 = vpack.c.b16 %v1574, %v1573
        %v1584 = vpack.c.b16 %v1576, %v1575
        %1593 = vmatprep.subr.bf16.mxu0 0
        %1594 = vmatpush1.bf16.msra.mxu0 %v1577
        %1595 = vmatprep.subr.bf16.mxu0 0
        %1596 = vmatpush1.bf16.msra.mxu0 %v1578
        %1597 = vmatprep.subr.bf16.mxu0 0
        %1598 = vmatpush1.bf16.msra.mxu0 %v1579
        %1599 = vmatprep.subr.bf16.mxu0 0
        %1600 = vmatpush1.bf16.msra.mxu0 %v1580
        %1601 = vmatprep.subr.bf16.mxu0 0
        %1602 = vmatpush1.bf16.msra.mxu0 %v1581
        %1603 = vmatprep.subr.bf16.mxu0 0
        %1604 = vmatpush1.bf16.msra.mxu0 %v1582
        %1605 = vmatprep.subr.bf16.mxu0 0
        %1606 = vmatpush1.bf16.msra.mxu0 %v1583
        %1607 = vmatprep.subr.bf16.mxu0 0
        %1608 = vmatpush1.bf16.msra.mxu0 %v1584
        %1609 = vmatprep.subr.bf16.mxu0 0
        %1610 = vmatpush1.bf16.msra.mxu0 0
        %1611 = vmatprep.subr.bf16.mxu0 0
        %1612 = vmatpush1.bf16.msra.mxu0 0
        %1613 = vmatprep.subr.bf16.mxu0 0
        %1614 = vmatpush1.bf16.msra.mxu0 0
        %1615 = vmatprep.subr.bf16.mxu0 0
        %1616 = vmatpush1.bf16.msra.mxu0 0
        %1617 = vmatprep.subr.bf16.mxu0 0
        %1618 = vmatpush1.bf16.msra.mxu0 0
        %1619 = vmatprep.subr.bf16.mxu0 0
        %1620 = vmatpush1.bf16.msra.mxu0 0
        %1621 = vmatprep.subr.bf16.mxu0 0
        %1622 = vmatpush1.bf16.msra.mxu0 0
        %1623 = vmatprep.subr.bf16.mxu0 0
        %1624 = vmatpush1.bf16.msra.mxu0 0
        %1625 = vmatprep.mubr.bf16.mxu0 0
        %1626 = vmatmul.mubr.bf16.gmra.mrb[0].mxu0 %v1537
        %v1627 = vpop.f32.mrb[0].mxu0
        %v1628 = vadd.f32 0.0, %v1627
        %v1629 = vpop.f32.mrb[0].mxu0
        %v1630 = vpop.f32.mrb[0].mxu0
        %v1631 = vadd.f32 0.0, %v1630
        %v1632 = vpop.f32.mrb[0].mxu0
        %1633 = vmatprep.mubr.bf16.mxu0 0
        %1634 = vmatmul.mubr.bf16.gmra.mrb[0].mxu0 %v1538
        %v1635 = vpop.f32.mrb[0].mxu0
        %v1636 = vadd.f32 0.0, %v1635
        %v1637 = vpop.f32.mrb[0].mxu0
        %v1638 = vpop.f32.mrb[0].mxu0
        %v1639 = vadd.f32 0.0, %v1638
        %v1640 = vpop.f32.mrb[0].mxu0
        %1641 = vmatprep.mubr.bf16.mxu0 0
        %1642 = vmatmul.mubr.bf16.gmra.mrb[0].mxu0 %v1539
        %v1643 = vpop.f32.mrb[0].mxu0
        %v1644 = vadd.f32 0.0, %v1643
        %v1645 = vpop.f32.mrb[0].mxu0
        %v1646 = vpop.f32.mrb[0].mxu0
        %v1647 = vadd.f32 0.0, %v1646
        %v1648 = vpop.f32.mrb[0].mxu0
        %1649 = vmatprep.mubr.bf16.mxu0 0
        %1650 = vmatmul.mubr.bf16.gmra.mrb[0].mxu0 %v1540
        %v1651 = vpop.f32.mrb[0].mxu0
        %v1652 = vadd.f32 0.0, %v1651
        %v1653 = vpop.f32.mrb[0].mxu0
        %v1654 = vpop.f32.mrb[0].mxu0
        %v1655 = vadd.f32 0.0, %v1654
        %v1656 = vpop.f32.mrb[0].mxu0
        %1657 = vdwg.mxu0
        %v1658 = vadd.f32 %v1448, %v1628
        %v1659 = vadd.f32 %v1449, %v1631
        %v1660 = vadd.f32 %v1450, %v1636
        %v1661 = vadd.f32 %v1451, %v1639
        %v1662 = vadd.f32 %v1452, %v1644
        %v1663 = vadd.f32 %v1453, %v1647
        %v1664 = vadd.f32 %v1454, %v1652
        %v1665 = vadd.f32 %v1455, %v1655
        %s1666 = scalar_lea.vmem %s323, 16
        %v1667 = vld [vmem:[%s1666] sm:$0xf]
        %v1668 = vld [vmem:[%s1666 + $0x8] sm:$0xf]
        %v1669 = vld [vmem:[%s1666 + $0x10] sm:$0xf]
        %v1670 = vld [vmem:[%s1666 + $0x18] sm:$0xf]
        %v1671 = vld [vmem:[%s1666 + $0x20] sm:$0xf]
        %v1672 = vld [vmem:[%s1666 + $0x28] sm:$0xf]
        %v1673 = vld [vmem:[%s1666 + $0x30] sm:$0xf]
        %v1674 = vld [vmem:[%s1666 + $0x38] sm:$0xf]
        %s1675 = scalar_lea.vmem %s331, 384
        %v1676 = vld [vmem:[%s1675] sm:$0xf]
        %v1677 = vld [vmem:[%s1675 + $0x4] sm:$0xf]
        %v1678 = vld [vmem:[%s1675 + $0x8] sm:$0xf]
        %v1679 = vld [vmem:[%s1675 + $0xc] sm:$0xf]
        %v1680 = vld [vmem:[%s1675 + $0x10] sm:$0xf]
        %v1681 = vld [vmem:[%s1675 + $0x14] sm:$0xf]
        %v1682 = vld [vmem:[%s1675 + $0x18] sm:$0xf]
        %v1683 = vld [vmem:[%s1675 + $0x1c] sm:$0xf]
        %v1684 = vld [vmem:[%s1675 + $0x20] sm:$0xf]
        %v1685 = vld [vmem:[%s1675 + $0x24] sm:$0xf]
        %v1686 = vld [vmem:[%s1675 + $0x28] sm:$0xf]
        %v1687 = vld [vmem:[%s1675 + $0x2c] sm:$0xf]
        %v1688 = vld [vmem:[%s1675 + $0x30] sm:$0xf]
        %v1689 = vld [vmem:[%s1675 + $0x34] sm:$0xf]
        %v1690 = vld [vmem:[%s1675 + $0x38] sm:$0xf]
        %v1691 = vld [vmem:[%s1675 + $0x3c] sm:$0xf]
        %v1700 = vunpack.c.l.b16 %v1667
        %v1701 = vunpack.c.l.b16 %v1668
        %v1702 = vunpack.c.l.b16 %v1669
        %v1703 = vunpack.c.l.b16 %v1670
        %v1704 = vunpack.c.l.b16 %v1671
        %v1705 = vunpack.c.l.b16 %v1672
        %v1706 = vunpack.c.l.b16 %v1673
        %v1707 = vunpack.c.l.b16 %v1674
        %v1708 = vpack.c.b16 %v1701, %v1700
        %v1709 = vpack.c.b16 %v1703, %v1702
        %v1710 = vpack.c.b16 %v1705, %v1704
        %v1711 = vpack.c.b16 %v1707, %v1706
        %v1732 = vunpack.c.l.b16 %v1676
        %v1733 = vunpack.c.l.b16 %v1677
        %v1734 = vunpack.c.l.b16 %v1678
        %v1735 = vunpack.c.l.b16 %v1679
        %v1736 = vunpack.c.l.b16 %v1680
        %v1737 = vunpack.c.l.b16 %v1681
        %v1738 = vunpack.c.l.b16 %v1682
        %v1739 = vunpack.c.l.b16 %v1683
        %v1740 = vunpack.c.l.b16 %v1684
        %v1741 = vunpack.c.l.b16 %v1685
        %v1742 = vunpack.c.l.b16 %v1686
        %v1743 = vunpack.c.l.b16 %v1687
        %v1744 = vunpack.c.l.b16 %v1688
        %v1745 = vunpack.c.l.b16 %v1689
        %v1746 = vunpack.c.l.b16 %v1690
        %v1747 = vunpack.c.l.b16 %v1691
        %v1748 = vpack.c.b16 %v1733, %v1732
        %v1749 = vpack.c.b16 %v1735, %v1734
        %v1750 = vpack.c.b16 %v1737, %v1736
        %v1751 = vpack.c.b16 %v1739, %v1738
        %v1752 = vpack.c.b16 %v1741, %v1740
        %v1753 = vpack.c.b16 %v1743, %v1742
        %v1754 = vpack.c.b16 %v1745, %v1744
        %v1755 = vpack.c.b16 %v1747, %v1746
        %1764 = vmatprep.subr.bf16.mxu0 0
        %1765 = vmatpush1.bf16.msra.mxu0 %v1748
        %1766 = vmatprep.subr.bf16.mxu0 0
        %1767 = vmatpush1.bf16.msra.mxu0 %v1749
        %1768 = vmatprep.subr.bf16.mxu0 0
        %1769 = vmatpush1.bf16.msra.mxu0 %v1750
        %1770 = vmatprep.subr.bf16.mxu0 0
        %1771 = vmatpush1.bf16.msra.mxu0 %v1751
        %1772 = vmatprep.subr.bf16.mxu0 0
        %1773 = vmatpush1.bf16.msra.mxu0 %v1752
        %1774 = vmatprep.subr.bf16.mxu0 0
        %1775 = vmatpush1.bf16.msra.mxu0 %v1753
        %1776 = vmatprep.subr.bf16.mxu0 0
        %1777 = vmatpush1.bf16.msra.mxu0 %v1754
        %1778 = vmatprep.subr.bf16.mxu0 0
        %1779 = vmatpush1.bf16.msra.mxu0 %v1755
        %1780 = vmatprep.subr.bf16.mxu0 0
        %1781 = vmatpush1.bf16.msra.mxu0 0
        %1782 = vmatprep.subr.bf16.mxu0 0
        %1783 = vmatpush1.bf16.msra.mxu0 0
        %1784 = vmatprep.subr.bf16.mxu0 0
        %1785 = vmatpush1.bf16.msra.mxu0 0
        %1786 = vmatprep.subr.bf16.mxu0 0
        %1787 = vmatpush1.bf16.msra.mxu0 0
        %1788 = vmatprep.subr.bf16.mxu0 0
        %1789 = vmatpush1.bf16.msra.mxu0 0
        %1790 = vmatprep.subr.bf16.mxu0 0
        %1791 = vmatpush1.bf16.msra.mxu0 0
        %1792 = vmatprep.subr.bf16.mxu0 0
        %1793 = vmatpush1.bf16.msra.mxu0 0
        %1794 = vmatprep.subr.bf16.mxu0 0
        %1795 = vmatpush1.bf16.msra.mxu0 0
        %1796 = vmatprep.mubr.bf16.mxu0 0
        %1797 = vmatmul.mubr.bf16.gmra.mrb[0].mxu0 %v1708
        %v1798 = vpop.f32.mrb[0].mxu0
        %v1799 = vadd.f32 0.0, %v1798
        %v1800 = vpop.f32.mrb[0].mxu0
        %v1801 = vpop.f32.mrb[0].mxu0
        %v1802 = vadd.f32 0.0, %v1801
        %v1803 = vpop.f32.mrb[0].mxu0
        %1804 = vmatprep.mubr.bf16.mxu0 0
        %1805 = vmatmul.mubr.bf16.gmra.mrb[0].mxu0 %v1709
        %v1806 = vpop.f32.mrb[0].mxu0
        %v1807 = vadd.f32 0.0, %v1806
        %v1808 = vpop.f32.mrb[0].mxu0
        %v1809 = vpop.f32.mrb[0].mxu0
        %v1810 = vadd.f32 0.0, %v1809
        %v1811 = vpop.f32.mrb[0].mxu0
        %1812 = vmatprep.mubr.bf16.mxu0 0
        %1813 = vmatmul.mubr.bf16.gmra.mrb[0].mxu0 %v1710
        %v1814 = vpop.f32.mrb[0].mxu0
        %v1815 = vadd.f32 0.0, %v1814
        %v1816 = vpop.f32.mrb[0].mxu0
        %v1817 = vpop.f32.mrb[0].mxu0
        %v1818 = vadd.f32 0.0, %v1817
        %v1819 = vpop.f32.mrb[0].mxu0
        %1820 = vmatprep.mubr.bf16.mxu0 0
        %1821 = vmatmul.mubr.bf16.gmra.mrb[0].mxu0 %v1711
        %v1822 = vpop.f32.mrb[0].mxu0
        %v1823 = vadd.f32 0.0, %v1822
        %v1824 = vpop.f32.mrb[0].mxu0
        %v1825 = vpop.f32.mrb[0].mxu0
        %v1826 = vadd.f32 0.0, %v1825
        %v1827 = vpop.f32.mrb[0].mxu0
        %1828 = vdwg.mxu0
        %v1829 = vadd.f32 %v1658, %v1799
        %v1830 = vadd.f32 %v1659, %v1802
        %v1831 = vadd.f32 %v1660, %v1807
        %v1832 = vadd.f32 %v1661, %v1810
        %v1833 = vadd.f32 %v1662, %v1815
        %v1834 = vadd.f32 %v1663, %v1818
        %v1835 = vadd.f32 %v1664, %v1823
        %v1836 = vadd.f32 %v1665, %v1826
        %v1837 = vld [vmem:[%s1666] sm:$0xf]
        %v1838 = vld [vmem:[%s1666 + $0x4] sm:$0x1]
        %v1839 = vld [vmem:[%s1666 + $0x8] sm:$0xf]
        %v1840 = vld [vmem:[%s1666 + $0xc] sm:$0x1]
        %v1841 = vld [vmem:[%s1666 + $0x10] sm:$0xf]
        %v1842 = vld [vmem:[%s1666 + $0x14] sm:$0x1]
        %v1843 = vld [vmem:[%s1666 + $0x18] sm:$0xf]
        %v1844 = vld [vmem:[%s1666 + $0x1c] sm:$0x1]
        %v1845 = vld [vmem:[%s1666 + $0x20] sm:$0xf]
        %v1846 = vld [vmem:[%s1666 + $0x24] sm:$0x1]
        %v1847 = vld [vmem:[%s1666 + $0x28] sm:$0xf]
        %v1848 = vld [vmem:[%s1666 + $0x2c] sm:$0x1]
        %v1849 = vld [vmem:[%s1666 + $0x30] sm:$0xf]
        %v1850 = vld [vmem:[%s1666 + $0x34] sm:$0x1]
        %v1851 = vld [vmem:[%s1666 + $0x38] sm:$0xf]
        %v1852 = vld [vmem:[%s1666 + $0x3c] sm:$0x1]
        %v1854 = vshrl.u32 %v1837, 16
        %v1856 = vrot.slane %v1854, 4
        %v1857 = vshll.u32 %v1837, 16
        %v1859 = vrot.slane %v1857, 5
        %v1860 = vor.u32 %v1856, %v1859
        %v1861 = vrot.slane %v1860, 4
        %v1863 = vshll.u32 %v1838, 16
        %v1865 = vrot.slane %v1863, 5
        %v1866 = vsel %vm394, %v1861, %v1865
        %v1868 = vshrl.u32 %v1839, 16
        %v1870 = vrot.slane %v1868, 4
        %v1871 = vshll.u32 %v1839, 16
        %v1873 = vrot.slane %v1871, 5
        %v1874 = vor.u32 %v1870, %v1873
        %v1875 = vrot.slane %v1874, 4
        %v1877 = vshll.u32 %v1840, 16
        %v1879 = vrot.slane %v1877, 5
        %v1880 = vsel %vm394, %v1875, %v1879
        %v1882 = vshrl.u32 %v1841, 16
        %v1884 = vrot.slane %v1882, 4
        %v1885 = vshll.u32 %v1841, 16
        %v1887 = vrot.slane %v1885, 5
        %v1888 = vor.u32 %v1884, %v1887
        %v1889 = vrot.slane %v1888, 4
        %v1891 = vshll.u32 %v1842, 16
        %v1893 = vrot.slane %v1891, 5
        %v1894 = vsel %vm394, %v1889, %v1893
        %v1896 = vshrl.u32 %v1843, 16
        %v1898 = vrot.slane %v1896, 4
        %v1899 = vshll.u32 %v1843, 16
        %v1901 = vrot.slane %v1899, 5
        %v1902 = vor.u32 %v1898, %v1901
        %v1903 = vrot.slane %v1902, 4
        %v1905 = vshll.u32 %v1844, 16
        %v1907 = vrot.slane %v1905, 5
        %v1908 = vsel %vm394, %v1903, %v1907
        %v1910 = vshrl.u32 %v1845, 16
        %v1912 = vrot.slane %v1910, 4
        %v1913 = vshll.u32 %v1845, 16
        %v1915 = vrot.slane %v1913, 5
        %v1916 = vor.u32 %v1912, %v1915
        %v1917 = vrot.slane %v1916, 4
        %v1919 = vshll.u32 %v1846, 16
        %v1921 = vrot.slane %v1919, 5
        %v1922 = vsel %vm394, %v1917, %v1921
        %v1924 = vshrl.u32 %v1847, 16
        %v1926 = vrot.slane %v1924, 4
        %v1927 = vshll.u32 %v1847, 16
        %v1929 = vrot.slane %v1927, 5
        %v1930 = vor.u32 %v1926, %v1929
        %v1931 = vrot.slane %v1930, 4
        %v1933 = vshll.u32 %v1848, 16
        %v1935 = vrot.slane %v1933, 5
        %v1936 = vsel %vm394, %v1931, %v1935
        %v1938 = vshrl.u32 %v1849, 16
        %v1940 = vrot.slane %v1938, 4
        %v1941 = vshll.u32 %v1849, 16
        %v1943 = vrot.slane %v1941, 5
        %v1944 = vor.u32 %v1940, %v1943
        %v1945 = vrot.slane %v1944, 4
        %v1947 = vshll.u32 %v1850, 16
        %v1949 = vrot.slane %v1947, 5
        %v1950 = vsel %vm394, %v1945, %v1949
        %v1952 = vshrl.u32 %v1851, 16
        %v1954 = vrot.slane %v1952, 4
        %v1955 = vshll.u32 %v1851, 16
        %v1957 = vrot.slane %v1955, 5
        %v1958 = vor.u32 %v1954, %v1957
        %v1959 = vrot.slane %v1958, 4
        %v1961 = vshll.u32 %v1852, 16
        %v1963 = vrot.slane %v1961, 5
        %v1964 = vsel %vm394, %v1959, %v1963
        %s1965 = scalar_lea.vmem %s331, 448
        %v1966 = vld [vmem:[%s1965] sm:$0xf]
        %v1967 = vld [vmem:[%s1965 + $0x4] sm:$0xf]
        %v1968 = vld [vmem:[%s1965 + $0x8] sm:$0xf]
        %v1969 = vld [vmem:[%s1965 + $0xc] sm:$0xf]
        %v1970 = vld [vmem:[%s1965 + $0x10] sm:$0xf]
        %v1971 = vld [vmem:[%s1965 + $0x14] sm:$0xf]
        %v1972 = vld [vmem:[%s1965 + $0x18] sm:$0xf]
        %v1973 = vld [vmem:[%s1965 + $0x1c] sm:$0xf]
        %v1974 = vld [vmem:[%s1965 + $0x20] sm:$0xf]
        %v1975 = vld [vmem:[%s1965 + $0x24] sm:$0xf]
        %v1976 = vld [vmem:[%s1965 + $0x28] sm:$0xf]
        %v1977 = vld [vmem:[%s1965 + $0x2c] sm:$0xf]
        %v1978 = vld [vmem:[%s1965 + $0x30] sm:$0xf]
        %v1979 = vld [vmem:[%s1965 + $0x34] sm:$0xf]
        %v1980 = vld [vmem:[%s1965 + $0x38] sm:$0xf]
        %v1981 = vld [vmem:[%s1965 + $0x3c] sm:$0xf]
        %v1982 = vunpack.c.l.b16 %v1866
        %v1983 = vunpack.c.l.b16 %v1880
        %v1984 = vunpack.c.l.b16 %v1894
        %v1985 = vunpack.c.l.b16 %v1908
        %v1986 = vunpack.c.l.b16 %v1922
        %v1987 = vunpack.c.l.b16 %v1936
        %v1988 = vunpack.c.l.b16 %v1950
        %v1989 = vunpack.c.l.b16 %v1964
        %v1990 = vpack.c.b16 %v1983, %v1982
        %v1991 = vpack.c.b16 %v1985, %v1984
        %v1992 = vpack.c.b16 %v1987, %v1986
        %v1993 = vpack.c.b16 %v1989, %v1988
        %v2014 = vunpack.c.l.b16 %v1966
        %v2015 = vunpack.c.l.b16 %v1967
        %v2016 = vunpack.c.l.b16 %v1968
        %v2017 = vunpack.c.l.b16 %v1969
        %v2018 = vunpack.c.l.b16 %v1970
        %v2019 = vunpack.c.l.b16 %v1971
        %v2020 = vunpack.c.l.b16 %v1972
        %v2021 = vunpack.c.l.b16 %v1973
        %v2022 = vunpack.c.l.b16 %v1974
        %v2023 = vunpack.c.l.b16 %v1975
        %v2024 = vunpack.c.l.b16 %v1976
        %v2025 = vunpack.c.l.b16 %v1977
        %v2026 = vunpack.c.l.b16 %v1978
        %v2027 = vunpack.c.l.b16 %v1979
        %v2028 = vunpack.c.l.b16 %v1980
        %v2029 = vunpack.c.l.b16 %v1981
        %v2030 = vpack.c.b16 %v2015, %v2014
        %v2031 = vpack.c.b16 %v2017, %v2016
        %v2032 = vpack.c.b16 %v2019, %v2018
        %v2033 = vpack.c.b16 %v2021, %v2020
        %v2034 = vpack.c.b16 %v2023, %v2022
        %v2035 = vpack.c.b16 %v2025, %v2024
        %v2036 = vpack.c.b16 %v2027, %v2026
        %v2037 = vpack.c.b16 %v2029, %v2028
        %2046 = vmatprep.subr.bf16.mxu0 0
        %2047 = vmatpush1.bf16.msra.mxu0 %v2030
        %2048 = vmatprep.subr.bf16.mxu0 0
        %2049 = vmatpush1.bf16.msra.mxu0 %v2031
        %2050 = vmatprep.subr.bf16.mxu0 0
        %2051 = vmatpush1.bf16.msra.mxu0 %v2032
        %2052 = vmatprep.subr.bf16.mxu0 0
        %2053 = vmatpush1.bf16.msra.mxu0 %v2033
        %2054 = vmatprep.subr.bf16.mxu0 0
        %2055 = vmatpush1.bf16.msra.mxu0 %v2034
        %2056 = vmatprep.subr.bf16.mxu0 0
        %2057 = vmatpush1.bf16.msra.mxu0 %v2035
        %2058 = vmatprep.subr.bf16.mxu0 0
        %2059 = vmatpush1.bf16.msra.mxu0 %v2036
        %2060 = vmatprep.subr.bf16.mxu0 0
        %2061 = vmatpush1.bf16.msra.mxu0 %v2037
        %2062 = vmatprep.subr.bf16.mxu0 0
        %2063 = vmatpush1.bf16.msra.mxu0 0
        %2064 = vmatprep.subr.bf16.mxu0 0
        %2065 = vmatpush1.bf16.msra.mxu0 0
        %2066 = vmatprep.subr.bf16.mxu0 0
        %2067 = vmatpush1.bf16.msra.mxu0 0
        %2068 = vmatprep.subr.bf16.mxu0 0
        %2069 = vmatpush1.bf16.msra.mxu0 0
        %2070 = vmatprep.subr.bf16.mxu0 0
        %2071 = vmatpush1.bf16.msra.mxu0 0
        %2072 = vmatprep.subr.bf16.mxu0 0
        %2073 = vmatpush1.bf16.msra.mxu0 0
        %2074 = vmatprep.subr.bf16.mxu0 0
        %2075 = vmatpush1.bf16.msra.mxu0 0
        %2076 = vmatprep.subr.bf16.mxu0 0
        %2077 = vmatpush1.bf16.msra.mxu0 0
        %2078 = vmatprep.mubr.bf16.mxu0 0
        %2079 = vmatmul.mubr.bf16.gmra.mrb[0].mxu0 %v1990
        %v2080 = vpop.f32.mrb[0].mxu0
        %v2081 = vadd.f32 0.0, %v2080
        %v2082 = vpop.f32.mrb[0].mxu0
        %v2083 = vpop.f32.mrb[0].mxu0
        %v2084 = vadd.f32 0.0, %v2083
        %v2085 = vpop.f32.mrb[0].mxu0
        %2086 = vmatprep.mubr.bf16.mxu0 0
        %2087 = vmatmul.mubr.bf16.gmra.mrb[0].mxu0 %v1991
        %v2088 = vpop.f32.mrb[0].mxu0
        %v2089 = vadd.f32 0.0, %v2088
        %v2090 = vpop.f32.mrb[0].mxu0
        %v2091 = vpop.f32.mrb[0].mxu0
        %v2092 = vadd.f32 0.0, %v2091
        %v2093 = vpop.f32.mrb[0].mxu0
        %2094 = vmatprep.mubr.bf16.mxu0 0
        %2095 = vmatmul.mubr.bf16.gmra.mrb[0].mxu0 %v1992
        %v2096 = vpop.f32.mrb[0].mxu0
        %v2097 = vadd.f32 0.0, %v2096
        %v2098 = vpop.f32.mrb[0].mxu0
        %v2099 = vpop.f32.mrb[0].mxu0
        %v2100 = vadd.f32 0.0, %v2099
        %v2101 = vpop.f32.mrb[0].mxu0
        %2102 = vmatprep.mubr.bf16.mxu0 0
        %2103 = vmatmul.mubr.bf16.gmra.mrb[0].mxu0 %v1993
        %v2104 = vpop.f32.mrb[0].mxu0
        %v2105 = vadd.f32 0.0, %v2104
        %v2106 = vpop.f32.mrb[0].mxu0
        %v2107 = vpop.f32.mrb[0].mxu0
        %v2108 = vadd.f32 0.0, %v2107
        %v2109 = vpop.f32.mrb[0].mxu0
        %2110 = vdwg.mxu0
        %v2111 = vadd.f32 %v1829, %v2081
        %v2112 = vadd.f32 %v1830, %v2084
        %v2113 = vadd.f32 %v1831, %v2089
        %v2114 = vadd.f32 %v1832, %v2092
        %v2115 = vadd.f32 %v1833, %v2097
        %v2116 = vadd.f32 %v1834, %v2100
        %v2117 = vadd.f32 %v1835, %v2105
        %v2118 = vadd.f32 %v1836, %v2108
        %v2119 = vld [vmem:[%s1666] sm:$0xe]
        %v2120 = vld [vmem:[%s1666 + $0x8] sm:$0xe]
        %v2121 = vld [vmem:[%s1666 + $0x10] sm:$0xe]
        %v2122 = vld [vmem:[%s1666 + $0x18] sm:$0xe]
        %v2123 = vld [vmem:[%s1666 + $0x20] sm:$0xe]
        %v2124 = vld [vmem:[%s1666 + $0x28] sm:$0xe]
        %v2125 = vld [vmem:[%s1666 + $0x30] sm:$0xe]
        %v2126 = vld [vmem:[%s1666 + $0x38] sm:$0xe]
        %v2143 = vrot.slane %v2119, 5
        %v2144 = vrot.slane %v2143, 4
        %v2145 = vrot.slane %v1838, 5
        %v2146 = vsel %vm816, %v2144, %v2145
        %v2147 = vrot.slane %v2120, 5
        %v2148 = vrot.slane %v2147, 4
        %v2149 = vrot.slane %v1840, 5
        %v2150 = vsel %vm816, %v2148, %v2149
        %v2151 = vrot.slane %v2121, 5
        %v2152 = vrot.slane %v2151, 4
        %v2153 = vrot.slane %v1842, 5
        %v2154 = vsel %vm816, %v2152, %v2153
        %v2155 = vrot.slane %v2122, 5
        %v2156 = vrot.slane %v2155, 4
        %v2157 = vrot.slane %v1844, 5
        %v2158 = vsel %vm816, %v2156, %v2157
        %v2159 = vrot.slane %v2123, 5
        %v2160 = vrot.slane %v2159, 4
        %v2161 = vrot.slane %v1846, 5
        %v2162 = vsel %vm816, %v2160, %v2161
        %v2163 = vrot.slane %v2124, 5
        %v2164 = vrot.slane %v2163, 4
        %v2165 = vrot.slane %v1848, 5
        %v2166 = vsel %vm816, %v2164, %v2165
        %v2167 = vrot.slane %v2125, 5
        %v2168 = vrot.slane %v2167, 4
        %v2169 = vrot.slane %v1850, 5
        %v2170 = vsel %vm816, %v2168, %v2169
        %v2171 = vrot.slane %v2126, 5
        %v2172 = vrot.slane %v2171, 4
        %v2173 = vrot.slane %v1852, 5
        %v2174 = vsel %vm816, %v2172, %v2173
        %s2175 = scalar_lea.vmem %s331, 512
        %v2176 = vld [vmem:[%s2175] sm:$0xf]
        %v2177 = vld [vmem:[%s2175 + $0x4] sm:$0xf]
        %v2178 = vld [vmem:[%s2175 + $0x8] sm:$0xf]
        %v2179 = vld [vmem:[%s2175 + $0xc] sm:$0xf]
        %v2180 = vld [vmem:[%s2175 + $0x10] sm:$0xf]
        %v2181 = vld [vmem:[%s2175 + $0x14] sm:$0xf]
        %v2182 = vld [vmem:[%s2175 + $0x18] sm:$0xf]
        %v2183 = vld [vmem:[%s2175 + $0x1c] sm:$0xf]
        %v2184 = vld [vmem:[%s2175 + $0x20] sm:$0xf]
        %v2185 = vld [vmem:[%s2175 + $0x24] sm:$0xf]
        %v2186 = vld [vmem:[%s2175 + $0x28] sm:$0xf]
        %v2187 = vld [vmem:[%s2175 + $0x2c] sm:$0xf]
        %v2188 = vld [vmem:[%s2175 + $0x30] sm:$0xf]
        %v2189 = vld [vmem:[%s2175 + $0x34] sm:$0xf]
        %v2190 = vld [vmem:[%s2175 + $0x38] sm:$0xf]
        %v2191 = vld [vmem:[%s2175 + $0x3c] sm:$0xf]
        %v2192 = vunpack.c.l.b16 %v2146
        %v2193 = vunpack.c.l.b16 %v2150
        %v2194 = vunpack.c.l.b16 %v2154
        %v2195 = vunpack.c.l.b16 %v2158
        %v2196 = vunpack.c.l.b16 %v2162
        %v2197 = vunpack.c.l.b16 %v2166
        %v2198 = vunpack.c.l.b16 %v2170
        %v2199 = vunpack.c.l.b16 %v2174
        %v2200 = vpack.c.b16 %v2193, %v2192
        %v2201 = vpack.c.b16 %v2195, %v2194
        %v2202 = vpack.c.b16 %v2197, %v2196
        %v2203 = vpack.c.b16 %v2199, %v2198
        %v2224 = vunpack.c.l.b16 %v2176
        %v2225 = vunpack.c.l.b16 %v2177
        %v2226 = vunpack.c.l.b16 %v2178
        %v2227 = vunpack.c.l.b16 %v2179
        %v2228 = vunpack.c.l.b16 %v2180
        %v2229 = vunpack.c.l.b16 %v2181
        %v2230 = vunpack.c.l.b16 %v2182
        %v2231 = vunpack.c.l.b16 %v2183
        %v2232 = vunpack.c.l.b16 %v2184
        %v2233 = vunpack.c.l.b16 %v2185
        %v2234 = vunpack.c.l.b16 %v2186
        %v2235 = vunpack.c.l.b16 %v2187
        %v2236 = vunpack.c.l.b16 %v2188
        %v2237 = vunpack.c.l.b16 %v2189
        %v2238 = vunpack.c.l.b16 %v2190
        %v2239 = vunpack.c.l.b16 %v2191
        %v2240 = vpack.c.b16 %v2225, %v2224
        %v2241 = vpack.c.b16 %v2227, %v2226
        %v2242 = vpack.c.b16 %v2229, %v2228
        %v2243 = vpack.c.b16 %v2231, %v2230
        %v2244 = vpack.c.b16 %v2233, %v2232
        %v2245 = vpack.c.b16 %v2235, %v2234
        %v2246 = vpack.c.b16 %v2237, %v2236
        %v2247 = vpack.c.b16 %v2239, %v2238
        %2256 = vmatprep.subr.bf16.mxu0 0
        %2257 = vmatpush1.bf16.msra.mxu0 %v2240
        %2258 = vmatprep.subr.bf16.mxu0 0
        %2259 = vmatpush1.bf16.msra.mxu0 %v2241
        %2260 = vmatprep.subr.bf16.mxu0 0
        %2261 = vmatpush1.bf16.msra.mxu0 %v2242
        %2262 = vmatprep.subr.bf16.mxu0 0
        %2263 = vmatpush1.bf16.msra.mxu0 %v2243
        %2264 = vmatprep.subr.bf16.mxu0 0
        %2265 = vmatpush1.bf16.msra.mxu0 %v2244
        %2266 = vmatprep.subr.bf16.mxu0 0
        %2267 = vmatpush1.bf16.msra.mxu0 %v2245
        %2268 = vmatprep.subr.bf16.mxu0 0
        %2269 = vmatpush1.bf16.msra.mxu0 %v2246
        %2270 = vmatprep.subr.bf16.mxu0 0
        %2271 = vmatpush1.bf16.msra.mxu0 %v2247
        %2272 = vmatprep.subr.bf16.mxu0 0
        %2273 = vmatpush1.bf16.msra.mxu0 0
        %2274 = vmatprep.subr.bf16.mxu0 0
        %2275 = vmatpush1.bf16.msra.mxu0 0
        %2276 = vmatprep.subr.bf16.mxu0 0
        %2277 = vmatpush1.bf16.msra.mxu0 0
        %2278 = vmatprep.subr.bf16.mxu0 0
        %2279 = vmatpush1.bf16.msra.mxu0 0
        %2280 = vmatprep.subr.bf16.mxu0 0
        %2281 = vmatpush1.bf16.msra.mxu0 0
        %2282 = vmatprep.subr.bf16.mxu0 0
        %2283 = vmatpush1.bf16.msra.mxu0 0
        %2284 = vmatprep.subr.bf16.mxu0 0
        %2285 = vmatpush1.bf16.msra.mxu0 0
        %2286 = vmatprep.subr.bf16.mxu0 0
        %2287 = vmatpush1.bf16.msra.mxu0 0
        %2288 = vmatprep.mubr.bf16.mxu0 0
        %2289 = vmatmul.mubr.bf16.gmra.mrb[0].mxu0 %v2200
        %v2290 = vpop.f32.mrb[0].mxu0
        %v2291 = vadd.f32 0.0, %v2290
        %v2292 = vpop.f32.mrb[0].mxu0
        %v2293 = vpop.f32.mrb[0].mxu0
        %v2294 = vadd.f32 0.0, %v2293
        %v2295 = vpop.f32.mrb[0].mxu0
        %2296 = vmatprep.mubr.bf16.mxu0 0
        %2297 = vmatmul.mubr.bf16.gmra.mrb[0].mxu0 %v2201
        %v2298 = vpop.f32.mrb[0].mxu0
        %v2299 = vadd.f32 0.0, %v2298
        %v2300 = vpop.f32.mrb[0].mxu0
        %v2301 = vpop.f32.mrb[0].mxu0
        %v2302 = vadd.f32 0.0, %v2301
        %v2303 = vpop.f32.mrb[0].mxu0
        %2304 = vmatprep.mubr.bf16.mxu0 0
        %2305 = vmatmul.mubr.bf16.gmra.mrb[0].mxu0 %v2202
        %v2306 = vpop.f32.mrb[0].mxu0
        %v2307 = vadd.f32 0.0, %v2306
        %v2308 = vpop.f32.mrb[0].mxu0
        %v2309 = vpop.f32.mrb[0].mxu0
        %v2310 = vadd.f32 0.0, %v2309
        %v2311 = vpop.f32.mrb[0].mxu0
        %2312 = vmatprep.mubr.bf16.mxu0 0
        %2313 = vmatmul.mubr.bf16.gmra.mrb[0].mxu0 %v2203
        %v2314 = vpop.f32.mrb[0].mxu0
        %v2315 = vadd.f32 0.0, %v2314
        %v2316 = vpop.f32.mrb[0].mxu0
        %v2317 = vpop.f32.mrb[0].mxu0
        %v2318 = vadd.f32 0.0, %v2317
        %v2319 = vpop.f32.mrb[0].mxu0
        %2320 = vdwg.mxu0
        %v2321 = vadd.f32 %v2111, %v2291
        %v2322 = vadd.f32 %v2112, %v2294
        %v2323 = vadd.f32 %v2113, %v2299
        %v2324 = vadd.f32 %v2114, %v2302
        %v2325 = vadd.f32 %v2115, %v2307
        %v2326 = vadd.f32 %v2116, %v2310
        %v2327 = vadd.f32 %v2117, %v2315
        %v2328 = vadd.f32 %v2118, %v2318
        %v2329 = vld [vmem:[#allocation2] sm:$0xff]
        %v2330 = vld [vmem:[#allocation2 + $0x8] sm:$0xff]
        %v2331 = vld [vmem:[#allocation2 + $0x10] sm:$0xff]
        %v2332 = vld [vmem:[#allocation2 + $0x18] sm:$0xff]
        %v2333 = vld [vmem:[#allocation2 + $0x20] sm:$0xff]
        %v2334 = vld [vmem:[#allocation2 + $0x28] sm:$0xff]
        %v2335 = vld [vmem:[#allocation2 + $0x30] sm:$0xff]
        %v2336 = vld [vmem:[#allocation2 + $0x38] sm:$0xff]
        %v2337 = vadd.f32 %v2329, %v2321
        %v2338 = vadd.f32 %v2330, %v2322
        %v2339 = vadd.f32 %v2331, %v2323
        %v2340 = vadd.f32 %v2332, %v2324
        %v2341 = vadd.f32 %v2333, %v2325
        %v2342 = vadd.f32 %v2334, %v2326
        %v2343 = vadd.f32 %v2335, %v2327
        %v2344 = vadd.f32 %v2336, %v2328
        %2345 = vst [vmem:[#allocation2] sm:$0xff] %v2337
        %2346 = vst [vmem:[#allocation2 + $0x8] sm:$0xff] %v2338
        %2347 = vst [vmem:[#allocation2 + $0x10] sm:$0xff] %v2339
        %2348 = vst [vmem:[#allocation2 + $0x18] sm:$0xff] %v2340
        %2349 = vst [vmem:[#allocation2 + $0x20] sm:$0xff] %v2341
        %2350 = vst [vmem:[#allocation2 + $0x28] sm:$0xff] %v2342
        %2351 = vst [vmem:[#allocation2 + $0x30] sm:$0xff] %v2343
        %2352 = vst [vmem:[#allocation2 + $0x38] sm:$0xff] %v2344
        // Predicated region
        $region45: #{_lambda_.9} parent=39 // pred_check
          %p2353 = pneg %p348
        $region46: #{_lambda_.9} parent=39 // pred_check_branch
          %2355 = sbr.rel (%p2353) target = $region48
        $region47: #{_lambda_.9} parent=39 // pred_region
          %v2356 = vld [vmem:[#allocation2] sm:$0xff]
          %v2357 = vld [vmem:[#allocation2 + $0x8] sm:$0xff]
          %v2358 = vld [vmem:[#allocation2 + $0x10] sm:$0xff]
          %v2359 = vld [vmem:[#allocation2 + $0x18] sm:$0xff]
          %v2360 = vld [vmem:[#allocation2 + $0x20] sm:$0xff]
          %v2361 = vld [vmem:[#allocation2 + $0x28] sm:$0xff]
          %v2362 = vld [vmem:[#allocation2 + $0x30] sm:$0xff]
          %v2363 = vld [vmem:[#allocation2 + $0x38] sm:$0xff]
          %v2364 = vld [vmem:[%s335] sm:$0x1]
          %v2366 = vlaneseq
          %v2367 = vshrl.u32 %v2366, 7
          %v2368 = vsub.s32 0, %v2367
          %v2369 = vrot.slane %v2364, %v2368
          %v2371 = vmul.f32 %v2356, %v2369
          %v2372 = vmul.f32 %v2357, %v2369
          %v2373 = vmul.f32 %v2358, %v2369
          %v2374 = vmul.f32 %v2359, %v2369
          %v2375 = vmul.f32 %v2360, %v2369
          %v2376 = vmul.f32 %v2361, %v2369
          %v2377 = vmul.f32 %v2362, %v2369
          %v2378 = vmul.f32 %v2363, %v2369
          %v2379 = vld [vmem:[%s338] sm:$0x1]
          %v2381 = vlaneseq
          %v2382 = vshrl.u32 %v2381, 7
          %v2383 = vsub.s32 0, %v2382
          %v2384 = vrot.slane %v2379, %v2383
          %v2386 = vadd.f32 %v2371, %v2384
          %v2387 = vadd.f32 %v2372, %v2384
          %v2388 = vadd.f32 %v2373, %v2384
          %v2389 = vadd.f32 %v2374, %v2384
          %v2390 = vadd.f32 %v2375, %v2384
          %v2391 = vadd.f32 %v2376, %v2384
          %v2392 = vadd.f32 %v2377, %v2384
          %v2393 = vadd.f32 %v2378, %v2384
          %v2394 = vld [vmem:[%s346] sm:$0xf]
          %v2395 = vld [vmem:[%s346 + $0x4] sm:$0xf]
          %v2396 = vld [vmem:[%s346 + $0x8] sm:$0xf]
          %v2397 = vld [vmem:[%s346 + $0xc] sm:$0xf]
          %v2398 = vld [vmem:[%s346 + $0x10] sm:$0xf]
          %v2399 = vld [vmem:[%s346 + $0x14] sm:$0xf]
          %v2400 = vld [vmem:[%s346 + $0x18] sm:$0xf]
          %v2401 = vld [vmem:[%s346 + $0x1c] sm:$0xf]
          %v2402 = vunpack.c.l.bf16 %v2394
          %v2403 = vunpack.c.l.bf16 %v2395
          %v2404 = vunpack.c.l.bf16 %v2396
          %v2405 = vunpack.c.l.bf16 %v2397
          %v2406 = vunpack.c.l.bf16 %v2398
          %v2407 = vunpack.c.l.bf16 %v2399
          %v2408 = vunpack.c.l.bf16 %v2400
          %v2409 = vunpack.c.l.bf16 %v2401
          %v2410 = vadd.f32 %v2386, %v2402
          %v2411 = vadd.f32 %v2387, %v2403
          %v2412 = vadd.f32 %v2388, %v2404
          %v2413 = vadd.f32 %v2389, %v2405
          %v2414 = vadd.f32 %v2390, %v2406
          %v2415 = vadd.f32 %v2391, %v2407
          %v2416 = vadd.f32 %v2392, %v2408
          %v2417 = vadd.f32 %v2393, %v2409
          %v2418 = vmax.f32 %v2410, 0.0
          %v2419 = vmax.f32 %v2411, 0.0
          %v2420 = vmax.f32 %v2412, 0.0
          %v2421 = vmax.f32 %v2413, 0.0
          %v2422 = vmax.f32 %v2414, 0.0
          %v2423 = vmax.f32 %v2415, 0.0
          %v2424 = vmax.f32 %v2416, 0.0
          %v2425 = vmax.f32 %v2417, 0.0
          %2426 = vst [vmem:[%s315] sm:$0xff] %v2418
          %2427 = vst [vmem:[%s315 + $0x8] sm:$0xff] %v2419
          %2428 = vst [vmem:[%s315 + $0x10] sm:$0xff] %v2420
          %2429 = vst [vmem:[%s315 + $0x18] sm:$0xff] %v2421
          %2430 = vst [vmem:[%s315 + $0x20] sm:$0xff] %v2422
          %2431 = vst [vmem:[%s315 + $0x28] sm:$0xff] %v2423
          %2432 = vst [vmem:[%s315 + $0x30] sm:$0xff] %v2424
          %2433 = vst [vmem:[%s315 + $0x38] sm:$0xff] %v2425
        $region48: #{_lambda_.9} parent=39 // pred_fallthru
          _
        %s2434 = sand.u32 %s184, 1
        %s2435 = scalar_lea.sflag [#allocation4], %s2434
        %s2436 = sand.u32 %s184, 1
        %s2437 = smul.addr %s2436, 64
        %s2438 = scalar_lea.vmem [#allocation3], %s2437
        // Predicated region
        $region49: #{_lambda_.9} parent=39 // pred_check
          %p2439 = pneg %p194
        $region50: #{_lambda_.9} parent=39 // pred_check_branch
          %2441 = sbr.rel (%p2439) target = $region52
        $region51: #{_lambda_.9} parent=39 // pred_region
          %s2443 = ssub.s32 1024, 1024
          %2444 = vsyncadd %s2435, %s2443
          %s2445 = smul.addr %s24, 8
          %s2446 = sadd.s32 %s25, %s2445
          %s2447 = smul.addr %s2446, 128
          %s2448 = scalar_lea.hbm %s5, %s2447
          %s2449 = sshll.u32 %s2438, 4
          %s2450 = int_to_ptr.vmem [resolvable:$true] %s2449
          %2455 = dma.vmem_to_hbm [thread:$0]  %s2450, 1024, %s2448, %s2435, 128, 128, 8
        $region52: #{_lambda_.9} parent=39 // pred_fallthru
          _
      $region40: #{_lambda_.9} parent=5 // pred_fallthru
        _
      %p2456 = scmp.le.s32.totalorder 2, %s14
      // Predicated region
      $region53: #{_lambda_.9} parent=5 // pred_check
        %p2457 = pneg %p2456
      $region54: #{_lambda_.9} parent=5 // pred_check_branch
        %2459 = sbr.rel (%p2457) target = $region56
      $region55: #{_lambda_.9} parent=5 // pred_region
        %s2460 = ssub.s32 %s14, 2
        // Predicated region
        $region57: #{_lambda_.9} parent=55 // pred_check
          %p2461 = pneg %p200
        $region58: #{_lambda_.9} parent=55 // pred_check_branch
          %2463 = sbr.rel (%p2461) target = $region60
        $region59: #{_lambda_.9} parent=55 // pred_region
          %s2464 = sand.u32 %s185, 1
          %s2465 = scalar_lea.sflag [#allocation4], %s2464
          %s2466 = sand.u32 %s185, 1
          %s2467 = smul.addr %s2466, 64
          %s2468 = scalar_lea.vmem [#allocation3], %s2467
          %2469 = dma.done %s2465, 1024
        $region60: #{_lambda_.9} parent=55 // pred_fallthru
          _
      $region56: #{_lambda_.9} parent=5 // pred_fallthru
        _
    $region6: #{_lambda_.9} parent=1 // loop_footer
      %s18 = sadd.s32 1, %s14
    $region7: #{_lambda_.9} parent=1 // loop_footer_branch
      %13 = sbr.rel target = $region3
    $region8: #{_lambda_.9} parent=1 // loop_exit
      _
    %2470 = vsyncpa [#allocation4], 1
    %s2471 = scalar_lea.sflag [#allocation4], 1
    %2472 = vsyncpa %s2471, 1

</llo_original>
